<compile_context>
chip_gen: v7x
topology: tpu7x:2x2x1
jax: 0.10.0
libtpu: 0.0.40
codegen_flags: <defaults>
</compile_context>

<pallas_src>
import functools

import jax
import jax.numpy as jnp
import numpy as np
from jax import lax
from jax.experimental import pallas as pl
from jax.experimental.pallas import tpu as pltpu

N_BANDS = 8
H1 = 32   # first hidden width of modulation MLP
H2 = 16   # second hidden width of modulation MLP
LANES = 128
MAX_TILE_ROWS = 256  # rows per grid tile (256*128*4B = 128 KiB/tile)


def _sigmoid(x):
    # sigmoid(x) = 0.5*(1 + tanh(x/2)); single EUP op, no divide.
    return 0.5 * (jnp.tanh(0.5 * x) + 1.0)


def _spectral_filter_kernel(
    x_ref,        # (TILE_R, 128) VMEM : padded eigenvalues tile
    bnd_ref,      # (n_bands+1,) SMEM  : band boundaries [0, sorted..., 1]
    bresp_ref,    # (n_bands,)   SMEM  : sigmoid(band_responses)
    w1_ref,       # (H1,)        SMEM  : Linear(1,32) weight (flattened)
    b1_ref,       # (H1,)        SMEM  : Linear(1,32) bias
    w2_ref,       # (H1*H2,)     SMEM  : Linear(32,16) weight, w2[j*H2+k]
    b2_ref,       # (H2,)        SMEM  : Linear(32,16) bias
    w3_ref,       # (H2,)        SMEM  : Linear(16,1) weight
    sc_ref,       # (4,)         SMEM  : [sharpness, modulation_scale, b3, inv_max]
    o_ref,        # (TILE_R, 128) VMEM : final response tile (padded)
    *,
    n_bands: int,
    h1: int,
    h2: int,
):
    sharp = sc_ref[0]
    mod_scale = sc_ref[1]
    b3 = sc_ref[2]
    inv_max = sc_ref[3]

    # normalization: multiply by precomputed 1/(max + 1e-8)
    norm = x_ref[...] * inv_max

    # --- learnable soft frequency bands --------------------------------------
    # s_i = sigmoid(sharp*(norm - bnd[i]));  right transition = 1 - s_{i+1}
    # -> 9 transcendentals instead of 16.
    s_prev = _sigmoid(sharp * (norm - bnd_ref[0]))
    resp = None
    for i in range(n_bands):
        s_next = _sigmoid(sharp * (norm - bnd_ref[i + 1]))
        term = s_prev * (1.0 - s_next) * bresp_ref[i]
        resp = term if resp is None else resp + term
        s_prev = s_next

    # --- modulation MLP: 1 -> 32 -> 16 -> 1, elementwise over the tile -------
    # loop order: each h1_j activation is produced once and immediately
    # accumulated into the 16 h2 accumulators (never materialize 32 slabs).
    h2_acc = [jnp.full_like(norm, b2_ref[k]) for k in range(h2)]
    for j in range(h1):
        h1_j = jnp.maximum(norm * w1_ref[j] + b1_ref[j], 0.0)
        for k in range(h2):
            h2_acc[k] = h2_acc[k] + h1_j * w2_ref[j * h2 + k]

    out = jnp.full_like(norm, b3)
    for k in range(h2):
        out = out + jnp.maximum(h2_acc[k], 0.0) * w3_ref[k]
    modulation = jnp.tanh(out)

    final = resp + mod_scale * modulation
    o_ref[...] = jnp.clip(final, 1e-6, 1.0)


def init_params(key, n_bands=N_BANDS):
    """Deterministic parameter init mirroring the module's __init__ shapes."""
    ks = jax.random.split(key, 6)
    params = {
        "band_boundaries": jnp.linspace(0.0, 1.0, n_bands + 1)[1:-1],
        "band_responses": jnp.ones((n_bands,), jnp.float32) * 0.5,
        "transition_sharpness": jnp.float32(10.0),
        "modulation_strength": jnp.float32(0.1),
        # modulation_net: Linear(1,32) -> ReLU -> Linear(32,16) -> ReLU -> Linear(16,1) -> Tanh
        "w1": jax.random.normal(ks[0], (H1,), jnp.float32) * 0.5,     # Linear(1,32).weight (32,1) flattened
        "b1": jax.random.normal(ks[1], (H1,), jnp.float32) * 0.1,
        "w2": jax.random.normal(ks[2], (H1, H2), jnp.float32) * 0.2,  # = torch weight.T (32,16)
        "b2": jax.random.normal(ks[3], (H2,), jnp.float32) * 0.1,
        "w3": jax.random.normal(ks[4], (H2,), jnp.float32) * 0.2,     # Linear(16,1).weight (1,16) flattened
        "b3": jax.random.normal(ks[5], (), jnp.float32) * 0.1,
    }
    return params


def multiscale_spectral_filter(eigenvalues, params):
    """Pallas-backed forward pass. eigenvalues: (N,) float32 -> (N,) float32."""
    eigenvalues = eigenvalues.astype(jnp.float32)
    n = eigenvalues.shape[0]

    # ---- plain-JAX glue on the (tiny) parameters ----------------------------
    sorted_b = jnp.sort(params["band_boundaries"])
    boundaries = jnp.concatenate(
        [jnp.zeros((1,), jnp.float32), sorted_b, jnp.ones((1,), jnp.float32)]
    )  # (n_bands+1,)
    sharpness = jnp.abs(params["transition_sharpness"]) + 1.0
    band_resp_sig = jax.nn.sigmoid(params["band_responses"])
    mod_scale = jax.nn.sigmoid(params["modulation_strength"])
    # global max hoisted out of the kernel; pass reciprocal so the kernel
    # only does a broadcast multiply.
    maxv = jnp.max(eigenvalues) + 1e-8
    inv_max = 1.0 / maxv
    scalars = jnp.stack(
        [sharpness, mod_scale, params["b3"], inv_max]
    ).astype(jnp.float32)
    w2_flat = params["w2"].reshape(-1)  # w2_flat[j*H2 + k]

    # ---- pad & reshape eigenvalues to the (rows, 128) slab, tiled over rows --
    rows_needed = max(8, 8 * pl.cdiv(n, 8 * LANES))   # multiple of 8 sublanes
    tile_r = min(MAX_TILE_ROWS, rows_needed)
    rows = tile_r * pl.cdiv(rows_needed, tile_r)
    padded = rows * LANES
    x2d = jnp.pad(eigenvalues, (0, padded - n)).reshape(rows, LANES)

    kernel = functools.partial(
        _spectral_filter_kernel,
        n_bands=N_BANDS,
        h1=H1,
        h2=H2,
    )

    smem = pl.BlockSpec(memory_space=pltpu.MemorySpace.SMEM)
    tile_spec = pl.BlockSpec((tile_r, LANES), lambda i: (i, 0))

    out2d = pl.pallas_call(
        kernel,
        out_shape=jax.ShapeDtypeStruct((rows, LANES), jnp.float32),
        grid=(rows // tile_r,),
        in_specs=[tile_spec, smem, smem, smem, smem, smem, smem, smem, smem],
        out_specs=tile_spec,
        compiler_params=pltpu.CompilerParams(
            dimension_semantics=("parallel",),
        ),
    )(
        x2d,
        boundaries,
        band_resp_sig,
        params["w1"],
        params["b1"],
        w2_flat,
        params["b2"],
        params["w3"],
        scalars,
    )
    return out2d.reshape(-1)[:n]


def reference_forward(eigenvalues, params):
    """Pure-JAX reference mirroring the PyTorch forward exactly."""
    eig = eigenvalues.astype(jnp.float32)
    maxv = jnp.max(eig) + 1e-8
    norm = eig / maxv
    sorted_b = jnp.sort(params["band_boundaries"])
    boundaries = jnp.concatenate([jnp.zeros((1,)), sorted_b, jnp.ones((1,))])
    sharp = jnp.abs(params["transition_sharpness"]) + 1.0
    bresp = jax.nn.sigmoid(params["band_responses"])
    resp = jnp.zeros_like(norm)
    for i in range(N_BANDS):
        lt = jax.nn.sigmoid(sharp * (norm - boundaries[i]))
        rt = jax.nn.sigmoid(sharp * (boundaries[i + 1] - norm))
        resp = resp + lt * rt * bresp[i]
    h1 = jax.nn.relu(norm[:, None] * params["w1"][None, :] + params["b1"])
    h2 = jax.nn.relu(h1 @ params["w2"] + params["b2"])
    mod = jnp.tanh(h2 @ params["w3"] + params["b3"])
    final = resp + jax.nn.sigmoid(params["modulation_strength"]) * mod
    return jnp.clip(final, 1e-6, 1.0)


if __name__ == "__main__":
    key = jax.random.PRNGKey(0)
    k_eig, k_par = jax.random.split(key)

    # small synthetic eigenvalue spectrum (e.g. graph Laplacian eigenvalues)
    n = 1000
    eigenvalues = jnp.sort(jax.random.uniform(k_eig, (n,), jnp.float32) * 2.0)

    params = init_params(k_par)

    out = multiscale_spectral_filter(eigenvalues, params)
    out = jax.block_until_ready(out)

    ref = jax.block_until_ready(reference_forward(eigenvalues, params))
    np.testing.assert_allclose(np.asarray(out), np.asarray(ref), rtol=3e-5, atol=3e-5)

    print("KERNEL_OK")
</pallas_src>

<mosaic_0001>
module attributes {stable_mosaic.version = 11 : i64} {
  func.func @_spectral_filter_kernel(%arg0: i32, %arg1: memref<8x128xf32, #tpu.memory_space<vmem>>, %arg2: memref<9xf32, #tpu.memory_space<smem>>, %arg3: memref<8xf32, #tpu.memory_space<smem>>, %arg4: memref<32xf32, #tpu.memory_space<smem>>, %arg5: memref<32xf32, #tpu.memory_space<smem>>, %arg6: memref<512xf32, #tpu.memory_space<smem>>, %arg7: memref<16xf32, #tpu.memory_space<smem>>, %arg8: memref<16xf32, #tpu.memory_space<smem>>, %arg9: memref<4xf32, #tpu.memory_space<smem>>, %arg10: memref<8x128xf32, #tpu.memory_space<vmem>>) attributes {dimension_semantics = [#tpu.dimension_semantics<parallel>], iteration_bounds = array<i64: 1>, scalar_prefetch = 0 : i64, scratch_operands = 0 : i64, tpu.core_type = #tpu.core_type<tc>, window_params = [{transform_indices = @transform_0, window_bounds = array<i64: 8, 128>}, {transform_indices = @transform_1, window_bounds = array<i64: 9>}, {transform_indices = @transform_2, window_bounds = array<i64: 8>}, {transform_indices = @transform_3, window_bounds = array<i64: 32>}, {transform_indices = @transform_4, window_bounds = array<i64: 32>}, {transform_indices = @transform_5, window_bounds = array<i64: 512>}, {transform_indices = @transform_6, window_bounds = array<i64: 16>}, {transform_indices = @transform_7, window_bounds = array<i64: 16>}, {transform_indices = @transform_8, window_bounds = array<i64: 4>}, {transform_indices = @transform_9, window_bounds = array<i64: 8, 128>}]} {
    %c0 = arith.constant 0 : index
    %0 = memref.load %arg9[%c0] : memref<4xf32, #tpu.memory_space<smem>>
    %c1 = arith.constant 1 : index
    %1 = memref.load %arg9[%c1] : memref<4xf32, #tpu.memory_space<smem>>
    %c2 = arith.constant 2 : index
    %2 = memref.load %arg9[%c2] : memref<4xf32, #tpu.memory_space<smem>>
    %c3 = arith.constant 3 : index
    %3 = memref.load %arg9[%c3] : memref<4xf32, #tpu.memory_space<smem>>
    %c0_0 = arith.constant 0 : index
    %c0_1 = arith.constant 0 : index
    %4 = vector.load %arg1[%c0_0, %c0_1] : memref<8x128xf32, #tpu.memory_space<vmem>>, vector<8x128xf32>
    %5 = vector.broadcast %3 : f32 to vector<8x128xf32>
    %6 = arith.mulf %4, %5 : vector<8x128xf32>
    %c0_2 = arith.constant 0 : index
    %7 = memref.load %arg2[%c0_2] : memref<9xf32, #tpu.memory_space<smem>>
    %8 = vector.broadcast %7 : f32 to vector<8x128xf32>
    %9 = arith.subf %6, %8 : vector<8x128xf32>
    %10 = vector.broadcast %0 : f32 to vector<8x128xf32>
    %11 = arith.mulf %10, %9 : vector<8x128xf32>
    %cst = arith.constant 5.000000e-01 : f32
    %12 = vector.broadcast %cst : f32 to vector<8x128xf32>
    %13 = arith.mulf %12, %11 : vector<8x128xf32>
    %14 = math.tanh %13 : vector<8x128xf32>
    %cst_3 = arith.constant 1.000000e+00 : f32
    %15 = vector.broadcast %cst_3 : f32 to vector<8x128xf32>
    %16 = arith.addf %14, %15 : vector<8x128xf32>
    %cst_4 = arith.constant 5.000000e-01 : f32
    %17 = vector.broadcast %cst_4 : f32 to vector<8x128xf32>
    %18 = arith.mulf %17, %16 : vector<8x128xf32>
    %c1_5 = arith.constant 1 : index
    %19 = memref.load %arg2[%c1_5] : memref<9xf32, #tpu.memory_space<smem>>
    %20 = vector.broadcast %19 : f32 to vector<8x128xf32>
    %21 = arith.subf %6, %20 : vector<8x128xf32>
    %22 = vector.broadcast %0 : f32 to vector<8x128xf32>
    %23 = arith.mulf %22, %21 : vector<8x128xf32>
    %cst_6 = arith.constant 5.000000e-01 : f32
    %24 = vector.broadcast %cst_6 : f32 to vector<8x128xf32>
    %25 = arith.mulf %24, %23 : vector<8x128xf32>
    %26 = math.tanh %25 : vector<8x128xf32>
    %cst_7 = arith.constant 1.000000e+00 : f32
    %27 = vector.broadcast %cst_7 : f32 to vector<8x128xf32>
    %28 = arith.addf %26, %27 : vector<8x128xf32>
    %cst_8 = arith.constant 5.000000e-01 : f32
    %29 = vector.broadcast %cst_8 : f32 to vector<8x128xf32>
    %30 = arith.mulf %29, %28 : vector<8x128xf32>
    %cst_9 = arith.constant 1.000000e+00 : f32
    %31 = vector.broadcast %cst_9 : f32 to vector<8x128xf32>
    %32 = arith.subf %31, %30 : vector<8x128xf32>
    %33 = arith.mulf %18, %32 : vector<8x128xf32>
    %c0_10 = arith.constant 0 : index
    %34 = memref.load %arg3[%c0_10] : memref<8xf32, #tpu.memory_space<smem>>
    %35 = vector.broadcast %34 : f32 to vector<8x128xf32>
    %36 = arith.mulf %33, %35 : vector<8x128xf32>
    %c2_11 = arith.constant 2 : index
    %37 = memref.load %arg2[%c2_11] : memref<9xf32, #tpu.memory_space<smem>>
    %38 = vector.broadcast %37 : f32 to vector<8x128xf32>
    %39 = arith.subf %6, %38 : vector<8x128xf32>
    %40 = vector.broadcast %0 : f32 to vector<8x128xf32>
    %41 = arith.mulf %40, %39 : vector<8x128xf32>
    %cst_12 = arith.constant 5.000000e-01 : f32
    %42 = vector.broadcast %cst_12 : f32 to vector<8x128xf32>
    %43 = arith.mulf %42, %41 : vector<8x128xf32>
    %44 = math.tanh %43 : vector<8x128xf32>
    %cst_13 = arith.constant 1.000000e+00 : f32
    %45 = vector.broadcast %cst_13 : f32 to vector<8x128xf32>
    %46 = arith.addf %44, %45 : vector<8x128xf32>
    %cst_14 = arith.constant 5.000000e-01 : f32
    %47 = vector.broadcast %cst_14 : f32 to vector<8x128xf32>
    %48 = arith.mulf %47, %46 : vector<8x128xf32>
    %cst_15 = arith.constant 1.000000e+00 : f32
    %49 = vector.broadcast %cst_15 : f32 to vector<8x128xf32>
    %50 = arith.subf %49, %48 : vector<8x128xf32>
    %51 = arith.mulf %30, %50 : vector<8x128xf32>
    %c1_16 = arith.constant 1 : index
    %52 = memref.load %arg3[%c1_16] : memref<8xf32, #tpu.memory_space<smem>>
    %53 = vector.broadcast %52 : f32 to vector<8x128xf32>
    %54 = arith.mulf %51, %53 : vector<8x128xf32>
    %55 = arith.addf %36, %54 : vector<8x128xf32>
    %c3_17 = arith.constant 3 : index
    %56 = memref.load %arg2[%c3_17] : memref<9xf32, #tpu.memory_space<smem>>
    %57 = vector.broadcast %56 : f32 to vector<8x128xf32>
    %58 = arith.subf %6, %57 : vector<8x128xf32>
    %59 = vector.broadcast %0 : f32 to vector<8x128xf32>
    %60 = arith.mulf %59, %58 : vector<8x128xf32>
    %cst_18 = arith.constant 5.000000e-01 : f32
    %61 = vector.broadcast %cst_18 : f32 to vector<8x128xf32>
    %62 = arith.mulf %61, %60 : vector<8x128xf32>
    %63 = math.tanh %62 : vector<8x128xf32>
    %cst_19 = arith.constant 1.000000e+00 : f32
    %64 = vector.broadcast %cst_19 : f32 to vector<8x128xf32>
    %65 = arith.addf %63, %64 : vector<8x128xf32>
    %cst_20 = arith.constant 5.000000e-01 : f32
    %66 = vector.broadcast %cst_20 : f32 to vector<8x128xf32>
    %67 = arith.mulf %66, %65 : vector<8x128xf32>
    %cst_21 = arith.constant 1.000000e+00 : f32
    %68 = vector.broadcast %cst_21 : f32 to vector<8x128xf32>
    %69 = arith.subf %68, %67 : vector<8x128xf32>
    %70 = arith.mulf %48, %69 : vector<8x128xf32>
    %c2_22 = arith.constant 2 : index
    %71 = memref.load %arg3[%c2_22] : memref<8xf32, #tpu.memory_space<smem>>
    %72 = vector.broadcast %71 : f32 to vector<8x128xf32>
    %73 = arith.mulf %70, %72 : vector<8x128xf32>
    %74 = arith.addf %55, %73 : vector<8x128xf32>
    %c4 = arith.constant 4 : index
    %75 = memref.load %arg2[%c4] : memref<9xf32, #tpu.memory_space<smem>>
    %76 = vector.broadcast %75 : f32 to vector<8x128xf32>
    %77 = arith.subf %6, %76 : vector<8x128xf32>
    %78 = vector.broadcast %0 : f32 to vector<8x128xf32>
    %79 = arith.mulf %78, %77 : vector<8x128xf32>
    %cst_23 = arith.constant 5.000000e-01 : f32
    %80 = vector.broadcast %cst_23 : f32 to vector<8x128xf32>
    %81 = arith.mulf %80, %79 : vector<8x128xf32>
    %82 = math.tanh %81 : vector<8x128xf32>
    %cst_24 = arith.constant 1.000000e+00 : f32
    %83 = vector.broadcast %cst_24 : f32 to vector<8x128xf32>
    %84 = arith.addf %82, %83 : vector<8x128xf32>
    %cst_25 = arith.constant 5.000000e-01 : f32
    %85 = vector.broadcast %cst_25 : f32 to vector<8x128xf32>
    %86 = arith.mulf %85, %84 : vector<8x128xf32>
    %cst_26 = arith.constant 1.000000e+00 : f32
    %87 = vector.broadcast %cst_26 : f32 to vector<8x128xf32>
    %88 = arith.subf %87, %86 : vector<8x128xf32>
    %89 = arith.mulf %67, %88 : vector<8x128xf32>
    %c3_27 = arith.constant 3 : index
    %90 = memref.load %arg3[%c3_27] : memref<8xf32, #tpu.memory_space<smem>>
    %91 = vector.broadcast %90 : f32 to vector<8x128xf32>
    %92 = arith.mulf %89, %91 : vector<8x128xf32>
    %93 = arith.addf %74, %92 : vector<8x128xf32>
    %c5 = arith.constant 5 : index
    %94 = memref.load %arg2[%c5] : memref<9xf32, #tpu.memory_space<smem>>
    %95 = vector.broadcast %94 : f32 to vector<8x128xf32>
    %96 = arith.subf %6, %95 : vector<8x128xf32>
    %97 = vector.broadcast %0 : f32 to vector<8x128xf32>
    %98 = arith.mulf %97, %96 : vector<8x128xf32>
    %cst_28 = arith.constant 5.000000e-01 : f32
    %99 = vector.broadcast %cst_28 : f32 to vector<8x128xf32>
    %100 = arith.mulf %99, %98 : vector<8x128xf32>
    %101 = math.tanh %100 : vector<8x128xf32>
    %cst_29 = arith.constant 1.000000e+00 : f32
    %102 = vector.broadcast %cst_29 : f32 to vector<8x128xf32>
    %103 = arith.addf %101, %102 : vector<8x128xf32>
    %cst_30 = arith.constant 5.000000e-01 : f32
    %104 = vector.broadcast %cst_30 : f32 to vector<8x128xf32>
    %105 = arith.mulf %104, %103 : vector<8x128xf32>
    %cst_31 = arith.constant 1.000000e+00 : f32
    %106 = vector.broadcast %cst_31 : f32 to vector<8x128xf32>
    %107 = arith.subf %106, %105 : vector<8x128xf32>
    %108 = arith.mulf %86, %107 : vector<8x128xf32>
    %c4_32 = arith.constant 4 : index
    %109 = memref.load %arg3[%c4_32] : memref<8xf32, #tpu.memory_space<smem>>
    %110 = vector.broadcast %109 : f32 to vector<8x128xf32>
    %111 = arith.mulf %108, %110 : vector<8x128xf32>
    %112 = arith.addf %93, %111 : vector<8x128xf32>
    %c6 = arith.constant 6 : index
    %113 = memref.load %arg2[%c6] : memref<9xf32, #tpu.memory_space<smem>>
    %114 = vector.broadcast %113 : f32 to vector<8x128xf32>
    %115 = arith.subf %6, %114 : vector<8x128xf32>
    %116 = vector.broadcast %0 : f32 to vector<8x128xf32>
    %117 = arith.mulf %116, %115 : vector<8x128xf32>
    %cst_33 = arith.constant 5.000000e-01 : f32
    %118 = vector.broadcast %cst_33 : f32 to vector<8x128xf32>
    %119 = arith.mulf %118, %117 : vector<8x128xf32>
    %120 = math.tanh %119 : vector<8x128xf32>
    %cst_34 = arith.constant 1.000000e+00 : f32
    %121 = vector.broadcast %cst_34 : f32 to vector<8x128xf32>
    %122 = arith.addf %120, %121 : vector<8x128xf32>
    %cst_35 = arith.constant 5.000000e-01 : f32
    %123 = vector.broadcast %cst_35 : f32 to vector<8x128xf32>
    %124 = arith.mulf %123, %122 : vector<8x128xf32>
    %cst_36 = arith.constant 1.000000e+00 : f32
    %125 = vector.broadcast %cst_36 : f32 to vector<8x128xf32>
    %126 = arith.subf %125, %124 : vector<8x128xf32>
    %127 = arith.mulf %105, %126 : vector<8x128xf32>
    %c5_37 = arith.constant 5 : index
    %128 = memref.load %arg3[%c5_37] : memref<8xf32, #tpu.memory_space<smem>>
    %129 = vector.broadcast %128 : f32 to vector<8x128xf32>
    %130 = arith.mulf %127, %129 : vector<8x128xf32>
    %131 = arith.addf %112, %130 : vector<8x128xf32>
    %c7 = arith.constant 7 : index
    %132 = memref.load %arg2[%c7] : memref<9xf32, #tpu.memory_space<smem>>
    %133 = vector.broadcast %132 : f32 to vector<8x128xf32>
    %134 = arith.subf %6, %133 : vector<8x128xf32>
    %135 = vector.broadcast %0 : f32 to vector<8x128xf32>
    %136 = arith.mulf %135, %134 : vector<8x128xf32>
    %cst_38 = arith.constant 5.000000e-01 : f32
    %137 = vector.broadcast %cst_38 : f32 to vector<8x128xf32>
    %138 = arith.mulf %137, %136 : vector<8x128xf32>
    %139 = math.tanh %138 : vector<8x128xf32>
    %cst_39 = arith.constant 1.000000e+00 : f32
    %140 = vector.broadcast %cst_39 : f32 to vector<8x128xf32>
    %141 = arith.addf %139, %140 : vector<8x128xf32>
    %cst_40 = arith.constant 5.000000e-01 : f32
    %142 = vector.broadcast %cst_40 : f32 to vector<8x128xf32>
    %143 = arith.mulf %142, %141 : vector<8x128xf32>
    %cst_41 = arith.constant 1.000000e+00 : f32
    %144 = vector.broadcast %cst_41 : f32 to vector<8x128xf32>
    %145 = arith.subf %144, %143 : vector<8x128xf32>
    %146 = arith.mulf %124, %145 : vector<8x128xf32>
    %c6_42 = arith.constant 6 : index
    %147 = memref.load %arg3[%c6_42] : memref<8xf32, #tpu.memory_space<smem>>
    %148 = vector.broadcast %147 : f32 to vector<8x128xf32>
    %149 = arith.mulf %146, %148 : vector<8x128xf32>
    %150 = arith.addf %131, %149 : vector<8x128xf32>
    %c8 = arith.constant 8 : index
    %151 = memref.load %arg2[%c8] : memref<9xf32, #tpu.memory_space<smem>>
    %152 = vector.broadcast %151 : f32 to vector<8x128xf32>
    %153 = arith.subf %6, %152 : vector<8x128xf32>
    %154 = vector.broadcast %0 : f32 to vector<8x128xf32>
    %155 = arith.mulf %154, %153 : vector<8x128xf32>
    %cst_43 = arith.constant 5.000000e-01 : f32
    %156 = vector.broadcast %cst_43 : f32 to vector<8x128xf32>
    %157 = arith.mulf %156, %155 : vector<8x128xf32>
    %158 = math.tanh %157 : vector<8x128xf32>
    %cst_44 = arith.constant 1.000000e+00 : f32
    %159 = vector.broadcast %cst_44 : f32 to vector<8x128xf32>
    %160 = arith.addf %158, %159 : vector<8x128xf32>
    %cst_45 = arith.constant 5.000000e-01 : f32
    %161 = vector.broadcast %cst_45 : f32 to vector<8x128xf32>
    %162 = arith.mulf %161, %160 : vector<8x128xf32>
    %cst_46 = arith.constant 1.000000e+00 : f32
    %163 = vector.broadcast %cst_46 : f32 to vector<8x128xf32>
    %164 = arith.subf %163, %162 : vector<8x128xf32>
    %165 = arith.mulf %143, %164 : vector<8x128xf32>
    %c7_47 = arith.constant 7 : index
    %166 = memref.load %arg3[%c7_47] : memref<8xf32, #tpu.memory_space<smem>>
    %167 = vector.broadcast %166 : f32 to vector<8x128xf32>
    %168 = arith.mulf %165, %167 : vector<8x128xf32>
    %169 = arith.addf %150, %168 : vector<8x128xf32>
    %c0_48 = arith.constant 0 : index
    %170 = memref.load %arg7[%c0_48] : memref<16xf32, #tpu.memory_space<smem>>
    %171 = vector.broadcast %170 : f32 to vector<8x128xf32>
    %c1_49 = arith.constant 1 : index
    %172 = memref.load %arg7[%c1_49] : memref<16xf32, #tpu.memory_space<smem>>
    %173 = vector.broadcast %172 : f32 to vector<8x128xf32>
    %c2_50 = arith.constant 2 : index
    %174 = memref.load %arg7[%c2_50] : memref<16xf32, #tpu.memory_space<smem>>
    %175 = vector.broadcast %174 : f32 to vector<8x128xf32>
    %c3_51 = arith.constant 3 : index
    %176 = memref.load %arg7[%c3_51] : memref<16xf32, #tpu.memory_space<smem>>
    %177 = vector.broadcast %176 : f32 to vector<8x128xf32>
    %c4_52 = arith.constant 4 : index
    %178 = memref.load %arg7[%c4_52] : memref<16xf32, #tpu.memory_space<smem>>
    %179 = vector.broadcast %178 : f32 to vector<8x128xf32>
    %c5_53 = arith.constant 5 : index
    %180 = memref.load %arg7[%c5_53] : memref<16xf32, #tpu.memory_space<smem>>
    %181 = vector.broadcast %180 : f32 to vector<8x128xf32>
    %c6_54 = arith.constant 6 : index
    %182 = memref.load %arg7[%c6_54] : memref<16xf32, #tpu.memory_space<smem>>
    %183 = vector.broadcast %182 : f32 to vector<8x128xf32>
    %c7_55 = arith.constant 7 : index
    %184 = memref.load %arg7[%c7_55] : memref<16xf32, #tpu.memory_space<smem>>
    %185 = vector.broadcast %184 : f32 to vector<8x128xf32>
    %c8_56 = arith.constant 8 : index
    %186 = memref.load %arg7[%c8_56] : memref<16xf32, #tpu.memory_space<smem>>
    %187 = vector.broadcast %186 : f32 to vector<8x128xf32>
    %c9 = arith.constant 9 : index
    %188 = memref.load %arg7[%c9] : memref<16xf32, #tpu.memory_space<smem>>
    %189 = vector.broadcast %188 : f32 to vector<8x128xf32>
    %c10 = arith.constant 10 : index
    %190 = memref.load %arg7[%c10] : memref<16xf32, #tpu.memory_space<smem>>
    %191 = vector.broadcast %190 : f32 to vector<8x128xf32>
    %c11 = arith.constant 11 : index
    %192 = memref.load %arg7[%c11] : memref<16xf32, #tpu.memory_space<smem>>
    %193 = vector.broadcast %192 : f32 to vector<8x128xf32>
    %c12 = arith.constant 12 : index
    %194 = memref.load %arg7[%c12] : memref<16xf32, #tpu.memory_space<smem>>
    %195 = vector.broadcast %194 : f32 to vector<8x128xf32>
    %c13 = arith.constant 13 : index
    %196 = memref.load %arg7[%c13] : memref<16xf32, #tpu.memory_space<smem>>
    %197 = vector.broadcast %196 : f32 to vector<8x128xf32>
    %c14 = arith.constant 14 : index
    %198 = memref.load %arg7[%c14] : memref<16xf32, #tpu.memory_space<smem>>
    %199 = vector.broadcast %198 : f32 to vector<8x128xf32>
    %c15 = arith.constant 15 : index
    %200 = memref.load %arg7[%c15] : memref<16xf32, #tpu.memory_space<smem>>
    %201 = vector.broadcast %200 : f32 to vector<8x128xf32>
    %c0_57 = arith.constant 0 : index
    %202 = memref.load %arg4[%c0_57] : memref<32xf32, #tpu.memory_space<smem>>
    %203 = vector.broadcast %202 : f32 to vector<8x128xf32>
    %204 = arith.mulf %6, %203 : vector<8x128xf32>
    %c0_58 = arith.constant 0 : index
    %205 = memref.load %arg5[%c0_58] : memref<32xf32, #tpu.memory_space<smem>>
    %206 = vector.broadcast %205 : f32 to vector<8x128xf32>
    %207 = arith.addf %204, %206 : vector<8x128xf32>
    %cst_59 = arith.constant 0.000000e+00 : f32
    %208 = vector.broadcast %cst_59 : f32 to vector<8x128xf32>
    %209 = arith.maximumf %207, %208 : vector<8x128xf32>
    %c0_60 = arith.constant 0 : index
    %210 = memref.load %arg6[%c0_60] : memref<512xf32, #tpu.memory_space<smem>>
    %211 = vector.broadcast %210 : f32 to vector<8x128xf32>
    %212 = arith.mulf %209, %211 : vector<8x128xf32>
    %213 = arith.addf %171, %212 : vector<8x128xf32>
    %c1_61 = arith.constant 1 : index
    %214 = memref.load %arg6[%c1_61] : memref<512xf32, #tpu.memory_space<smem>>
    %215 = vector.broadcast %214 : f32 to vector<8x128xf32>
    %216 = arith.mulf %209, %215 : vector<8x128xf32>
    %217 = arith.addf %173, %216 : vector<8x128xf32>
    %c2_62 = arith.constant 2 : index
    %218 = memref.load %arg6[%c2_62] : memref<512xf32, #tpu.memory_space<smem>>
    %219 = vector.broadcast %218 : f32 to vector<8x128xf32>
    %220 = arith.mulf %209, %219 : vector<8x128xf32>
    %221 = arith.addf %175, %220 : vector<8x128xf32>
    %c3_63 = arith.constant 3 : index
    %222 = memref.load %arg6[%c3_63] : memref<512xf32, #tpu.memory_space<smem>>
    %223 = vector.broadcast %222 : f32 to vector<8x128xf32>
    %224 = arith.mulf %209, %223 : vector<8x128xf32>
    %225 = arith.addf %177, %224 : vector<8x128xf32>
    %c4_64 = arith.constant 4 : index
    %226 = memref.load %arg6[%c4_64] : memref<512xf32, #tpu.memory_space<smem>>
    %227 = vector.broadcast %226 : f32 to vector<8x128xf32>
    %228 = arith.mulf %209, %227 : vector<8x128xf32>
    %229 = arith.addf %179, %228 : vector<8x128xf32>
    %c5_65 = arith.constant 5 : index
    %230 = memref.load %arg6[%c5_65] : memref<512xf32, #tpu.memory_space<smem>>
    %231 = vector.broadcast %230 : f32 to vector<8x128xf32>
    %232 = arith.mulf %209, %231 : vector<8x128xf32>
    %233 = arith.addf %181, %232 : vector<8x128xf32>
    %c6_66 = arith.constant 6 : index
    %234 = memref.load %arg6[%c6_66] : memref<512xf32, #tpu.memory_space<smem>>
    %235 = vector.broadcast %234 : f32 to vector<8x128xf32>
    %236 = arith.mulf %209, %235 : vector<8x128xf32>
    %237 = arith.addf %183, %236 : vector<8x128xf32>
    %c7_67 = arith.constant 7 : index
    %238 = memref.load %arg6[%c7_67] : memref<512xf32, #tpu.memory_space<smem>>
    %239 = vector.broadcast %238 : f32 to vector<8x128xf32>
    %240 = arith.mulf %209, %239 : vector<8x128xf32>
    %241 = arith.addf %185, %240 : vector<8x128xf32>
    %c8_68 = arith.constant 8 : index
    %242 = memref.load %arg6[%c8_68] : memref<512xf32, #tpu.memory_space<smem>>
    %243 = vector.broadcast %242 : f32 to vector<8x128xf32>
    %244 = arith.mulf %209, %243 : vector<8x128xf32>
    %245 = arith.addf %187, %244 : vector<8x128xf32>
    %c9_69 = arith.constant 9 : index
    %246 = memref.load %arg6[%c9_69] : memref<512xf32, #tpu.memory_space<smem>>
    %247 = vector.broadcast %246 : f32 to vector<8x128xf32>
    %248 = arith.mulf %209, %247 : vector<8x128xf32>
    %249 = arith.addf %189, %248 : vector<8x128xf32>
    %c10_70 = arith.constant 10 : index
    %250 = memref.load %arg6[%c10_70] : memref<512xf32, #tpu.memory_space<smem>>
    %251 = vector.broadcast %250 : f32 to vector<8x128xf32>
    %252 = arith.mulf %209, %251 : vector<8x128xf32>
    %253 = arith.addf %191, %252 : vector<8x128xf32>
    %c11_71 = arith.constant 11 : index
    %254 = memref.load %arg6[%c11_71] : memref<512xf32, #tpu.memory_space<smem>>
    %255 = vector.broadcast %254 : f32 to vector<8x128xf32>
    %256 = arith.mulf %209, %255 : vector<8x128xf32>
    %257 = arith.addf %193, %256 : vector<8x128xf32>
    %c12_72 = arith.constant 12 : index
    %258 = memref.load %arg6[%c12_72] : memref<512xf32, #tpu.memory_space<smem>>
    %259 = vector.broadcast %258 : f32 to vector<8x128xf32>
    %260 = arith.mulf %209, %259 : vector<8x128xf32>
    %261 = arith.addf %195, %260 : vector<8x128xf32>
    %c13_73 = arith.constant 13 : index
    %262 = memref.load %arg6[%c13_73] : memref<512xf32, #tpu.memory_space<smem>>
    %263 = vector.broadcast %262 : f32 to vector<8x128xf32>
    %264 = arith.mulf %209, %263 : vector<8x128xf32>
    %265 = arith.addf %197, %264 : vector<8x128xf32>
    %c14_74 = arith.constant 14 : index
    %266 = memref.load %arg6[%c14_74] : memref<512xf32, #tpu.memory_space<smem>>
    %267 = vector.broadcast %266 : f32 to vector<8x128xf32>
    %268 = arith.mulf %209, %267 : vector<8x128xf32>
    %269 = arith.addf %199, %268 : vector<8x128xf32>
    %c15_75 = arith.constant 15 : index
    %270 = memref.load %arg6[%c15_75] : memref<512xf32, #tpu.memory_space<smem>>
    %271 = vector.broadcast %270 : f32 to vector<8x128xf32>
    %272 = arith.mulf %209, %271 : vector<8x128xf32>
    %273 = arith.addf %201, %272 : vector<8x128xf32>
    %c1_76 = arith.constant 1 : index
    %274 = memref.load %arg4[%c1_76] : memref<32xf32, #tpu.memory_space<smem>>
    %275 = vector.broadcast %274 : f32 to vector<8x128xf32>
    %276 = arith.mulf %6, %275 : vector<8x128xf32>
    %c1_77 = arith.constant 1 : index
    %277 = memref.load %arg5[%c1_77] : memref<32xf32, #tpu.memory_space<smem>>
    %278 = vector.broadcast %277 : f32 to vector<8x128xf32>
    %279 = arith.addf %276, %278 : vector<8x128xf32>
    %cst_78 = arith.constant 0.000000e+00 : f32
    %280 = vector.broadcast %cst_78 : f32 to vector<8x128xf32>
    %281 = arith.maximumf %279, %280 : vector<8x128xf32>
    %c16 = arith.constant 16 : index
    %282 = memref.load %arg6[%c16] : memref<512xf32, #tpu.memory_space<smem>>
    %283 = vector.broadcast %282 : f32 to vector<8x128xf32>
    %284 = arith.mulf %281, %283 : vector<8x128xf32>
    %285 = arith.addf %213, %284 : vector<8x128xf32>
    %c17 = arith.constant 17 : index
    %286 = memref.load %arg6[%c17] : memref<512xf32, #tpu.memory_space<smem>>
    %287 = vector.broadcast %286 : f32 to vector<8x128xf32>
    %288 = arith.mulf %281, %287 : vector<8x128xf32>
    %289 = arith.addf %217, %288 : vector<8x128xf32>
    %c18 = arith.constant 18 : index
    %290 = memref.load %arg6[%c18] : memref<512xf32, #tpu.memory_space<smem>>
    %291 = vector.broadcast %290 : f32 to vector<8x128xf32>
    %292 = arith.mulf %281, %291 : vector<8x128xf32>
    %293 = arith.addf %221, %292 : vector<8x128xf32>
    %c19 = arith.constant 19 : index
    %294 = memref.load %arg6[%c19] : memref<512xf32, #tpu.memory_space<smem>>
    %295 = vector.broadcast %294 : f32 to vector<8x128xf32>
    %296 = arith.mulf %281, %295 : vector<8x128xf32>
    %297 = arith.addf %225, %296 : vector<8x128xf32>
    %c20 = arith.constant 20 : index
    %298 = memref.load %arg6[%c20] : memref<512xf32, #tpu.memory_space<smem>>
    %299 = vector.broadcast %298 : f32 to vector<8x128xf32>
    %300 = arith.mulf %281, %299 : vector<8x128xf32>
    %301 = arith.addf %229, %300 : vector<8x128xf32>
    %c21 = arith.constant 21 : index
    %302 = memref.load %arg6[%c21] : memref<512xf32, #tpu.memory_space<smem>>
    %303 = vector.broadcast %302 : f32 to vector<8x128xf32>
    %304 = arith.mulf %281, %303 : vector<8x128xf32>
    %305 = arith.addf %233, %304 : vector<8x128xf32>
    %c22 = arith.constant 22 : index
    %306 = memref.load %arg6[%c22] : memref<512xf32, #tpu.memory_space<smem>>
    %307 = vector.broadcast %306 : f32 to vector<8x128xf32>
    %308 = arith.mulf %281, %307 : vector<8x128xf32>
    %309 = arith.addf %237, %308 : vector<8x128xf32>
    %c23 = arith.constant 23 : index
    %310 = memref.load %arg6[%c23] : memref<512xf32, #tpu.memory_space<smem>>
    %311 = vector.broadcast %310 : f32 to vector<8x128xf32>
    %312 = arith.mulf %281, %311 : vector<8x128xf32>
    %313 = arith.addf %241, %312 : vector<8x128xf32>
    %c24 = arith.constant 24 : index
    %314 = memref.load %arg6[%c24] : memref<512xf32, #tpu.memory_space<smem>>
    %315 = vector.broadcast %314 : f32 to vector<8x128xf32>
    %316 = arith.mulf %281, %315 : vector<8x128xf32>
    %317 = arith.addf %245, %316 : vector<8x128xf32>
    %c25 = arith.constant 25 : index
    %318 = memref.load %arg6[%c25] : memref<512xf32, #tpu.memory_space<smem>>
    %319 = vector.broadcast %318 : f32 to vector<8x128xf32>
    %320 = arith.mulf %281, %319 : vector<8x128xf32>
    %321 = arith.addf %249, %320 : vector<8x128xf32>
    %c26 = arith.constant 26 : index
    %322 = memref.load %arg6[%c26] : memref<512xf32, #tpu.memory_space<smem>>
    %323 = vector.broadcast %322 : f32 to vector<8x128xf32>
    %324 = arith.mulf %281, %323 : vector<8x128xf32>
    %325 = arith.addf %253, %324 : vector<8x128xf32>
    %c27 = arith.constant 27 : index
    %326 = memref.load %arg6[%c27] : memref<512xf32, #tpu.memory_space<smem>>
    %327 = vector.broadcast %326 : f32 to vector<8x128xf32>
    %328 = arith.mulf %281, %327 : vector<8x128xf32>
    %329 = arith.addf %257, %328 : vector<8x128xf32>
    %c28 = arith.constant 28 : index
    %330 = memref.load %arg6[%c28] : memref<512xf32, #tpu.memory_space<smem>>
    %331 = vector.broadcast %330 : f32 to vector<8x128xf32>
    %332 = arith.mulf %281, %331 : vector<8x128xf32>
    %333 = arith.addf %261, %332 : vector<8x128xf32>
    %c29 = arith.constant 29 : index
    %334 = memref.load %arg6[%c29] : memref<512xf32, #tpu.memory_space<smem>>
    %335 = vector.broadcast %334 : f32 to vector<8x128xf32>
    %336 = arith.mulf %281, %335 : vector<8x128xf32>
    %337 = arith.addf %265, %336 : vector<8x128xf32>
    %c30 = arith.constant 30 : index
    %338 = memref.load %arg6[%c30] : memref<512xf32, #tpu.memory_space<smem>>
    %339 = vector.broadcast %338 : f32 to vector<8x128xf32>
    %340 = arith.mulf %281, %339 : vector<8x128xf32>
    %341 = arith.addf %269, %340 : vector<8x128xf32>
    %c31 = arith.constant 31 : index
    %342 = memref.load %arg6[%c31] : memref<512xf32, #tpu.memory_space<smem>>
    %343 = vector.broadcast %342 : f32 to vector<8x128xf32>
    %344 = arith.mulf %281, %343 : vector<8x128xf32>
    %345 = arith.addf %273, %344 : vector<8x128xf32>
    %c2_79 = arith.constant 2 : index
    %346 = memref.load %arg4[%c2_79] : memref<32xf32, #tpu.memory_space<smem>>
    %347 = vector.broadcast %346 : f32 to vector<8x128xf32>
    %348 = arith.mulf %6, %347 : vector<8x128xf32>
    %c2_80 = arith.constant 2 : index
    %349 = memref.load %arg5[%c2_80] : memref<32xf32, #tpu.memory_space<smem>>
    %350 = vector.broadcast %349 : f32 to vector<8x128xf32>
    %351 = arith.addf %348, %350 : vector<8x128xf32>
    %cst_81 = arith.constant 0.000000e+00 : f32
    %352 = vector.broadcast %cst_81 : f32 to vector<8x128xf32>
    %353 = arith.maximumf %351, %352 : vector<8x128xf32>
    %c32 = arith.constant 32 : index
    %354 = memref.load %arg6[%c32] : memref<512xf32, #tpu.memory_space<smem>>
    %355 = vector.broadcast %354 : f32 to vector<8x128xf32>
    %356 = arith.mulf %353, %355 : vector<8x128xf32>
    %357 = arith.addf %285, %356 : vector<8x128xf32>
    %c33 = arith.constant 33 : index
    %358 = memref.load %arg6[%c33] : memref<512xf32, #tpu.memory_space<smem>>
    %359 = vector.broadcast %358 : f32 to vector<8x128xf32>
    %360 = arith.mulf %353, %359 : vector<8x128xf32>
    %361 = arith.addf %289, %360 : vector<8x128xf32>
    %c34 = arith.constant 34 : index
    %362 = memref.load %arg6[%c34] : memref<512xf32, #tpu.memory_space<smem>>
    %363 = vector.broadcast %362 : f32 to vector<8x128xf32>
    %364 = arith.mulf %353, %363 : vector<8x128xf32>
    %365 = arith.addf %293, %364 : vector<8x128xf32>
    %c35 = arith.constant 35 : index
    %366 = memref.load %arg6[%c35] : memref<512xf32, #tpu.memory_space<smem>>
    %367 = vector.broadcast %366 : f32 to vector<8x128xf32>
    %368 = arith.mulf %353, %367 : vector<8x128xf32>
    %369 = arith.addf %297, %368 : vector<8x128xf32>
    %c36 = arith.constant 36 : index
    %370 = memref.load %arg6[%c36] : memref<512xf32, #tpu.memory_space<smem>>
    %371 = vector.broadcast %370 : f32 to vector<8x128xf32>
    %372 = arith.mulf %353, %371 : vector<8x128xf32>
    %373 = arith.addf %301, %372 : vector<8x128xf32>
    %c37 = arith.constant 37 : index
    %374 = memref.load %arg6[%c37] : memref<512xf32, #tpu.memory_space<smem>>
    %375 = vector.broadcast %374 : f32 to vector<8x128xf32>
    %376 = arith.mulf %353, %375 : vector<8x128xf32>
    %377 = arith.addf %305, %376 : vector<8x128xf32>
    %c38 = arith.constant 38 : index
    %378 = memref.load %arg6[%c38] : memref<512xf32, #tpu.memory_space<smem>>
    %379 = vector.broadcast %378 : f32 to vector<8x128xf32>
    %380 = arith.mulf %353, %379 : vector<8x128xf32>
    %381 = arith.addf %309, %380 : vector<8x128xf32>
    %c39 = arith.constant 39 : index
    %382 = memref.load %arg6[%c39] : memref<512xf32, #tpu.memory_space<smem>>
    %383 = vector.broadcast %382 : f32 to vector<8x128xf32>
    %384 = arith.mulf %353, %383 : vector<8x128xf32>
    %385 = arith.addf %313, %384 : vector<8x128xf32>
    %c40 = arith.constant 40 : index
    %386 = memref.load %arg6[%c40] : memref<512xf32, #tpu.memory_space<smem>>
    %387 = vector.broadcast %386 : f32 to vector<8x128xf32>
    %388 = arith.mulf %353, %387 : vector<8x128xf32>
    %389 = arith.addf %317, %388 : vector<8x128xf32>
    %c41 = arith.constant 41 : index
    %390 = memref.load %arg6[%c41] : memref<512xf32, #tpu.memory_space<smem>>
    %391 = vector.broadcast %390 : f32 to vector<8x128xf32>
    %392 = arith.mulf %353, %391 : vector<8x128xf32>
    %393 = arith.addf %321, %392 : vector<8x128xf32>
    %c42 = arith.constant 42 : index
    %394 = memref.load %arg6[%c42] : memref<512xf32, #tpu.memory_space<smem>>
    %395 = vector.broadcast %394 : f32 to vector<8x128xf32>
    %396 = arith.mulf %353, %395 : vector<8x128xf32>
    %397 = arith.addf %325, %396 : vector<8x128xf32>
    %c43 = arith.constant 43 : index
    %398 = memref.load %arg6[%c43] : memref<512xf32, #tpu.memory_space<smem>>
    %399 = vector.broadcast %398 : f32 to vector<8x128xf32>
    %400 = arith.mulf %353, %399 : vector<8x128xf32>
    %401 = arith.addf %329, %400 : vector<8x128xf32>
    %c44 = arith.constant 44 : index
    %402 = memref.load %arg6[%c44] : memref<512xf32, #tpu.memory_space<smem>>
    %403 = vector.broadcast %402 : f32 to vector<8x128xf32>
    %404 = arith.mulf %353, %403 : vector<8x128xf32>
    %405 = arith.addf %333, %404 : vector<8x128xf32>
    %c45 = arith.constant 45 : index
    %406 = memref.load %arg6[%c45] : memref<512xf32, #tpu.memory_space<smem>>
    %407 = vector.broadcast %406 : f32 to vector<8x128xf32>
    %408 = arith.mulf %353, %407 : vector<8x128xf32>
    %409 = arith.addf %337, %408 : vector<8x128xf32>
    %c46 = arith.constant 46 : index
    %410 = memref.load %arg6[%c46] : memref<512xf32, #tpu.memory_space<smem>>
    %411 = vector.broadcast %410 : f32 to vector<8x128xf32>
    %412 = arith.mulf %353, %411 : vector<8x128xf32>
    %413 = arith.addf %341, %412 : vector<8x128xf32>
    %c47 = arith.constant 47 : index
    %414 = memref.load %arg6[%c47] : memref<512xf32, #tpu.memory_space<smem>>
    %415 = vector.broadcast %414 : f32 to vector<8x128xf32>
    %416 = arith.mulf %353, %415 : vector<8x128xf32>
    %417 = arith.addf %345, %416 : vector<8x128xf32>
    %c3_82 = arith.constant 3 : index
    %418 = memref.load %arg4[%c3_82] : memref<32xf32, #tpu.memory_space<smem>>
    %419 = vector.broadcast %418 : f32 to vector<8x128xf32>
    %420 = arith.mulf %6, %419 : vector<8x128xf32>
    %c3_83 = arith.constant 3 : index
    %421 = memref.load %arg5[%c3_83] : memref<32xf32, #tpu.memory_space<smem>>
    %422 = vector.broadcast %421 : f32 to vector<8x128xf32>
    %423 = arith.addf %420, %422 : vector<8x128xf32>
    %cst_84 = arith.constant 0.000000e+00 : f32
    %424 = vector.broadcast %cst_84 : f32 to vector<8x128xf32>
    %425 = arith.maximumf %423, %424 : vector<8x128xf32>
    %c48 = arith.constant 48 : index
    %426 = memref.load %arg6[%c48] : memref<512xf32, #tpu.memory_space<smem>>
    %427 = vector.broadcast %426 : f32 to vector<8x128xf32>
    %428 = arith.mulf %425, %427 : vector<8x128xf32>
    %429 = arith.addf %357, %428 : vector<8x128xf32>
    %c49 = arith.constant 49 : index
    %430 = memref.load %arg6[%c49] : memref<512xf32, #tpu.memory_space<smem>>
    %431 = vector.broadcast %430 : f32 to vector<8x128xf32>
    %432 = arith.mulf %425, %431 : vector<8x128xf32>
    %433 = arith.addf %361, %432 : vector<8x128xf32>
    %c50 = arith.constant 50 : index
    %434 = memref.load %arg6[%c50] : memref<512xf32, #tpu.memory_space<smem>>
    %435 = vector.broadcast %434 : f32 to vector<8x128xf32>
    %436 = arith.mulf %425, %435 : vector<8x128xf32>
    %437 = arith.addf %365, %436 : vector<8x128xf32>
    %c51 = arith.constant 51 : index
    %438 = memref.load %arg6[%c51] : memref<512xf32, #tpu.memory_space<smem>>
    %439 = vector.broadcast %438 : f32 to vector<8x128xf32>
    %440 = arith.mulf %425, %439 : vector<8x128xf32>
    %441 = arith.addf %369, %440 : vector<8x128xf32>
    %c52 = arith.constant 52 : index
    %442 = memref.load %arg6[%c52] : memref<512xf32, #tpu.memory_space<smem>>
    %443 = vector.broadcast %442 : f32 to vector<8x128xf32>
    %444 = arith.mulf %425, %443 : vector<8x128xf32>
    %445 = arith.addf %373, %444 : vector<8x128xf32>
    %c53 = arith.constant 53 : index
    %446 = memref.load %arg6[%c53] : memref<512xf32, #tpu.memory_space<smem>>
    %447 = vector.broadcast %446 : f32 to vector<8x128xf32>
    %448 = arith.mulf %425, %447 : vector<8x128xf32>
    %449 = arith.addf %377, %448 : vector<8x128xf32>
    %c54 = arith.constant 54 : index
    %450 = memref.load %arg6[%c54] : memref<512xf32, #tpu.memory_space<smem>>
    %451 = vector.broadcast %450 : f32 to vector<8x128xf32>
    %452 = arith.mulf %425, %451 : vector<8x128xf32>
    %453 = arith.addf %381, %452 : vector<8x128xf32>
    %c55 = arith.constant 55 : index
    %454 = memref.load %arg6[%c55] : memref<512xf32, #tpu.memory_space<smem>>
    %455 = vector.broadcast %454 : f32 to vector<8x128xf32>
    %456 = arith.mulf %425, %455 : vector<8x128xf32>
    %457 = arith.addf %385, %456 : vector<8x128xf32>
    %c56 = arith.constant 56 : index
    %458 = memref.load %arg6[%c56] : memref<512xf32, #tpu.memory_space<smem>>
    %459 = vector.broadcast %458 : f32 to vector<8x128xf32>
    %460 = arith.mulf %425, %459 : vector<8x128xf32>
    %461 = arith.addf %389, %460 : vector<8x128xf32>
    %c57 = arith.constant 57 : index
    %462 = memref.load %arg6[%c57] : memref<512xf32, #tpu.memory_space<smem>>
    %463 = vector.broadcast %462 : f32 to vector<8x128xf32>
    %464 = arith.mulf %425, %463 : vector<8x128xf32>
    %465 = arith.addf %393, %464 : vector<8x128xf32>
    %c58 = arith.constant 58 : index
    %466 = memref.load %arg6[%c58] : memref<512xf32, #tpu.memory_space<smem>>
    %467 = vector.broadcast %466 : f32 to vector<8x128xf32>
    %468 = arith.mulf %425, %467 : vector<8x128xf32>
    %469 = arith.addf %397, %468 : vector<8x128xf32>
    %c59 = arith.constant 59 : index
    %470 = memref.load %arg6[%c59] : memref<512xf32, #tpu.memory_space<smem>>
    %471 = vector.broadcast %470 : f32 to vector<8x128xf32>
    %472 = arith.mulf %425, %471 : vector<8x128xf32>
    %473 = arith.addf %401, %472 : vector<8x128xf32>
    %c60 = arith.constant 60 : index
    %474 = memref.load %arg6[%c60] : memref<512xf32, #tpu.memory_space<smem>>
    %475 = vector.broadcast %474 : f32 to vector<8x128xf32>
    %476 = arith.mulf %425, %475 : vector<8x128xf32>
    %477 = arith.addf %405, %476 : vector<8x128xf32>
    %c61 = arith.constant 61 : index
    %478 = memref.load %arg6[%c61] : memref<512xf32, #tpu.memory_space<smem>>
    %479 = vector.broadcast %478 : f32 to vector<8x128xf32>
    %480 = arith.mulf %425, %479 : vector<8x128xf32>
    %481 = arith.addf %409, %480 : vector<8x128xf32>
    %c62 = arith.constant 62 : index
    %482 = memref.load %arg6[%c62] : memref<512xf32, #tpu.memory_space<smem>>
    %483 = vector.broadcast %482 : f32 to vector<8x128xf32>
    %484 = arith.mulf %425, %483 : vector<8x128xf32>
    %485 = arith.addf %413, %484 : vector<8x128xf32>
    %c63 = arith.constant 63 : index
    %486 = memref.load %arg6[%c63] : memref<512xf32, #tpu.memory_space<smem>>
    %487 = vector.broadcast %486 : f32 to vector<8x128xf32>
    %488 = arith.mulf %425, %487 : vector<8x128xf32>
    %489 = arith.addf %417, %488 : vector<8x128xf32>
    %c4_85 = arith.constant 4 : index
    %490 = memref.load %arg4[%c4_85] : memref<32xf32, #tpu.memory_space<smem>>
    %491 = vector.broadcast %490 : f32 to vector<8x128xf32>
    %492 = arith.mulf %6, %491 : vector<8x128xf32>
    %c4_86 = arith.constant 4 : index
    %493 = memref.load %arg5[%c4_86] : memref<32xf32, #tpu.memory_space<smem>>
    %494 = vector.broadcast %493 : f32 to vector<8x128xf32>
    %495 = arith.addf %492, %494 : vector<8x128xf32>
    %cst_87 = arith.constant 0.000000e+00 : f32
    %496 = vector.broadcast %cst_87 : f32 to vector<8x128xf32>
    %497 = arith.maximumf %495, %496 : vector<8x128xf32>
    %c64 = arith.constant 64 : index
    %498 = memref.load %arg6[%c64] : memref<512xf32, #tpu.memory_space<smem>>
    %499 = vector.broadcast %498 : f32 to vector<8x128xf32>
    %500 = arith.mulf %497, %499 : vector<8x128xf32>
    %501 = arith.addf %429, %500 : vector<8x128xf32>
    %c65 = arith.constant 65 : index
    %502 = memref.load %arg6[%c65] : memref<512xf32, #tpu.memory_space<smem>>
    %503 = vector.broadcast %502 : f32 to vector<8x128xf32>
    %504 = arith.mulf %497, %503 : vector<8x128xf32>
    %505 = arith.addf %433, %504 : vector<8x128xf32>
    %c66 = arith.constant 66 : index
    %506 = memref.load %arg6[%c66] : memref<512xf32, #tpu.memory_space<smem>>
    %507 = vector.broadcast %506 : f32 to vector<8x128xf32>
    %508 = arith.mulf %497, %507 : vector<8x128xf32>
    %509 = arith.addf %437, %508 : vector<8x128xf32>
    %c67 = arith.constant 67 : index
    %510 = memref.load %arg6[%c67] : memref<512xf32, #tpu.memory_space<smem>>
    %511 = vector.broadcast %510 : f32 to vector<8x128xf32>
    %512 = arith.mulf %497, %511 : vector<8x128xf32>
    %513 = arith.addf %441, %512 : vector<8x128xf32>
    %c68 = arith.constant 68 : index
    %514 = memref.load %arg6[%c68] : memref<512xf32, #tpu.memory_space<smem>>
    %515 = vector.broadcast %514 : f32 to vector<8x128xf32>
    %516 = arith.mulf %497, %515 : vector<8x128xf32>
    %517 = arith.addf %445, %516 : vector<8x128xf32>
    %c69 = arith.constant 69 : index
    %518 = memref.load %arg6[%c69] : memref<512xf32, #tpu.memory_space<smem>>
    %519 = vector.broadcast %518 : f32 to vector<8x128xf32>
    %520 = arith.mulf %497, %519 : vector<8x128xf32>
    %521 = arith.addf %449, %520 : vector<8x128xf32>
    %c70 = arith.constant 70 : index
    %522 = memref.load %arg6[%c70] : memref<512xf32, #tpu.memory_space<smem>>
    %523 = vector.broadcast %522 : f32 to vector<8x128xf32>
    %524 = arith.mulf %497, %523 : vector<8x128xf32>
    %525 = arith.addf %453, %524 : vector<8x128xf32>
    %c71 = arith.constant 71 : index
    %526 = memref.load %arg6[%c71] : memref<512xf32, #tpu.memory_space<smem>>
    %527 = vector.broadcast %526 : f32 to vector<8x128xf32>
    %528 = arith.mulf %497, %527 : vector<8x128xf32>
    %529 = arith.addf %457, %528 : vector<8x128xf32>
    %c72 = arith.constant 72 : index
    %530 = memref.load %arg6[%c72] : memref<512xf32, #tpu.memory_space<smem>>
    %531 = vector.broadcast %530 : f32 to vector<8x128xf32>
    %532 = arith.mulf %497, %531 : vector<8x128xf32>
    %533 = arith.addf %461, %532 : vector<8x128xf32>
    %c73 = arith.constant 73 : index
    %534 = memref.load %arg6[%c73] : memref<512xf32, #tpu.memory_space<smem>>
    %535 = vector.broadcast %534 : f32 to vector<8x128xf32>
    %536 = arith.mulf %497, %535 : vector<8x128xf32>
    %537 = arith.addf %465, %536 : vector<8x128xf32>
    %c74 = arith.constant 74 : index
    %538 = memref.load %arg6[%c74] : memref<512xf32, #tpu.memory_space<smem>>
    %539 = vector.broadcast %538 : f32 to vector<8x128xf32>
    %540 = arith.mulf %497, %539 : vector<8x128xf32>
    %541 = arith.addf %469, %540 : vector<8x128xf32>
    %c75 = arith.constant 75 : index
    %542 = memref.load %arg6[%c75] : memref<512xf32, #tpu.memory_space<smem>>
    %543 = vector.broadcast %542 : f32 to vector<8x128xf32>
    %544 = arith.mulf %497, %543 : vector<8x128xf32>
    %545 = arith.addf %473, %544 : vector<8x128xf32>
    %c76 = arith.constant 76 : index
    %546 = memref.load %arg6[%c76] : memref<512xf32, #tpu.memory_space<smem>>
    %547 = vector.broadcast %546 : f32 to vector<8x128xf32>
    %548 = arith.mulf %497, %547 : vector<8x128xf32>
    %549 = arith.addf %477, %548 : vector<8x128xf32>
    %c77 = arith.constant 77 : index
    %550 = memref.load %arg6[%c77] : memref<512xf32, #tpu.memory_space<smem>>
    %551 = vector.broadcast %550 : f32 to vector<8x128xf32>
    %552 = arith.mulf %497, %551 : vector<8x128xf32>
    %553 = arith.addf %481, %552 : vector<8x128xf32>
    %c78 = arith.constant 78 : index
    %554 = memref.load %arg6[%c78] : memref<512xf32, #tpu.memory_space<smem>>
    %555 = vector.broadcast %554 : f32 to vector<8x128xf32>
    %556 = arith.mulf %497, %555 : vector<8x128xf32>
    %557 = arith.addf %485, %556 : vector<8x128xf32>
    %c79 = arith.constant 79 : index
    %558 = memref.load %arg6[%c79] : memref<512xf32, #tpu.memory_space<smem>>
    %559 = vector.broadcast %558 : f32 to vector<8x128xf32>
    %560 = arith.mulf %497, %559 : vector<8x128xf32>
    %561 = arith.addf %489, %560 : vector<8x128xf32>
    %c5_88 = arith.constant 5 : index
    %562 = memref.load %arg4[%c5_88] : memref<32xf32, #tpu.memory_space<smem>>
    %563 = vector.broadcast %562 : f32 to vector<8x128xf32>
    %564 = arith.mulf %6, %563 : vector<8x128xf32>
    %c5_89 = arith.constant 5 : index
    %565 = memref.load %arg5[%c5_89] : memref<32xf32, #tpu.memory_space<smem>>
    %566 = vector.broadcast %565 : f32 to vector<8x128xf32>
    %567 = arith.addf %564, %566 : vector<8x128xf32>
    %cst_90 = arith.constant 0.000000e+00 : f32
    %568 = vector.broadcast %cst_90 : f32 to vector<8x128xf32>
    %569 = arith.maximumf %567, %568 : vector<8x128xf32>
    %c80 = arith.constant 80 : index
    %570 = memref.load %arg6[%c80] : memref<512xf32, #tpu.memory_space<smem>>
    %571 = vector.broadcast %570 : f32 to vector<8x128xf32>
    %572 = arith.mulf %569, %571 : vector<8x128xf32>
    %573 = arith.addf %501, %572 : vector<8x128xf32>
    %c81 = arith.constant 81 : index
    %574 = memref.load %arg6[%c81] : memref<512xf32, #tpu.memory_space<smem>>
    %575 = vector.broadcast %574 : f32 to vector<8x128xf32>
    %576 = arith.mulf %569, %575 : vector<8x128xf32>
    %577 = arith.addf %505, %576 : vector<8x128xf32>
    %c82 = arith.constant 82 : index
    %578 = memref.load %arg6[%c82] : memref<512xf32, #tpu.memory_space<smem>>
    %579 = vector.broadcast %578 : f32 to vector<8x128xf32>
    %580 = arith.mulf %569, %579 : vector<8x128xf32>
    %581 = arith.addf %509, %580 : vector<8x128xf32>
    %c83 = arith.constant 83 : index
    %582 = memref.load %arg6[%c83] : memref<512xf32, #tpu.memory_space<smem>>
    %583 = vector.broadcast %582 : f32 to vector<8x128xf32>
    %584 = arith.mulf %569, %583 : vector<8x128xf32>
    %585 = arith.addf %513, %584 : vector<8x128xf32>
    %c84 = arith.constant 84 : index
    %586 = memref.load %arg6[%c84] : memref<512xf32, #tpu.memory_space<smem>>
    %587 = vector.broadcast %586 : f32 to vector<8x128xf32>
    %588 = arith.mulf %569, %587 : vector<8x128xf32>
    %589 = arith.addf %517, %588 : vector<8x128xf32>
    %c85 = arith.constant 85 : index
    %590 = memref.load %arg6[%c85] : memref<512xf32, #tpu.memory_space<smem>>
    %591 = vector.broadcast %590 : f32 to vector<8x128xf32>
    %592 = arith.mulf %569, %591 : vector<8x128xf32>
    %593 = arith.addf %521, %592 : vector<8x128xf32>
    %c86 = arith.constant 86 : index
    %594 = memref.load %arg6[%c86] : memref<512xf32, #tpu.memory_space<smem>>
    %595 = vector.broadcast %594 : f32 to vector<8x128xf32>
    %596 = arith.mulf %569, %595 : vector<8x128xf32>
    %597 = arith.addf %525, %596 : vector<8x128xf32>
    %c87 = arith.constant 87 : index
    %598 = memref.load %arg6[%c87] : memref<512xf32, #tpu.memory_space<smem>>
    %599 = vector.broadcast %598 : f32 to vector<8x128xf32>
    %600 = arith.mulf %569, %599 : vector<8x128xf32>
    %601 = arith.addf %529, %600 : vector<8x128xf32>
    %c88 = arith.constant 88 : index
    %602 = memref.load %arg6[%c88] : memref<512xf32, #tpu.memory_space<smem>>
    %603 = vector.broadcast %602 : f32 to vector<8x128xf32>
    %604 = arith.mulf %569, %603 : vector<8x128xf32>
    %605 = arith.addf %533, %604 : vector<8x128xf32>
    %c89 = arith.constant 89 : index
    %606 = memref.load %arg6[%c89] : memref<512xf32, #tpu.memory_space<smem>>
    %607 = vector.broadcast %606 : f32 to vector<8x128xf32>
    %608 = arith.mulf %569, %607 : vector<8x128xf32>
    %609 = arith.addf %537, %608 : vector<8x128xf32>
    %c90 = arith.constant 90 : index
    %610 = memref.load %arg6[%c90] : memref<512xf32, #tpu.memory_space<smem>>
    %611 = vector.broadcast %610 : f32 to vector<8x128xf32>
    %612 = arith.mulf %569, %611 : vector<8x128xf32>
    %613 = arith.addf %541, %612 : vector<8x128xf32>
    %c91 = arith.constant 91 : index
    %614 = memref.load %arg6[%c91] : memref<512xf32, #tpu.memory_space<smem>>
    %615 = vector.broadcast %614 : f32 to vector<8x128xf32>
    %616 = arith.mulf %569, %615 : vector<8x128xf32>
    %617 = arith.addf %545, %616 : vector<8x128xf32>
    %c92 = arith.constant 92 : index
    %618 = memref.load %arg6[%c92] : memref<512xf32, #tpu.memory_space<smem>>
    %619 = vector.broadcast %618 : f32 to vector<8x128xf32>
    %620 = arith.mulf %569, %619 : vector<8x128xf32>
    %621 = arith.addf %549, %620 : vector<8x128xf32>
    %c93 = arith.constant 93 : index
    %622 = memref.load %arg6[%c93] : memref<512xf32, #tpu.memory_space<smem>>
    %623 = vector.broadcast %622 : f32 to vector<8x128xf32>
    %624 = arith.mulf %569, %623 : vector<8x128xf32>
    %625 = arith.addf %553, %624 : vector<8x128xf32>
    %c94 = arith.constant 94 : index
    %626 = memref.load %arg6[%c94] : memref<512xf32, #tpu.memory_space<smem>>
    %627 = vector.broadcast %626 : f32 to vector<8x128xf32>
    %628 = arith.mulf %569, %627 : vector<8x128xf32>
    %629 = arith.addf %557, %628 : vector<8x128xf32>
    %c95 = arith.constant 95 : index
    %630 = memref.load %arg6[%c95] : memref<512xf32, #tpu.memory_space<smem>>
    %631 = vector.broadcast %630 : f32 to vector<8x128xf32>
    %632 = arith.mulf %569, %631 : vector<8x128xf32>
    %633 = arith.addf %561, %632 : vector<8x128xf32>
    %c6_91 = arith.constant 6 : index
    %634 = memref.load %arg4[%c6_91] : memref<32xf32, #tpu.memory_space<smem>>
    %635 = vector.broadcast %634 : f32 to vector<8x128xf32>
    %636 = arith.mulf %6, %635 : vector<8x128xf32>
    %c6_92 = arith.constant 6 : index
    %637 = memref.load %arg5[%c6_92] : memref<32xf32, #tpu.memory_space<smem>>
    %638 = vector.broadcast %637 : f32 to vector<8x128xf32>
    %639 = arith.addf %636, %638 : vector<8x128xf32>
    %cst_93 = arith.constant 0.000000e+00 : f32
    %640 = vector.broadcast %cst_93 : f32 to vector<8x128xf32>
    %641 = arith.maximumf %639, %640 : vector<8x128xf32>
    %c96 = arith.constant 96 : index
    %642 = memref.load %arg6[%c96] : memref<512xf32, #tpu.memory_space<smem>>
    %643 = vector.broadcast %642 : f32 to vector<8x128xf32>
    %644 = arith.mulf %641, %643 : vector<8x128xf32>
    %645 = arith.addf %573, %644 : vector<8x128xf32>
    %c97 = arith.constant 97 : index
    %646 = memref.load %arg6[%c97] : memref<512xf32, #tpu.memory_space<smem>>
    %647 = vector.broadcast %646 : f32 to vector<8x128xf32>
    %648 = arith.mulf %641, %647 : vector<8x128xf32>
    %649 = arith.addf %577, %648 : vector<8x128xf32>
    %c98 = arith.constant 98 : index
    %650 = memref.load %arg6[%c98] : memref<512xf32, #tpu.memory_space<smem>>
    %651 = vector.broadcast %650 : f32 to vector<8x128xf32>
    %652 = arith.mulf %641, %651 : vector<8x128xf32>
    %653 = arith.addf %581, %652 : vector<8x128xf32>
    %c99 = arith.constant 99 : index
    %654 = memref.load %arg6[%c99] : memref<512xf32, #tpu.memory_space<smem>>
    %655 = vector.broadcast %654 : f32 to vector<8x128xf32>
    %656 = arith.mulf %641, %655 : vector<8x128xf32>
    %657 = arith.addf %585, %656 : vector<8x128xf32>
    %c100 = arith.constant 100 : index
    %658 = memref.load %arg6[%c100] : memref<512xf32, #tpu.memory_space<smem>>
    %659 = vector.broadcast %658 : f32 to vector<8x128xf32>
    %660 = arith.mulf %641, %659 : vector<8x128xf32>
    %661 = arith.addf %589, %660 : vector<8x128xf32>
    %c101 = arith.constant 101 : index
    %662 = memref.load %arg6[%c101] : memref<512xf32, #tpu.memory_space<smem>>
    %663 = vector.broadcast %662 : f32 to vector<8x128xf32>
    %664 = arith.mulf %641, %663 : vector<8x128xf32>
    %665 = arith.addf %593, %664 : vector<8x128xf32>
    %c102 = arith.constant 102 : index
    %666 = memref.load %arg6[%c102] : memref<512xf32, #tpu.memory_space<smem>>
    %667 = vector.broadcast %666 : f32 to vector<8x128xf32>
    %668 = arith.mulf %641, %667 : vector<8x128xf32>
    %669 = arith.addf %597, %668 : vector<8x128xf32>
    %c103 = arith.constant 103 : index
    %670 = memref.load %arg6[%c103] : memref<512xf32, #tpu.memory_space<smem>>
    %671 = vector.broadcast %670 : f32 to vector<8x128xf32>
    %672 = arith.mulf %641, %671 : vector<8x128xf32>
    %673 = arith.addf %601, %672 : vector<8x128xf32>
    %c104 = arith.constant 104 : index
    %674 = memref.load %arg6[%c104] : memref<512xf32, #tpu.memory_space<smem>>
    %675 = vector.broadcast %674 : f32 to vector<8x128xf32>
    %676 = arith.mulf %641, %675 : vector<8x128xf32>
    %677 = arith.addf %605, %676 : vector<8x128xf32>
    %c105 = arith.constant 105 : index
    %678 = memref.load %arg6[%c105] : memref<512xf32, #tpu.memory_space<smem>>
    %679 = vector.broadcast %678 : f32 to vector<8x128xf32>
    %680 = arith.mulf %641, %679 : vector<8x128xf32>
    %681 = arith.addf %609, %680 : vector<8x128xf32>
    %c106 = arith.constant 106 : index
    %682 = memref.load %arg6[%c106] : memref<512xf32, #tpu.memory_space<smem>>
    %683 = vector.broadcast %682 : f32 to vector<8x128xf32>
    %684 = arith.mulf %641, %683 : vector<8x128xf32>
    %685 = arith.addf %613, %684 : vector<8x128xf32>
    %c107 = arith.constant 107 : index
    %686 = memref.load %arg6[%c107] : memref<512xf32, #tpu.memory_space<smem>>
    %687 = vector.broadcast %686 : f32 to vector<8x128xf32>
    %688 = arith.mulf %641, %687 : vector<8x128xf32>
    %689 = arith.addf %617, %688 : vector<8x128xf32>
    %c108 = arith.constant 108 : index
    %690 = memref.load %arg6[%c108] : memref<512xf32, #tpu.memory_space<smem>>
    %691 = vector.broadcast %690 : f32 to vector<8x128xf32>
    %692 = arith.mulf %641, %691 : vector<8x128xf32>
    %693 = arith.addf %621, %692 : vector<8x128xf32>
    %c109 = arith.constant 109 : index
    %694 = memref.load %arg6[%c109] : memref<512xf32, #tpu.memory_space<smem>>
    %695 = vector.broadcast %694 : f32 to vector<8x128xf32>
    %696 = arith.mulf %641, %695 : vector<8x128xf32>
    %697 = arith.addf %625, %696 : vector<8x128xf32>
    %c110 = arith.constant 110 : index
    %698 = memref.load %arg6[%c110] : memref<512xf32, #tpu.memory_space<smem>>
    %699 = vector.broadcast %698 : f32 to vector<8x128xf32>
    %700 = arith.mulf %641, %699 : vector<8x128xf32>
    %701 = arith.addf %629, %700 : vector<8x128xf32>
    %c111 = arith.constant 111 : index
    %702 = memref.load %arg6[%c111] : memref<512xf32, #tpu.memory_space<smem>>
    %703 = vector.broadcast %702 : f32 to vector<8x128xf32>
    %704 = arith.mulf %641, %703 : vector<8x128xf32>
    %705 = arith.addf %633, %704 : vector<8x128xf32>
    %c7_94 = arith.constant 7 : index
    %706 = memref.load %arg4[%c7_94] : memref<32xf32, #tpu.memory_space<smem>>
    %707 = vector.broadcast %706 : f32 to vector<8x128xf32>
    %708 = arith.mulf %6, %707 : vector<8x128xf32>
    %c7_95 = arith.constant 7 : index
    %709 = memref.load %arg5[%c7_95] : memref<32xf32, #tpu.memory_space<smem>>
    %710 = vector.broadcast %709 : f32 to vector<8x128xf32>
    %711 = arith.addf %708, %710 : vector<8x128xf32>
    %cst_96 = arith.constant 0.000000e+00 : f32
    %712 = vector.broadcast %cst_96 : f32 to vector<8x128xf32>
    %713 = arith.maximumf %711, %712 : vector<8x128xf32>
    %c112 = arith.constant 112 : index
    %714 = memref.load %arg6[%c112] : memref<512xf32, #tpu.memory_space<smem>>
    %715 = vector.broadcast %714 : f32 to vector<8x128xf32>
    %716 = arith.mulf %713, %715 : vector<8x128xf32>
    %717 = arith.addf %645, %716 : vector<8x128xf32>
    %c113 = arith.constant 113 : index
    %718 = memref.load %arg6[%c113] : memref<512xf32, #tpu.memory_space<smem>>
    %719 = vector.broadcast %718 : f32 to vector<8x128xf32>
    %720 = arith.mulf %713, %719 : vector<8x128xf32>
    %721 = arith.addf %649, %720 : vector<8x128xf32>
    %c114 = arith.constant 114 : index
    %722 = memref.load %arg6[%c114] : memref<512xf32, #tpu.memory_space<smem>>
    %723 = vector.broadcast %722 : f32 to vector<8x128xf32>
    %724 = arith.mulf %713, %723 : vector<8x128xf32>
    %725 = arith.addf %653, %724 : vector<8x128xf32>
    %c115 = arith.constant 115 : index
    %726 = memref.load %arg6[%c115] : memref<512xf32, #tpu.memory_space<smem>>
    %727 = vector.broadcast %726 : f32 to vector<8x128xf32>
    %728 = arith.mulf %713, %727 : vector<8x128xf32>
    %729 = arith.addf %657, %728 : vector<8x128xf32>
    %c116 = arith.constant 116 : index
    %730 = memref.load %arg6[%c116] : memref<512xf32, #tpu.memory_space<smem>>
    %731 = vector.broadcast %730 : f32 to vector<8x128xf32>
    %732 = arith.mulf %713, %731 : vector<8x128xf32>
    %733 = arith.addf %661, %732 : vector<8x128xf32>
    %c117 = arith.constant 117 : index
    %734 = memref.load %arg6[%c117] : memref<512xf32, #tpu.memory_space<smem>>
    %735 = vector.broadcast %734 : f32 to vector<8x128xf32>
    %736 = arith.mulf %713, %735 : vector<8x128xf32>
    %737 = arith.addf %665, %736 : vector<8x128xf32>
    %c118 = arith.constant 118 : index
    %738 = memref.load %arg6[%c118] : memref<512xf32, #tpu.memory_space<smem>>
    %739 = vector.broadcast %738 : f32 to vector<8x128xf32>
    %740 = arith.mulf %713, %739 : vector<8x128xf32>
    %741 = arith.addf %669, %740 : vector<8x128xf32>
    %c119 = arith.constant 119 : index
    %742 = memref.load %arg6[%c119] : memref<512xf32, #tpu.memory_space<smem>>
    %743 = vector.broadcast %742 : f32 to vector<8x128xf32>
    %744 = arith.mulf %713, %743 : vector<8x128xf32>
    %745 = arith.addf %673, %744 : vector<8x128xf32>
    %c120 = arith.constant 120 : index
    %746 = memref.load %arg6[%c120] : memref<512xf32, #tpu.memory_space<smem>>
    %747 = vector.broadcast %746 : f32 to vector<8x128xf32>
    %748 = arith.mulf %713, %747 : vector<8x128xf32>
    %749 = arith.addf %677, %748 : vector<8x128xf32>
    %c121 = arith.constant 121 : index
    %750 = memref.load %arg6[%c121] : memref<512xf32, #tpu.memory_space<smem>>
    %751 = vector.broadcast %750 : f32 to vector<8x128xf32>
    %752 = arith.mulf %713, %751 : vector<8x128xf32>
    %753 = arith.addf %681, %752 : vector<8x128xf32>
    %c122 = arith.constant 122 : index
    %754 = memref.load %arg6[%c122] : memref<512xf32, #tpu.memory_space<smem>>
    %755 = vector.broadcast %754 : f32 to vector<8x128xf32>
    %756 = arith.mulf %713, %755 : vector<8x128xf32>
    %757 = arith.addf %685, %756 : vector<8x128xf32>
    %c123 = arith.constant 123 : index
    %758 = memref.load %arg6[%c123] : memref<512xf32, #tpu.memory_space<smem>>
    %759 = vector.broadcast %758 : f32 to vector<8x128xf32>
    %760 = arith.mulf %713, %759 : vector<8x128xf32>
    %761 = arith.addf %689, %760 : vector<8x128xf32>
    %c124 = arith.constant 124 : index
    %762 = memref.load %arg6[%c124] : memref<512xf32, #tpu.memory_space<smem>>
    %763 = vector.broadcast %762 : f32 to vector<8x128xf32>
    %764 = arith.mulf %713, %763 : vector<8x128xf32>
    %765 = arith.addf %693, %764 : vector<8x128xf32>
    %c125 = arith.constant 125 : index
    %766 = memref.load %arg6[%c125] : memref<512xf32, #tpu.memory_space<smem>>
    %767 = vector.broadcast %766 : f32 to vector<8x128xf32>
    %768 = arith.mulf %713, %767 : vector<8x128xf32>
    %769 = arith.addf %697, %768 : vector<8x128xf32>
    %c126 = arith.constant 126 : index
    %770 = memref.load %arg6[%c126] : memref<512xf32, #tpu.memory_space<smem>>
    %771 = vector.broadcast %770 : f32 to vector<8x128xf32>
    %772 = arith.mulf %713, %771 : vector<8x128xf32>
    %773 = arith.addf %701, %772 : vector<8x128xf32>
    %c127 = arith.constant 127 : index
    %774 = memref.load %arg6[%c127] : memref<512xf32, #tpu.memory_space<smem>>
    %775 = vector.broadcast %774 : f32 to vector<8x128xf32>
    %776 = arith.mulf %713, %775 : vector<8x128xf32>
    %777 = arith.addf %705, %776 : vector<8x128xf32>
    %c8_97 = arith.constant 8 : index
    %778 = memref.load %arg4[%c8_97] : memref<32xf32, #tpu.memory_space<smem>>
    %779 = vector.broadcast %778 : f32 to vector<8x128xf32>
    %780 = arith.mulf %6, %779 : vector<8x128xf32>
    %c8_98 = arith.constant 8 : index
    %781 = memref.load %arg5[%c8_98] : memref<32xf32, #tpu.memory_space<smem>>
    %782 = vector.broadcast %781 : f32 to vector<8x128xf32>
    %783 = arith.addf %780, %782 : vector<8x128xf32>
    %cst_99 = arith.constant 0.000000e+00 : f32
    %784 = vector.broadcast %cst_99 : f32 to vector<8x128xf32>
    %785 = arith.maximumf %783, %784 : vector<8x128xf32>
    %c128 = arith.constant 128 : index
    %786 = memref.load %arg6[%c128] : memref<512xf32, #tpu.memory_space<smem>>
    %787 = vector.broadcast %786 : f32 to vector<8x128xf32>
    %788 = arith.mulf %785, %787 : vector<8x128xf32>
    %789 = arith.addf %717, %788 : vector<8x128xf32>
    %c129 = arith.constant 129 : index
    %790 = memref.load %arg6[%c129] : memref<512xf32, #tpu.memory_space<smem>>
    %791 = vector.broadcast %790 : f32 to vector<8x128xf32>
    %792 = arith.mulf %785, %791 : vector<8x128xf32>
    %793 = arith.addf %721, %792 : vector<8x128xf32>
    %c130 = arith.constant 130 : index
    %794 = memref.load %arg6[%c130] : memref<512xf32, #tpu.memory_space<smem>>
    %795 = vector.broadcast %794 : f32 to vector<8x128xf32>
    %796 = arith.mulf %785, %795 : vector<8x128xf32>
    %797 = arith.addf %725, %796 : vector<8x128xf32>
    %c131 = arith.constant 131 : index
    %798 = memref.load %arg6[%c131] : memref<512xf32, #tpu.memory_space<smem>>
    %799 = vector.broadcast %798 : f32 to vector<8x128xf32>
    %800 = arith.mulf %785, %799 : vector<8x128xf32>
    %801 = arith.addf %729, %800 : vector<8x128xf32>
    %c132 = arith.constant 132 : index
    %802 = memref.load %arg6[%c132] : memref<512xf32, #tpu.memory_space<smem>>
    %803 = vector.broadcast %802 : f32 to vector<8x128xf32>
    %804 = arith.mulf %785, %803 : vector<8x128xf32>
    %805 = arith.addf %733, %804 : vector<8x128xf32>
    %c133 = arith.constant 133 : index
    %806 = memref.load %arg6[%c133] : memref<512xf32, #tpu.memory_space<smem>>
    %807 = vector.broadcast %806 : f32 to vector<8x128xf32>
    %808 = arith.mulf %785, %807 : vector<8x128xf32>
    %809 = arith.addf %737, %808 : vector<8x128xf32>
    %c134 = arith.constant 134 : index
    %810 = memref.load %arg6[%c134] : memref<512xf32, #tpu.memory_space<smem>>
    %811 = vector.broadcast %810 : f32 to vector<8x128xf32>
    %812 = arith.mulf %785, %811 : vector<8x128xf32>
    %813 = arith.addf %741, %812 : vector<8x128xf32>
    %c135 = arith.constant 135 : index
    %814 = memref.load %arg6[%c135] : memref<512xf32, #tpu.memory_space<smem>>
    %815 = vector.broadcast %814 : f32 to vector<8x128xf32>
    %816 = arith.mulf %785, %815 : vector<8x128xf32>
    %817 = arith.addf %745, %816 : vector<8x128xf32>
    %c136 = arith.constant 136 : index
    %818 = memref.load %arg6[%c136] : memref<512xf32, #tpu.memory_space<smem>>
    %819 = vector.broadcast %818 : f32 to vector<8x128xf32>
    %820 = arith.mulf %785, %819 : vector<8x128xf32>
    %821 = arith.addf %749, %820 : vector<8x128xf32>
    %c137 = arith.constant 137 : index
    %822 = memref.load %arg6[%c137] : memref<512xf32, #tpu.memory_space<smem>>
    %823 = vector.broadcast %822 : f32 to vector<8x128xf32>
    %824 = arith.mulf %785, %823 : vector<8x128xf32>
    %825 = arith.addf %753, %824 : vector<8x128xf32>
    %c138 = arith.constant 138 : index
    %826 = memref.load %arg6[%c138] : memref<512xf32, #tpu.memory_space<smem>>
    %827 = vector.broadcast %826 : f32 to vector<8x128xf32>
    %828 = arith.mulf %785, %827 : vector<8x128xf32>
    %829 = arith.addf %757, %828 : vector<8x128xf32>
    %c139 = arith.constant 139 : index
    %830 = memref.load %arg6[%c139] : memref<512xf32, #tpu.memory_space<smem>>
    %831 = vector.broadcast %830 : f32 to vector<8x128xf32>
    %832 = arith.mulf %785, %831 : vector<8x128xf32>
    %833 = arith.addf %761, %832 : vector<8x128xf32>
    %c140 = arith.constant 140 : index
    %834 = memref.load %arg6[%c140] : memref<512xf32, #tpu.memory_space<smem>>
    %835 = vector.broadcast %834 : f32 to vector<8x128xf32>
    %836 = arith.mulf %785, %835 : vector<8x128xf32>
    %837 = arith.addf %765, %836 : vector<8x128xf32>
    %c141 = arith.constant 141 : index
    %838 = memref.load %arg6[%c141] : memref<512xf32, #tpu.memory_space<smem>>
    %839 = vector.broadcast %838 : f32 to vector<8x128xf32>
    %840 = arith.mulf %785, %839 : vector<8x128xf32>
    %841 = arith.addf %769, %840 : vector<8x128xf32>
    %c142 = arith.constant 142 : index
    %842 = memref.load %arg6[%c142] : memref<512xf32, #tpu.memory_space<smem>>
    %843 = vector.broadcast %842 : f32 to vector<8x128xf32>
    %844 = arith.mulf %785, %843 : vector<8x128xf32>
    %845 = arith.addf %773, %844 : vector<8x128xf32>
    %c143 = arith.constant 143 : index
    %846 = memref.load %arg6[%c143] : memref<512xf32, #tpu.memory_space<smem>>
    %847 = vector.broadcast %846 : f32 to vector<8x128xf32>
    %848 = arith.mulf %785, %847 : vector<8x128xf32>
    %849 = arith.addf %777, %848 : vector<8x128xf32>
    %c9_100 = arith.constant 9 : index
    %850 = memref.load %arg4[%c9_100] : memref<32xf32, #tpu.memory_space<smem>>
    %851 = vector.broadcast %850 : f32 to vector<8x128xf32>
    %852 = arith.mulf %6, %851 : vector<8x128xf32>
    %c9_101 = arith.constant 9 : index
    %853 = memref.load %arg5[%c9_101] : memref<32xf32, #tpu.memory_space<smem>>
    %854 = vector.broadcast %853 : f32 to vector<8x128xf32>
    %855 = arith.addf %852, %854 : vector<8x128xf32>
    %cst_102 = arith.constant 0.000000e+00 : f32
    %856 = vector.broadcast %cst_102 : f32 to vector<8x128xf32>
    %857 = arith.maximumf %855, %856 : vector<8x128xf32>
    %c144 = arith.constant 144 : index
    %858 = memref.load %arg6[%c144] : memref<512xf32, #tpu.memory_space<smem>>
    %859 = vector.broadcast %858 : f32 to vector<8x128xf32>
    %860 = arith.mulf %857, %859 : vector<8x128xf32>
    %861 = arith.addf %789, %860 : vector<8x128xf32>
    %c145 = arith.constant 145 : index
    %862 = memref.load %arg6[%c145] : memref<512xf32, #tpu.memory_space<smem>>
    %863 = vector.broadcast %862 : f32 to vector<8x128xf32>
    %864 = arith.mulf %857, %863 : vector<8x128xf32>
    %865 = arith.addf %793, %864 : vector<8x128xf32>
    %c146 = arith.constant 146 : index
    %866 = memref.load %arg6[%c146] : memref<512xf32, #tpu.memory_space<smem>>
    %867 = vector.broadcast %866 : f32 to vector<8x128xf32>
    %868 = arith.mulf %857, %867 : vector<8x128xf32>
    %869 = arith.addf %797, %868 : vector<8x128xf32>
    %c147 = arith.constant 147 : index
    %870 = memref.load %arg6[%c147] : memref<512xf32, #tpu.memory_space<smem>>
    %871 = vector.broadcast %870 : f32 to vector<8x128xf32>
    %872 = arith.mulf %857, %871 : vector<8x128xf32>
    %873 = arith.addf %801, %872 : vector<8x128xf32>
    %c148 = arith.constant 148 : index
    %874 = memref.load %arg6[%c148] : memref<512xf32, #tpu.memory_space<smem>>
    %875 = vector.broadcast %874 : f32 to vector<8x128xf32>
    %876 = arith.mulf %857, %875 : vector<8x128xf32>
    %877 = arith.addf %805, %876 : vector<8x128xf32>
    %c149 = arith.constant 149 : index
    %878 = memref.load %arg6[%c149] : memref<512xf32, #tpu.memory_space<smem>>
    %879 = vector.broadcast %878 : f32 to vector<8x128xf32>
    %880 = arith.mulf %857, %879 : vector<8x128xf32>
    %881 = arith.addf %809, %880 : vector<8x128xf32>
    %c150 = arith.constant 150 : index
    %882 = memref.load %arg6[%c150] : memref<512xf32, #tpu.memory_space<smem>>
    %883 = vector.broadcast %882 : f32 to vector<8x128xf32>
    %884 = arith.mulf %857, %883 : vector<8x128xf32>
    %885 = arith.addf %813, %884 : vector<8x128xf32>
    %c151 = arith.constant 151 : index
    %886 = memref.load %arg6[%c151] : memref<512xf32, #tpu.memory_space<smem>>
    %887 = vector.broadcast %886 : f32 to vector<8x128xf32>
    %888 = arith.mulf %857, %887 : vector<8x128xf32>
    %889 = arith.addf %817, %888 : vector<8x128xf32>
    %c152 = arith.constant 152 : index
    %890 = memref.load %arg6[%c152] : memref<512xf32, #tpu.memory_space<smem>>
    %891 = vector.broadcast %890 : f32 to vector<8x128xf32>
    %892 = arith.mulf %857, %891 : vector<8x128xf32>
    %893 = arith.addf %821, %892 : vector<8x128xf32>
    %c153 = arith.constant 153 : index
    %894 = memref.load %arg6[%c153] : memref<512xf32, #tpu.memory_space<smem>>
    %895 = vector.broadcast %894 : f32 to vector<8x128xf32>
    %896 = arith.mulf %857, %895 : vector<8x128xf32>
    %897 = arith.addf %825, %896 : vector<8x128xf32>
    %c154 = arith.constant 154 : index
    %898 = memref.load %arg6[%c154] : memref<512xf32, #tpu.memory_space<smem>>
    %899 = vector.broadcast %898 : f32 to vector<8x128xf32>
    %900 = arith.mulf %857, %899 : vector<8x128xf32>
    %901 = arith.addf %829, %900 : vector<8x128xf32>
    %c155 = arith.constant 155 : index
    %902 = memref.load %arg6[%c155] : memref<512xf32, #tpu.memory_space<smem>>
    %903 = vector.broadcast %902 : f32 to vector<8x128xf32>
    %904 = arith.mulf %857, %903 : vector<8x128xf32>
    %905 = arith.addf %833, %904 : vector<8x128xf32>
    %c156 = arith.constant 156 : index
    %906 = memref.load %arg6[%c156] : memref<512xf32, #tpu.memory_space<smem>>
    %907 = vector.broadcast %906 : f32 to vector<8x128xf32>
    %908 = arith.mulf %857, %907 : vector<8x128xf32>
    %909 = arith.addf %837, %908 : vector<8x128xf32>
    %c157 = arith.constant 157 : index
    %910 = memref.load %arg6[%c157] : memref<512xf32, #tpu.memory_space<smem>>
    %911 = vector.broadcast %910 : f32 to vector<8x128xf32>
    %912 = arith.mulf %857, %911 : vector<8x128xf32>
    %913 = arith.addf %841, %912 : vector<8x128xf32>
    %c158 = arith.constant 158 : index
    %914 = memref.load %arg6[%c158] : memref<512xf32, #tpu.memory_space<smem>>
    %915 = vector.broadcast %914 : f32 to vector<8x128xf32>
    %916 = arith.mulf %857, %915 : vector<8x128xf32>
    %917 = arith.addf %845, %916 : vector<8x128xf32>
    %c159 = arith.constant 159 : index
    %918 = memref.load %arg6[%c159] : memref<512xf32, #tpu.memory_space<smem>>
    %919 = vector.broadcast %918 : f32 to vector<8x128xf32>
    %920 = arith.mulf %857, %919 : vector<8x128xf32>
    %921 = arith.addf %849, %920 : vector<8x128xf32>
    %c10_103 = arith.constant 10 : index
    %922 = memref.load %arg4[%c10_103] : memref<32xf32, #tpu.memory_space<smem>>
    %923 = vector.broadcast %922 : f32 to vector<8x128xf32>
    %924 = arith.mulf %6, %923 : vector<8x128xf32>
    %c10_104 = arith.constant 10 : index
    %925 = memref.load %arg5[%c10_104] : memref<32xf32, #tpu.memory_space<smem>>
    %926 = vector.broadcast %925 : f32 to vector<8x128xf32>
    %927 = arith.addf %924, %926 : vector<8x128xf32>
    %cst_105 = arith.constant 0.000000e+00 : f32
    %928 = vector.broadcast %cst_105 : f32 to vector<8x128xf32>
    %929 = arith.maximumf %927, %928 : vector<8x128xf32>
    %c160 = arith.constant 160 : index
    %930 = memref.load %arg6[%c160] : memref<512xf32, #tpu.memory_space<smem>>
    %931 = vector.broadcast %930 : f32 to vector<8x128xf32>
    %932 = arith.mulf %929, %931 : vector<8x128xf32>
    %933 = arith.addf %861, %932 : vector<8x128xf32>
    %c161 = arith.constant 161 : index
    %934 = memref.load %arg6[%c161] : memref<512xf32, #tpu.memory_space<smem>>
    %935 = vector.broadcast %934 : f32 to vector<8x128xf32>
    %936 = arith.mulf %929, %935 : vector<8x128xf32>
    %937 = arith.addf %865, %936 : vector<8x128xf32>
    %c162 = arith.constant 162 : index
    %938 = memref.load %arg6[%c162] : memref<512xf32, #tpu.memory_space<smem>>
    %939 = vector.broadcast %938 : f32 to vector<8x128xf32>
    %940 = arith.mulf %929, %939 : vector<8x128xf32>
    %941 = arith.addf %869, %940 : vector<8x128xf32>
    %c163 = arith.constant 163 : index
    %942 = memref.load %arg6[%c163] : memref<512xf32, #tpu.memory_space<smem>>
    %943 = vector.broadcast %942 : f32 to vector<8x128xf32>
    %944 = arith.mulf %929, %943 : vector<8x128xf32>
    %945 = arith.addf %873, %944 : vector<8x128xf32>
    %c164 = arith.constant 164 : index
    %946 = memref.load %arg6[%c164] : memref<512xf32, #tpu.memory_space<smem>>
    %947 = vector.broadcast %946 : f32 to vector<8x128xf32>
    %948 = arith.mulf %929, %947 : vector<8x128xf32>
    %949 = arith.addf %877, %948 : vector<8x128xf32>
    %c165 = arith.constant 165 : index
    %950 = memref.load %arg6[%c165] : memref<512xf32, #tpu.memory_space<smem>>
    %951 = vector.broadcast %950 : f32 to vector<8x128xf32>
    %952 = arith.mulf %929, %951 : vector<8x128xf32>
    %953 = arith.addf %881, %952 : vector<8x128xf32>
    %c166 = arith.constant 166 : index
    %954 = memref.load %arg6[%c166] : memref<512xf32, #tpu.memory_space<smem>>
    %955 = vector.broadcast %954 : f32 to vector<8x128xf32>
    %956 = arith.mulf %929, %955 : vector<8x128xf32>
    %957 = arith.addf %885, %956 : vector<8x128xf32>
    %c167 = arith.constant 167 : index
    %958 = memref.load %arg6[%c167] : memref<512xf32, #tpu.memory_space<smem>>
    %959 = vector.broadcast %958 : f32 to vector<8x128xf32>
    %960 = arith.mulf %929, %959 : vector<8x128xf32>
    %961 = arith.addf %889, %960 : vector<8x128xf32>
    %c168 = arith.constant 168 : index
    %962 = memref.load %arg6[%c168] : memref<512xf32, #tpu.memory_space<smem>>
    %963 = vector.broadcast %962 : f32 to vector<8x128xf32>
    %964 = arith.mulf %929, %963 : vector<8x128xf32>
    %965 = arith.addf %893, %964 : vector<8x128xf32>
    %c169 = arith.constant 169 : index
    %966 = memref.load %arg6[%c169] : memref<512xf32, #tpu.memory_space<smem>>
    %967 = vector.broadcast %966 : f32 to vector<8x128xf32>
    %968 = arith.mulf %929, %967 : vector<8x128xf32>
    %969 = arith.addf %897, %968 : vector<8x128xf32>
    %c170 = arith.constant 170 : index
    %970 = memref.load %arg6[%c170] : memref<512xf32, #tpu.memory_space<smem>>
    %971 = vector.broadcast %970 : f32 to vector<8x128xf32>
    %972 = arith.mulf %929, %971 : vector<8x128xf32>
    %973 = arith.addf %901, %972 : vector<8x128xf32>
    %c171 = arith.constant 171 : index
    %974 = memref.load %arg6[%c171] : memref<512xf32, #tpu.memory_space<smem>>
    %975 = vector.broadcast %974 : f32 to vector<8x128xf32>
    %976 = arith.mulf %929, %975 : vector<8x128xf32>
    %977 = arith.addf %905, %976 : vector<8x128xf32>
    %c172 = arith.constant 172 : index
    %978 = memref.load %arg6[%c172] : memref<512xf32, #tpu.memory_space<smem>>
    %979 = vector.broadcast %978 : f32 to vector<8x128xf32>
    %980 = arith.mulf %929, %979 : vector<8x128xf32>
    %981 = arith.addf %909, %980 : vector<8x128xf32>
    %c173 = arith.constant 173 : index
    %982 = memref.load %arg6[%c173] : memref<512xf32, #tpu.memory_space<smem>>
    %983 = vector.broadcast %982 : f32 to vector<8x128xf32>
    %984 = arith.mulf %929, %983 : vector<8x128xf32>
    %985 = arith.addf %913, %984 : vector<8x128xf32>
    %c174 = arith.constant 174 : index
    %986 = memref.load %arg6[%c174] : memref<512xf32, #tpu.memory_space<smem>>
    %987 = vector.broadcast %986 : f32 to vector<8x128xf32>
    %988 = arith.mulf %929, %987 : vector<8x128xf32>
    %989 = arith.addf %917, %988 : vector<8x128xf32>
    %c175 = arith.constant 175 : index
    %990 = memref.load %arg6[%c175] : memref<512xf32, #tpu.memory_space<smem>>
    %991 = vector.broadcast %990 : f32 to vector<8x128xf32>
    %992 = arith.mulf %929, %991 : vector<8x128xf32>
    %993 = arith.addf %921, %992 : vector<8x128xf32>
    %c11_106 = arith.constant 11 : index
    %994 = memref.load %arg4[%c11_106] : memref<32xf32, #tpu.memory_space<smem>>
    %995 = vector.broadcast %994 : f32 to vector<8x128xf32>
    %996 = arith.mulf %6, %995 : vector<8x128xf32>
    %c11_107 = arith.constant 11 : index
    %997 = memref.load %arg5[%c11_107] : memref<32xf32, #tpu.memory_space<smem>>
    %998 = vector.broadcast %997 : f32 to vector<8x128xf32>
    %999 = arith.addf %996, %998 : vector<8x128xf32>
    %cst_108 = arith.constant 0.000000e+00 : f32
    %1000 = vector.broadcast %cst_108 : f32 to vector<8x128xf32>
    %1001 = arith.maximumf %999, %1000 : vector<8x128xf32>
    %c176 = arith.constant 176 : index
    %1002 = memref.load %arg6[%c176] : memref<512xf32, #tpu.memory_space<smem>>
    %1003 = vector.broadcast %1002 : f32 to vector<8x128xf32>
    %1004 = arith.mulf %1001, %1003 : vector<8x128xf32>
    %1005 = arith.addf %933, %1004 : vector<8x128xf32>
    %c177 = arith.constant 177 : index
    %1006 = memref.load %arg6[%c177] : memref<512xf32, #tpu.memory_space<smem>>
    %1007 = vector.broadcast %1006 : f32 to vector<8x128xf32>
    %1008 = arith.mulf %1001, %1007 : vector<8x128xf32>
    %1009 = arith.addf %937, %1008 : vector<8x128xf32>
    %c178 = arith.constant 178 : index
    %1010 = memref.load %arg6[%c178] : memref<512xf32, #tpu.memory_space<smem>>
    %1011 = vector.broadcast %1010 : f32 to vector<8x128xf32>
    %1012 = arith.mulf %1001, %1011 : vector<8x128xf32>
    %1013 = arith.addf %941, %1012 : vector<8x128xf32>
    %c179 = arith.constant 179 : index
    %1014 = memref.load %arg6[%c179] : memref<512xf32, #tpu.memory_space<smem>>
    %1015 = vector.broadcast %1014 : f32 to vector<8x128xf32>
    %1016 = arith.mulf %1001, %1015 : vector<8x128xf32>
    %1017 = arith.addf %945, %1016 : vector<8x128xf32>
    %c180 = arith.constant 180 : index
    %1018 = memref.load %arg6[%c180] : memref<512xf32, #tpu.memory_space<smem>>
    %1019 = vector.broadcast %1018 : f32 to vector<8x128xf32>
    %1020 = arith.mulf %1001, %1019 : vector<8x128xf32>
    %1021 = arith.addf %949, %1020 : vector<8x128xf32>
    %c181 = arith.constant 181 : index
    %1022 = memref.load %arg6[%c181] : memref<512xf32, #tpu.memory_space<smem>>
    %1023 = vector.broadcast %1022 : f32 to vector<8x128xf32>
    %1024 = arith.mulf %1001, %1023 : vector<8x128xf32>
    %1025 = arith.addf %953, %1024 : vector<8x128xf32>
    %c182 = arith.constant 182 : index
    %1026 = memref.load %arg6[%c182] : memref<512xf32, #tpu.memory_space<smem>>
    %1027 = vector.broadcast %1026 : f32 to vector<8x128xf32>
    %1028 = arith.mulf %1001, %1027 : vector<8x128xf32>
    %1029 = arith.addf %957, %1028 : vector<8x128xf32>
    %c183 = arith.constant 183 : index
    %1030 = memref.load %arg6[%c183] : memref<512xf32, #tpu.memory_space<smem>>
    %1031 = vector.broadcast %1030 : f32 to vector<8x128xf32>
    %1032 = arith.mulf %1001, %1031 : vector<8x128xf32>
    %1033 = arith.addf %961, %1032 : vector<8x128xf32>
    %c184 = arith.constant 184 : index
    %1034 = memref.load %arg6[%c184] : memref<512xf32, #tpu.memory_space<smem>>
    %1035 = vector.broadcast %1034 : f32 to vector<8x128xf32>
    %1036 = arith.mulf %1001, %1035 : vector<8x128xf32>
    %1037 = arith.addf %965, %1036 : vector<8x128xf32>
    %c185 = arith.constant 185 : index
    %1038 = memref.load %arg6[%c185] : memref<512xf32, #tpu.memory_space<smem>>
    %1039 = vector.broadcast %1038 : f32 to vector<8x128xf32>
    %1040 = arith.mulf %1001, %1039 : vector<8x128xf32>
    %1041 = arith.addf %969, %1040 : vector<8x128xf32>
    %c186 = arith.constant 186 : index
    %1042 = memref.load %arg6[%c186] : memref<512xf32, #tpu.memory_space<smem>>
    %1043 = vector.broadcast %1042 : f32 to vector<8x128xf32>
    %1044 = arith.mulf %1001, %1043 : vector<8x128xf32>
    %1045 = arith.addf %973, %1044 : vector<8x128xf32>
    %c187 = arith.constant 187 : index
    %1046 = memref.load %arg6[%c187] : memref<512xf32, #tpu.memory_space<smem>>
    %1047 = vector.broadcast %1046 : f32 to vector<8x128xf32>
    %1048 = arith.mulf %1001, %1047 : vector<8x128xf32>
    %1049 = arith.addf %977, %1048 : vector<8x128xf32>
    %c188 = arith.constant 188 : index
    %1050 = memref.load %arg6[%c188] : memref<512xf32, #tpu.memory_space<smem>>
    %1051 = vector.broadcast %1050 : f32 to vector<8x128xf32>
    %1052 = arith.mulf %1001, %1051 : vector<8x128xf32>
    %1053 = arith.addf %981, %1052 : vector<8x128xf32>
    %c189 = arith.constant 189 : index
    %1054 = memref.load %arg6[%c189] : memref<512xf32, #tpu.memory_space<smem>>
    %1055 = vector.broadcast %1054 : f32 to vector<8x128xf32>
    %1056 = arith.mulf %1001, %1055 : vector<8x128xf32>
    %1057 = arith.addf %985, %1056 : vector<8x128xf32>
    %c190 = arith.constant 190 : index
    %1058 = memref.load %arg6[%c190] : memref<512xf32, #tpu.memory_space<smem>>
    %1059 = vector.broadcast %1058 : f32 to vector<8x128xf32>
    %1060 = arith.mulf %1001, %1059 : vector<8x128xf32>
    %1061 = arith.addf %989, %1060 : vector<8x128xf32>
    %c191 = arith.constant 191 : index
    %1062 = memref.load %arg6[%c191] : memref<512xf32, #tpu.memory_space<smem>>
    %1063 = vector.broadcast %1062 : f32 to vector<8x128xf32>
    %1064 = arith.mulf %1001, %1063 : vector<8x128xf32>
    %1065 = arith.addf %993, %1064 : vector<8x128xf32>
    %c12_109 = arith.constant 12 : index
    %1066 = memref.load %arg4[%c12_109] : memref<32xf32, #tpu.memory_space<smem>>
    %1067 = vector.broadcast %1066 : f32 to vector<8x128xf32>
    %1068 = arith.mulf %6, %1067 : vector<8x128xf32>
    %c12_110 = arith.constant 12 : index
    %1069 = memref.load %arg5[%c12_110] : memref<32xf32, #tpu.memory_space<smem>>
    %1070 = vector.broadcast %1069 : f32 to vector<8x128xf32>
    %1071 = arith.addf %1068, %1070 : vector<8x128xf32>
    %cst_111 = arith.constant 0.000000e+00 : f32
    %1072 = vector.broadcast %cst_111 : f32 to vector<8x128xf32>
    %1073 = arith.maximumf %1071, %1072 : vector<8x128xf32>
    %c192 = arith.constant 192 : index
    %1074 = memref.load %arg6[%c192] : memref<512xf32, #tpu.memory_space<smem>>
    %1075 = vector.broadcast %1074 : f32 to vector<8x128xf32>
    %1076 = arith.mulf %1073, %1075 : vector<8x128xf32>
    %1077 = arith.addf %1005, %1076 : vector<8x128xf32>
    %c193 = arith.constant 193 : index
    %1078 = memref.load %arg6[%c193] : memref<512xf32, #tpu.memory_space<smem>>
    %1079 = vector.broadcast %1078 : f32 to vector<8x128xf32>
    %1080 = arith.mulf %1073, %1079 : vector<8x128xf32>
    %1081 = arith.addf %1009, %1080 : vector<8x128xf32>
    %c194 = arith.constant 194 : index
    %1082 = memref.load %arg6[%c194] : memref<512xf32, #tpu.memory_space<smem>>
    %1083 = vector.broadcast %1082 : f32 to vector<8x128xf32>
    %1084 = arith.mulf %1073, %1083 : vector<8x128xf32>
    %1085 = arith.addf %1013, %1084 : vector<8x128xf32>
    %c195 = arith.constant 195 : index
    %1086 = memref.load %arg6[%c195] : memref<512xf32, #tpu.memory_space<smem>>
    %1087 = vector.broadcast %1086 : f32 to vector<8x128xf32>
    %1088 = arith.mulf %1073, %1087 : vector<8x128xf32>
    %1089 = arith.addf %1017, %1088 : vector<8x128xf32>
    %c196 = arith.constant 196 : index
    %1090 = memref.load %arg6[%c196] : memref<512xf32, #tpu.memory_space<smem>>
    %1091 = vector.broadcast %1090 : f32 to vector<8x128xf32>
    %1092 = arith.mulf %1073, %1091 : vector<8x128xf32>
    %1093 = arith.addf %1021, %1092 : vector<8x128xf32>
    %c197 = arith.constant 197 : index
    %1094 = memref.load %arg6[%c197] : memref<512xf32, #tpu.memory_space<smem>>
    %1095 = vector.broadcast %1094 : f32 to vector<8x128xf32>
    %1096 = arith.mulf %1073, %1095 : vector<8x128xf32>
    %1097 = arith.addf %1025, %1096 : vector<8x128xf32>
    %c198 = arith.constant 198 : index
    %1098 = memref.load %arg6[%c198] : memref<512xf32, #tpu.memory_space<smem>>
    %1099 = vector.broadcast %1098 : f32 to vector<8x128xf32>
    %1100 = arith.mulf %1073, %1099 : vector<8x128xf32>
    %1101 = arith.addf %1029, %1100 : vector<8x128xf32>
    %c199 = arith.constant 199 : index
    %1102 = memref.load %arg6[%c199] : memref<512xf32, #tpu.memory_space<smem>>
    %1103 = vector.broadcast %1102 : f32 to vector<8x128xf32>
    %1104 = arith.mulf %1073, %1103 : vector<8x128xf32>
    %1105 = arith.addf %1033, %1104 : vector<8x128xf32>
    %c200 = arith.constant 200 : index
    %1106 = memref.load %arg6[%c200] : memref<512xf32, #tpu.memory_space<smem>>
    %1107 = vector.broadcast %1106 : f32 to vector<8x128xf32>
    %1108 = arith.mulf %1073, %1107 : vector<8x128xf32>
    %1109 = arith.addf %1037, %1108 : vector<8x128xf32>
    %c201 = arith.constant 201 : index
    %1110 = memref.load %arg6[%c201] : memref<512xf32, #tpu.memory_space<smem>>
    %1111 = vector.broadcast %1110 : f32 to vector<8x128xf32>
    %1112 = arith.mulf %1073, %1111 : vector<8x128xf32>
    %1113 = arith.addf %1041, %1112 : vector<8x128xf32>
    %c202 = arith.constant 202 : index
    %1114 = memref.load %arg6[%c202] : memref<512xf32, #tpu.memory_space<smem>>
    %1115 = vector.broadcast %1114 : f32 to vector<8x128xf32>
    %1116 = arith.mulf %1073, %1115 : vector<8x128xf32>
    %1117 = arith.addf %1045, %1116 : vector<8x128xf32>
    %c203 = arith.constant 203 : index
    %1118 = memref.load %arg6[%c203] : memref<512xf32, #tpu.memory_space<smem>>
    %1119 = vector.broadcast %1118 : f32 to vector<8x128xf32>
    %1120 = arith.mulf %1073, %1119 : vector<8x128xf32>
    %1121 = arith.addf %1049, %1120 : vector<8x128xf32>
    %c204 = arith.constant 204 : index
    %1122 = memref.load %arg6[%c204] : memref<512xf32, #tpu.memory_space<smem>>
    %1123 = vector.broadcast %1122 : f32 to vector<8x128xf32>
    %1124 = arith.mulf %1073, %1123 : vector<8x128xf32>
    %1125 = arith.addf %1053, %1124 : vector<8x128xf32>
    %c205 = arith.constant 205 : index
    %1126 = memref.load %arg6[%c205] : memref<512xf32, #tpu.memory_space<smem>>
    %1127 = vector.broadcast %1126 : f32 to vector<8x128xf32>
    %1128 = arith.mulf %1073, %1127 : vector<8x128xf32>
    %1129 = arith.addf %1057, %1128 : vector<8x128xf32>
    %c206 = arith.constant 206 : index
    %1130 = memref.load %arg6[%c206] : memref<512xf32, #tpu.memory_space<smem>>
    %1131 = vector.broadcast %1130 : f32 to vector<8x128xf32>
    %1132 = arith.mulf %1073, %1131 : vector<8x128xf32>
    %1133 = arith.addf %1061, %1132 : vector<8x128xf32>
    %c207 = arith.constant 207 : index
    %1134 = memref.load %arg6[%c207] : memref<512xf32, #tpu.memory_space<smem>>
    %1135 = vector.broadcast %1134 : f32 to vector<8x128xf32>
    %1136 = arith.mulf %1073, %1135 : vector<8x128xf32>
    %1137 = arith.addf %1065, %1136 : vector<8x128xf32>
    %c13_112 = arith.constant 13 : index
    %1138 = memref.load %arg4[%c13_112] : memref<32xf32, #tpu.memory_space<smem>>
    %1139 = vector.broadcast %1138 : f32 to vector<8x128xf32>
    %1140 = arith.mulf %6, %1139 : vector<8x128xf32>
    %c13_113 = arith.constant 13 : index
    %1141 = memref.load %arg5[%c13_113] : memref<32xf32, #tpu.memory_space<smem>>
    %1142 = vector.broadcast %1141 : f32 to vector<8x128xf32>
    %1143 = arith.addf %1140, %1142 : vector<8x128xf32>
    %cst_114 = arith.constant 0.000000e+00 : f32
    %1144 = vector.broadcast %cst_114 : f32 to vector<8x128xf32>
    %1145 = arith.maximumf %1143, %1144 : vector<8x128xf32>
    %c208 = arith.constant 208 : index
    %1146 = memref.load %arg6[%c208] : memref<512xf32, #tpu.memory_space<smem>>
    %1147 = vector.broadcast %1146 : f32 to vector<8x128xf32>
    %1148 = arith.mulf %1145, %1147 : vector<8x128xf32>
    %1149 = arith.addf %1077, %1148 : vector<8x128xf32>
    %c209 = arith.constant 209 : index
    %1150 = memref.load %arg6[%c209] : memref<512xf32, #tpu.memory_space<smem>>
    %1151 = vector.broadcast %1150 : f32 to vector<8x128xf32>
    %1152 = arith.mulf %1145, %1151 : vector<8x128xf32>
    %1153 = arith.addf %1081, %1152 : vector<8x128xf32>
    %c210 = arith.constant 210 : index
    %1154 = memref.load %arg6[%c210] : memref<512xf32, #tpu.memory_space<smem>>
    %1155 = vector.broadcast %1154 : f32 to vector<8x128xf32>
    %1156 = arith.mulf %1145, %1155 : vector<8x128xf32>
    %1157 = arith.addf %1085, %1156 : vector<8x128xf32>
    %c211 = arith.constant 211 : index
    %1158 = memref.load %arg6[%c211] : memref<512xf32, #tpu.memory_space<smem>>
    %1159 = vector.broadcast %1158 : f32 to vector<8x128xf32>
    %1160 = arith.mulf %1145, %1159 : vector<8x128xf32>
    %1161 = arith.addf %1089, %1160 : vector<8x128xf32>
    %c212 = arith.constant 212 : index
    %1162 = memref.load %arg6[%c212] : memref<512xf32, #tpu.memory_space<smem>>
    %1163 = vector.broadcast %1162 : f32 to vector<8x128xf32>
    %1164 = arith.mulf %1145, %1163 : vector<8x128xf32>
    %1165 = arith.addf %1093, %1164 : vector<8x128xf32>
    %c213 = arith.constant 213 : index
    %1166 = memref.load %arg6[%c213] : memref<512xf32, #tpu.memory_space<smem>>
    %1167 = vector.broadcast %1166 : f32 to vector<8x128xf32>
    %1168 = arith.mulf %1145, %1167 : vector<8x128xf32>
    %1169 = arith.addf %1097, %1168 : vector<8x128xf32>
    %c214 = arith.constant 214 : index
    %1170 = memref.load %arg6[%c214] : memref<512xf32, #tpu.memory_space<smem>>
    %1171 = vector.broadcast %1170 : f32 to vector<8x128xf32>
    %1172 = arith.mulf %1145, %1171 : vector<8x128xf32>
    %1173 = arith.addf %1101, %1172 : vector<8x128xf32>
    %c215 = arith.constant 215 : index
    %1174 = memref.load %arg6[%c215] : memref<512xf32, #tpu.memory_space<smem>>
    %1175 = vector.broadcast %1174 : f32 to vector<8x128xf32>
    %1176 = arith.mulf %1145, %1175 : vector<8x128xf32>
    %1177 = arith.addf %1105, %1176 : vector<8x128xf32>
    %c216 = arith.constant 216 : index
    %1178 = memref.load %arg6[%c216] : memref<512xf32, #tpu.memory_space<smem>>
    %1179 = vector.broadcast %1178 : f32 to vector<8x128xf32>
    %1180 = arith.mulf %1145, %1179 : vector<8x128xf32>
    %1181 = arith.addf %1109, %1180 : vector<8x128xf32>
    %c217 = arith.constant 217 : index
    %1182 = memref.load %arg6[%c217] : memref<512xf32, #tpu.memory_space<smem>>
    %1183 = vector.broadcast %1182 : f32 to vector<8x128xf32>
    %1184 = arith.mulf %1145, %1183 : vector<8x128xf32>
    %1185 = arith.addf %1113, %1184 : vector<8x128xf32>
    %c218 = arith.constant 218 : index
    %1186 = memref.load %arg6[%c218] : memref<512xf32, #tpu.memory_space<smem>>
    %1187 = vector.broadcast %1186 : f32 to vector<8x128xf32>
    %1188 = arith.mulf %1145, %1187 : vector<8x128xf32>
    %1189 = arith.addf %1117, %1188 : vector<8x128xf32>
    %c219 = arith.constant 219 : index
    %1190 = memref.load %arg6[%c219] : memref<512xf32, #tpu.memory_space<smem>>
    %1191 = vector.broadcast %1190 : f32 to vector<8x128xf32>
    %1192 = arith.mulf %1145, %1191 : vector<8x128xf32>
    %1193 = arith.addf %1121, %1192 : vector<8x128xf32>
    %c220 = arith.constant 220 : index
    %1194 = memref.load %arg6[%c220] : memref<512xf32, #tpu.memory_space<smem>>
    %1195 = vector.broadcast %1194 : f32 to vector<8x128xf32>
    %1196 = arith.mulf %1145, %1195 : vector<8x128xf32>
    %1197 = arith.addf %1125, %1196 : vector<8x128xf32>
    %c221 = arith.constant 221 : index
    %1198 = memref.load %arg6[%c221] : memref<512xf32, #tpu.memory_space<smem>>
    %1199 = vector.broadcast %1198 : f32 to vector<8x128xf32>
    %1200 = arith.mulf %1145, %1199 : vector<8x128xf32>
    %1201 = arith.addf %1129, %1200 : vector<8x128xf32>
    %c222 = arith.constant 222 : index
    %1202 = memref.load %arg6[%c222] : memref<512xf32, #tpu.memory_space<smem>>
    %1203 = vector.broadcast %1202 : f32 to vector<8x128xf32>
    %1204 = arith.mulf %1145, %1203 : vector<8x128xf32>
    %1205 = arith.addf %1133, %1204 : vector<8x128xf32>
    %c223 = arith.constant 223 : index
    %1206 = memref.load %arg6[%c223] : memref<512xf32, #tpu.memory_space<smem>>
    %1207 = vector.broadcast %1206 : f32 to vector<8x128xf32>
    %1208 = arith.mulf %1145, %1207 : vector<8x128xf32>
    %1209 = arith.addf %1137, %1208 : vector<8x128xf32>
    %c14_115 = arith.constant 14 : index
    %1210 = memref.load %arg4[%c14_115] : memref<32xf32, #tpu.memory_space<smem>>
    %1211 = vector.broadcast %1210 : f32 to vector<8x128xf32>
    %1212 = arith.mulf %6, %1211 : vector<8x128xf32>
    %c14_116 = arith.constant 14 : index
    %1213 = memref.load %arg5[%c14_116] : memref<32xf32, #tpu.memory_space<smem>>
    %1214 = vector.broadcast %1213 : f32 to vector<8x128xf32>
    %1215 = arith.addf %1212, %1214 : vector<8x128xf32>
    %cst_117 = arith.constant 0.000000e+00 : f32
    %1216 = vector.broadcast %cst_117 : f32 to vector<8x128xf32>
    %1217 = arith.maximumf %1215, %1216 : vector<8x128xf32>
    %c224 = arith.constant 224 : index
    %1218 = memref.load %arg6[%c224] : memref<512xf32, #tpu.memory_space<smem>>
    %1219 = vector.broadcast %1218 : f32 to vector<8x128xf32>
    %1220 = arith.mulf %1217, %1219 : vector<8x128xf32>
    %1221 = arith.addf %1149, %1220 : vector<8x128xf32>
    %c225 = arith.constant 225 : index
    %1222 = memref.load %arg6[%c225] : memref<512xf32, #tpu.memory_space<smem>>
    %1223 = vector.broadcast %1222 : f32 to vector<8x128xf32>
    %1224 = arith.mulf %1217, %1223 : vector<8x128xf32>
    %1225 = arith.addf %1153, %1224 : vector<8x128xf32>
    %c226 = arith.constant 226 : index
    %1226 = memref.load %arg6[%c226] : memref<512xf32, #tpu.memory_space<smem>>
    %1227 = vector.broadcast %1226 : f32 to vector<8x128xf32>
    %1228 = arith.mulf %1217, %1227 : vector<8x128xf32>
    %1229 = arith.addf %1157, %1228 : vector<8x128xf32>
    %c227 = arith.constant 227 : index
    %1230 = memref.load %arg6[%c227] : memref<512xf32, #tpu.memory_space<smem>>
    %1231 = vector.broadcast %1230 : f32 to vector<8x128xf32>
    %1232 = arith.mulf %1217, %1231 : vector<8x128xf32>
    %1233 = arith.addf %1161, %1232 : vector<8x128xf32>
    %c228 = arith.constant 228 : index
    %1234 = memref.load %arg6[%c228] : memref<512xf32, #tpu.memory_space<smem>>
    %1235 = vector.broadcast %1234 : f32 to vector<8x128xf32>
    %1236 = arith.mulf %1217, %1235 : vector<8x128xf32>
    %1237 = arith.addf %1165, %1236 : vector<8x128xf32>
    %c229 = arith.constant 229 : index
    %1238 = memref.load %arg6[%c229] : memref<512xf32, #tpu.memory_space<smem>>
    %1239 = vector.broadcast %1238 : f32 to vector<8x128xf32>
    %1240 = arith.mulf %1217, %1239 : vector<8x128xf32>
    %1241 = arith.addf %1169, %1240 : vector<8x128xf32>
    %c230 = arith.constant 230 : index
    %1242 = memref.load %arg6[%c230] : memref<512xf32, #tpu.memory_space<smem>>
    %1243 = vector.broadcast %1242 : f32 to vector<8x128xf32>
    %1244 = arith.mulf %1217, %1243 : vector<8x128xf32>
    %1245 = arith.addf %1173, %1244 : vector<8x128xf32>
    %c231 = arith.constant 231 : index
    %1246 = memref.load %arg6[%c231] : memref<512xf32, #tpu.memory_space<smem>>
    %1247 = vector.broadcast %1246 : f32 to vector<8x128xf32>
    %1248 = arith.mulf %1217, %1247 : vector<8x128xf32>
    %1249 = arith.addf %1177, %1248 : vector<8x128xf32>
    %c232 = arith.constant 232 : index
    %1250 = memref.load %arg6[%c232] : memref<512xf32, #tpu.memory_space<smem>>
    %1251 = vector.broadcast %1250 : f32 to vector<8x128xf32>
    %1252 = arith.mulf %1217, %1251 : vector<8x128xf32>
    %1253 = arith.addf %1181, %1252 : vector<8x128xf32>
    %c233 = arith.constant 233 : index
    %1254 = memref.load %arg6[%c233] : memref<512xf32, #tpu.memory_space<smem>>
    %1255 = vector.broadcast %1254 : f32 to vector<8x128xf32>
    %1256 = arith.mulf %1217, %1255 : vector<8x128xf32>
    %1257 = arith.addf %1185, %1256 : vector<8x128xf32>
    %c234 = arith.constant 234 : index
    %1258 = memref.load %arg6[%c234] : memref<512xf32, #tpu.memory_space<smem>>
    %1259 = vector.broadcast %1258 : f32 to vector<8x128xf32>
    %1260 = arith.mulf %1217, %1259 : vector<8x128xf32>
    %1261 = arith.addf %1189, %1260 : vector<8x128xf32>
    %c235 = arith.constant 235 : index
    %1262 = memref.load %arg6[%c235] : memref<512xf32, #tpu.memory_space<smem>>
    %1263 = vector.broadcast %1262 : f32 to vector<8x128xf32>
    %1264 = arith.mulf %1217, %1263 : vector<8x128xf32>
    %1265 = arith.addf %1193, %1264 : vector<8x128xf32>
    %c236 = arith.constant 236 : index
    %1266 = memref.load %arg6[%c236] : memref<512xf32, #tpu.memory_space<smem>>
    %1267 = vector.broadcast %1266 : f32 to vector<8x128xf32>
    %1268 = arith.mulf %1217, %1267 : vector<8x128xf32>
    %1269 = arith.addf %1197, %1268 : vector<8x128xf32>
    %c237 = arith.constant 237 : index
    %1270 = memref.load %arg6[%c237] : memref<512xf32, #tpu.memory_space<smem>>
    %1271 = vector.broadcast %1270 : f32 to vector<8x128xf32>
    %1272 = arith.mulf %1217, %1271 : vector<8x128xf32>
    %1273 = arith.addf %1201, %1272 : vector<8x128xf32>
    %c238 = arith.constant 238 : index
    %1274 = memref.load %arg6[%c238] : memref<512xf32, #tpu.memory_space<smem>>
    %1275 = vector.broadcast %1274 : f32 to vector<8x128xf32>
    %1276 = arith.mulf %1217, %1275 : vector<8x128xf32>
    %1277 = arith.addf %1205, %1276 : vector<8x128xf32>
    %c239 = arith.constant 239 : index
    %1278 = memref.load %arg6[%c239] : memref<512xf32, #tpu.memory_space<smem>>
    %1279 = vector.broadcast %1278 : f32 to vector<8x128xf32>
    %1280 = arith.mulf %1217, %1279 : vector<8x128xf32>
    %1281 = arith.addf %1209, %1280 : vector<8x128xf32>
    %c15_118 = arith.constant 15 : index
    %1282 = memref.load %arg4[%c15_118] : memref<32xf32, #tpu.memory_space<smem>>
    %1283 = vector.broadcast %1282 : f32 to vector<8x128xf32>
    %1284 = arith.mulf %6, %1283 : vector<8x128xf32>
    %c15_119 = arith.constant 15 : index
    %1285 = memref.load %arg5[%c15_119] : memref<32xf32, #tpu.memory_space<smem>>
    %1286 = vector.broadcast %1285 : f32 to vector<8x128xf32>
    %1287 = arith.addf %1284, %1286 : vector<8x128xf32>
    %cst_120 = arith.constant 0.000000e+00 : f32
    %1288 = vector.broadcast %cst_120 : f32 to vector<8x128xf32>
    %1289 = arith.maximumf %1287, %1288 : vector<8x128xf32>
    %c240 = arith.constant 240 : index
    %1290 = memref.load %arg6[%c240] : memref<512xf32, #tpu.memory_space<smem>>
    %1291 = vector.broadcast %1290 : f32 to vector<8x128xf32>
    %1292 = arith.mulf %1289, %1291 : vector<8x128xf32>
    %1293 = arith.addf %1221, %1292 : vector<8x128xf32>
    %c241 = arith.constant 241 : index
    %1294 = memref.load %arg6[%c241] : memref<512xf32, #tpu.memory_space<smem>>
    %1295 = vector.broadcast %1294 : f32 to vector<8x128xf32>
    %1296 = arith.mulf %1289, %1295 : vector<8x128xf32>
    %1297 = arith.addf %1225, %1296 : vector<8x128xf32>
    %c242 = arith.constant 242 : index
    %1298 = memref.load %arg6[%c242] : memref<512xf32, #tpu.memory_space<smem>>
    %1299 = vector.broadcast %1298 : f32 to vector<8x128xf32>
    %1300 = arith.mulf %1289, %1299 : vector<8x128xf32>
    %1301 = arith.addf %1229, %1300 : vector<8x128xf32>
    %c243 = arith.constant 243 : index
    %1302 = memref.load %arg6[%c243] : memref<512xf32, #tpu.memory_space<smem>>
    %1303 = vector.broadcast %1302 : f32 to vector<8x128xf32>
    %1304 = arith.mulf %1289, %1303 : vector<8x128xf32>
    %1305 = arith.addf %1233, %1304 : vector<8x128xf32>
    %c244 = arith.constant 244 : index
    %1306 = memref.load %arg6[%c244] : memref<512xf32, #tpu.memory_space<smem>>
    %1307 = vector.broadcast %1306 : f32 to vector<8x128xf32>
    %1308 = arith.mulf %1289, %1307 : vector<8x128xf32>
    %1309 = arith.addf %1237, %1308 : vector<8x128xf32>
    %c245 = arith.constant 245 : index
    %1310 = memref.load %arg6[%c245] : memref<512xf32, #tpu.memory_space<smem>>
    %1311 = vector.broadcast %1310 : f32 to vector<8x128xf32>
    %1312 = arith.mulf %1289, %1311 : vector<8x128xf32>
    %1313 = arith.addf %1241, %1312 : vector<8x128xf32>
    %c246 = arith.constant 246 : index
    %1314 = memref.load %arg6[%c246] : memref<512xf32, #tpu.memory_space<smem>>
    %1315 = vector.broadcast %1314 : f32 to vector<8x128xf32>
    %1316 = arith.mulf %1289, %1315 : vector<8x128xf32>
    %1317 = arith.addf %1245, %1316 : vector<8x128xf32>
    %c247 = arith.constant 247 : index
    %1318 = memref.load %arg6[%c247] : memref<512xf32, #tpu.memory_space<smem>>
    %1319 = vector.broadcast %1318 : f32 to vector<8x128xf32>
    %1320 = arith.mulf %1289, %1319 : vector<8x128xf32>
    %1321 = arith.addf %1249, %1320 : vector<8x128xf32>
    %c248 = arith.constant 248 : index
    %1322 = memref.load %arg6[%c248] : memref<512xf32, #tpu.memory_space<smem>>
    %1323 = vector.broadcast %1322 : f32 to vector<8x128xf32>
    %1324 = arith.mulf %1289, %1323 : vector<8x128xf32>
    %1325 = arith.addf %1253, %1324 : vector<8x128xf32>
    %c249 = arith.constant 249 : index
    %1326 = memref.load %arg6[%c249] : memref<512xf32, #tpu.memory_space<smem>>
    %1327 = vector.broadcast %1326 : f32 to vector<8x128xf32>
    %1328 = arith.mulf %1289, %1327 : vector<8x128xf32>
    %1329 = arith.addf %1257, %1328 : vector<8x128xf32>
    %c250 = arith.constant 250 : index
    %1330 = memref.load %arg6[%c250] : memref<512xf32, #tpu.memory_space<smem>>
    %1331 = vector.broadcast %1330 : f32 to vector<8x128xf32>
    %1332 = arith.mulf %1289, %1331 : vector<8x128xf32>
    %1333 = arith.addf %1261, %1332 : vector<8x128xf32>
    %c251 = arith.constant 251 : index
    %1334 = memref.load %arg6[%c251] : memref<512xf32, #tpu.memory_space<smem>>
    %1335 = vector.broadcast %1334 : f32 to vector<8x128xf32>
    %1336 = arith.mulf %1289, %1335 : vector<8x128xf32>
    %1337 = arith.addf %1265, %1336 : vector<8x128xf32>
    %c252 = arith.constant 252 : index
    %1338 = memref.load %arg6[%c252] : memref<512xf32, #tpu.memory_space<smem>>
    %1339 = vector.broadcast %1338 : f32 to vector<8x128xf32>
    %1340 = arith.mulf %1289, %1339 : vector<8x128xf32>
    %1341 = arith.addf %1269, %1340 : vector<8x128xf32>
    %c253 = arith.constant 253 : index
    %1342 = memref.load %arg6[%c253] : memref<512xf32, #tpu.memory_space<smem>>
    %1343 = vector.broadcast %1342 : f32 to vector<8x128xf32>
    %1344 = arith.mulf %1289, %1343 : vector<8x128xf32>
    %1345 = arith.addf %1273, %1344 : vector<8x128xf32>
    %c254 = arith.constant 254 : index
    %1346 = memref.load %arg6[%c254] : memref<512xf32, #tpu.memory_space<smem>>
    %1347 = vector.broadcast %1346 : f32 to vector<8x128xf32>
    %1348 = arith.mulf %1289, %1347 : vector<8x128xf32>
    %1349 = arith.addf %1277, %1348 : vector<8x128xf32>
    %c255 = arith.constant 255 : index
    %1350 = memref.load %arg6[%c255] : memref<512xf32, #tpu.memory_space<smem>>
    %1351 = vector.broadcast %1350 : f32 to vector<8x128xf32>
    %1352 = arith.mulf %1289, %1351 : vector<8x128xf32>
    %1353 = arith.addf %1281, %1352 : vector<8x128xf32>
    %c16_121 = arith.constant 16 : index
    %1354 = memref.load %arg4[%c16_121] : memref<32xf32, #tpu.memory_space<smem>>
    %1355 = vector.broadcast %1354 : f32 to vector<8x128xf32>
    %1356 = arith.mulf %6, %1355 : vector<8x128xf32>
    %c16_122 = arith.constant 16 : index
    %1357 = memref.load %arg5[%c16_122] : memref<32xf32, #tpu.memory_space<smem>>
    %1358 = vector.broadcast %1357 : f32 to vector<8x128xf32>
    %1359 = arith.addf %1356, %1358 : vector<8x128xf32>
    %cst_123 = arith.constant 0.000000e+00 : f32
    %1360 = vector.broadcast %cst_123 : f32 to vector<8x128xf32>
    %1361 = arith.maximumf %1359, %1360 : vector<8x128xf32>
    %c256 = arith.constant 256 : index
    %1362 = memref.load %arg6[%c256] : memref<512xf32, #tpu.memory_space<smem>>
    %1363 = vector.broadcast %1362 : f32 to vector<8x128xf32>
    %1364 = arith.mulf %1361, %1363 : vector<8x128xf32>
    %1365 = arith.addf %1293, %1364 : vector<8x128xf32>
    %c257 = arith.constant 257 : index
    %1366 = memref.load %arg6[%c257] : memref<512xf32, #tpu.memory_space<smem>>
    %1367 = vector.broadcast %1366 : f32 to vector<8x128xf32>
    %1368 = arith.mulf %1361, %1367 : vector<8x128xf32>
    %1369 = arith.addf %1297, %1368 : vector<8x128xf32>
    %c258 = arith.constant 258 : index
    %1370 = memref.load %arg6[%c258] : memref<512xf32, #tpu.memory_space<smem>>
    %1371 = vector.broadcast %1370 : f32 to vector<8x128xf32>
    %1372 = arith.mulf %1361, %1371 : vector<8x128xf32>
    %1373 = arith.addf %1301, %1372 : vector<8x128xf32>
    %c259 = arith.constant 259 : index
    %1374 = memref.load %arg6[%c259] : memref<512xf32, #tpu.memory_space<smem>>
    %1375 = vector.broadcast %1374 : f32 to vector<8x128xf32>
    %1376 = arith.mulf %1361, %1375 : vector<8x128xf32>
    %1377 = arith.addf %1305, %1376 : vector<8x128xf32>
    %c260 = arith.constant 260 : index
    %1378 = memref.load %arg6[%c260] : memref<512xf32, #tpu.memory_space<smem>>
    %1379 = vector.broadcast %1378 : f32 to vector<8x128xf32>
    %1380 = arith.mulf %1361, %1379 : vector<8x128xf32>
    %1381 = arith.addf %1309, %1380 : vector<8x128xf32>
    %c261 = arith.constant 261 : index
    %1382 = memref.load %arg6[%c261] : memref<512xf32, #tpu.memory_space<smem>>
    %1383 = vector.broadcast %1382 : f32 to vector<8x128xf32>
    %1384 = arith.mulf %1361, %1383 : vector<8x128xf32>
    %1385 = arith.addf %1313, %1384 : vector<8x128xf32>
    %c262 = arith.constant 262 : index
    %1386 = memref.load %arg6[%c262] : memref<512xf32, #tpu.memory_space<smem>>
    %1387 = vector.broadcast %1386 : f32 to vector<8x128xf32>
    %1388 = arith.mulf %1361, %1387 : vector<8x128xf32>
    %1389 = arith.addf %1317, %1388 : vector<8x128xf32>
    %c263 = arith.constant 263 : index
    %1390 = memref.load %arg6[%c263] : memref<512xf32, #tpu.memory_space<smem>>
    %1391 = vector.broadcast %1390 : f32 to vector<8x128xf32>
    %1392 = arith.mulf %1361, %1391 : vector<8x128xf32>
    %1393 = arith.addf %1321, %1392 : vector<8x128xf32>
    %c264 = arith.constant 264 : index
    %1394 = memref.load %arg6[%c264] : memref<512xf32, #tpu.memory_space<smem>>
    %1395 = vector.broadcast %1394 : f32 to vector<8x128xf32>
    %1396 = arith.mulf %1361, %1395 : vector<8x128xf32>
    %1397 = arith.addf %1325, %1396 : vector<8x128xf32>
    %c265 = arith.constant 265 : index
    %1398 = memref.load %arg6[%c265] : memref<512xf32, #tpu.memory_space<smem>>
    %1399 = vector.broadcast %1398 : f32 to vector<8x128xf32>
    %1400 = arith.mulf %1361, %1399 : vector<8x128xf32>
    %1401 = arith.addf %1329, %1400 : vector<8x128xf32>
    %c266 = arith.constant 266 : index
    %1402 = memref.load %arg6[%c266] : memref<512xf32, #tpu.memory_space<smem>>
    %1403 = vector.broadcast %1402 : f32 to vector<8x128xf32>
    %1404 = arith.mulf %1361, %1403 : vector<8x128xf32>
    %1405 = arith.addf %1333, %1404 : vector<8x128xf32>
    %c267 = arith.constant 267 : index
    %1406 = memref.load %arg6[%c267] : memref<512xf32, #tpu.memory_space<smem>>
    %1407 = vector.broadcast %1406 : f32 to vector<8x128xf32>
    %1408 = arith.mulf %1361, %1407 : vector<8x128xf32>
    %1409 = arith.addf %1337, %1408 : vector<8x128xf32>
    %c268 = arith.constant 268 : index
    %1410 = memref.load %arg6[%c268] : memref<512xf32, #tpu.memory_space<smem>>
    %1411 = vector.broadcast %1410 : f32 to vector<8x128xf32>
    %1412 = arith.mulf %1361, %1411 : vector<8x128xf32>
    %1413 = arith.addf %1341, %1412 : vector<8x128xf32>
    %c269 = arith.constant 269 : index
    %1414 = memref.load %arg6[%c269] : memref<512xf32, #tpu.memory_space<smem>>
    %1415 = vector.broadcast %1414 : f32 to vector<8x128xf32>
    %1416 = arith.mulf %1361, %1415 : vector<8x128xf32>
    %1417 = arith.addf %1345, %1416 : vector<8x128xf32>
    %c270 = arith.constant 270 : index
    %1418 = memref.load %arg6[%c270] : memref<512xf32, #tpu.memory_space<smem>>
    %1419 = vector.broadcast %1418 : f32 to vector<8x128xf32>
    %1420 = arith.mulf %1361, %1419 : vector<8x128xf32>
    %1421 = arith.addf %1349, %1420 : vector<8x128xf32>
    %c271 = arith.constant 271 : index
    %1422 = memref.load %arg6[%c271] : memref<512xf32, #tpu.memory_space<smem>>
    %1423 = vector.broadcast %1422 : f32 to vector<8x128xf32>
    %1424 = arith.mulf %1361, %1423 : vector<8x128xf32>
    %1425 = arith.addf %1353, %1424 : vector<8x128xf32>
    %c17_124 = arith.constant 17 : index
    %1426 = memref.load %arg4[%c17_124] : memref<32xf32, #tpu.memory_space<smem>>
    %1427 = vector.broadcast %1426 : f32 to vector<8x128xf32>
    %1428 = arith.mulf %6, %1427 : vector<8x128xf32>
    %c17_125 = arith.constant 17 : index
    %1429 = memref.load %arg5[%c17_125] : memref<32xf32, #tpu.memory_space<smem>>
    %1430 = vector.broadcast %1429 : f32 to vector<8x128xf32>
    %1431 = arith.addf %1428, %1430 : vector<8x128xf32>
    %cst_126 = arith.constant 0.000000e+00 : f32
    %1432 = vector.broadcast %cst_126 : f32 to vector<8x128xf32>
    %1433 = arith.maximumf %1431, %1432 : vector<8x128xf32>
    %c272 = arith.constant 272 : index
    %1434 = memref.load %arg6[%c272] : memref<512xf32, #tpu.memory_space<smem>>
    %1435 = vector.broadcast %1434 : f32 to vector<8x128xf32>
    %1436 = arith.mulf %1433, %1435 : vector<8x128xf32>
    %1437 = arith.addf %1365, %1436 : vector<8x128xf32>
    %c273 = arith.constant 273 : index
    %1438 = memref.load %arg6[%c273] : memref<512xf32, #tpu.memory_space<smem>>
    %1439 = vector.broadcast %1438 : f32 to vector<8x128xf32>
    %1440 = arith.mulf %1433, %1439 : vector<8x128xf32>
    %1441 = arith.addf %1369, %1440 : vector<8x128xf32>
    %c274 = arith.constant 274 : index
    %1442 = memref.load %arg6[%c274] : memref<512xf32, #tpu.memory_space<smem>>
    %1443 = vector.broadcast %1442 : f32 to vector<8x128xf32>
    %1444 = arith.mulf %1433, %1443 : vector<8x128xf32>
    %1445 = arith.addf %1373, %1444 : vector<8x128xf32>
    %c275 = arith.constant 275 : index
    %1446 = memref.load %arg6[%c275] : memref<512xf32, #tpu.memory_space<smem>>
    %1447 = vector.broadcast %1446 : f32 to vector<8x128xf32>
    %1448 = arith.mulf %1433, %1447 : vector<8x128xf32>
    %1449 = arith.addf %1377, %1448 : vector<8x128xf32>
    %c276 = arith.constant 276 : index
    %1450 = memref.load %arg6[%c276] : memref<512xf32, #tpu.memory_space<smem>>
    %1451 = vector.broadcast %1450 : f32 to vector<8x128xf32>
    %1452 = arith.mulf %1433, %1451 : vector<8x128xf32>
    %1453 = arith.addf %1381, %1452 : vector<8x128xf32>
    %c277 = arith.constant 277 : index
    %1454 = memref.load %arg6[%c277] : memref<512xf32, #tpu.memory_space<smem>>
    %1455 = vector.broadcast %1454 : f32 to vector<8x128xf32>
    %1456 = arith.mulf %1433, %1455 : vector<8x128xf32>
    %1457 = arith.addf %1385, %1456 : vector<8x128xf32>
    %c278 = arith.constant 278 : index
    %1458 = memref.load %arg6[%c278] : memref<512xf32, #tpu.memory_space<smem>>
    %1459 = vector.broadcast %1458 : f32 to vector<8x128xf32>
    %1460 = arith.mulf %1433, %1459 : vector<8x128xf32>
    %1461 = arith.addf %1389, %1460 : vector<8x128xf32>
    %c279 = arith.constant 279 : index
    %1462 = memref.load %arg6[%c279] : memref<512xf32, #tpu.memory_space<smem>>
    %1463 = vector.broadcast %1462 : f32 to vector<8x128xf32>
    %1464 = arith.mulf %1433, %1463 : vector<8x128xf32>
    %1465 = arith.addf %1393, %1464 : vector<8x128xf32>
    %c280 = arith.constant 280 : index
    %1466 = memref.load %arg6[%c280] : memref<512xf32, #tpu.memory_space<smem>>
    %1467 = vector.broadcast %1466 : f32 to vector<8x128xf32>
    %1468 = arith.mulf %1433, %1467 : vector<8x128xf32>
    %1469 = arith.addf %1397, %1468 : vector<8x128xf32>
    %c281 = arith.constant 281 : index
    %1470 = memref.load %arg6[%c281] : memref<512xf32, #tpu.memory_space<smem>>
    %1471 = vector.broadcast %1470 : f32 to vector<8x128xf32>
    %1472 = arith.mulf %1433, %1471 : vector<8x128xf32>
    %1473 = arith.addf %1401, %1472 : vector<8x128xf32>
    %c282 = arith.constant 282 : index
    %1474 = memref.load %arg6[%c282] : memref<512xf32, #tpu.memory_space<smem>>
    %1475 = vector.broadcast %1474 : f32 to vector<8x128xf32>
    %1476 = arith.mulf %1433, %1475 : vector<8x128xf32>
    %1477 = arith.addf %1405, %1476 : vector<8x128xf32>
    %c283 = arith.constant 283 : index
    %1478 = memref.load %arg6[%c283] : memref<512xf32, #tpu.memory_space<smem>>
    %1479 = vector.broadcast %1478 : f32 to vector<8x128xf32>
    %1480 = arith.mulf %1433, %1479 : vector<8x128xf32>
    %1481 = arith.addf %1409, %1480 : vector<8x128xf32>
    %c284 = arith.constant 284 : index
    %1482 = memref.load %arg6[%c284] : memref<512xf32, #tpu.memory_space<smem>>
    %1483 = vector.broadcast %1482 : f32 to vector<8x128xf32>
    %1484 = arith.mulf %1433, %1483 : vector<8x128xf32>
    %1485 = arith.addf %1413, %1484 : vector<8x128xf32>
    %c285 = arith.constant 285 : index
    %1486 = memref.load %arg6[%c285] : memref<512xf32, #tpu.memory_space<smem>>
    %1487 = vector.broadcast %1486 : f32 to vector<8x128xf32>
    %1488 = arith.mulf %1433, %1487 : vector<8x128xf32>
    %1489 = arith.addf %1417, %1488 : vector<8x128xf32>
    %c286 = arith.constant 286 : index
    %1490 = memref.load %arg6[%c286] : memref<512xf32, #tpu.memory_space<smem>>
    %1491 = vector.broadcast %1490 : f32 to vector<8x128xf32>
    %1492 = arith.mulf %1433, %1491 : vector<8x128xf32>
    %1493 = arith.addf %1421, %1492 : vector<8x128xf32>
    %c287 = arith.constant 287 : index
    %1494 = memref.load %arg6[%c287] : memref<512xf32, #tpu.memory_space<smem>>
    %1495 = vector.broadcast %1494 : f32 to vector<8x128xf32>
    %1496 = arith.mulf %1433, %1495 : vector<8x128xf32>
    %1497 = arith.addf %1425, %1496 : vector<8x128xf32>
    %c18_127 = arith.constant 18 : index
    %1498 = memref.load %arg4[%c18_127] : memref<32xf32, #tpu.memory_space<smem>>
    %1499 = vector.broadcast %1498 : f32 to vector<8x128xf32>
    %1500 = arith.mulf %6, %1499 : vector<8x128xf32>
    %c18_128 = arith.constant 18 : index
    %1501 = memref.load %arg5[%c18_128] : memref<32xf32, #tpu.memory_space<smem>>
    %1502 = vector.broadcast %1501 : f32 to vector<8x128xf32>
    %1503 = arith.addf %1500, %1502 : vector<8x128xf32>
    %cst_129 = arith.constant 0.000000e+00 : f32
    %1504 = vector.broadcast %cst_129 : f32 to vector<8x128xf32>
    %1505 = arith.maximumf %1503, %1504 : vector<8x128xf32>
    %c288 = arith.constant 288 : index
    %1506 = memref.load %arg6[%c288] : memref<512xf32, #tpu.memory_space<smem>>
    %1507 = vector.broadcast %1506 : f32 to vector<8x128xf32>
    %1508 = arith.mulf %1505, %1507 : vector<8x128xf32>
    %1509 = arith.addf %1437, %1508 : vector<8x128xf32>
    %c289 = arith.constant 289 : index
    %1510 = memref.load %arg6[%c289] : memref<512xf32, #tpu.memory_space<smem>>
    %1511 = vector.broadcast %1510 : f32 to vector<8x128xf32>
    %1512 = arith.mulf %1505, %1511 : vector<8x128xf32>
    %1513 = arith.addf %1441, %1512 : vector<8x128xf32>
    %c290 = arith.constant 290 : index
    %1514 = memref.load %arg6[%c290] : memref<512xf32, #tpu.memory_space<smem>>
    %1515 = vector.broadcast %1514 : f32 to vector<8x128xf32>
    %1516 = arith.mulf %1505, %1515 : vector<8x128xf32>
    %1517 = arith.addf %1445, %1516 : vector<8x128xf32>
    %c291 = arith.constant 291 : index
    %1518 = memref.load %arg6[%c291] : memref<512xf32, #tpu.memory_space<smem>>
    %1519 = vector.broadcast %1518 : f32 to vector<8x128xf32>
    %1520 = arith.mulf %1505, %1519 : vector<8x128xf32>
    %1521 = arith.addf %1449, %1520 : vector<8x128xf32>
    %c292 = arith.constant 292 : index
    %1522 = memref.load %arg6[%c292] : memref<512xf32, #tpu.memory_space<smem>>
    %1523 = vector.broadcast %1522 : f32 to vector<8x128xf32>
    %1524 = arith.mulf %1505, %1523 : vector<8x128xf32>
    %1525 = arith.addf %1453, %1524 : vector<8x128xf32>
    %c293 = arith.constant 293 : index
    %1526 = memref.load %arg6[%c293] : memref<512xf32, #tpu.memory_space<smem>>
    %1527 = vector.broadcast %1526 : f32 to vector<8x128xf32>
    %1528 = arith.mulf %1505, %1527 : vector<8x128xf32>
    %1529 = arith.addf %1457, %1528 : vector<8x128xf32>
    %c294 = arith.constant 294 : index
    %1530 = memref.load %arg6[%c294] : memref<512xf32, #tpu.memory_space<smem>>
    %1531 = vector.broadcast %1530 : f32 to vector<8x128xf32>
    %1532 = arith.mulf %1505, %1531 : vector<8x128xf32>
    %1533 = arith.addf %1461, %1532 : vector<8x128xf32>
    %c295 = arith.constant 295 : index
    %1534 = memref.load %arg6[%c295] : memref<512xf32, #tpu.memory_space<smem>>
    %1535 = vector.broadcast %1534 : f32 to vector<8x128xf32>
    %1536 = arith.mulf %1505, %1535 : vector<8x128xf32>
    %1537 = arith.addf %1465, %1536 : vector<8x128xf32>
    %c296 = arith.constant 296 : index
    %1538 = memref.load %arg6[%c296] : memref<512xf32, #tpu.memory_space<smem>>
    %1539 = vector.broadcast %1538 : f32 to vector<8x128xf32>
    %1540 = arith.mulf %1505, %1539 : vector<8x128xf32>
    %1541 = arith.addf %1469, %1540 : vector<8x128xf32>
    %c297 = arith.constant 297 : index
    %1542 = memref.load %arg6[%c297] : memref<512xf32, #tpu.memory_space<smem>>
    %1543 = vector.broadcast %1542 : f32 to vector<8x128xf32>
    %1544 = arith.mulf %1505, %1543 : vector<8x128xf32>
    %1545 = arith.addf %1473, %1544 : vector<8x128xf32>
    %c298 = arith.constant 298 : index
    %1546 = memref.load %arg6[%c298] : memref<512xf32, #tpu.memory_space<smem>>
    %1547 = vector.broadcast %1546 : f32 to vector<8x128xf32>
    %1548 = arith.mulf %1505, %1547 : vector<8x128xf32>
    %1549 = arith.addf %1477, %1548 : vector<8x128xf32>
    %c299 = arith.constant 299 : index
    %1550 = memref.load %arg6[%c299] : memref<512xf32, #tpu.memory_space<smem>>
    %1551 = vector.broadcast %1550 : f32 to vector<8x128xf32>
    %1552 = arith.mulf %1505, %1551 : vector<8x128xf32>
    %1553 = arith.addf %1481, %1552 : vector<8x128xf32>
    %c300 = arith.constant 300 : index
    %1554 = memref.load %arg6[%c300] : memref<512xf32, #tpu.memory_space<smem>>
    %1555 = vector.broadcast %1554 : f32 to vector<8x128xf32>
    %1556 = arith.mulf %1505, %1555 : vector<8x128xf32>
    %1557 = arith.addf %1485, %1556 : vector<8x128xf32>
    %c301 = arith.constant 301 : index
    %1558 = memref.load %arg6[%c301] : memref<512xf32, #tpu.memory_space<smem>>
    %1559 = vector.broadcast %1558 : f32 to vector<8x128xf32>
    %1560 = arith.mulf %1505, %1559 : vector<8x128xf32>
    %1561 = arith.addf %1489, %1560 : vector<8x128xf32>
    %c302 = arith.constant 302 : index
    %1562 = memref.load %arg6[%c302] : memref<512xf32, #tpu.memory_space<smem>>
    %1563 = vector.broadcast %1562 : f32 to vector<8x128xf32>
    %1564 = arith.mulf %1505, %1563 : vector<8x128xf32>
    %1565 = arith.addf %1493, %1564 : vector<8x128xf32>
    %c303 = arith.constant 303 : index
    %1566 = memref.load %arg6[%c303] : memref<512xf32, #tpu.memory_space<smem>>
    %1567 = vector.broadcast %1566 : f32 to vector<8x128xf32>
    %1568 = arith.mulf %1505, %1567 : vector<8x128xf32>
    %1569 = arith.addf %1497, %1568 : vector<8x128xf32>
    %c19_130 = arith.constant 19 : index
    %1570 = memref.load %arg4[%c19_130] : memref<32xf32, #tpu.memory_space<smem>>
    %1571 = vector.broadcast %1570 : f32 to vector<8x128xf32>
    %1572 = arith.mulf %6, %1571 : vector<8x128xf32>
    %c19_131 = arith.constant 19 : index
    %1573 = memref.load %arg5[%c19_131] : memref<32xf32, #tpu.memory_space<smem>>
    %1574 = vector.broadcast %1573 : f32 to vector<8x128xf32>
    %1575 = arith.addf %1572, %1574 : vector<8x128xf32>
    %cst_132 = arith.constant 0.000000e+00 : f32
    %1576 = vector.broadcast %cst_132 : f32 to vector<8x128xf32>
    %1577 = arith.maximumf %1575, %1576 : vector<8x128xf32>
    %c304 = arith.constant 304 : index
    %1578 = memref.load %arg6[%c304] : memref<512xf32, #tpu.memory_space<smem>>
    %1579 = vector.broadcast %1578 : f32 to vector<8x128xf32>
    %1580 = arith.mulf %1577, %1579 : vector<8x128xf32>
    %1581 = arith.addf %1509, %1580 : vector<8x128xf32>
    %c305 = arith.constant 305 : index
    %1582 = memref.load %arg6[%c305] : memref<512xf32, #tpu.memory_space<smem>>
    %1583 = vector.broadcast %1582 : f32 to vector<8x128xf32>
    %1584 = arith.mulf %1577, %1583 : vector<8x128xf32>
    %1585 = arith.addf %1513, %1584 : vector<8x128xf32>
    %c306 = arith.constant 306 : index
    %1586 = memref.load %arg6[%c306] : memref<512xf32, #tpu.memory_space<smem>>
    %1587 = vector.broadcast %1586 : f32 to vector<8x128xf32>
    %1588 = arith.mulf %1577, %1587 : vector<8x128xf32>
    %1589 = arith.addf %1517, %1588 : vector<8x128xf32>
    %c307 = arith.constant 307 : index
    %1590 = memref.load %arg6[%c307] : memref<512xf32, #tpu.memory_space<smem>>
    %1591 = vector.broadcast %1590 : f32 to vector<8x128xf32>
    %1592 = arith.mulf %1577, %1591 : vector<8x128xf32>
    %1593 = arith.addf %1521, %1592 : vector<8x128xf32>
    %c308 = arith.constant 308 : index
    %1594 = memref.load %arg6[%c308] : memref<512xf32, #tpu.memory_space<smem>>
    %1595 = vector.broadcast %1594 : f32 to vector<8x128xf32>
    %1596 = arith.mulf %1577, %1595 : vector<8x128xf32>
    %1597 = arith.addf %1525, %1596 : vector<8x128xf32>
    %c309 = arith.constant 309 : index
    %1598 = memref.load %arg6[%c309] : memref<512xf32, #tpu.memory_space<smem>>
    %1599 = vector.broadcast %1598 : f32 to vector<8x128xf32>
    %1600 = arith.mulf %1577, %1599 : vector<8x128xf32>
    %1601 = arith.addf %1529, %1600 : vector<8x128xf32>
    %c310 = arith.constant 310 : index
    %1602 = memref.load %arg6[%c310] : memref<512xf32, #tpu.memory_space<smem>>
    %1603 = vector.broadcast %1602 : f32 to vector<8x128xf32>
    %1604 = arith.mulf %1577, %1603 : vector<8x128xf32>
    %1605 = arith.addf %1533, %1604 : vector<8x128xf32>
    %c311 = arith.constant 311 : index
    %1606 = memref.load %arg6[%c311] : memref<512xf32, #tpu.memory_space<smem>>
    %1607 = vector.broadcast %1606 : f32 to vector<8x128xf32>
    %1608 = arith.mulf %1577, %1607 : vector<8x128xf32>
    %1609 = arith.addf %1537, %1608 : vector<8x128xf32>
    %c312 = arith.constant 312 : index
    %1610 = memref.load %arg6[%c312] : memref<512xf32, #tpu.memory_space<smem>>
    %1611 = vector.broadcast %1610 : f32 to vector<8x128xf32>
    %1612 = arith.mulf %1577, %1611 : vector<8x128xf32>
    %1613 = arith.addf %1541, %1612 : vector<8x128xf32>
    %c313 = arith.constant 313 : index
    %1614 = memref.load %arg6[%c313] : memref<512xf32, #tpu.memory_space<smem>>
    %1615 = vector.broadcast %1614 : f32 to vector<8x128xf32>
    %1616 = arith.mulf %1577, %1615 : vector<8x128xf32>
    %1617 = arith.addf %1545, %1616 : vector<8x128xf32>
    %c314 = arith.constant 314 : index
    %1618 = memref.load %arg6[%c314] : memref<512xf32, #tpu.memory_space<smem>>
    %1619 = vector.broadcast %1618 : f32 to vector<8x128xf32>
    %1620 = arith.mulf %1577, %1619 : vector<8x128xf32>
    %1621 = arith.addf %1549, %1620 : vector<8x128xf32>
    %c315 = arith.constant 315 : index
    %1622 = memref.load %arg6[%c315] : memref<512xf32, #tpu.memory_space<smem>>
    %1623 = vector.broadcast %1622 : f32 to vector<8x128xf32>
    %1624 = arith.mulf %1577, %1623 : vector<8x128xf32>
    %1625 = arith.addf %1553, %1624 : vector<8x128xf32>
    %c316 = arith.constant 316 : index
    %1626 = memref.load %arg6[%c316] : memref<512xf32, #tpu.memory_space<smem>>
    %1627 = vector.broadcast %1626 : f32 to vector<8x128xf32>
    %1628 = arith.mulf %1577, %1627 : vector<8x128xf32>
    %1629 = arith.addf %1557, %1628 : vector<8x128xf32>
    %c317 = arith.constant 317 : index
    %1630 = memref.load %arg6[%c317] : memref<512xf32, #tpu.memory_space<smem>>
    %1631 = vector.broadcast %1630 : f32 to vector<8x128xf32>
    %1632 = arith.mulf %1577, %1631 : vector<8x128xf32>
    %1633 = arith.addf %1561, %1632 : vector<8x128xf32>
    %c318 = arith.constant 318 : index
    %1634 = memref.load %arg6[%c318] : memref<512xf32, #tpu.memory_space<smem>>
    %1635 = vector.broadcast %1634 : f32 to vector<8x128xf32>
    %1636 = arith.mulf %1577, %1635 : vector<8x128xf32>
    %1637 = arith.addf %1565, %1636 : vector<8x128xf32>
    %c319 = arith.constant 319 : index
    %1638 = memref.load %arg6[%c319] : memref<512xf32, #tpu.memory_space<smem>>
    %1639 = vector.broadcast %1638 : f32 to vector<8x128xf32>
    %1640 = arith.mulf %1577, %1639 : vector<8x128xf32>
    %1641 = arith.addf %1569, %1640 : vector<8x128xf32>
    %c20_133 = arith.constant 20 : index
    %1642 = memref.load %arg4[%c20_133] : memref<32xf32, #tpu.memory_space<smem>>
    %1643 = vector.broadcast %1642 : f32 to vector<8x128xf32>
    %1644 = arith.mulf %6, %1643 : vector<8x128xf32>
    %c20_134 = arith.constant 20 : index
    %1645 = memref.load %arg5[%c20_134] : memref<32xf32, #tpu.memory_space<smem>>
    %1646 = vector.broadcast %1645 : f32 to vector<8x128xf32>
    %1647 = arith.addf %1644, %1646 : vector<8x128xf32>
    %cst_135 = arith.constant 0.000000e+00 : f32
    %1648 = vector.broadcast %cst_135 : f32 to vector<8x128xf32>
    %1649 = arith.maximumf %1647, %1648 : vector<8x128xf32>
    %c320 = arith.constant 320 : index
    %1650 = memref.load %arg6[%c320] : memref<512xf32, #tpu.memory_space<smem>>
    %1651 = vector.broadcast %1650 : f32 to vector<8x128xf32>
    %1652 = arith.mulf %1649, %1651 : vector<8x128xf32>
    %1653 = arith.addf %1581, %1652 : vector<8x128xf32>
    %c321 = arith.constant 321 : index
    %1654 = memref.load %arg6[%c321] : memref<512xf32, #tpu.memory_space<smem>>
    %1655 = vector.broadcast %1654 : f32 to vector<8x128xf32>
    %1656 = arith.mulf %1649, %1655 : vector<8x128xf32>
    %1657 = arith.addf %1585, %1656 : vector<8x128xf32>
    %c322 = arith.constant 322 : index
    %1658 = memref.load %arg6[%c322] : memref<512xf32, #tpu.memory_space<smem>>
    %1659 = vector.broadcast %1658 : f32 to vector<8x128xf32>
    %1660 = arith.mulf %1649, %1659 : vector<8x128xf32>
    %1661 = arith.addf %1589, %1660 : vector<8x128xf32>
    %c323 = arith.constant 323 : index
    %1662 = memref.load %arg6[%c323] : memref<512xf32, #tpu.memory_space<smem>>
    %1663 = vector.broadcast %1662 : f32 to vector<8x128xf32>
    %1664 = arith.mulf %1649, %1663 : vector<8x128xf32>
    %1665 = arith.addf %1593, %1664 : vector<8x128xf32>
    %c324 = arith.constant 324 : index
    %1666 = memref.load %arg6[%c324] : memref<512xf32, #tpu.memory_space<smem>>
    %1667 = vector.broadcast %1666 : f32 to vector<8x128xf32>
    %1668 = arith.mulf %1649, %1667 : vector<8x128xf32>
    %1669 = arith.addf %1597, %1668 : vector<8x128xf32>
    %c325 = arith.constant 325 : index
    %1670 = memref.load %arg6[%c325] : memref<512xf32, #tpu.memory_space<smem>>
    %1671 = vector.broadcast %1670 : f32 to vector<8x128xf32>
    %1672 = arith.mulf %1649, %1671 : vector<8x128xf32>
    %1673 = arith.addf %1601, %1672 : vector<8x128xf32>
    %c326 = arith.constant 326 : index
    %1674 = memref.load %arg6[%c326] : memref<512xf32, #tpu.memory_space<smem>>
    %1675 = vector.broadcast %1674 : f32 to vector<8x128xf32>
    %1676 = arith.mulf %1649, %1675 : vector<8x128xf32>
    %1677 = arith.addf %1605, %1676 : vector<8x128xf32>
    %c327 = arith.constant 327 : index
    %1678 = memref.load %arg6[%c327] : memref<512xf32, #tpu.memory_space<smem>>
    %1679 = vector.broadcast %1678 : f32 to vector<8x128xf32>
    %1680 = arith.mulf %1649, %1679 : vector<8x128xf32>
    %1681 = arith.addf %1609, %1680 : vector<8x128xf32>
    %c328 = arith.constant 328 : index
    %1682 = memref.load %arg6[%c328] : memref<512xf32, #tpu.memory_space<smem>>
    %1683 = vector.broadcast %1682 : f32 to vector<8x128xf32>
    %1684 = arith.mulf %1649, %1683 : vector<8x128xf32>
    %1685 = arith.addf %1613, %1684 : vector<8x128xf32>
    %c329 = arith.constant 329 : index
    %1686 = memref.load %arg6[%c329] : memref<512xf32, #tpu.memory_space<smem>>
    %1687 = vector.broadcast %1686 : f32 to vector<8x128xf32>
    %1688 = arith.mulf %1649, %1687 : vector<8x128xf32>
    %1689 = arith.addf %1617, %1688 : vector<8x128xf32>
    %c330 = arith.constant 330 : index
    %1690 = memref.load %arg6[%c330] : memref<512xf32, #tpu.memory_space<smem>>
    %1691 = vector.broadcast %1690 : f32 to vector<8x128xf32>
    %1692 = arith.mulf %1649, %1691 : vector<8x128xf32>
    %1693 = arith.addf %1621, %1692 : vector<8x128xf32>
    %c331 = arith.constant 331 : index
    %1694 = memref.load %arg6[%c331] : memref<512xf32, #tpu.memory_space<smem>>
    %1695 = vector.broadcast %1694 : f32 to vector<8x128xf32>
    %1696 = arith.mulf %1649, %1695 : vector<8x128xf32>
    %1697 = arith.addf %1625, %1696 : vector<8x128xf32>
    %c332 = arith.constant 332 : index
    %1698 = memref.load %arg6[%c332] : memref<512xf32, #tpu.memory_space<smem>>
    %1699 = vector.broadcast %1698 : f32 to vector<8x128xf32>
    %1700 = arith.mulf %1649, %1699 : vector<8x128xf32>
    %1701 = arith.addf %1629, %1700 : vector<8x128xf32>
    %c333 = arith.constant 333 : index
    %1702 = memref.load %arg6[%c333] : memref<512xf32, #tpu.memory_space<smem>>
    %1703 = vector.broadcast %1702 : f32 to vector<8x128xf32>
    %1704 = arith.mulf %1649, %1703 : vector<8x128xf32>
    %1705 = arith.addf %1633, %1704 : vector<8x128xf32>
    %c334 = arith.constant 334 : index
    %1706 = memref.load %arg6[%c334] : memref<512xf32, #tpu.memory_space<smem>>
    %1707 = vector.broadcast %1706 : f32 to vector<8x128xf32>
    %1708 = arith.mulf %1649, %1707 : vector<8x128xf32>
    %1709 = arith.addf %1637, %1708 : vector<8x128xf32>
    %c335 = arith.constant 335 : index
    %1710 = memref.load %arg6[%c335] : memref<512xf32, #tpu.memory_space<smem>>
    %1711 = vector.broadcast %1710 : f32 to vector<8x128xf32>
    %1712 = arith.mulf %1649, %1711 : vector<8x128xf32>
    %1713 = arith.addf %1641, %1712 : vector<8x128xf32>
    %c21_136 = arith.constant 21 : index
    %1714 = memref.load %arg4[%c21_136] : memref<32xf32, #tpu.memory_space<smem>>
    %1715 = vector.broadcast %1714 : f32 to vector<8x128xf32>
    %1716 = arith.mulf %6, %1715 : vector<8x128xf32>
    %c21_137 = arith.constant 21 : index
    %1717 = memref.load %arg5[%c21_137] : memref<32xf32, #tpu.memory_space<smem>>
    %1718 = vector.broadcast %1717 : f32 to vector<8x128xf32>
    %1719 = arith.addf %1716, %1718 : vector<8x128xf32>
    %cst_138 = arith.constant 0.000000e+00 : f32
    %1720 = vector.broadcast %cst_138 : f32 to vector<8x128xf32>
    %1721 = arith.maximumf %1719, %1720 : vector<8x128xf32>
    %c336 = arith.constant 336 : index
    %1722 = memref.load %arg6[%c336] : memref<512xf32, #tpu.memory_space<smem>>
    %1723 = vector.broadcast %1722 : f32 to vector<8x128xf32>
    %1724 = arith.mulf %1721, %1723 : vector<8x128xf32>
    %1725 = arith.addf %1653, %1724 : vector<8x128xf32>
    %c337 = arith.constant 337 : index
    %1726 = memref.load %arg6[%c337] : memref<512xf32, #tpu.memory_space<smem>>
    %1727 = vector.broadcast %1726 : f32 to vector<8x128xf32>
    %1728 = arith.mulf %1721, %1727 : vector<8x128xf32>
    %1729 = arith.addf %1657, %1728 : vector<8x128xf32>
    %c338 = arith.constant 338 : index
    %1730 = memref.load %arg6[%c338] : memref<512xf32, #tpu.memory_space<smem>>
    %1731 = vector.broadcast %1730 : f32 to vector<8x128xf32>
    %1732 = arith.mulf %1721, %1731 : vector<8x128xf32>
    %1733 = arith.addf %1661, %1732 : vector<8x128xf32>
    %c339 = arith.constant 339 : index
    %1734 = memref.load %arg6[%c339] : memref<512xf32, #tpu.memory_space<smem>>
    %1735 = vector.broadcast %1734 : f32 to vector<8x128xf32>
    %1736 = arith.mulf %1721, %1735 : vector<8x128xf32>
    %1737 = arith.addf %1665, %1736 : vector<8x128xf32>
    %c340 = arith.constant 340 : index
    %1738 = memref.load %arg6[%c340] : memref<512xf32, #tpu.memory_space<smem>>
    %1739 = vector.broadcast %1738 : f32 to vector<8x128xf32>
    %1740 = arith.mulf %1721, %1739 : vector<8x128xf32>
    %1741 = arith.addf %1669, %1740 : vector<8x128xf32>
    %c341 = arith.constant 341 : index
    %1742 = memref.load %arg6[%c341] : memref<512xf32, #tpu.memory_space<smem>>
    %1743 = vector.broadcast %1742 : f32 to vector<8x128xf32>
    %1744 = arith.mulf %1721, %1743 : vector<8x128xf32>
    %1745 = arith.addf %1673, %1744 : vector<8x128xf32>
    %c342 = arith.constant 342 : index
    %1746 = memref.load %arg6[%c342] : memref<512xf32, #tpu.memory_space<smem>>
    %1747 = vector.broadcast %1746 : f32 to vector<8x128xf32>
    %1748 = arith.mulf %1721, %1747 : vector<8x128xf32>
    %1749 = arith.addf %1677, %1748 : vector<8x128xf32>
    %c343 = arith.constant 343 : index
    %1750 = memref.load %arg6[%c343] : memref<512xf32, #tpu.memory_space<smem>>
    %1751 = vector.broadcast %1750 : f32 to vector<8x128xf32>
    %1752 = arith.mulf %1721, %1751 : vector<8x128xf32>
    %1753 = arith.addf %1681, %1752 : vector<8x128xf32>
    %c344 = arith.constant 344 : index
    %1754 = memref.load %arg6[%c344] : memref<512xf32, #tpu.memory_space<smem>>
    %1755 = vector.broadcast %1754 : f32 to vector<8x128xf32>
    %1756 = arith.mulf %1721, %1755 : vector<8x128xf32>
    %1757 = arith.addf %1685, %1756 : vector<8x128xf32>
    %c345 = arith.constant 345 : index
    %1758 = memref.load %arg6[%c345] : memref<512xf32, #tpu.memory_space<smem>>
    %1759 = vector.broadcast %1758 : f32 to vector<8x128xf32>
    %1760 = arith.mulf %1721, %1759 : vector<8x128xf32>
    %1761 = arith.addf %1689, %1760 : vector<8x128xf32>
    %c346 = arith.constant 346 : index
    %1762 = memref.load %arg6[%c346] : memref<512xf32, #tpu.memory_space<smem>>
    %1763 = vector.broadcast %1762 : f32 to vector<8x128xf32>
    %1764 = arith.mulf %1721, %1763 : vector<8x128xf32>
    %1765 = arith.addf %1693, %1764 : vector<8x128xf32>
    %c347 = arith.constant 347 : index
    %1766 = memref.load %arg6[%c347] : memref<512xf32, #tpu.memory_space<smem>>
    %1767 = vector.broadcast %1766 : f32 to vector<8x128xf32>
    %1768 = arith.mulf %1721, %1767 : vector<8x128xf32>
    %1769 = arith.addf %1697, %1768 : vector<8x128xf32>
    %c348 = arith.constant 348 : index
    %1770 = memref.load %arg6[%c348] : memref<512xf32, #tpu.memory_space<smem>>
    %1771 = vector.broadcast %1770 : f32 to vector<8x128xf32>
    %1772 = arith.mulf %1721, %1771 : vector<8x128xf32>
    %1773 = arith.addf %1701, %1772 : vector<8x128xf32>
    %c349 = arith.constant 349 : index
    %1774 = memref.load %arg6[%c349] : memref<512xf32, #tpu.memory_space<smem>>
    %1775 = vector.broadcast %1774 : f32 to vector<8x128xf32>
    %1776 = arith.mulf %1721, %1775 : vector<8x128xf32>
    %1777 = arith.addf %1705, %1776 : vector<8x128xf32>
    %c350 = arith.constant 350 : index
    %1778 = memref.load %arg6[%c350] : memref<512xf32, #tpu.memory_space<smem>>
    %1779 = vector.broadcast %1778 : f32 to vector<8x128xf32>
    %1780 = arith.mulf %1721, %1779 : vector<8x128xf32>
    %1781 = arith.addf %1709, %1780 : vector<8x128xf32>
    %c351 = arith.constant 351 : index
    %1782 = memref.load %arg6[%c351] : memref<512xf32, #tpu.memory_space<smem>>
    %1783 = vector.broadcast %1782 : f32 to vector<8x128xf32>
    %1784 = arith.mulf %1721, %1783 : vector<8x128xf32>
    %1785 = arith.addf %1713, %1784 : vector<8x128xf32>
    %c22_139 = arith.constant 22 : index
    %1786 = memref.load %arg4[%c22_139] : memref<32xf32, #tpu.memory_space<smem>>
    %1787 = vector.broadcast %1786 : f32 to vector<8x128xf32>
    %1788 = arith.mulf %6, %1787 : vector<8x128xf32>
    %c22_140 = arith.constant 22 : index
    %1789 = memref.load %arg5[%c22_140] : memref<32xf32, #tpu.memory_space<smem>>
    %1790 = vector.broadcast %1789 : f32 to vector<8x128xf32>
    %1791 = arith.addf %1788, %1790 : vector<8x128xf32>
    %cst_141 = arith.constant 0.000000e+00 : f32
    %1792 = vector.broadcast %cst_141 : f32 to vector<8x128xf32>
    %1793 = arith.maximumf %1791, %1792 : vector<8x128xf32>
    %c352 = arith.constant 352 : index
    %1794 = memref.load %arg6[%c352] : memref<512xf32, #tpu.memory_space<smem>>
    %1795 = vector.broadcast %1794 : f32 to vector<8x128xf32>
    %1796 = arith.mulf %1793, %1795 : vector<8x128xf32>
    %1797 = arith.addf %1725, %1796 : vector<8x128xf32>
    %c353 = arith.constant 353 : index
    %1798 = memref.load %arg6[%c353] : memref<512xf32, #tpu.memory_space<smem>>
    %1799 = vector.broadcast %1798 : f32 to vector<8x128xf32>
    %1800 = arith.mulf %1793, %1799 : vector<8x128xf32>
    %1801 = arith.addf %1729, %1800 : vector<8x128xf32>
    %c354 = arith.constant 354 : index
    %1802 = memref.load %arg6[%c354] : memref<512xf32, #tpu.memory_space<smem>>
    %1803 = vector.broadcast %1802 : f32 to vector<8x128xf32>
    %1804 = arith.mulf %1793, %1803 : vector<8x128xf32>
    %1805 = arith.addf %1733, %1804 : vector<8x128xf32>
    %c355 = arith.constant 355 : index
    %1806 = memref.load %arg6[%c355] : memref<512xf32, #tpu.memory_space<smem>>
    %1807 = vector.broadcast %1806 : f32 to vector<8x128xf32>
    %1808 = arith.mulf %1793, %1807 : vector<8x128xf32>
    %1809 = arith.addf %1737, %1808 : vector<8x128xf32>
    %c356 = arith.constant 356 : index
    %1810 = memref.load %arg6[%c356] : memref<512xf32, #tpu.memory_space<smem>>
    %1811 = vector.broadcast %1810 : f32 to vector<8x128xf32>
    %1812 = arith.mulf %1793, %1811 : vector<8x128xf32>
    %1813 = arith.addf %1741, %1812 : vector<8x128xf32>
    %c357 = arith.constant 357 : index
    %1814 = memref.load %arg6[%c357] : memref<512xf32, #tpu.memory_space<smem>>
    %1815 = vector.broadcast %1814 : f32 to vector<8x128xf32>
    %1816 = arith.mulf %1793, %1815 : vector<8x128xf32>
    %1817 = arith.addf %1745, %1816 : vector<8x128xf32>
    %c358 = arith.constant 358 : index
    %1818 = memref.load %arg6[%c358] : memref<512xf32, #tpu.memory_space<smem>>
    %1819 = vector.broadcast %1818 : f32 to vector<8x128xf32>
    %1820 = arith.mulf %1793, %1819 : vector<8x128xf32>
    %1821 = arith.addf %1749, %1820 : vector<8x128xf32>
    %c359 = arith.constant 359 : index
    %1822 = memref.load %arg6[%c359] : memref<512xf32, #tpu.memory_space<smem>>
    %1823 = vector.broadcast %1822 : f32 to vector<8x128xf32>
    %1824 = arith.mulf %1793, %1823 : vector<8x128xf32>
    %1825 = arith.addf %1753, %1824 : vector<8x128xf32>
    %c360 = arith.constant 360 : index
    %1826 = memref.load %arg6[%c360] : memref<512xf32, #tpu.memory_space<smem>>
    %1827 = vector.broadcast %1826 : f32 to vector<8x128xf32>
    %1828 = arith.mulf %1793, %1827 : vector<8x128xf32>
    %1829 = arith.addf %1757, %1828 : vector<8x128xf32>
    %c361 = arith.constant 361 : index
    %1830 = memref.load %arg6[%c361] : memref<512xf32, #tpu.memory_space<smem>>
    %1831 = vector.broadcast %1830 : f32 to vector<8x128xf32>
    %1832 = arith.mulf %1793, %1831 : vector<8x128xf32>
    %1833 = arith.addf %1761, %1832 : vector<8x128xf32>
    %c362 = arith.constant 362 : index
    %1834 = memref.load %arg6[%c362] : memref<512xf32, #tpu.memory_space<smem>>
    %1835 = vector.broadcast %1834 : f32 to vector<8x128xf32>
    %1836 = arith.mulf %1793, %1835 : vector<8x128xf32>
    %1837 = arith.addf %1765, %1836 : vector<8x128xf32>
    %c363 = arith.constant 363 : index
    %1838 = memref.load %arg6[%c363] : memref<512xf32, #tpu.memory_space<smem>>
    %1839 = vector.broadcast %1838 : f32 to vector<8x128xf32>
    %1840 = arith.mulf %1793, %1839 : vector<8x128xf32>
    %1841 = arith.addf %1769, %1840 : vector<8x128xf32>
    %c364 = arith.constant 364 : index
    %1842 = memref.load %arg6[%c364] : memref<512xf32, #tpu.memory_space<smem>>
    %1843 = vector.broadcast %1842 : f32 to vector<8x128xf32>
    %1844 = arith.mulf %1793, %1843 : vector<8x128xf32>
    %1845 = arith.addf %1773, %1844 : vector<8x128xf32>
    %c365 = arith.constant 365 : index
    %1846 = memref.load %arg6[%c365] : memref<512xf32, #tpu.memory_space<smem>>
    %1847 = vector.broadcast %1846 : f32 to vector<8x128xf32>
    %1848 = arith.mulf %1793, %1847 : vector<8x128xf32>
    %1849 = arith.addf %1777, %1848 : vector<8x128xf32>
    %c366 = arith.constant 366 : index
    %1850 = memref.load %arg6[%c366] : memref<512xf32, #tpu.memory_space<smem>>
    %1851 = vector.broadcast %1850 : f32 to vector<8x128xf32>
    %1852 = arith.mulf %1793, %1851 : vector<8x128xf32>
    %1853 = arith.addf %1781, %1852 : vector<8x128xf32>
    %c367 = arith.constant 367 : index
    %1854 = memref.load %arg6[%c367] : memref<512xf32, #tpu.memory_space<smem>>
    %1855 = vector.broadcast %1854 : f32 to vector<8x128xf32>
    %1856 = arith.mulf %1793, %1855 : vector<8x128xf32>
    %1857 = arith.addf %1785, %1856 : vector<8x128xf32>
    %c23_142 = arith.constant 23 : index
    %1858 = memref.load %arg4[%c23_142] : memref<32xf32, #tpu.memory_space<smem>>
    %1859 = vector.broadcast %1858 : f32 to vector<8x128xf32>
    %1860 = arith.mulf %6, %1859 : vector<8x128xf32>
    %c23_143 = arith.constant 23 : index
    %1861 = memref.load %arg5[%c23_143] : memref<32xf32, #tpu.memory_space<smem>>
    %1862 = vector.broadcast %1861 : f32 to vector<8x128xf32>
    %1863 = arith.addf %1860, %1862 : vector<8x128xf32>
    %cst_144 = arith.constant 0.000000e+00 : f32
    %1864 = vector.broadcast %cst_144 : f32 to vector<8x128xf32>
    %1865 = arith.maximumf %1863, %1864 : vector<8x128xf32>
    %c368 = arith.constant 368 : index
    %1866 = memref.load %arg6[%c368] : memref<512xf32, #tpu.memory_space<smem>>
    %1867 = vector.broadcast %1866 : f32 to vector<8x128xf32>
    %1868 = arith.mulf %1865, %1867 : vector<8x128xf32>
    %1869 = arith.addf %1797, %1868 : vector<8x128xf32>
    %c369 = arith.constant 369 : index
    %1870 = memref.load %arg6[%c369] : memref<512xf32, #tpu.memory_space<smem>>
    %1871 = vector.broadcast %1870 : f32 to vector<8x128xf32>
    %1872 = arith.mulf %1865, %1871 : vector<8x128xf32>
    %1873 = arith.addf %1801, %1872 : vector<8x128xf32>
    %c370 = arith.constant 370 : index
    %1874 = memref.load %arg6[%c370] : memref<512xf32, #tpu.memory_space<smem>>
    %1875 = vector.broadcast %1874 : f32 to vector<8x128xf32>
    %1876 = arith.mulf %1865, %1875 : vector<8x128xf32>
    %1877 = arith.addf %1805, %1876 : vector<8x128xf32>
    %c371 = arith.constant 371 : index
    %1878 = memref.load %arg6[%c371] : memref<512xf32, #tpu.memory_space<smem>>
    %1879 = vector.broadcast %1878 : f32 to vector<8x128xf32>
    %1880 = arith.mulf %1865, %1879 : vector<8x128xf32>
    %1881 = arith.addf %1809, %1880 : vector<8x128xf32>
    %c372 = arith.constant 372 : index
    %1882 = memref.load %arg6[%c372] : memref<512xf32, #tpu.memory_space<smem>>
    %1883 = vector.broadcast %1882 : f32 to vector<8x128xf32>
    %1884 = arith.mulf %1865, %1883 : vector<8x128xf32>
    %1885 = arith.addf %1813, %1884 : vector<8x128xf32>
    %c373 = arith.constant 373 : index
    %1886 = memref.load %arg6[%c373] : memref<512xf32, #tpu.memory_space<smem>>
    %1887 = vector.broadcast %1886 : f32 to vector<8x128xf32>
    %1888 = arith.mulf %1865, %1887 : vector<8x128xf32>
    %1889 = arith.addf %1817, %1888 : vector<8x128xf32>
    %c374 = arith.constant 374 : index
    %1890 = memref.load %arg6[%c374] : memref<512xf32, #tpu.memory_space<smem>>
    %1891 = vector.broadcast %1890 : f32 to vector<8x128xf32>
    %1892 = arith.mulf %1865, %1891 : vector<8x128xf32>
    %1893 = arith.addf %1821, %1892 : vector<8x128xf32>
    %c375 = arith.constant 375 : index
    %1894 = memref.load %arg6[%c375] : memref<512xf32, #tpu.memory_space<smem>>
    %1895 = vector.broadcast %1894 : f32 to vector<8x128xf32>
    %1896 = arith.mulf %1865, %1895 : vector<8x128xf32>
    %1897 = arith.addf %1825, %1896 : vector<8x128xf32>
    %c376 = arith.constant 376 : index
    %1898 = memref.load %arg6[%c376] : memref<512xf32, #tpu.memory_space<smem>>
    %1899 = vector.broadcast %1898 : f32 to vector<8x128xf32>
    %1900 = arith.mulf %1865, %1899 : vector<8x128xf32>
    %1901 = arith.addf %1829, %1900 : vector<8x128xf32>
    %c377 = arith.constant 377 : index
    %1902 = memref.load %arg6[%c377] : memref<512xf32, #tpu.memory_space<smem>>
    %1903 = vector.broadcast %1902 : f32 to vector<8x128xf32>
    %1904 = arith.mulf %1865, %1903 : vector<8x128xf32>
    %1905 = arith.addf %1833, %1904 : vector<8x128xf32>
    %c378 = arith.constant 378 : index
    %1906 = memref.load %arg6[%c378] : memref<512xf32, #tpu.memory_space<smem>>
    %1907 = vector.broadcast %1906 : f32 to vector<8x128xf32>
    %1908 = arith.mulf %1865, %1907 : vector<8x128xf32>
    %1909 = arith.addf %1837, %1908 : vector<8x128xf32>
    %c379 = arith.constant 379 : index
    %1910 = memref.load %arg6[%c379] : memref<512xf32, #tpu.memory_space<smem>>
    %1911 = vector.broadcast %1910 : f32 to vector<8x128xf32>
    %1912 = arith.mulf %1865, %1911 : vector<8x128xf32>
    %1913 = arith.addf %1841, %1912 : vector<8x128xf32>
    %c380 = arith.constant 380 : index
    %1914 = memref.load %arg6[%c380] : memref<512xf32, #tpu.memory_space<smem>>
    %1915 = vector.broadcast %1914 : f32 to vector<8x128xf32>
    %1916 = arith.mulf %1865, %1915 : vector<8x128xf32>
    %1917 = arith.addf %1845, %1916 : vector<8x128xf32>
    %c381 = arith.constant 381 : index
    %1918 = memref.load %arg6[%c381] : memref<512xf32, #tpu.memory_space<smem>>
    %1919 = vector.broadcast %1918 : f32 to vector<8x128xf32>
    %1920 = arith.mulf %1865, %1919 : vector<8x128xf32>
    %1921 = arith.addf %1849, %1920 : vector<8x128xf32>
    %c382 = arith.constant 382 : index
    %1922 = memref.load %arg6[%c382] : memref<512xf32, #tpu.memory_space<smem>>
    %1923 = vector.broadcast %1922 : f32 to vector<8x128xf32>
    %1924 = arith.mulf %1865, %1923 : vector<8x128xf32>
    %1925 = arith.addf %1853, %1924 : vector<8x128xf32>
    %c383 = arith.constant 383 : index
    %1926 = memref.load %arg6[%c383] : memref<512xf32, #tpu.memory_space<smem>>
    %1927 = vector.broadcast %1926 : f32 to vector<8x128xf32>
    %1928 = arith.mulf %1865, %1927 : vector<8x128xf32>
    %1929 = arith.addf %1857, %1928 : vector<8x128xf32>
    %c24_145 = arith.constant 24 : index
    %1930 = memref.load %arg4[%c24_145] : memref<32xf32, #tpu.memory_space<smem>>
    %1931 = vector.broadcast %1930 : f32 to vector<8x128xf32>
    %1932 = arith.mulf %6, %1931 : vector<8x128xf32>
    %c24_146 = arith.constant 24 : index
    %1933 = memref.load %arg5[%c24_146] : memref<32xf32, #tpu.memory_space<smem>>
    %1934 = vector.broadcast %1933 : f32 to vector<8x128xf32>
    %1935 = arith.addf %1932, %1934 : vector<8x128xf32>
    %cst_147 = arith.constant 0.000000e+00 : f32
    %1936 = vector.broadcast %cst_147 : f32 to vector<8x128xf32>
    %1937 = arith.maximumf %1935, %1936 : vector<8x128xf32>
    %c384 = arith.constant 384 : index
    %1938 = memref.load %arg6[%c384] : memref<512xf32, #tpu.memory_space<smem>>
    %1939 = vector.broadcast %1938 : f32 to vector<8x128xf32>
    %1940 = arith.mulf %1937, %1939 : vector<8x128xf32>
    %1941 = arith.addf %1869, %1940 : vector<8x128xf32>
    %c385 = arith.constant 385 : index
    %1942 = memref.load %arg6[%c385] : memref<512xf32, #tpu.memory_space<smem>>
    %1943 = vector.broadcast %1942 : f32 to vector<8x128xf32>
    %1944 = arith.mulf %1937, %1943 : vector<8x128xf32>
    %1945 = arith.addf %1873, %1944 : vector<8x128xf32>
    %c386 = arith.constant 386 : index
    %1946 = memref.load %arg6[%c386] : memref<512xf32, #tpu.memory_space<smem>>
    %1947 = vector.broadcast %1946 : f32 to vector<8x128xf32>
    %1948 = arith.mulf %1937, %1947 : vector<8x128xf32>
    %1949 = arith.addf %1877, %1948 : vector<8x128xf32>
    %c387 = arith.constant 387 : index
    %1950 = memref.load %arg6[%c387] : memref<512xf32, #tpu.memory_space<smem>>
    %1951 = vector.broadcast %1950 : f32 to vector<8x128xf32>
    %1952 = arith.mulf %1937, %1951 : vector<8x128xf32>
    %1953 = arith.addf %1881, %1952 : vector<8x128xf32>
    %c388 = arith.constant 388 : index
    %1954 = memref.load %arg6[%c388] : memref<512xf32, #tpu.memory_space<smem>>
    %1955 = vector.broadcast %1954 : f32 to vector<8x128xf32>
    %1956 = arith.mulf %1937, %1955 : vector<8x128xf32>
    %1957 = arith.addf %1885, %1956 : vector<8x128xf32>
    %c389 = arith.constant 389 : index
    %1958 = memref.load %arg6[%c389] : memref<512xf32, #tpu.memory_space<smem>>
    %1959 = vector.broadcast %1958 : f32 to vector<8x128xf32>
    %1960 = arith.mulf %1937, %1959 : vector<8x128xf32>
    %1961 = arith.addf %1889, %1960 : vector<8x128xf32>
    %c390 = arith.constant 390 : index
    %1962 = memref.load %arg6[%c390] : memref<512xf32, #tpu.memory_space<smem>>
    %1963 = vector.broadcast %1962 : f32 to vector<8x128xf32>
    %1964 = arith.mulf %1937, %1963 : vector<8x128xf32>
    %1965 = arith.addf %1893, %1964 : vector<8x128xf32>
    %c391 = arith.constant 391 : index
    %1966 = memref.load %arg6[%c391] : memref<512xf32, #tpu.memory_space<smem>>
    %1967 = vector.broadcast %1966 : f32 to vector<8x128xf32>
    %1968 = arith.mulf %1937, %1967 : vector<8x128xf32>
    %1969 = arith.addf %1897, %1968 : vector<8x128xf32>
    %c392 = arith.constant 392 : index
    %1970 = memref.load %arg6[%c392] : memref<512xf32, #tpu.memory_space<smem>>
    %1971 = vector.broadcast %1970 : f32 to vector<8x128xf32>
    %1972 = arith.mulf %1937, %1971 : vector<8x128xf32>
    %1973 = arith.addf %1901, %1972 : vector<8x128xf32>
    %c393 = arith.constant 393 : index
    %1974 = memref.load %arg6[%c393] : memref<512xf32, #tpu.memory_space<smem>>
    %1975 = vector.broadcast %1974 : f32 to vector<8x128xf32>
    %1976 = arith.mulf %1937, %1975 : vector<8x128xf32>
    %1977 = arith.addf %1905, %1976 : vector<8x128xf32>
    %c394 = arith.constant 394 : index
    %1978 = memref.load %arg6[%c394] : memref<512xf32, #tpu.memory_space<smem>>
    %1979 = vector.broadcast %1978 : f32 to vector<8x128xf32>
    %1980 = arith.mulf %1937, %1979 : vector<8x128xf32>
    %1981 = arith.addf %1909, %1980 : vector<8x128xf32>
    %c395 = arith.constant 395 : index
    %1982 = memref.load %arg6[%c395] : memref<512xf32, #tpu.memory_space<smem>>
    %1983 = vector.broadcast %1982 : f32 to vector<8x128xf32>
    %1984 = arith.mulf %1937, %1983 : vector<8x128xf32>
    %1985 = arith.addf %1913, %1984 : vector<8x128xf32>
    %c396 = arith.constant 396 : index
    %1986 = memref.load %arg6[%c396] : memref<512xf32, #tpu.memory_space<smem>>
    %1987 = vector.broadcast %1986 : f32 to vector<8x128xf32>
    %1988 = arith.mulf %1937, %1987 : vector<8x128xf32>
    %1989 = arith.addf %1917, %1988 : vector<8x128xf32>
    %c397 = arith.constant 397 : index
    %1990 = memref.load %arg6[%c397] : memref<512xf32, #tpu.memory_space<smem>>
    %1991 = vector.broadcast %1990 : f32 to vector<8x128xf32>
    %1992 = arith.mulf %1937, %1991 : vector<8x128xf32>
    %1993 = arith.addf %1921, %1992 : vector<8x128xf32>
    %c398 = arith.constant 398 : index
    %1994 = memref.load %arg6[%c398] : memref<512xf32, #tpu.memory_space<smem>>
    %1995 = vector.broadcast %1994 : f32 to vector<8x128xf32>
    %1996 = arith.mulf %1937, %1995 : vector<8x128xf32>
    %1997 = arith.addf %1925, %1996 : vector<8x128xf32>
    %c399 = arith.constant 399 : index
    %1998 = memref.load %arg6[%c399] : memref<512xf32, #tpu.memory_space<smem>>
    %1999 = vector.broadcast %1998 : f32 to vector<8x128xf32>
    %2000 = arith.mulf %1937, %1999 : vector<8x128xf32>
    %2001 = arith.addf %1929, %2000 : vector<8x128xf32>
    %c25_148 = arith.constant 25 : index
    %2002 = memref.load %arg4[%c25_148] : memref<32xf32, #tpu.memory_space<smem>>
    %2003 = vector.broadcast %2002 : f32 to vector<8x128xf32>
    %2004 = arith.mulf %6, %2003 : vector<8x128xf32>
    %c25_149 = arith.constant 25 : index
    %2005 = memref.load %arg5[%c25_149] : memref<32xf32, #tpu.memory_space<smem>>
    %2006 = vector.broadcast %2005 : f32 to vector<8x128xf32>
    %2007 = arith.addf %2004, %2006 : vector<8x128xf32>
    %cst_150 = arith.constant 0.000000e+00 : f32
    %2008 = vector.broadcast %cst_150 : f32 to vector<8x128xf32>
    %2009 = arith.maximumf %2007, %2008 : vector<8x128xf32>
    %c400 = arith.constant 400 : index
    %2010 = memref.load %arg6[%c400] : memref<512xf32, #tpu.memory_space<smem>>
    %2011 = vector.broadcast %2010 : f32 to vector<8x128xf32>
    %2012 = arith.mulf %2009, %2011 : vector<8x128xf32>
    %2013 = arith.addf %1941, %2012 : vector<8x128xf32>
    %c401 = arith.constant 401 : index
    %2014 = memref.load %arg6[%c401] : memref<512xf32, #tpu.memory_space<smem>>
    %2015 = vector.broadcast %2014 : f32 to vector<8x128xf32>
    %2016 = arith.mulf %2009, %2015 : vector<8x128xf32>
    %2017 = arith.addf %1945, %2016 : vector<8x128xf32>
    %c402 = arith.constant 402 : index
    %2018 = memref.load %arg6[%c402] : memref<512xf32, #tpu.memory_space<smem>>
    %2019 = vector.broadcast %2018 : f32 to vector<8x128xf32>
    %2020 = arith.mulf %2009, %2019 : vector<8x128xf32>
    %2021 = arith.addf %1949, %2020 : vector<8x128xf32>
    %c403 = arith.constant 403 : index
    %2022 = memref.load %arg6[%c403] : memref<512xf32, #tpu.memory_space<smem>>
    %2023 = vector.broadcast %2022 : f32 to vector<8x128xf32>
    %2024 = arith.mulf %2009, %2023 : vector<8x128xf32>
    %2025 = arith.addf %1953, %2024 : vector<8x128xf32>
    %c404 = arith.constant 404 : index
    %2026 = memref.load %arg6[%c404] : memref<512xf32, #tpu.memory_space<smem>>
    %2027 = vector.broadcast %2026 : f32 to vector<8x128xf32>
    %2028 = arith.mulf %2009, %2027 : vector<8x128xf32>
    %2029 = arith.addf %1957, %2028 : vector<8x128xf32>
    %c405 = arith.constant 405 : index
    %2030 = memref.load %arg6[%c405] : memref<512xf32, #tpu.memory_space<smem>>
    %2031 = vector.broadcast %2030 : f32 to vector<8x128xf32>
    %2032 = arith.mulf %2009, %2031 : vector<8x128xf32>
    %2033 = arith.addf %1961, %2032 : vector<8x128xf32>
    %c406 = arith.constant 406 : index
    %2034 = memref.load %arg6[%c406] : memref<512xf32, #tpu.memory_space<smem>>
    %2035 = vector.broadcast %2034 : f32 to vector<8x128xf32>
    %2036 = arith.mulf %2009, %2035 : vector<8x128xf32>
    %2037 = arith.addf %1965, %2036 : vector<8x128xf32>
    %c407 = arith.constant 407 : index
    %2038 = memref.load %arg6[%c407] : memref<512xf32, #tpu.memory_space<smem>>
    %2039 = vector.broadcast %2038 : f32 to vector<8x128xf32>
    %2040 = arith.mulf %2009, %2039 : vector<8x128xf32>
    %2041 = arith.addf %1969, %2040 : vector<8x128xf32>
    %c408 = arith.constant 408 : index
    %2042 = memref.load %arg6[%c408] : memref<512xf32, #tpu.memory_space<smem>>
    %2043 = vector.broadcast %2042 : f32 to vector<8x128xf32>
    %2044 = arith.mulf %2009, %2043 : vector<8x128xf32>
    %2045 = arith.addf %1973, %2044 : vector<8x128xf32>
    %c409 = arith.constant 409 : index
    %2046 = memref.load %arg6[%c409] : memref<512xf32, #tpu.memory_space<smem>>
    %2047 = vector.broadcast %2046 : f32 to vector<8x128xf32>
    %2048 = arith.mulf %2009, %2047 : vector<8x128xf32>
    %2049 = arith.addf %1977, %2048 : vector<8x128xf32>
    %c410 = arith.constant 410 : index
    %2050 = memref.load %arg6[%c410] : memref<512xf32, #tpu.memory_space<smem>>
    %2051 = vector.broadcast %2050 : f32 to vector<8x128xf32>
    %2052 = arith.mulf %2009, %2051 : vector<8x128xf32>
    %2053 = arith.addf %1981, %2052 : vector<8x128xf32>
    %c411 = arith.constant 411 : index
    %2054 = memref.load %arg6[%c411] : memref<512xf32, #tpu.memory_space<smem>>
    %2055 = vector.broadcast %2054 : f32 to vector<8x128xf32>
    %2056 = arith.mulf %2009, %2055 : vector<8x128xf32>
    %2057 = arith.addf %1985, %2056 : vector<8x128xf32>
    %c412 = arith.constant 412 : index
    %2058 = memref.load %arg6[%c412] : memref<512xf32, #tpu.memory_space<smem>>
    %2059 = vector.broadcast %2058 : f32 to vector<8x128xf32>
    %2060 = arith.mulf %2009, %2059 : vector<8x128xf32>
    %2061 = arith.addf %1989, %2060 : vector<8x128xf32>
    %c413 = arith.constant 413 : index
    %2062 = memref.load %arg6[%c413] : memref<512xf32, #tpu.memory_space<smem>>
    %2063 = vector.broadcast %2062 : f32 to vector<8x128xf32>
    %2064 = arith.mulf %2009, %2063 : vector<8x128xf32>
    %2065 = arith.addf %1993, %2064 : vector<8x128xf32>
    %c414 = arith.constant 414 : index
    %2066 = memref.load %arg6[%c414] : memref<512xf32, #tpu.memory_space<smem>>
    %2067 = vector.broadcast %2066 : f32 to vector<8x128xf32>
    %2068 = arith.mulf %2009, %2067 : vector<8x128xf32>
    %2069 = arith.addf %1997, %2068 : vector<8x128xf32>
    %c415 = arith.constant 415 : index
    %2070 = memref.load %arg6[%c415] : memref<512xf32, #tpu.memory_space<smem>>
    %2071 = vector.broadcast %2070 : f32 to vector<8x128xf32>
    %2072 = arith.mulf %2009, %2071 : vector<8x128xf32>
    %2073 = arith.addf %2001, %2072 : vector<8x128xf32>
    %c26_151 = arith.constant 26 : index
    %2074 = memref.load %arg4[%c26_151] : memref<32xf32, #tpu.memory_space<smem>>
    %2075 = vector.broadcast %2074 : f32 to vector<8x128xf32>
    %2076 = arith.mulf %6, %2075 : vector<8x128xf32>
    %c26_152 = arith.constant 26 : index
    %2077 = memref.load %arg5[%c26_152] : memref<32xf32, #tpu.memory_space<smem>>
    %2078 = vector.broadcast %2077 : f32 to vector<8x128xf32>
    %2079 = arith.addf %2076, %2078 : vector<8x128xf32>
    %cst_153 = arith.constant 0.000000e+00 : f32
    %2080 = vector.broadcast %cst_153 : f32 to vector<8x128xf32>
    %2081 = arith.maximumf %2079, %2080 : vector<8x128xf32>
    %c416 = arith.constant 416 : index
    %2082 = memref.load %arg6[%c416] : memref<512xf32, #tpu.memory_space<smem>>
    %2083 = vector.broadcast %2082 : f32 to vector<8x128xf32>
    %2084 = arith.mulf %2081, %2083 : vector<8x128xf32>
    %2085 = arith.addf %2013, %2084 : vector<8x128xf32>
    %c417 = arith.constant 417 : index
    %2086 = memref.load %arg6[%c417] : memref<512xf32, #tpu.memory_space<smem>>
    %2087 = vector.broadcast %2086 : f32 to vector<8x128xf32>
    %2088 = arith.mulf %2081, %2087 : vector<8x128xf32>
    %2089 = arith.addf %2017, %2088 : vector<8x128xf32>
    %c418 = arith.constant 418 : index
    %2090 = memref.load %arg6[%c418] : memref<512xf32, #tpu.memory_space<smem>>
    %2091 = vector.broadcast %2090 : f32 to vector<8x128xf32>
    %2092 = arith.mulf %2081, %2091 : vector<8x128xf32>
    %2093 = arith.addf %2021, %2092 : vector<8x128xf32>
    %c419 = arith.constant 419 : index
    %2094 = memref.load %arg6[%c419] : memref<512xf32, #tpu.memory_space<smem>>
    %2095 = vector.broadcast %2094 : f32 to vector<8x128xf32>
    %2096 = arith.mulf %2081, %2095 : vector<8x128xf32>
    %2097 = arith.addf %2025, %2096 : vector<8x128xf32>
    %c420 = arith.constant 420 : index
    %2098 = memref.load %arg6[%c420] : memref<512xf32, #tpu.memory_space<smem>>
    %2099 = vector.broadcast %2098 : f32 to vector<8x128xf32>
    %2100 = arith.mulf %2081, %2099 : vector<8x128xf32>
    %2101 = arith.addf %2029, %2100 : vector<8x128xf32>
    %c421 = arith.constant 421 : index
    %2102 = memref.load %arg6[%c421] : memref<512xf32, #tpu.memory_space<smem>>
    %2103 = vector.broadcast %2102 : f32 to vector<8x128xf32>
    %2104 = arith.mulf %2081, %2103 : vector<8x128xf32>
    %2105 = arith.addf %2033, %2104 : vector<8x128xf32>
    %c422 = arith.constant 422 : index
    %2106 = memref.load %arg6[%c422] : memref<512xf32, #tpu.memory_space<smem>>
    %2107 = vector.broadcast %2106 : f32 to vector<8x128xf32>
    %2108 = arith.mulf %2081, %2107 : vector<8x128xf32>
    %2109 = arith.addf %2037, %2108 : vector<8x128xf32>
    %c423 = arith.constant 423 : index
    %2110 = memref.load %arg6[%c423] : memref<512xf32, #tpu.memory_space<smem>>
    %2111 = vector.broadcast %2110 : f32 to vector<8x128xf32>
    %2112 = arith.mulf %2081, %2111 : vector<8x128xf32>
    %2113 = arith.addf %2041, %2112 : vector<8x128xf32>
    %c424 = arith.constant 424 : index
    %2114 = memref.load %arg6[%c424] : memref<512xf32, #tpu.memory_space<smem>>
    %2115 = vector.broadcast %2114 : f32 to vector<8x128xf32>
    %2116 = arith.mulf %2081, %2115 : vector<8x128xf32>
    %2117 = arith.addf %2045, %2116 : vector<8x128xf32>
    %c425 = arith.constant 425 : index
    %2118 = memref.load %arg6[%c425] : memref<512xf32, #tpu.memory_space<smem>>
    %2119 = vector.broadcast %2118 : f32 to vector<8x128xf32>
    %2120 = arith.mulf %2081, %2119 : vector<8x128xf32>
    %2121 = arith.addf %2049, %2120 : vector<8x128xf32>
    %c426 = arith.constant 426 : index
    %2122 = memref.load %arg6[%c426] : memref<512xf32, #tpu.memory_space<smem>>
    %2123 = vector.broadcast %2122 : f32 to vector<8x128xf32>
    %2124 = arith.mulf %2081, %2123 : vector<8x128xf32>
    %2125 = arith.addf %2053, %2124 : vector<8x128xf32>
    %c427 = arith.constant 427 : index
    %2126 = memref.load %arg6[%c427] : memref<512xf32, #tpu.memory_space<smem>>
    %2127 = vector.broadcast %2126 : f32 to vector<8x128xf32>
    %2128 = arith.mulf %2081, %2127 : vector<8x128xf32>
    %2129 = arith.addf %2057, %2128 : vector<8x128xf32>
    %c428 = arith.constant 428 : index
    %2130 = memref.load %arg6[%c428] : memref<512xf32, #tpu.memory_space<smem>>
    %2131 = vector.broadcast %2130 : f32 to vector<8x128xf32>
    %2132 = arith.mulf %2081, %2131 : vector<8x128xf32>
    %2133 = arith.addf %2061, %2132 : vector<8x128xf32>
    %c429 = arith.constant 429 : index
    %2134 = memref.load %arg6[%c429] : memref<512xf32, #tpu.memory_space<smem>>
    %2135 = vector.broadcast %2134 : f32 to vector<8x128xf32>
    %2136 = arith.mulf %2081, %2135 : vector<8x128xf32>
    %2137 = arith.addf %2065, %2136 : vector<8x128xf32>
    %c430 = arith.constant 430 : index
    %2138 = memref.load %arg6[%c430] : memref<512xf32, #tpu.memory_space<smem>>
    %2139 = vector.broadcast %2138 : f32 to vector<8x128xf32>
    %2140 = arith.mulf %2081, %2139 : vector<8x128xf32>
    %2141 = arith.addf %2069, %2140 : vector<8x128xf32>
    %c431 = arith.constant 431 : index
    %2142 = memref.load %arg6[%c431] : memref<512xf32, #tpu.memory_space<smem>>
    %2143 = vector.broadcast %2142 : f32 to vector<8x128xf32>
    %2144 = arith.mulf %2081, %2143 : vector<8x128xf32>
    %2145 = arith.addf %2073, %2144 : vector<8x128xf32>
    %c27_154 = arith.constant 27 : index
    %2146 = memref.load %arg4[%c27_154] : memref<32xf32, #tpu.memory_space<smem>>
    %2147 = vector.broadcast %2146 : f32 to vector<8x128xf32>
    %2148 = arith.mulf %6, %2147 : vector<8x128xf32>
    %c27_155 = arith.constant 27 : index
    %2149 = memref.load %arg5[%c27_155] : memref<32xf32, #tpu.memory_space<smem>>
    %2150 = vector.broadcast %2149 : f32 to vector<8x128xf32>
    %2151 = arith.addf %2148, %2150 : vector<8x128xf32>
    %cst_156 = arith.constant 0.000000e+00 : f32
    %2152 = vector.broadcast %cst_156 : f32 to vector<8x128xf32>
    %2153 = arith.maximumf %2151, %2152 : vector<8x128xf32>
    %c432 = arith.constant 432 : index
    %2154 = memref.load %arg6[%c432] : memref<512xf32, #tpu.memory_space<smem>>
    %2155 = vector.broadcast %2154 : f32 to vector<8x128xf32>
    %2156 = arith.mulf %2153, %2155 : vector<8x128xf32>
    %2157 = arith.addf %2085, %2156 : vector<8x128xf32>
    %c433 = arith.constant 433 : index
    %2158 = memref.load %arg6[%c433] : memref<512xf32, #tpu.memory_space<smem>>
    %2159 = vector.broadcast %2158 : f32 to vector<8x128xf32>
    %2160 = arith.mulf %2153, %2159 : vector<8x128xf32>
    %2161 = arith.addf %2089, %2160 : vector<8x128xf32>
    %c434 = arith.constant 434 : index
    %2162 = memref.load %arg6[%c434] : memref<512xf32, #tpu.memory_space<smem>>
    %2163 = vector.broadcast %2162 : f32 to vector<8x128xf32>
    %2164 = arith.mulf %2153, %2163 : vector<8x128xf32>
    %2165 = arith.addf %2093, %2164 : vector<8x128xf32>
    %c435 = arith.constant 435 : index
    %2166 = memref.load %arg6[%c435] : memref<512xf32, #tpu.memory_space<smem>>
    %2167 = vector.broadcast %2166 : f32 to vector<8x128xf32>
    %2168 = arith.mulf %2153, %2167 : vector<8x128xf32>
    %2169 = arith.addf %2097, %2168 : vector<8x128xf32>
    %c436 = arith.constant 436 : index
    %2170 = memref.load %arg6[%c436] : memref<512xf32, #tpu.memory_space<smem>>
    %2171 = vector.broadcast %2170 : f32 to vector<8x128xf32>
    %2172 = arith.mulf %2153, %2171 : vector<8x128xf32>
    %2173 = arith.addf %2101, %2172 : vector<8x128xf32>
    %c437 = arith.constant 437 : index
    %2174 = memref.load %arg6[%c437] : memref<512xf32, #tpu.memory_space<smem>>
    %2175 = vector.broadcast %2174 : f32 to vector<8x128xf32>
    %2176 = arith.mulf %2153, %2175 : vector<8x128xf32>
    %2177 = arith.addf %2105, %2176 : vector<8x128xf32>
    %c438 = arith.constant 438 : index
    %2178 = memref.load %arg6[%c438] : memref<512xf32, #tpu.memory_space<smem>>
    %2179 = vector.broadcast %2178 : f32 to vector<8x128xf32>
    %2180 = arith.mulf %2153, %2179 : vector<8x128xf32>
    %2181 = arith.addf %2109, %2180 : vector<8x128xf32>
    %c439 = arith.constant 439 : index
    %2182 = memref.load %arg6[%c439] : memref<512xf32, #tpu.memory_space<smem>>
    %2183 = vector.broadcast %2182 : f32 to vector<8x128xf32>
    %2184 = arith.mulf %2153, %2183 : vector<8x128xf32>
    %2185 = arith.addf %2113, %2184 : vector<8x128xf32>
    %c440 = arith.constant 440 : index
    %2186 = memref.load %arg6[%c440] : memref<512xf32, #tpu.memory_space<smem>>
    %2187 = vector.broadcast %2186 : f32 to vector<8x128xf32>
    %2188 = arith.mulf %2153, %2187 : vector<8x128xf32>
    %2189 = arith.addf %2117, %2188 : vector<8x128xf32>
    %c441 = arith.constant 441 : index
    %2190 = memref.load %arg6[%c441] : memref<512xf32, #tpu.memory_space<smem>>
    %2191 = vector.broadcast %2190 : f32 to vector<8x128xf32>
    %2192 = arith.mulf %2153, %2191 : vector<8x128xf32>
    %2193 = arith.addf %2121, %2192 : vector<8x128xf32>
    %c442 = arith.constant 442 : index
    %2194 = memref.load %arg6[%c442] : memref<512xf32, #tpu.memory_space<smem>>
    %2195 = vector.broadcast %2194 : f32 to vector<8x128xf32>
    %2196 = arith.mulf %2153, %2195 : vector<8x128xf32>
    %2197 = arith.addf %2125, %2196 : vector<8x128xf32>
    %c443 = arith.constant 443 : index
    %2198 = memref.load %arg6[%c443] : memref<512xf32, #tpu.memory_space<smem>>
    %2199 = vector.broadcast %2198 : f32 to vector<8x128xf32>
    %2200 = arith.mulf %2153, %2199 : vector<8x128xf32>
    %2201 = arith.addf %2129, %2200 : vector<8x128xf32>
    %c444 = arith.constant 444 : index
    %2202 = memref.load %arg6[%c444] : memref<512xf32, #tpu.memory_space<smem>>
    %2203 = vector.broadcast %2202 : f32 to vector<8x128xf32>
    %2204 = arith.mulf %2153, %2203 : vector<8x128xf32>
    %2205 = arith.addf %2133, %2204 : vector<8x128xf32>
    %c445 = arith.constant 445 : index
    %2206 = memref.load %arg6[%c445] : memref<512xf32, #tpu.memory_space<smem>>
    %2207 = vector.broadcast %2206 : f32 to vector<8x128xf32>
    %2208 = arith.mulf %2153, %2207 : vector<8x128xf32>
    %2209 = arith.addf %2137, %2208 : vector<8x128xf32>
    %c446 = arith.constant 446 : index
    %2210 = memref.load %arg6[%c446] : memref<512xf32, #tpu.memory_space<smem>>
    %2211 = vector.broadcast %2210 : f32 to vector<8x128xf32>
    %2212 = arith.mulf %2153, %2211 : vector<8x128xf32>
    %2213 = arith.addf %2141, %2212 : vector<8x128xf32>
    %c447 = arith.constant 447 : index
    %2214 = memref.load %arg6[%c447] : memref<512xf32, #tpu.memory_space<smem>>
    %2215 = vector.broadcast %2214 : f32 to vector<8x128xf32>
    %2216 = arith.mulf %2153, %2215 : vector<8x128xf32>
    %2217 = arith.addf %2145, %2216 : vector<8x128xf32>
    %c28_157 = arith.constant 28 : index
    %2218 = memref.load %arg4[%c28_157] : memref<32xf32, #tpu.memory_space<smem>>
    %2219 = vector.broadcast %2218 : f32 to vector<8x128xf32>
    %2220 = arith.mulf %6, %2219 : vector<8x128xf32>
    %c28_158 = arith.constant 28 : index
    %2221 = memref.load %arg5[%c28_158] : memref<32xf32, #tpu.memory_space<smem>>
    %2222 = vector.broadcast %2221 : f32 to vector<8x128xf32>
    %2223 = arith.addf %2220, %2222 : vector<8x128xf32>
    %cst_159 = arith.constant 0.000000e+00 : f32
    %2224 = vector.broadcast %cst_159 : f32 to vector<8x128xf32>
    %2225 = arith.maximumf %2223, %2224 : vector<8x128xf32>
    %c448 = arith.constant 448 : index
    %2226 = memref.load %arg6[%c448] : memref<512xf32, #tpu.memory_space<smem>>
    %2227 = vector.broadcast %2226 : f32 to vector<8x128xf32>
    %2228 = arith.mulf %2225, %2227 : vector<8x128xf32>
    %2229 = arith.addf %2157, %2228 : vector<8x128xf32>
    %c449 = arith.constant 449 : index
    %2230 = memref.load %arg6[%c449] : memref<512xf32, #tpu.memory_space<smem>>
    %2231 = vector.broadcast %2230 : f32 to vector<8x128xf32>
    %2232 = arith.mulf %2225, %2231 : vector<8x128xf32>
    %2233 = arith.addf %2161, %2232 : vector<8x128xf32>
    %c450 = arith.constant 450 : index
    %2234 = memref.load %arg6[%c450] : memref<512xf32, #tpu.memory_space<smem>>
    %2235 = vector.broadcast %2234 : f32 to vector<8x128xf32>
    %2236 = arith.mulf %2225, %2235 : vector<8x128xf32>
    %2237 = arith.addf %2165, %2236 : vector<8x128xf32>
    %c451 = arith.constant 451 : index
    %2238 = memref.load %arg6[%c451] : memref<512xf32, #tpu.memory_space<smem>>
    %2239 = vector.broadcast %2238 : f32 to vector<8x128xf32>
    %2240 = arith.mulf %2225, %2239 : vector<8x128xf32>
    %2241 = arith.addf %2169, %2240 : vector<8x128xf32>
    %c452 = arith.constant 452 : index
    %2242 = memref.load %arg6[%c452] : memref<512xf32, #tpu.memory_space<smem>>
    %2243 = vector.broadcast %2242 : f32 to vector<8x128xf32>
    %2244 = arith.mulf %2225, %2243 : vector<8x128xf32>
    %2245 = arith.addf %2173, %2244 : vector<8x128xf32>
    %c453 = arith.constant 453 : index
    %2246 = memref.load %arg6[%c453] : memref<512xf32, #tpu.memory_space<smem>>
    %2247 = vector.broadcast %2246 : f32 to vector<8x128xf32>
    %2248 = arith.mulf %2225, %2247 : vector<8x128xf32>
    %2249 = arith.addf %2177, %2248 : vector<8x128xf32>
    %c454 = arith.constant 454 : index
    %2250 = memref.load %arg6[%c454] : memref<512xf32, #tpu.memory_space<smem>>
    %2251 = vector.broadcast %2250 : f32 to vector<8x128xf32>
    %2252 = arith.mulf %2225, %2251 : vector<8x128xf32>
    %2253 = arith.addf %2181, %2252 : vector<8x128xf32>
    %c455 = arith.constant 455 : index
    %2254 = memref.load %arg6[%c455] : memref<512xf32, #tpu.memory_space<smem>>
    %2255 = vector.broadcast %2254 : f32 to vector<8x128xf32>
    %2256 = arith.mulf %2225, %2255 : vector<8x128xf32>
    %2257 = arith.addf %2185, %2256 : vector<8x128xf32>
    %c456 = arith.constant 456 : index
    %2258 = memref.load %arg6[%c456] : memref<512xf32, #tpu.memory_space<smem>>
    %2259 = vector.broadcast %2258 : f32 to vector<8x128xf32>
    %2260 = arith.mulf %2225, %2259 : vector<8x128xf32>
    %2261 = arith.addf %2189, %2260 : vector<8x128xf32>
    %c457 = arith.constant 457 : index
    %2262 = memref.load %arg6[%c457] : memref<512xf32, #tpu.memory_space<smem>>
    %2263 = vector.broadcast %2262 : f32 to vector<8x128xf32>
    %2264 = arith.mulf %2225, %2263 : vector<8x128xf32>
    %2265 = arith.addf %2193, %2264 : vector<8x128xf32>
    %c458 = arith.constant 458 : index
    %2266 = memref.load %arg6[%c458] : memref<512xf32, #tpu.memory_space<smem>>
    %2267 = vector.broadcast %2266 : f32 to vector<8x128xf32>
    %2268 = arith.mulf %2225, %2267 : vector<8x128xf32>
    %2269 = arith.addf %2197, %2268 : vector<8x128xf32>
    %c459 = arith.constant 459 : index
    %2270 = memref.load %arg6[%c459] : memref<512xf32, #tpu.memory_space<smem>>
    %2271 = vector.broadcast %2270 : f32 to vector<8x128xf32>
    %2272 = arith.mulf %2225, %2271 : vector<8x128xf32>
    %2273 = arith.addf %2201, %2272 : vector<8x128xf32>
    %c460 = arith.constant 460 : index
    %2274 = memref.load %arg6[%c460] : memref<512xf32, #tpu.memory_space<smem>>
    %2275 = vector.broadcast %2274 : f32 to vector<8x128xf32>
    %2276 = arith.mulf %2225, %2275 : vector<8x128xf32>
    %2277 = arith.addf %2205, %2276 : vector<8x128xf32>
    %c461 = arith.constant 461 : index
    %2278 = memref.load %arg6[%c461] : memref<512xf32, #tpu.memory_space<smem>>
    %2279 = vector.broadcast %2278 : f32 to vector<8x128xf32>
    %2280 = arith.mulf %2225, %2279 : vector<8x128xf32>
    %2281 = arith.addf %2209, %2280 : vector<8x128xf32>
    %c462 = arith.constant 462 : index
    %2282 = memref.load %arg6[%c462] : memref<512xf32, #tpu.memory_space<smem>>
    %2283 = vector.broadcast %2282 : f32 to vector<8x128xf32>
    %2284 = arith.mulf %2225, %2283 : vector<8x128xf32>
    %2285 = arith.addf %2213, %2284 : vector<8x128xf32>
    %c463 = arith.constant 463 : index
    %2286 = memref.load %arg6[%c463] : memref<512xf32, #tpu.memory_space<smem>>
    %2287 = vector.broadcast %2286 : f32 to vector<8x128xf32>
    %2288 = arith.mulf %2225, %2287 : vector<8x128xf32>
    %2289 = arith.addf %2217, %2288 : vector<8x128xf32>
    %c29_160 = arith.constant 29 : index
    %2290 = memref.load %arg4[%c29_160] : memref<32xf32, #tpu.memory_space<smem>>
    %2291 = vector.broadcast %2290 : f32 to vector<8x128xf32>
    %2292 = arith.mulf %6, %2291 : vector<8x128xf32>
    %c29_161 = arith.constant 29 : index
    %2293 = memref.load %arg5[%c29_161] : memref<32xf32, #tpu.memory_space<smem>>
    %2294 = vector.broadcast %2293 : f32 to vector<8x128xf32>
    %2295 = arith.addf %2292, %2294 : vector<8x128xf32>
    %cst_162 = arith.constant 0.000000e+00 : f32
    %2296 = vector.broadcast %cst_162 : f32 to vector<8x128xf32>
    %2297 = arith.maximumf %2295, %2296 : vector<8x128xf32>
    %c464 = arith.constant 464 : index
    %2298 = memref.load %arg6[%c464] : memref<512xf32, #tpu.memory_space<smem>>
    %2299 = vector.broadcast %2298 : f32 to vector<8x128xf32>
    %2300 = arith.mulf %2297, %2299 : vector<8x128xf32>
    %2301 = arith.addf %2229, %2300 : vector<8x128xf32>
    %c465 = arith.constant 465 : index
    %2302 = memref.load %arg6[%c465] : memref<512xf32, #tpu.memory_space<smem>>
    %2303 = vector.broadcast %2302 : f32 to vector<8x128xf32>
    %2304 = arith.mulf %2297, %2303 : vector<8x128xf32>
    %2305 = arith.addf %2233, %2304 : vector<8x128xf32>
    %c466 = arith.constant 466 : index
    %2306 = memref.load %arg6[%c466] : memref<512xf32, #tpu.memory_space<smem>>
    %2307 = vector.broadcast %2306 : f32 to vector<8x128xf32>
    %2308 = arith.mulf %2297, %2307 : vector<8x128xf32>
    %2309 = arith.addf %2237, %2308 : vector<8x128xf32>
    %c467 = arith.constant 467 : index
    %2310 = memref.load %arg6[%c467] : memref<512xf32, #tpu.memory_space<smem>>
    %2311 = vector.broadcast %2310 : f32 to vector<8x128xf32>
    %2312 = arith.mulf %2297, %2311 : vector<8x128xf32>
    %2313 = arith.addf %2241, %2312 : vector<8x128xf32>
    %c468 = arith.constant 468 : index
    %2314 = memref.load %arg6[%c468] : memref<512xf32, #tpu.memory_space<smem>>
    %2315 = vector.broadcast %2314 : f32 to vector<8x128xf32>
    %2316 = arith.mulf %2297, %2315 : vector<8x128xf32>
    %2317 = arith.addf %2245, %2316 : vector<8x128xf32>
    %c469 = arith.constant 469 : index
    %2318 = memref.load %arg6[%c469] : memref<512xf32, #tpu.memory_space<smem>>
    %2319 = vector.broadcast %2318 : f32 to vector<8x128xf32>
    %2320 = arith.mulf %2297, %2319 : vector<8x128xf32>
    %2321 = arith.addf %2249, %2320 : vector<8x128xf32>
    %c470 = arith.constant 470 : index
    %2322 = memref.load %arg6[%c470] : memref<512xf32, #tpu.memory_space<smem>>
    %2323 = vector.broadcast %2322 : f32 to vector<8x128xf32>
    %2324 = arith.mulf %2297, %2323 : vector<8x128xf32>
    %2325 = arith.addf %2253, %2324 : vector<8x128xf32>
    %c471 = arith.constant 471 : index
    %2326 = memref.load %arg6[%c471] : memref<512xf32, #tpu.memory_space<smem>>
    %2327 = vector.broadcast %2326 : f32 to vector<8x128xf32>
    %2328 = arith.mulf %2297, %2327 : vector<8x128xf32>
    %2329 = arith.addf %2257, %2328 : vector<8x128xf32>
    %c472 = arith.constant 472 : index
    %2330 = memref.load %arg6[%c472] : memref<512xf32, #tpu.memory_space<smem>>
    %2331 = vector.broadcast %2330 : f32 to vector<8x128xf32>
    %2332 = arith.mulf %2297, %2331 : vector<8x128xf32>
    %2333 = arith.addf %2261, %2332 : vector<8x128xf32>
    %c473 = arith.constant 473 : index
    %2334 = memref.load %arg6[%c473] : memref<512xf32, #tpu.memory_space<smem>>
    %2335 = vector.broadcast %2334 : f32 to vector<8x128xf32>
    %2336 = arith.mulf %2297, %2335 : vector<8x128xf32>
    %2337 = arith.addf %2265, %2336 : vector<8x128xf32>
    %c474 = arith.constant 474 : index
    %2338 = memref.load %arg6[%c474] : memref<512xf32, #tpu.memory_space<smem>>
    %2339 = vector.broadcast %2338 : f32 to vector<8x128xf32>
    %2340 = arith.mulf %2297, %2339 : vector<8x128xf32>
    %2341 = arith.addf %2269, %2340 : vector<8x128xf32>
    %c475 = arith.constant 475 : index
    %2342 = memref.load %arg6[%c475] : memref<512xf32, #tpu.memory_space<smem>>
    %2343 = vector.broadcast %2342 : f32 to vector<8x128xf32>
    %2344 = arith.mulf %2297, %2343 : vector<8x128xf32>
    %2345 = arith.addf %2273, %2344 : vector<8x128xf32>
    %c476 = arith.constant 476 : index
    %2346 = memref.load %arg6[%c476] : memref<512xf32, #tpu.memory_space<smem>>
    %2347 = vector.broadcast %2346 : f32 to vector<8x128xf32>
    %2348 = arith.mulf %2297, %2347 : vector<8x128xf32>
    %2349 = arith.addf %2277, %2348 : vector<8x128xf32>
    %c477 = arith.constant 477 : index
    %2350 = memref.load %arg6[%c477] : memref<512xf32, #tpu.memory_space<smem>>
    %2351 = vector.broadcast %2350 : f32 to vector<8x128xf32>
    %2352 = arith.mulf %2297, %2351 : vector<8x128xf32>
    %2353 = arith.addf %2281, %2352 : vector<8x128xf32>
    %c478 = arith.constant 478 : index
    %2354 = memref.load %arg6[%c478] : memref<512xf32, #tpu.memory_space<smem>>
    %2355 = vector.broadcast %2354 : f32 to vector<8x128xf32>
    %2356 = arith.mulf %2297, %2355 : vector<8x128xf32>
    %2357 = arith.addf %2285, %2356 : vector<8x128xf32>
    %c479 = arith.constant 479 : index
    %2358 = memref.load %arg6[%c479] : memref<512xf32, #tpu.memory_space<smem>>
    %2359 = vector.broadcast %2358 : f32 to vector<8x128xf32>
    %2360 = arith.mulf %2297, %2359 : vector<8x128xf32>
    %2361 = arith.addf %2289, %2360 : vector<8x128xf32>
    %c30_163 = arith.constant 30 : index
    %2362 = memref.load %arg4[%c30_163] : memref<32xf32, #tpu.memory_space<smem>>
    %2363 = vector.broadcast %2362 : f32 to vector<8x128xf32>
    %2364 = arith.mulf %6, %2363 : vector<8x128xf32>
    %c30_164 = arith.constant 30 : index
    %2365 = memref.load %arg5[%c30_164] : memref<32xf32, #tpu.memory_space<smem>>
    %2366 = vector.broadcast %2365 : f32 to vector<8x128xf32>
    %2367 = arith.addf %2364, %2366 : vector<8x128xf32>
    %cst_165 = arith.constant 0.000000e+00 : f32
    %2368 = vector.broadcast %cst_165 : f32 to vector<8x128xf32>
    %2369 = arith.maximumf %2367, %2368 : vector<8x128xf32>
    %c480 = arith.constant 480 : index
    %2370 = memref.load %arg6[%c480] : memref<512xf32, #tpu.memory_space<smem>>
    %2371 = vector.broadcast %2370 : f32 to vector<8x128xf32>
    %2372 = arith.mulf %2369, %2371 : vector<8x128xf32>
    %2373 = arith.addf %2301, %2372 : vector<8x128xf32>
    %c481 = arith.constant 481 : index
    %2374 = memref.load %arg6[%c481] : memref<512xf32, #tpu.memory_space<smem>>
    %2375 = vector.broadcast %2374 : f32 to vector<8x128xf32>
    %2376 = arith.mulf %2369, %2375 : vector<8x128xf32>
    %2377 = arith.addf %2305, %2376 : vector<8x128xf32>
    %c482 = arith.constant 482 : index
    %2378 = memref.load %arg6[%c482] : memref<512xf32, #tpu.memory_space<smem>>
    %2379 = vector.broadcast %2378 : f32 to vector<8x128xf32>
    %2380 = arith.mulf %2369, %2379 : vector<8x128xf32>
    %2381 = arith.addf %2309, %2380 : vector<8x128xf32>
    %c483 = arith.constant 483 : index
    %2382 = memref.load %arg6[%c483] : memref<512xf32, #tpu.memory_space<smem>>
    %2383 = vector.broadcast %2382 : f32 to vector<8x128xf32>
    %2384 = arith.mulf %2369, %2383 : vector<8x128xf32>
    %2385 = arith.addf %2313, %2384 : vector<8x128xf32>
    %c484 = arith.constant 484 : index
    %2386 = memref.load %arg6[%c484] : memref<512xf32, #tpu.memory_space<smem>>
    %2387 = vector.broadcast %2386 : f32 to vector<8x128xf32>
    %2388 = arith.mulf %2369, %2387 : vector<8x128xf32>
    %2389 = arith.addf %2317, %2388 : vector<8x128xf32>
    %c485 = arith.constant 485 : index
    %2390 = memref.load %arg6[%c485] : memref<512xf32, #tpu.memory_space<smem>>
    %2391 = vector.broadcast %2390 : f32 to vector<8x128xf32>
    %2392 = arith.mulf %2369, %2391 : vector<8x128xf32>
    %2393 = arith.addf %2321, %2392 : vector<8x128xf32>
    %c486 = arith.constant 486 : index
    %2394 = memref.load %arg6[%c486] : memref<512xf32, #tpu.memory_space<smem>>
    %2395 = vector.broadcast %2394 : f32 to vector<8x128xf32>
    %2396 = arith.mulf %2369, %2395 : vector<8x128xf32>
    %2397 = arith.addf %2325, %2396 : vector<8x128xf32>
    %c487 = arith.constant 487 : index
    %2398 = memref.load %arg6[%c487] : memref<512xf32, #tpu.memory_space<smem>>
    %2399 = vector.broadcast %2398 : f32 to vector<8x128xf32>
    %2400 = arith.mulf %2369, %2399 : vector<8x128xf32>
    %2401 = arith.addf %2329, %2400 : vector<8x128xf32>
    %c488 = arith.constant 488 : index
    %2402 = memref.load %arg6[%c488] : memref<512xf32, #tpu.memory_space<smem>>
    %2403 = vector.broadcast %2402 : f32 to vector<8x128xf32>
    %2404 = arith.mulf %2369, %2403 : vector<8x128xf32>
    %2405 = arith.addf %2333, %2404 : vector<8x128xf32>
    %c489 = arith.constant 489 : index
    %2406 = memref.load %arg6[%c489] : memref<512xf32, #tpu.memory_space<smem>>
    %2407 = vector.broadcast %2406 : f32 to vector<8x128xf32>
    %2408 = arith.mulf %2369, %2407 : vector<8x128xf32>
    %2409 = arith.addf %2337, %2408 : vector<8x128xf32>
    %c490 = arith.constant 490 : index
    %2410 = memref.load %arg6[%c490] : memref<512xf32, #tpu.memory_space<smem>>
    %2411 = vector.broadcast %2410 : f32 to vector<8x128xf32>
    %2412 = arith.mulf %2369, %2411 : vector<8x128xf32>
    %2413 = arith.addf %2341, %2412 : vector<8x128xf32>
    %c491 = arith.constant 491 : index
    %2414 = memref.load %arg6[%c491] : memref<512xf32, #tpu.memory_space<smem>>
    %2415 = vector.broadcast %2414 : f32 to vector<8x128xf32>
    %2416 = arith.mulf %2369, %2415 : vector<8x128xf32>
    %2417 = arith.addf %2345, %2416 : vector<8x128xf32>
    %c492 = arith.constant 492 : index
    %2418 = memref.load %arg6[%c492] : memref<512xf32, #tpu.memory_space<smem>>
    %2419 = vector.broadcast %2418 : f32 to vector<8x128xf32>
    %2420 = arith.mulf %2369, %2419 : vector<8x128xf32>
    %2421 = arith.addf %2349, %2420 : vector<8x128xf32>
    %c493 = arith.constant 493 : index
    %2422 = memref.load %arg6[%c493] : memref<512xf32, #tpu.memory_space<smem>>
    %2423 = vector.broadcast %2422 : f32 to vector<8x128xf32>
    %2424 = arith.mulf %2369, %2423 : vector<8x128xf32>
    %2425 = arith.addf %2353, %2424 : vector<8x128xf32>
    %c494 = arith.constant 494 : index
    %2426 = memref.load %arg6[%c494] : memref<512xf32, #tpu.memory_space<smem>>
    %2427 = vector.broadcast %2426 : f32 to vector<8x128xf32>
    %2428 = arith.mulf %2369, %2427 : vector<8x128xf32>
    %2429 = arith.addf %2357, %2428 : vector<8x128xf32>
    %c495 = arith.constant 495 : index
    %2430 = memref.load %arg6[%c495] : memref<512xf32, #tpu.memory_space<smem>>
    %2431 = vector.broadcast %2430 : f32 to vector<8x128xf32>
    %2432 = arith.mulf %2369, %2431 : vector<8x128xf32>
    %2433 = arith.addf %2361, %2432 : vector<8x128xf32>
    %c31_166 = arith.constant 31 : index
    %2434 = memref.load %arg4[%c31_166] : memref<32xf32, #tpu.memory_space<smem>>
    %2435 = vector.broadcast %2434 : f32 to vector<8x128xf32>
    %2436 = arith.mulf %6, %2435 : vector<8x128xf32>
    %c31_167 = arith.constant 31 : index
    %2437 = memref.load %arg5[%c31_167] : memref<32xf32, #tpu.memory_space<smem>>
    %2438 = vector.broadcast %2437 : f32 to vector<8x128xf32>
    %2439 = arith.addf %2436, %2438 : vector<8x128xf32>
    %cst_168 = arith.constant 0.000000e+00 : f32
    %2440 = vector.broadcast %cst_168 : f32 to vector<8x128xf32>
    %2441 = arith.maximumf %2439, %2440 : vector<8x128xf32>
    %c496 = arith.constant 496 : index
    %2442 = memref.load %arg6[%c496] : memref<512xf32, #tpu.memory_space<smem>>
    %2443 = vector.broadcast %2442 : f32 to vector<8x128xf32>
    %2444 = arith.mulf %2441, %2443 : vector<8x128xf32>
    %2445 = arith.addf %2373, %2444 : vector<8x128xf32>
    %c497 = arith.constant 497 : index
    %2446 = memref.load %arg6[%c497] : memref<512xf32, #tpu.memory_space<smem>>
    %2447 = vector.broadcast %2446 : f32 to vector<8x128xf32>
    %2448 = arith.mulf %2441, %2447 : vector<8x128xf32>
    %2449 = arith.addf %2377, %2448 : vector<8x128xf32>
    %c498 = arith.constant 498 : index
    %2450 = memref.load %arg6[%c498] : memref<512xf32, #tpu.memory_space<smem>>
    %2451 = vector.broadcast %2450 : f32 to vector<8x128xf32>
    %2452 = arith.mulf %2441, %2451 : vector<8x128xf32>
    %2453 = arith.addf %2381, %2452 : vector<8x128xf32>
    %c499 = arith.constant 499 : index
    %2454 = memref.load %arg6[%c499] : memref<512xf32, #tpu.memory_space<smem>>
    %2455 = vector.broadcast %2454 : f32 to vector<8x128xf32>
    %2456 = arith.mulf %2441, %2455 : vector<8x128xf32>
    %2457 = arith.addf %2385, %2456 : vector<8x128xf32>
    %c500 = arith.constant 500 : index
    %2458 = memref.load %arg6[%c500] : memref<512xf32, #tpu.memory_space<smem>>
    %2459 = vector.broadcast %2458 : f32 to vector<8x128xf32>
    %2460 = arith.mulf %2441, %2459 : vector<8x128xf32>
    %2461 = arith.addf %2389, %2460 : vector<8x128xf32>
    %c501 = arith.constant 501 : index
    %2462 = memref.load %arg6[%c501] : memref<512xf32, #tpu.memory_space<smem>>
    %2463 = vector.broadcast %2462 : f32 to vector<8x128xf32>
    %2464 = arith.mulf %2441, %2463 : vector<8x128xf32>
    %2465 = arith.addf %2393, %2464 : vector<8x128xf32>
    %c502 = arith.constant 502 : index
    %2466 = memref.load %arg6[%c502] : memref<512xf32, #tpu.memory_space<smem>>
    %2467 = vector.broadcast %2466 : f32 to vector<8x128xf32>
    %2468 = arith.mulf %2441, %2467 : vector<8x128xf32>
    %2469 = arith.addf %2397, %2468 : vector<8x128xf32>
    %c503 = arith.constant 503 : index
    %2470 = memref.load %arg6[%c503] : memref<512xf32, #tpu.memory_space<smem>>
    %2471 = vector.broadcast %2470 : f32 to vector<8x128xf32>
    %2472 = arith.mulf %2441, %2471 : vector<8x128xf32>
    %2473 = arith.addf %2401, %2472 : vector<8x128xf32>
    %c504 = arith.constant 504 : index
    %2474 = memref.load %arg6[%c504] : memref<512xf32, #tpu.memory_space<smem>>
    %2475 = vector.broadcast %2474 : f32 to vector<8x128xf32>
    %2476 = arith.mulf %2441, %2475 : vector<8x128xf32>
    %2477 = arith.addf %2405, %2476 : vector<8x128xf32>
    %c505 = arith.constant 505 : index
    %2478 = memref.load %arg6[%c505] : memref<512xf32, #tpu.memory_space<smem>>
    %2479 = vector.broadcast %2478 : f32 to vector<8x128xf32>
    %2480 = arith.mulf %2441, %2479 : vector<8x128xf32>
    %2481 = arith.addf %2409, %2480 : vector<8x128xf32>
    %c506 = arith.constant 506 : index
    %2482 = memref.load %arg6[%c506] : memref<512xf32, #tpu.memory_space<smem>>
    %2483 = vector.broadcast %2482 : f32 to vector<8x128xf32>
    %2484 = arith.mulf %2441, %2483 : vector<8x128xf32>
    %2485 = arith.addf %2413, %2484 : vector<8x128xf32>
    %c507 = arith.constant 507 : index
    %2486 = memref.load %arg6[%c507] : memref<512xf32, #tpu.memory_space<smem>>
    %2487 = vector.broadcast %2486 : f32 to vector<8x128xf32>
    %2488 = arith.mulf %2441, %2487 : vector<8x128xf32>
    %2489 = arith.addf %2417, %2488 : vector<8x128xf32>
    %c508 = arith.constant 508 : index
    %2490 = memref.load %arg6[%c508] : memref<512xf32, #tpu.memory_space<smem>>
    %2491 = vector.broadcast %2490 : f32 to vector<8x128xf32>
    %2492 = arith.mulf %2441, %2491 : vector<8x128xf32>
    %2493 = arith.addf %2421, %2492 : vector<8x128xf32>
    %c509 = arith.constant 509 : index
    %2494 = memref.load %arg6[%c509] : memref<512xf32, #tpu.memory_space<smem>>
    %2495 = vector.broadcast %2494 : f32 to vector<8x128xf32>
    %2496 = arith.mulf %2441, %2495 : vector<8x128xf32>
    %2497 = arith.addf %2425, %2496 : vector<8x128xf32>
    %c510 = arith.constant 510 : index
    %2498 = memref.load %arg6[%c510] : memref<512xf32, #tpu.memory_space<smem>>
    %2499 = vector.broadcast %2498 : f32 to vector<8x128xf32>
    %2500 = arith.mulf %2441, %2499 : vector<8x128xf32>
    %2501 = arith.addf %2429, %2500 : vector<8x128xf32>
    %c511 = arith.constant 511 : index
    %2502 = memref.load %arg6[%c511] : memref<512xf32, #tpu.memory_space<smem>>
    %2503 = vector.broadcast %2502 : f32 to vector<8x128xf32>
    %2504 = arith.mulf %2441, %2503 : vector<8x128xf32>
    %2505 = arith.addf %2433, %2504 : vector<8x128xf32>
    %2506 = vector.broadcast %2 : f32 to vector<8x128xf32>
    %cst_169 = arith.constant 0.000000e+00 : f32
    %2507 = vector.broadcast %cst_169 : f32 to vector<8x128xf32>
    %2508 = arith.maximumf %2445, %2507 : vector<8x128xf32>
    %c0_170 = arith.constant 0 : index
    %2509 = memref.load %arg8[%c0_170] : memref<16xf32, #tpu.memory_space<smem>>
    %2510 = vector.broadcast %2509 : f32 to vector<8x128xf32>
    %2511 = arith.mulf %2508, %2510 : vector<8x128xf32>
    %2512 = arith.addf %2506, %2511 : vector<8x128xf32>
    %cst_171 = arith.constant 0.000000e+00 : f32
    %2513 = vector.broadcast %cst_171 : f32 to vector<8x128xf32>
    %2514 = arith.maximumf %2449, %2513 : vector<8x128xf32>
    %c1_172 = arith.constant 1 : index
    %2515 = memref.load %arg8[%c1_172] : memref<16xf32, #tpu.memory_space<smem>>
    %2516 = vector.broadcast %2515 : f32 to vector<8x128xf32>
    %2517 = arith.mulf %2514, %2516 : vector<8x128xf32>
    %2518 = arith.addf %2512, %2517 : vector<8x128xf32>
    %cst_173 = arith.constant 0.000000e+00 : f32
    %2519 = vector.broadcast %cst_173 : f32 to vector<8x128xf32>
    %2520 = arith.maximumf %2453, %2519 : vector<8x128xf32>
    %c2_174 = arith.constant 2 : index
    %2521 = memref.load %arg8[%c2_174] : memref<16xf32, #tpu.memory_space<smem>>
    %2522 = vector.broadcast %2521 : f32 to vector<8x128xf32>
    %2523 = arith.mulf %2520, %2522 : vector<8x128xf32>
    %2524 = arith.addf %2518, %2523 : vector<8x128xf32>
    %cst_175 = arith.constant 0.000000e+00 : f32
    %2525 = vector.broadcast %cst_175 : f32 to vector<8x128xf32>
    %2526 = arith.maximumf %2457, %2525 : vector<8x128xf32>
    %c3_176 = arith.constant 3 : index
    %2527 = memref.load %arg8[%c3_176] : memref<16xf32, #tpu.memory_space<smem>>
    %2528 = vector.broadcast %2527 : f32 to vector<8x128xf32>
    %2529 = arith.mulf %2526, %2528 : vector<8x128xf32>
    %2530 = arith.addf %2524, %2529 : vector<8x128xf32>
    %cst_177 = arith.constant 0.000000e+00 : f32
    %2531 = vector.broadcast %cst_177 : f32 to vector<8x128xf32>
    %2532 = arith.maximumf %2461, %2531 : vector<8x128xf32>
    %c4_178 = arith.constant 4 : index
    %2533 = memref.load %arg8[%c4_178] : memref<16xf32, #tpu.memory_space<smem>>
    %2534 = vector.broadcast %2533 : f32 to vector<8x128xf32>
    %2535 = arith.mulf %2532, %2534 : vector<8x128xf32>
    %2536 = arith.addf %2530, %2535 : vector<8x128xf32>
    %cst_179 = arith.constant 0.000000e+00 : f32
    %2537 = vector.broadcast %cst_179 : f32 to vector<8x128xf32>
    %2538 = arith.maximumf %2465, %2537 : vector<8x128xf32>
    %c5_180 = arith.constant 5 : index
    %2539 = memref.load %arg8[%c5_180] : memref<16xf32, #tpu.memory_space<smem>>
    %2540 = vector.broadcast %2539 : f32 to vector<8x128xf32>
    %2541 = arith.mulf %2538, %2540 : vector<8x128xf32>
    %2542 = arith.addf %2536, %2541 : vector<8x128xf32>
    %cst_181 = arith.constant 0.000000e+00 : f32
    %2543 = vector.broadcast %cst_181 : f32 to vector<8x128xf32>
    %2544 = arith.maximumf %2469, %2543 : vector<8x128xf32>
    %c6_182 = arith.constant 6 : index
    %2545 = memref.load %arg8[%c6_182] : memref<16xf32, #tpu.memory_space<smem>>
    %2546 = vector.broadcast %2545 : f32 to vector<8x128xf32>
    %2547 = arith.mulf %2544, %2546 : vector<8x128xf32>
    %2548 = arith.addf %2542, %2547 : vector<8x128xf32>
    %cst_183 = arith.constant 0.000000e+00 : f32
    %2549 = vector.broadcast %cst_183 : f32 to vector<8x128xf32>
    %2550 = arith.maximumf %2473, %2549 : vector<8x128xf32>
    %c7_184 = arith.constant 7 : index
    %2551 = memref.load %arg8[%c7_184] : memref<16xf32, #tpu.memory_space<smem>>
    %2552 = vector.broadcast %2551 : f32 to vector<8x128xf32>
    %2553 = arith.mulf %2550, %2552 : vector<8x128xf32>
    %2554 = arith.addf %2548, %2553 : vector<8x128xf32>
    %cst_185 = arith.constant 0.000000e+00 : f32
    %2555 = vector.broadcast %cst_185 : f32 to vector<8x128xf32>
    %2556 = arith.maximumf %2477, %2555 : vector<8x128xf32>
    %c8_186 = arith.constant 8 : index
    %2557 = memref.load %arg8[%c8_186] : memref<16xf32, #tpu.memory_space<smem>>
    %2558 = vector.broadcast %2557 : f32 to vector<8x128xf32>
    %2559 = arith.mulf %2556, %2558 : vector<8x128xf32>
    %2560 = arith.addf %2554, %2559 : vector<8x128xf32>
    %cst_187 = arith.constant 0.000000e+00 : f32
    %2561 = vector.broadcast %cst_187 : f32 to vector<8x128xf32>
    %2562 = arith.maximumf %2481, %2561 : vector<8x128xf32>
    %c9_188 = arith.constant 9 : index
    %2563 = memref.load %arg8[%c9_188] : memref<16xf32, #tpu.memory_space<smem>>
    %2564 = vector.broadcast %2563 : f32 to vector<8x128xf32>
    %2565 = arith.mulf %2562, %2564 : vector<8x128xf32>
    %2566 = arith.addf %2560, %2565 : vector<8x128xf32>
    %cst_189 = arith.constant 0.000000e+00 : f32
    %2567 = vector.broadcast %cst_189 : f32 to vector<8x128xf32>
    %2568 = arith.maximumf %2485, %2567 : vector<8x128xf32>
    %c10_190 = arith.constant 10 : index
    %2569 = memref.load %arg8[%c10_190] : memref<16xf32, #tpu.memory_space<smem>>
    %2570 = vector.broadcast %2569 : f32 to vector<8x128xf32>
    %2571 = arith.mulf %2568, %2570 : vector<8x128xf32>
    %2572 = arith.addf %2566, %2571 : vector<8x128xf32>
    %cst_191 = arith.constant 0.000000e+00 : f32
    %2573 = vector.broadcast %cst_191 : f32 to vector<8x128xf32>
    %2574 = arith.maximumf %2489, %2573 : vector<8x128xf32>
    %c11_192 = arith.constant 11 : index
    %2575 = memref.load %arg8[%c11_192] : memref<16xf32, #tpu.memory_space<smem>>
    %2576 = vector.broadcast %2575 : f32 to vector<8x128xf32>
    %2577 = arith.mulf %2574, %2576 : vector<8x128xf32>
    %2578 = arith.addf %2572, %2577 : vector<8x128xf32>
    %cst_193 = arith.constant 0.000000e+00 : f32
    %2579 = vector.broadcast %cst_193 : f32 to vector<8x128xf32>
    %2580 = arith.maximumf %2493, %2579 : vector<8x128xf32>
    %c12_194 = arith.constant 12 : index
    %2581 = memref.load %arg8[%c12_194] : memref<16xf32, #tpu.memory_space<smem>>
    %2582 = vector.broadcast %2581 : f32 to vector<8x128xf32>
    %2583 = arith.mulf %2580, %2582 : vector<8x128xf32>
    %2584 = arith.addf %2578, %2583 : vector<8x128xf32>
    %cst_195 = arith.constant 0.000000e+00 : f32
    %2585 = vector.broadcast %cst_195 : f32 to vector<8x128xf32>
    %2586 = arith.maximumf %2497, %2585 : vector<8x128xf32>
    %c13_196 = arith.constant 13 : index
    %2587 = memref.load %arg8[%c13_196] : memref<16xf32, #tpu.memory_space<smem>>
    %2588 = vector.broadcast %2587 : f32 to vector<8x128xf32>
    %2589 = arith.mulf %2586, %2588 : vector<8x128xf32>
    %2590 = arith.addf %2584, %2589 : vector<8x128xf32>
    %cst_197 = arith.constant 0.000000e+00 : f32
    %2591 = vector.broadcast %cst_197 : f32 to vector<8x128xf32>
    %2592 = arith.maximumf %2501, %2591 : vector<8x128xf32>
    %c14_198 = arith.constant 14 : index
    %2593 = memref.load %arg8[%c14_198] : memref<16xf32, #tpu.memory_space<smem>>
    %2594 = vector.broadcast %2593 : f32 to vector<8x128xf32>
    %2595 = arith.mulf %2592, %2594 : vector<8x128xf32>
    %2596 = arith.addf %2590, %2595 : vector<8x128xf32>
    %cst_199 = arith.constant 0.000000e+00 : f32
    %2597 = vector.broadcast %cst_199 : f32 to vector<8x128xf32>
    %2598 = arith.maximumf %2505, %2597 : vector<8x128xf32>
    %c15_200 = arith.constant 15 : index
    %2599 = memref.load %arg8[%c15_200] : memref<16xf32, #tpu.memory_space<smem>>
    %2600 = vector.broadcast %2599 : f32 to vector<8x128xf32>
    %2601 = arith.mulf %2598, %2600 : vector<8x128xf32>
    %2602 = arith.addf %2596, %2601 : vector<8x128xf32>
    %2603 = math.tanh %2602 : vector<8x128xf32>
    %2604 = vector.broadcast %1 : f32 to vector<8x128xf32>
    %2605 = arith.mulf %2604, %2603 : vector<8x128xf32>
    %2606 = arith.addf %169, %2605 : vector<8x128xf32>
    %cst_201 = arith.constant 9.99999997E-7 : f32
    %cst_202 = arith.constant 1.000000e+00 : f32
    %2607 = vector.broadcast %cst_201 : f32 to vector<8x128xf32>
    %2608 = arith.maximumf %2607, %2606 : vector<8x128xf32>
    %2609 = vector.broadcast %cst_202 : f32 to vector<8x128xf32>
    %2610 = arith.minimumf %2609, %2608 : vector<8x128xf32>
    %c0_203 = arith.constant 0 : index
    %c0_204 = arith.constant 0 : index
    %2611 = vector.load %arg10[%c0_203, %c0_204] : memref<8x128xf32, #tpu.memory_space<vmem>>, vector<8x128xf32>
    tpu.vector_store %arg10[%c0_203, %c0_204], %2610 {strides = array<i32>} : memref<8x128xf32, #tpu.memory_space<vmem>>, vector<8x128xf32>,
    return
  }
  func.func @transform_0(%arg0: i32) -> (i32, i32) {
    %c0_i32 = arith.constant 0 : i32
    %c0_i32_0 = arith.constant 0 : i32
    return %arg0, %c0_i32 : i32, i32
  }
  func.func @transform_1(%arg0: i32) -> i32 {
    %c0_i32 = arith.constant 0 : i32
    %c0_i32_0 = arith.constant 0 : i32
    return %c0_i32 : i32
  }
  func.func @transform_2(%arg0: i32) -> i32 {
    %c0_i32 = arith.constant 0 : i32
    %c0_i32_0 = arith.constant 0 : i32
    return %c0_i32 : i32
  }
  func.func @transform_3(%arg0: i32) -> i32 {
    %c0_i32 = arith.constant 0 : i32
    %c0_i32_0 = arith.constant 0 : i32
    return %c0_i32 : i32
  }
  func.func @transform_4(%arg0: i32) -> i32 {
    %c0_i32 = arith.constant 0 : i32
    %c0_i32_0 = arith.constant 0 : i32
    return %c0_i32 : i32
  }
  func.func @transform_5(%arg0: i32) -> i32 {
    %c0_i32 = arith.constant 0 : i32
    %c0_i32_0 = arith.constant 0 : i32
    return %c0_i32 : i32
  }
  func.func @transform_6(%arg0: i32) -> i32 {
    %c0_i32 = arith.constant 0 : i32
    %c0_i32_0 = arith.constant 0 : i32
    return %c0_i32 : i32
  }
  func.func @transform_7(%arg0: i32) -> i32 {
    %c0_i32 = arith.constant 0 : i32
    %c0_i32_0 = arith.constant 0 : i32
    return %c0_i32 : i32
  }
  func.func @transform_8(%arg0: i32) -> i32 {
    %c0_i32 = arith.constant 0 : i32
    %c0_i32_0 = arith.constant 0 : i32
    return %c0_i32 : i32
  }
  func.func @transform_9(%arg0: i32) -> (i32, i32) {
    %c0_i32 = arith.constant 0 : i32
    %c0_i32_0 = arith.constant 0 : i32
    return %arg0, %c0_i32 : i32, i32
  }
}

</mosaic_0001>

<llo_original>
// kernel: tpu_custom_call.1
$region0: #{tpu_custom_call.1}
  #allocation0 [shape = 'u32[]', space=smem, size = 0x4, offset = 0x4, fixed_abs, tag = 'smem constant byte address 0x4 - core index']
  #allocation1 [shape = 'u32[144,128]{1,0:T(1,128)}', space=vmem, size = 0x12000, scoped, tag = 'internal scratch']
  %s0 = inlined_call_operand.hbm [shape: f32[8,128], index: 0, kind: input, shape index: {}]
  %s1 = inlined_call_operand.vmem [shape: f32[9], index: 1, kind: input, shape index: {}]
  %s2 = inlined_call_operand.vmem [shape: f32[8], index: 2, kind: input, shape index: {}]
  %s3 = inlined_call_operand.vmem [shape: f32[32], index: 3, kind: input, shape index: {}]
  %s4 = inlined_call_operand.vmem [shape: f32[32], index: 4, kind: input, shape index: {}]
  %s5 = inlined_call_operand.vmem [shape: f32[512], index: 5, kind: input, shape index: {}]
  %s6 = inlined_call_operand.vmem [shape: f32[16], index: 6, kind: input, shape index: {}]
  %s7 = inlined_call_operand.vmem [shape: f32[16], index: 7, kind: input, shape index: {}]
  %s8 = inlined_call_operand.vmem [shape: f32[4], index: 8, kind: input, shape index: {}]
  %s9 = inlined_call_operand.hbm [shape: f32[8,128], index: 9, kind: output, shape index: {}]
  %s10 = sld [smem:[#allocation0]]
  $region82: #{tpu_custom_call.1} parent=0
    _
  %s12 = ssub.s32 1, %s10
  %s13 = scalar_select 0, %s12, %s10
  $region1: #{tpu_custom_call.1} parent=0
    #allocation2 [shape = 'u8[4096]{0}', space=vmem, size = 0x1000, scoped, tag = 'input window, operand 0, single buffered']
    #allocation3 [shape = 's32[1]{0}', space=sflag, size = 0x4, scoped, tag = 'scoped memory for tpu_custom_call.1']
    #allocation4 [shape = 's32[1]{0}', space=sflag, size = 0x4, scoped, tag = 'scoped memory for tpu_custom_call.1']
    #allocation5 [shape = 's32[1]{0}', space=sflag, size = 0x4, scoped, tag = 'scoped memory for tpu_custom_call.1']
    #allocation6 [shape = 'u8[512]{0}', space=smem, size = 0x200, scoped, tag = 'input window, operand 1, single buffered']
    #allocation7 [shape = 'u8[512]{0}', space=smem, size = 0x200, scoped, tag = 'input window, operand 2, single buffered']
    #allocation8 [shape = 's32[1]{0}', space=sflag, size = 0x4, scoped, tag = 'scoped memory for tpu_custom_call.1']
    #allocation9 [shape = 'u8[512]{0}', space=smem, size = 0x200, scoped, tag = 'input window, operand 3, single buffered']
    #allocation10 [shape = 'u8[512]{0}', space=smem, size = 0x200, scoped, tag = 'input window, operand 4, single buffered']
    #allocation11 [shape = 's32[1]{0}', space=sflag, size = 0x4, scoped, tag = 'scoped memory for tpu_custom_call.1']
    #allocation12 [shape = 'u8[2048]{0}', space=smem, size = 0x800, scoped, tag = 'input window, operand 5, single buffered']
    #allocation13 [shape = 'u8[512]{0}', space=smem, size = 0x200, scoped, tag = 'input window, operand 6, single buffered']
    #allocation14 [shape = 's32[1]{0}', space=sflag, size = 0x4, scoped, tag = 'scoped memory for tpu_custom_call.1']
    #allocation15 [shape = 'u8[512]{0}', space=smem, size = 0x200, scoped, tag = 'input window, operand 7, single buffered']
    #allocation16 [shape = 'u8[512]{0}', space=smem, size = 0x200, scoped, tag = 'input window, operand 8, single buffered']
    #allocation17 [shape = 's32[1]{0}', space=sflag, size = 0x4, scoped, tag = 'scoped memory for tpu_custom_call.1']
    #allocation18 [shape = 'u8[4096]{0}', space=vmem, size = 0x1000, scoped, tag = 'output window, operand 0, single buffered']
    %14 = vsyncpa [#allocation3], 0
    %15 = vsyncpa [#allocation5], 0
    %16 = vsyncpa [#allocation8], 0
    %17 = vsyncpa [#allocation11], 0
    %18 = vsyncpa [#allocation14], 0
    %19 = vsyncpa [#allocation17], 0
    %20 = vsyncpa [#allocation4], 0
    // Predicated region
    $region2: #{tpu_custom_call.1} parent=1 // pred_check
      _
    $region3: #{tpu_custom_call.1} parent=1 // pred_check_branch
      %22 = sbr.rel (0) target = $region5
    $region4: #{tpu_custom_call.1} parent=1 // pred_region
      %s24 = ssub.s32 128, 128
      %25 = vsyncadd [#allocation3], %s24
      %s27 = sshll.u32 [#allocation2], 4
      %s28 = int_to_ptr.vmem [resolvable:$true] %s27
      %30 = dma.hbm_to_vmem [thread:$0]  %s0, 128, %s28, [#allocation3]
    $region5: #{tpu_custom_call.1} parent=1 // pred_fallthru
      _
    // Predicated region
    $region6: #{tpu_custom_call.1} parent=1 // pred_check
      _
    $region7: #{tpu_custom_call.1} parent=1 // pred_check_branch
      %32 = sbr.rel (0) target = $region9
    $region8: #{tpu_custom_call.1} parent=1 // pred_region
      %s34 = ssub.s32 16, 16
      %35 = vsyncadd [#allocation5], %s34
      %s37 = sshll.u32 %s1, 4
      %s38 = int_to_ptr.vmem [resolvable:$true] %s37
      %40 = dma.vmem_to_smem %s38, 16, [#allocation6], [#allocation5]
    $region9: #{tpu_custom_call.1} parent=1 // pred_fallthru
      _
    // Predicated region
    $region10: #{tpu_custom_call.1} parent=1 // pred_check
      _
    $region11: #{tpu_custom_call.1} parent=1 // pred_check_branch
      %42 = sbr.rel (0) target = $region13
    $region12: #{tpu_custom_call.1} parent=1 // pred_region
      %s44 = ssub.s32 16, 16
      %45 = vsyncadd [#allocation8], %s44
      %s47 = sshll.u32 %s2, 4
      %s48 = int_to_ptr.vmem [resolvable:$true] %s47
      %50 = dma.vmem_to_smem %s48, 16, [#allocation7], [#allocation8]
    $region13: #{tpu_custom_call.1} parent=1 // pred_fallthru
      _
    // Predicated region
    $region14: #{tpu_custom_call.1} parent=1 // pred_check
      _
    $region15: #{tpu_custom_call.1} parent=1 // pred_check_branch
      %52 = sbr.rel (0) target = $region17
    $region16: #{tpu_custom_call.1} parent=1 // pred_region
      %s54 = ssub.s32 16, 16
      %55 = vsyncadd [#allocation8], %s54
      %s57 = sshll.u32 %s3, 4
      %s58 = int_to_ptr.vmem [resolvable:$true] %s57
      %60 = dma.vmem_to_smem %s58, 16, [#allocation9], [#allocation8]
    $region17: #{tpu_custom_call.1} parent=1 // pred_fallthru
      _
    // Predicated region
    $region18: #{tpu_custom_call.1} parent=1 // pred_check
      _
    $region19: #{tpu_custom_call.1} parent=1 // pred_check_branch
      %62 = sbr.rel (0) target = $region21
    $region20: #{tpu_custom_call.1} parent=1 // pred_region
      %s64 = ssub.s32 16, 16
      %65 = vsyncadd [#allocation11], %s64
      %s67 = sshll.u32 %s4, 4
      %s68 = int_to_ptr.vmem [resolvable:$true] %s67
      %70 = dma.vmem_to_smem %s68, 16, [#allocation10], [#allocation11]
    $region21: #{tpu_custom_call.1} parent=1 // pred_fallthru
      _
    // Predicated region
    $region22: #{tpu_custom_call.1} parent=1 // pred_check
      _
    $region23: #{tpu_custom_call.1} parent=1 // pred_check_branch
      %72 = sbr.rel (0) target = $region25
    $region24: #{tpu_custom_call.1} parent=1 // pred_region
      %s74 = ssub.s32 64, 64
      %75 = vsyncadd [#allocation11], %s74
      %s77 = sshll.u32 %s5, 4
      %s78 = int_to_ptr.vmem [resolvable:$true] %s77
      %80 = dma.vmem_to_smem %s78, 64, [#allocation12], [#allocation11]
    $region25: #{tpu_custom_call.1} parent=1 // pred_fallthru
      _
    // Predicated region
    $region26: #{tpu_custom_call.1} parent=1 // pred_check
      _
    $region27: #{tpu_custom_call.1} parent=1 // pred_check_branch
      %82 = sbr.rel (0) target = $region29
    $region28: #{tpu_custom_call.1} parent=1 // pred_region
      %s84 = ssub.s32 16, 16
      %85 = vsyncadd [#allocation14], %s84
      %s87 = sshll.u32 %s6, 4
      %s88 = int_to_ptr.vmem [resolvable:$true] %s87
      %90 = dma.vmem_to_smem %s88, 16, [#allocation13], [#allocation14]
    $region29: #{tpu_custom_call.1} parent=1 // pred_fallthru
      _
    // Predicated region
    $region30: #{tpu_custom_call.1} parent=1 // pred_check
      _
    $region31: #{tpu_custom_call.1} parent=1 // pred_check_branch
      %92 = sbr.rel (0) target = $region33
    $region32: #{tpu_custom_call.1} parent=1 // pred_region
      %s94 = ssub.s32 16, 16
      %95 = vsyncadd [#allocation14], %s94
      %s97 = sshll.u32 %s7, 4
      %s98 = int_to_ptr.vmem [resolvable:$true] %s97
      %100 = dma.vmem_to_smem %s98, 16, [#allocation15], [#allocation14]
    $region33: #{tpu_custom_call.1} parent=1 // pred_fallthru
      _
    // Predicated region
    $region34: #{tpu_custom_call.1} parent=1 // pred_check
      _
    $region35: #{tpu_custom_call.1} parent=1 // pred_check_branch
      %102 = sbr.rel (0) target = $region37
    $region36: #{tpu_custom_call.1} parent=1 // pred_region
      %s104 = ssub.s32 16, 16
      %105 = vsyncadd [#allocation17], %s104
      %s107 = sshll.u32 %s8, 4
      %s108 = int_to_ptr.vmem [resolvable:$true] %s107
      %110 = dma.vmem_to_smem %s108, 16, [#allocation16], [#allocation17]
    $region37: #{tpu_custom_call.1} parent=1 // pred_fallthru
      _
    // Predicated region
    $region38: #{tpu_custom_call.1} parent=1 // pred_check
      _
    $region39: #{tpu_custom_call.1} parent=1 // pred_check_branch
      %112 = sbr.rel (0) target = $region41
    $region40: #{tpu_custom_call.1} parent=1 // pred_region
      %113 = dma.done [#allocation3], 128
    $region41: #{tpu_custom_call.1} parent=1 // pred_fallthru
      _
    // Predicated region
    $region42: #{tpu_custom_call.1} parent=1 // pred_check
      _
    $region43: #{tpu_custom_call.1} parent=1 // pred_check_branch
      %115 = sbr.rel (0) target = $region45
    $region44: #{tpu_custom_call.1} parent=1 // pred_region
      %116 = dma.done [#allocation5], 16
    $region45: #{tpu_custom_call.1} parent=1 // pred_fallthru
      _
    // Predicated region
    $region46: #{tpu_custom_call.1} parent=1 // pred_check
      _
    $region47: #{tpu_custom_call.1} parent=1 // pred_check_branch
      %118 = sbr.rel (0) target = $region49
    $region48: #{tpu_custom_call.1} parent=1 // pred_region
      %119 = dma.done [#allocation8], 16
    $region49: #{tpu_custom_call.1} parent=1 // pred_fallthru
      _
    // Predicated region
    $region50: #{tpu_custom_call.1} parent=1 // pred_check
      _
    $region51: #{tpu_custom_call.1} parent=1 // pred_check_branch
      %121 = sbr.rel (0) target = $region53
    $region52: #{tpu_custom_call.1} parent=1 // pred_region
      %122 = dma.done [#allocation8], 16
    $region53: #{tpu_custom_call.1} parent=1 // pred_fallthru
      _
    // Predicated region
    $region54: #{tpu_custom_call.1} parent=1 // pred_check
      _
    $region55: #{tpu_custom_call.1} parent=1 // pred_check_branch
      %124 = sbr.rel (0) target = $region57
    $region56: #{tpu_custom_call.1} parent=1 // pred_region
      %125 = dma.done [#allocation11], 16
    $region57: #{tpu_custom_call.1} parent=1 // pred_fallthru
      _
    // Predicated region
    $region58: #{tpu_custom_call.1} parent=1 // pred_check
      _
    $region59: #{tpu_custom_call.1} parent=1 // pred_check_branch
      %127 = sbr.rel (0) target = $region61
    $region60: #{tpu_custom_call.1} parent=1 // pred_region
      %128 = dma.done [#allocation11], 64
    $region61: #{tpu_custom_call.1} parent=1 // pred_fallthru
      _
    // Predicated region
    $region62: #{tpu_custom_call.1} parent=1 // pred_check
      _
    $region63: #{tpu_custom_call.1} parent=1 // pred_check_branch
      %130 = sbr.rel (0) target = $region65
    $region64: #{tpu_custom_call.1} parent=1 // pred_region
      %131 = dma.done [#allocation14], 16
    $region65: #{tpu_custom_call.1} parent=1 // pred_fallthru
      _
    // Predicated region
    $region66: #{tpu_custom_call.1} parent=1 // pred_check
      _
    $region67: #{tpu_custom_call.1} parent=1 // pred_check_branch
      %133 = sbr.rel (0) target = $region69
    $region68: #{tpu_custom_call.1} parent=1 // pred_region
      %134 = dma.done [#allocation14], 16
    $region69: #{tpu_custom_call.1} parent=1 // pred_fallthru
      _
    // Predicated region
    $region70: #{tpu_custom_call.1} parent=1 // pred_check
      _
    $region71: #{tpu_custom_call.1} parent=1 // pred_check_branch
      %136 = sbr.rel (0) target = $region73
    $region72: #{tpu_custom_call.1} parent=1 // pred_region
      %137 = dma.done [#allocation17], 16
    $region73: #{tpu_custom_call.1} parent=1 // pred_fallthru
      _
    %138 = sfence
    %s139 = sld [smem:[#allocation16]]
    %s140 = sld [smem:[#allocation16 + $0x1]]
    %s141 = sld [smem:[#allocation16 + $0x2]]
    %s142 = sld [smem:[#allocation16 + $0x3]]
    %v143 = vld [vmem:[#allocation2] sm:$0xff]
    %v144 = vstv %s142
    %v145 = vmul.f32 %v143, %v144
    %s146 = sld [smem:[#allocation6]]
    %v147 = vstv %s146
    %v148 = vsub.f32 %v145, %v147
    %v149 = vstv %s139
    %v150 = vmul.f32 %v149, %v148
    %v151 = vmul.f32 %v150, 0.5
    %v152 = vtanh.pop %v151
    %v153 = vadd.f32 %v152, 1.0
    %v154 = vmul.f32 %v153, 0.5
    %s155 = sld [smem:[#allocation6 + $0x1]]
    %v156 = vstv %s155
    %v157 = vsub.f32 %v145, %v156
    %v158 = vmul.f32 %v149, %v157
    %v159 = vmul.f32 %v158, 0.5
    %v160 = vtanh.pop %v159
    %v161 = vadd.f32 %v160, 1.0
    %v162 = vmul.f32 %v161, 0.5
    %v163 = vsub.f32 1.0, %v162
    %v164 = vmul.f32 %v154, %v163
    %s165 = sld [smem:[#allocation7]]
    %v166 = vstv %s165
    %v167 = vmul.f32 %v164, %v166
    %s168 = sld [smem:[#allocation6 + $0x2]]
    %v169 = vstv %s168
    %v170 = vsub.f32 %v145, %v169
    %v171 = vmul.f32 %v149, %v170
    %v172 = vmul.f32 %v171, 0.5
    %v173 = vtanh.pop %v172
    %v174 = vadd.f32 %v173, 1.0
    %v175 = vmul.f32 %v174, 0.5
    %v176 = vsub.f32 1.0, %v175
    %v177 = vmul.f32 %v162, %v176
    %s178 = sld [smem:[#allocation7 + $0x1]]
    %v179 = vstv %s178
    %v180 = vmul.f32 %v177, %v179
    %v181 = vadd.f32 %v167, %v180
    %s182 = sld [smem:[#allocation6 + $0x3]]
    %v183 = vstv %s182
    %v184 = vsub.f32 %v145, %v183
    %v185 = vmul.f32 %v149, %v184
    %v186 = vmul.f32 %v185, 0.5
    %v187 = vtanh.pop %v186
    %v188 = vadd.f32 %v187, 1.0
    %v189 = vmul.f32 %v188, 0.5
    %v190 = vsub.f32 1.0, %v189
    %v191 = vmul.f32 %v175, %v190
    %s192 = sld [smem:[#allocation7 + $0x2]]
    %v193 = vstv %s192
    %v194 = vmul.f32 %v191, %v193
    %v195 = vadd.f32 %v181, %v194
    %s196 = sld [smem:[#allocation6 + $0x4]]
    %v197 = vstv %s196
    %v198 = vsub.f32 %v145, %v197
    %v199 = vmul.f32 %v149, %v198
    %v200 = vmul.f32 %v199, 0.5
    %v201 = vtanh.pop %v200
    %v202 = vadd.f32 %v201, 1.0
    %v203 = vmul.f32 %v202, 0.5
    %v204 = vsub.f32 1.0, %v203
    %v205 = vmul.f32 %v189, %v204
    %s206 = sld [smem:[#allocation7 + $0x3]]
    %v207 = vstv %s206
    %v208 = vmul.f32 %v205, %v207
    %v209 = vadd.f32 %v195, %v208
    %s210 = sld [smem:[#allocation6 + $0x5]]
    %v211 = vstv %s210
    %v212 = vsub.f32 %v145, %v211
    %v213 = vmul.f32 %v149, %v212
    %v214 = vmul.f32 %v213, 0.5
    %v215 = vtanh.pop %v214
    %v216 = vadd.f32 %v215, 1.0
    %v217 = vmul.f32 %v216, 0.5
    %v218 = vsub.f32 1.0, %v217
    %v219 = vmul.f32 %v203, %v218
    %s220 = sld [smem:[#allocation7 + $0x4]]
    %v221 = vstv %s220
    %v222 = vmul.f32 %v219, %v221
    %v223 = vadd.f32 %v209, %v222
    %s224 = sld [smem:[#allocation6 + $0x6]]
    %v225 = vstv %s224
    %v226 = vsub.f32 %v145, %v225
    %v227 = vmul.f32 %v149, %v226
    %v228 = vmul.f32 %v227, 0.5
    %v229 = vtanh.pop %v228
    %v230 = vadd.f32 %v229, 1.0
    %v231 = vmul.f32 %v230, 0.5
    %v232 = vsub.f32 1.0, %v231
    %v233 = vmul.f32 %v217, %v232
    %s234 = sld [smem:[#allocation7 + $0x5]]
    %v235 = vstv %s234
    %v236 = vmul.f32 %v233, %v235
    %v237 = vadd.f32 %v223, %v236
    %s238 = sld [smem:[#allocation6 + $0x7]]
    %v239 = vstv %s238
    %v240 = vsub.f32 %v145, %v239
    %v241 = vmul.f32 %v149, %v240
    %v242 = vmul.f32 %v241, 0.5
    %v243 = vtanh.pop %v242
    %v244 = vadd.f32 %v243, 1.0
    %v245 = vmul.f32 %v244, 0.5
    %v246 = vsub.f32 1.0, %v245
    %v247 = vmul.f32 %v231, %v246
    %s248 = sld [smem:[#allocation7 + $0x6]]
    %v249 = vstv %s248
    %v250 = vmul.f32 %v247, %v249
    %v251 = vadd.f32 %v237, %v250
    %s252 = sld [smem:[#allocation6 + $0x8]]
    %v253 = vstv %s252
    %v254 = vsub.f32 %v145, %v253
    %v255 = vmul.f32 %v149, %v254
    %v256 = vmul.f32 %v255, 0.5
    %v257 = vtanh.pop %v256
    %v258 = vadd.f32 %v257, 1.0
    %v259 = vmul.f32 %v258, 0.5
    %v260 = vsub.f32 1.0, %v259
    %v261 = vmul.f32 %v245, %v260
    %s262 = sld [smem:[#allocation7 + $0x7]]
    %v263 = vstv %s262
    %v264 = vmul.f32 %v261, %v263
    %v265 = vadd.f32 %v251, %v264
    %s266 = sld [smem:[#allocation13]]
    %v267 = vstv %s266
    %s268 = sld [smem:[#allocation13 + $0x1]]
    %v269 = vstv %s268
    %s270 = sld [smem:[#allocation13 + $0x2]]
    %v271 = vstv %s270
    %s272 = sld [smem:[#allocation13 + $0x3]]
    %v273 = vstv %s272
    %s274 = sld [smem:[#allocation13 + $0x4]]
    %v275 = vstv %s274
    %s276 = sld [smem:[#allocation13 + $0x5]]
    %v277 = vstv %s276
    %s278 = sld [smem:[#allocation13 + $0x6]]
    %v279 = vstv %s278
    %s280 = sld [smem:[#allocation13 + $0x7]]
    %v281 = vstv %s280
    %s282 = sld [smem:[#allocation13 + $0x8]]
    %v283 = vstv %s282
    %s284 = sld [smem:[#allocation13 + $0x9]]
    %v285 = vstv %s284
    %s286 = sld [smem:[#allocation13 + $0xa]]
    %v287 = vstv %s286
    %s288 = sld [smem:[#allocation13 + $0xb]]
    %v289 = vstv %s288
    %s290 = sld [smem:[#allocation13 + $0xc]]
    %v291 = vstv %s290
    %s292 = sld [smem:[#allocation13 + $0xd]]
    %v293 = vstv %s292
    %s294 = sld [smem:[#allocation13 + $0xe]]
    %v295 = vstv %s294
    %s296 = sld [smem:[#allocation13 + $0xf]]
    %v297 = vstv %s296
    %s298 = sld [smem:[#allocation9]]
    %v299 = vstv %s298
    %v300 = vmul.f32 %v145, %v299
    %s301 = sld [smem:[#allocation10]]
    %v302 = vstv %s301
    %v303 = vadd.f32 %v300, %v302
    %v304 = vmax.f32 %v303, 0.0
    %s305 = sld [smem:[#allocation12]]
    %v306 = vstv %s305
    %v307 = vmul.f32 %v304, %v306
    %v308 = vadd.f32 %v267, %v307
    %s309 = sld [smem:[#allocation12 + $0x1]]
    %v310 = vstv %s309
    %v311 = vmul.f32 %v304, %v310
    %v312 = vadd.f32 %v269, %v311
    %s313 = sld [smem:[#allocation12 + $0x2]]
    %v314 = vstv %s313
    %v315 = vmul.f32 %v304, %v314
    %v316 = vadd.f32 %v271, %v315
    %s317 = sld [smem:[#allocation12 + $0x3]]
    %v318 = vstv %s317
    %v319 = vmul.f32 %v304, %v318
    %v320 = vadd.f32 %v273, %v319
    %s321 = sld [smem:[#allocation12 + $0x4]]
    %v322 = vstv %s321
    %v323 = vmul.f32 %v304, %v322
    %v324 = vadd.f32 %v275, %v323
    %s325 = sld [smem:[#allocation12 + $0x5]]
    %v326 = vstv %s325
    %v327 = vmul.f32 %v304, %v326
    %v328 = vadd.f32 %v277, %v327
    %s329 = sld [smem:[#allocation12 + $0x6]]
    %v330 = vstv %s329
    %v331 = vmul.f32 %v304, %v330
    %v332 = vadd.f32 %v279, %v331
    %s333 = sld [smem:[#allocation12 + $0x7]]
    %v334 = vstv %s333
    %v335 = vmul.f32 %v304, %v334
    %v336 = vadd.f32 %v281, %v335
    %s337 = sld [smem:[#allocation12 + $0x8]]
    %v338 = vstv %s337
    %v339 = vmul.f32 %v304, %v338
    %v340 = vadd.f32 %v283, %v339
    %s341 = sld [smem:[#allocation12 + $0x9]]
    %v342 = vstv %s341
    %v343 = vmul.f32 %v304, %v342
    %v344 = vadd.f32 %v285, %v343
    %s345 = sld [smem:[#allocation12 + $0xa]]
    %v346 = vstv %s345
    %v347 = vmul.f32 %v304, %v346
    %v348 = vadd.f32 %v287, %v347
    %s349 = sld [smem:[#allocation12 + $0xb]]
    %v350 = vstv %s349
    %v351 = vmul.f32 %v304, %v350
    %v352 = vadd.f32 %v289, %v351
    %s353 = sld [smem:[#allocation12 + $0xc]]
    %v354 = vstv %s353
    %v355 = vmul.f32 %v304, %v354
    %v356 = vadd.f32 %v291, %v355
    %s357 = sld [smem:[#allocation12 + $0xd]]
    %v358 = vstv %s357
    %v359 = vmul.f32 %v304, %v358
    %v360 = vadd.f32 %v293, %v359
    %s361 = sld [smem:[#allocation12 + $0xe]]
    %v362 = vstv %s361
    %v363 = vmul.f32 %v304, %v362
    %v364 = vadd.f32 %v295, %v363
    %s365 = sld [smem:[#allocation12 + $0xf]]
    %v366 = vstv %s365
    %v367 = vmul.f32 %v304, %v366
    %v368 = vadd.f32 %v297, %v367
    %s369 = sld [smem:[#allocation9 + $0x1]]
    %v370 = vstv %s369
    %v371 = vmul.f32 %v145, %v370
    %s372 = sld [smem:[#allocation10 + $0x1]]
    %v373 = vstv %s372
    %v374 = vadd.f32 %v371, %v373
    %v375 = vmax.f32 %v374, 0.0
    %s376 = sld [smem:[#allocation12 + $0x10]]
    %v377 = vstv %s376
    %v378 = vmul.f32 %v375, %v377
    %v379 = vadd.f32 %v308, %v378
    %s380 = sld [smem:[#allocation12 + $0x11]]
    %v381 = vstv %s380
    %v382 = vmul.f32 %v375, %v381
    %v383 = vadd.f32 %v312, %v382
    %s384 = sld [smem:[#allocation12 + $0x12]]
    %v385 = vstv %s384
    %v386 = vmul.f32 %v375, %v385
    %v387 = vadd.f32 %v316, %v386
    %s388 = sld [smem:[#allocation12 + $0x13]]
    %v389 = vstv %s388
    %v390 = vmul.f32 %v375, %v389
    %v391 = vadd.f32 %v320, %v390
    %s392 = sld [smem:[#allocation12 + $0x14]]
    %v393 = vstv %s392
    %v394 = vmul.f32 %v375, %v393
    %v395 = vadd.f32 %v324, %v394
    %s396 = sld [smem:[#allocation12 + $0x15]]
    %v397 = vstv %s396
    %v398 = vmul.f32 %v375, %v397
    %v399 = vadd.f32 %v328, %v398
    %s400 = sld [smem:[#allocation12 + $0x16]]
    %v401 = vstv %s400
    %v402 = vmul.f32 %v375, %v401
    %v403 = vadd.f32 %v332, %v402
    %s404 = sld [smem:[#allocation12 + $0x17]]
    %v405 = vstv %s404
    %v406 = vmul.f32 %v375, %v405
    %v407 = vadd.f32 %v336, %v406
    %s408 = sld [smem:[#allocation12 + $0x18]]
    %v409 = vstv %s408
    %v410 = vmul.f32 %v375, %v409
    %v411 = vadd.f32 %v340, %v410
    %s412 = sld [smem:[#allocation12 + $0x19]]
    %v413 = vstv %s412
    %v414 = vmul.f32 %v375, %v413
    %v415 = vadd.f32 %v344, %v414
    %s416 = sld [smem:[#allocation12 + $0x1a]]
    %v417 = vstv %s416
    %v418 = vmul.f32 %v375, %v417
    %v419 = vadd.f32 %v348, %v418
    %s420 = sld [smem:[#allocation12 + $0x1b]]
    %v421 = vstv %s420
    %v422 = vmul.f32 %v375, %v421
    %v423 = vadd.f32 %v352, %v422
    %s424 = sld [smem:[#allocation12 + $0x1c]]
    %v425 = vstv %s424
    %v426 = vmul.f32 %v375, %v425
    %v427 = vadd.f32 %v356, %v426
    %s428 = sld [smem:[#allocation12 + $0x1d]]
    %v429 = vstv %s428
    %v430 = vmul.f32 %v375, %v429
    %v431 = vadd.f32 %v360, %v430
    %s432 = sld [smem:[#allocation12 + $0x1e]]
    %v433 = vstv %s432
    %v434 = vmul.f32 %v375, %v433
    %v435 = vadd.f32 %v364, %v434
    %s436 = sld [smem:[#allocation12 + $0x1f]]
    %v437 = vstv %s436
    %v438 = vmul.f32 %v375, %v437
    %v439 = vadd.f32 %v368, %v438
    %s440 = sld [smem:[#allocation9 + $0x2]]
    %v441 = vstv %s440
    %v442 = vmul.f32 %v145, %v441
    %s443 = sld [smem:[#allocation10 + $0x2]]
    %v444 = vstv %s443
    %v445 = vadd.f32 %v442, %v444
    %v446 = vmax.f32 %v445, 0.0
    %s447 = sld [smem:[#allocation12 + $0x20]]
    %v448 = vstv %s447
    %v449 = vmul.f32 %v446, %v448
    %v450 = vadd.f32 %v379, %v449
    %s451 = sld [smem:[#allocation12 + $0x21]]
    %v452 = vstv %s451
    %v453 = vmul.f32 %v446, %v452
    %v454 = vadd.f32 %v383, %v453
    %s455 = sld [smem:[#allocation12 + $0x22]]
    %v456 = vstv %s455
    %v457 = vmul.f32 %v446, %v456
    %v458 = vadd.f32 %v387, %v457
    %s459 = sld [smem:[#allocation12 + $0x23]]
    %v460 = vstv %s459
    %v461 = vmul.f32 %v446, %v460
    %v462 = vadd.f32 %v391, %v461
    %s463 = sld [smem:[#allocation12 + $0x24]]
    %v464 = vstv %s463
    %v465 = vmul.f32 %v446, %v464
    %v466 = vadd.f32 %v395, %v465
    %s467 = sld [smem:[#allocation12 + $0x25]]
    %v468 = vstv %s467
    %v469 = vmul.f32 %v446, %v468
    %v470 = vadd.f32 %v399, %v469
    %s471 = sld [smem:[#allocation12 + $0x26]]
    %v472 = vstv %s471
    %v473 = vmul.f32 %v446, %v472
    %v474 = vadd.f32 %v403, %v473
    %s475 = sld [smem:[#allocation12 + $0x27]]
    %v476 = vstv %s475
    %v477 = vmul.f32 %v446, %v476
    %v478 = vadd.f32 %v407, %v477
    %s479 = sld [smem:[#allocation12 + $0x28]]
    %v480 = vstv %s479
    %v481 = vmul.f32 %v446, %v480
    %v482 = vadd.f32 %v411, %v481
    %s483 = sld [smem:[#allocation12 + $0x29]]
    %v484 = vstv %s483
    %v485 = vmul.f32 %v446, %v484
    %v486 = vadd.f32 %v415, %v485
    %s487 = sld [smem:[#allocation12 + $0x2a]]
    %v488 = vstv %s487
    %v489 = vmul.f32 %v446, %v488
    %v490 = vadd.f32 %v419, %v489
    %s491 = sld [smem:[#allocation12 + $0x2b]]
    %v492 = vstv %s491
    %v493 = vmul.f32 %v446, %v492
    %v494 = vadd.f32 %v423, %v493
    %s495 = sld [smem:[#allocation12 + $0x2c]]
    %v496 = vstv %s495
    %v497 = vmul.f32 %v446, %v496
    %v498 = vadd.f32 %v427, %v497
    %s499 = sld [smem:[#allocation12 + $0x2d]]
    %v500 = vstv %s499
    %v501 = vmul.f32 %v446, %v500
    %v502 = vadd.f32 %v431, %v501
    %s503 = sld [smem:[#allocation12 + $0x2e]]
    %v504 = vstv %s503
    %v505 = vmul.f32 %v446, %v504
    %v506 = vadd.f32 %v435, %v505
    %s507 = sld [smem:[#allocation12 + $0x2f]]
    %v508 = vstv %s507
    %v509 = vmul.f32 %v446, %v508
    %v510 = vadd.f32 %v439, %v509
    %s511 = sld [smem:[#allocation9 + $0x3]]
    %v512 = vstv %s511
    %v513 = vmul.f32 %v145, %v512
    %s514 = sld [smem:[#allocation10 + $0x3]]
    %v515 = vstv %s514
    %v516 = vadd.f32 %v513, %v515
    %v517 = vmax.f32 %v516, 0.0
    %s518 = sld [smem:[#allocation12 + $0x30]]
    %v519 = vstv %s518
    %v520 = vmul.f32 %v517, %v519
    %v521 = vadd.f32 %v450, %v520
    %s522 = sld [smem:[#allocation12 + $0x31]]
    %v523 = vstv %s522
    %v524 = vmul.f32 %v517, %v523
    %v525 = vadd.f32 %v454, %v524
    %s526 = sld [smem:[#allocation12 + $0x32]]
    %v527 = vstv %s526
    %v528 = vmul.f32 %v517, %v527
    %v529 = vadd.f32 %v458, %v528
    %s530 = sld [smem:[#allocation12 + $0x33]]
    %v531 = vstv %s530
    %v532 = vmul.f32 %v517, %v531
    %v533 = vadd.f32 %v462, %v532
    %s534 = sld [smem:[#allocation12 + $0x34]]
    %v535 = vstv %s534
    %v536 = vmul.f32 %v517, %v535
    %v537 = vadd.f32 %v466, %v536
    %s538 = sld [smem:[#allocation12 + $0x35]]
    %v539 = vstv %s538
    %v540 = vmul.f32 %v517, %v539
    %v541 = vadd.f32 %v470, %v540
    %s542 = sld [smem:[#allocation12 + $0x36]]
    %v543 = vstv %s542
    %v544 = vmul.f32 %v517, %v543
    %v545 = vadd.f32 %v474, %v544
    %s546 = sld [smem:[#allocation12 + $0x37]]
    %v547 = vstv %s546
    %v548 = vmul.f32 %v517, %v547
    %v549 = vadd.f32 %v478, %v548
    %s550 = sld [smem:[#allocation12 + $0x38]]
    %v551 = vstv %s550
    %v552 = vmul.f32 %v517, %v551
    %v553 = vadd.f32 %v482, %v552
    %s554 = sld [smem:[#allocation12 + $0x39]]
    %v555 = vstv %s554
    %v556 = vmul.f32 %v517, %v555
    %v557 = vadd.f32 %v486, %v556
    %s558 = sld [smem:[#allocation12 + $0x3a]]
    %v559 = vstv %s558
    %v560 = vmul.f32 %v517, %v559
    %v561 = vadd.f32 %v490, %v560
    %s562 = sld [smem:[#allocation12 + $0x3b]]
    %v563 = vstv %s562
    %v564 = vmul.f32 %v517, %v563
    %v565 = vadd.f32 %v494, %v564
    %s566 = sld [smem:[#allocation12 + $0x3c]]
    %v567 = vstv %s566
    %v568 = vmul.f32 %v517, %v567
    %v569 = vadd.f32 %v498, %v568
    %s570 = sld [smem:[#allocation12 + $0x3d]]
    %v571 = vstv %s570
    %v572 = vmul.f32 %v517, %v571
    %v573 = vadd.f32 %v502, %v572
    %s574 = sld [smem:[#allocation12 + $0x3e]]
    %v575 = vstv %s574
    %v576 = vmul.f32 %v517, %v575
    %v577 = vadd.f32 %v506, %v576
    %s578 = sld [smem:[#allocation12 + $0x3f]]
    %v579 = vstv %s578
    %v580 = vmul.f32 %v517, %v579
    %v581 = vadd.f32 %v510, %v580
    %s582 = sld [smem:[#allocation9 + $0x4]]
    %v583 = vstv %s582
    %v584 = vmul.f32 %v145, %v583
    %s585 = sld [smem:[#allocation10 + $0x4]]
    %v586 = vstv %s585
    %v587 = vadd.f32 %v584, %v586
    %v588 = vmax.f32 %v587, 0.0
    %s589 = sld [smem:[#allocation12 + $0x40]]
    %v590 = vstv %s589
    %v591 = vmul.f32 %v588, %v590
    %v592 = vadd.f32 %v521, %v591
    %s593 = sld [smem:[#allocation12 + $0x41]]
    %v594 = vstv %s593
    %v595 = vmul.f32 %v588, %v594
    %v596 = vadd.f32 %v525, %v595
    %s597 = sld [smem:[#allocation12 + $0x42]]
    %v598 = vstv %s597
    %v599 = vmul.f32 %v588, %v598
    %v600 = vadd.f32 %v529, %v599
    %s601 = sld [smem:[#allocation12 + $0x43]]
    %v602 = vstv %s601
    %v603 = vmul.f32 %v588, %v602
    %v604 = vadd.f32 %v533, %v603
    %s605 = sld [smem:[#allocation12 + $0x44]]
    %v606 = vstv %s605
    %v607 = vmul.f32 %v588, %v606
    %v608 = vadd.f32 %v537, %v607
    %s609 = sld [smem:[#allocation12 + $0x45]]
    %v610 = vstv %s609
    %v611 = vmul.f32 %v588, %v610
    %v612 = vadd.f32 %v541, %v611
    %s613 = sld [smem:[#allocation12 + $0x46]]
    %v614 = vstv %s613
    %v615 = vmul.f32 %v588, %v614
    %v616 = vadd.f32 %v545, %v615
    %s617 = sld [smem:[#allocation12 + $0x47]]
    %v618 = vstv %s617
    %v619 = vmul.f32 %v588, %v618
    %v620 = vadd.f32 %v549, %v619
    %s621 = sld [smem:[#allocation12 + $0x48]]
    %v622 = vstv %s621
    %v623 = vmul.f32 %v588, %v622
    %v624 = vadd.f32 %v553, %v623
    %s625 = sld [smem:[#allocation12 + $0x49]]
    %v626 = vstv %s625
    %v627 = vmul.f32 %v588, %v626
    %v628 = vadd.f32 %v557, %v627
    %s629 = sld [smem:[#allocation12 + $0x4a]]
    %v630 = vstv %s629
    %v631 = vmul.f32 %v588, %v630
    %v632 = vadd.f32 %v561, %v631
    %s633 = sld [smem:[#allocation12 + $0x4b]]
    %v634 = vstv %s633
    %v635 = vmul.f32 %v588, %v634
    %v636 = vadd.f32 %v565, %v635
    %s637 = sld [smem:[#allocation12 + $0x4c]]
    %v638 = vstv %s637
    %v639 = vmul.f32 %v588, %v638
    %v640 = vadd.f32 %v569, %v639
    %s641 = sld [smem:[#allocation12 + $0x4d]]
    %v642 = vstv %s641
    %v643 = vmul.f32 %v588, %v642
    %v644 = vadd.f32 %v573, %v643
    %s645 = sld [smem:[#allocation12 + $0x4e]]
    %v646 = vstv %s645
    %v647 = vmul.f32 %v588, %v646
    %v648 = vadd.f32 %v577, %v647
    %s649 = sld [smem:[#allocation12 + $0x4f]]
    %v650 = vstv %s649
    %v651 = vmul.f32 %v588, %v650
    %v652 = vadd.f32 %v581, %v651
    %s653 = sld [smem:[#allocation9 + $0x5]]
    %v654 = vstv %s653
    %v655 = vmul.f32 %v145, %v654
    %s656 = sld [smem:[#allocation10 + $0x5]]
    %v657 = vstv %s656
    %v658 = vadd.f32 %v655, %v657
    %v659 = vmax.f32 %v658, 0.0
    %s660 = sld [smem:[#allocation12 + $0x50]]
    %v661 = vstv %s660
    %v662 = vmul.f32 %v659, %v661
    %v663 = vadd.f32 %v592, %v662
    %s664 = sld [smem:[#allocation12 + $0x51]]
    %v665 = vstv %s664
    %v666 = vmul.f32 %v659, %v665
    %v667 = vadd.f32 %v596, %v666
    %s668 = sld [smem:[#allocation12 + $0x52]]
    %v669 = vstv %s668
    %v670 = vmul.f32 %v659, %v669
    %v671 = vadd.f32 %v600, %v670
    %s672 = sld [smem:[#allocation12 + $0x53]]
    %v673 = vstv %s672
    %v674 = vmul.f32 %v659, %v673
    %v675 = vadd.f32 %v604, %v674
    %s676 = sld [smem:[#allocation12 + $0x54]]
    %v677 = vstv %s676
    %v678 = vmul.f32 %v659, %v677
    %v679 = vadd.f32 %v608, %v678
    %s680 = sld [smem:[#allocation12 + $0x55]]
    %v681 = vstv %s680
    %v682 = vmul.f32 %v659, %v681
    %v683 = vadd.f32 %v612, %v682
    %s684 = sld [smem:[#allocation12 + $0x56]]
    %v685 = vstv %s684
    %v686 = vmul.f32 %v659, %v685
    %v687 = vadd.f32 %v616, %v686
    %s688 = sld [smem:[#allocation12 + $0x57]]
    %v689 = vstv %s688
    %v690 = vmul.f32 %v659, %v689
    %v691 = vadd.f32 %v620, %v690
    %s692 = sld [smem:[#allocation12 + $0x58]]
    %v693 = vstv %s692
    %v694 = vmul.f32 %v659, %v693
    %v695 = vadd.f32 %v624, %v694
    %s696 = sld [smem:[#allocation12 + $0x59]]
    %v697 = vstv %s696
    %v698 = vmul.f32 %v659, %v697
    %v699 = vadd.f32 %v628, %v698
    %s700 = sld [smem:[#allocation12 + $0x5a]]
    %v701 = vstv %s700
    %v702 = vmul.f32 %v659, %v701
    %v703 = vadd.f32 %v632, %v702
    %s704 = sld [smem:[#allocation12 + $0x5b]]
    %v705 = vstv %s704
    %v706 = vmul.f32 %v659, %v705
    %v707 = vadd.f32 %v636, %v706
    %s708 = sld [smem:[#allocation12 + $0x5c]]
    %v709 = vstv %s708
    %v710 = vmul.f32 %v659, %v709
    %v711 = vadd.f32 %v640, %v710
    %s712 = sld [smem:[#allocation12 + $0x5d]]
    %v713 = vstv %s712
    %v714 = vmul.f32 %v659, %v713
    %v715 = vadd.f32 %v644, %v714
    %s716 = sld [smem:[#allocation12 + $0x5e]]
    %v717 = vstv %s716
    %v718 = vmul.f32 %v659, %v717
    %v719 = vadd.f32 %v648, %v718
    %s720 = sld [smem:[#allocation12 + $0x5f]]
    %v721 = vstv %s720
    %v722 = vmul.f32 %v659, %v721
    %v723 = vadd.f32 %v652, %v722
    %s724 = sld [smem:[#allocation9 + $0x6]]
    %v725 = vstv %s724
    %v726 = vmul.f32 %v145, %v725
    %s727 = sld [smem:[#allocation10 + $0x6]]
    %v728 = vstv %s727
    %v729 = vadd.f32 %v726, %v728
    %v730 = vmax.f32 %v729, 0.0
    %s731 = sld [smem:[#allocation12 + $0x60]]
    %v732 = vstv %s731
    %v733 = vmul.f32 %v730, %v732
    %v734 = vadd.f32 %v663, %v733
    %s735 = sld [smem:[#allocation12 + $0x61]]
    %v736 = vstv %s735
    %v737 = vmul.f32 %v730, %v736
    %v738 = vadd.f32 %v667, %v737
    %s739 = sld [smem:[#allocation12 + $0x62]]
    %v740 = vstv %s739
    %v741 = vmul.f32 %v730, %v740
    %v742 = vadd.f32 %v671, %v741
    %s743 = sld [smem:[#allocation12 + $0x63]]
    %v744 = vstv %s743
    %v745 = vmul.f32 %v730, %v744
    %v746 = vadd.f32 %v675, %v745
    %s747 = sld [smem:[#allocation12 + $0x64]]
    %v748 = vstv %s747
    %v749 = vmul.f32 %v730, %v748
    %v750 = vadd.f32 %v679, %v749
    %s751 = sld [smem:[#allocation12 + $0x65]]
    %v752 = vstv %s751
    %v753 = vmul.f32 %v730, %v752
    %v754 = vadd.f32 %v683, %v753
    %s755 = sld [smem:[#allocation12 + $0x66]]
    %v756 = vstv %s755
    %v757 = vmul.f32 %v730, %v756
    %v758 = vadd.f32 %v687, %v757
    %s759 = sld [smem:[#allocation12 + $0x67]]
    %v760 = vstv %s759
    %v761 = vmul.f32 %v730, %v760
    %v762 = vadd.f32 %v691, %v761
    %s763 = sld [smem:[#allocation12 + $0x68]]
    %v764 = vstv %s763
    %v765 = vmul.f32 %v730, %v764
    %v766 = vadd.f32 %v695, %v765
    %s767 = sld [smem:[#allocation12 + $0x69]]
    %v768 = vstv %s767
    %v769 = vmul.f32 %v730, %v768
    %v770 = vadd.f32 %v699, %v769
    %s771 = sld [smem:[#allocation12 + $0x6a]]
    %v772 = vstv %s771
    %v773 = vmul.f32 %v730, %v772
    %v774 = vadd.f32 %v703, %v773
    %s775 = sld [smem:[#allocation12 + $0x6b]]
    %v776 = vstv %s775
    %v777 = vmul.f32 %v730, %v776
    %v778 = vadd.f32 %v707, %v777
    %s779 = sld [smem:[#allocation12 + $0x6c]]
    %v780 = vstv %s779
    %v781 = vmul.f32 %v730, %v780
    %v782 = vadd.f32 %v711, %v781
    %s783 = sld [smem:[#allocation12 + $0x6d]]
    %v784 = vstv %s783
    %v785 = vmul.f32 %v730, %v784
    %v786 = vadd.f32 %v715, %v785
    %s787 = sld [smem:[#allocation12 + $0x6e]]
    %v788 = vstv %s787
    %v789 = vmul.f32 %v730, %v788
    %v790 = vadd.f32 %v719, %v789
    %s791 = sld [smem:[#allocation12 + $0x6f]]
    %v792 = vstv %s791
    %v793 = vmul.f32 %v730, %v792
    %v794 = vadd.f32 %v723, %v793
    %s795 = sld [smem:[#allocation9 + $0x7]]
    %v796 = vstv %s795
    %v797 = vmul.f32 %v145, %v796
    %s798 = sld [smem:[#allocation10 + $0x7]]
    %v799 = vstv %s798
    %v800 = vadd.f32 %v797, %v799
    %v801 = vmax.f32 %v800, 0.0
    %s802 = sld [smem:[#allocation12 + $0x70]]
    %v803 = vstv %s802
    %v804 = vmul.f32 %v801, %v803
    %v805 = vadd.f32 %v734, %v804
    %s806 = sld [smem:[#allocation12 + $0x71]]
    %v807 = vstv %s806
    %v808 = vmul.f32 %v801, %v807
    %v809 = vadd.f32 %v738, %v808
    %s810 = sld [smem:[#allocation12 + $0x72]]
    %v811 = vstv %s810
    %v812 = vmul.f32 %v801, %v811
    %v813 = vadd.f32 %v742, %v812
    %s814 = sld [smem:[#allocation12 + $0x73]]
    %v815 = vstv %s814
    %v816 = vmul.f32 %v801, %v815
    %v817 = vadd.f32 %v746, %v816
    %s818 = sld [smem:[#allocation12 + $0x74]]
    %v819 = vstv %s818
    %v820 = vmul.f32 %v801, %v819
    %v821 = vadd.f32 %v750, %v820
    %s822 = sld [smem:[#allocation12 + $0x75]]
    %v823 = vstv %s822
    %v824 = vmul.f32 %v801, %v823
    %v825 = vadd.f32 %v754, %v824
    %s826 = sld [smem:[#allocation12 + $0x76]]
    %v827 = vstv %s826
    %v828 = vmul.f32 %v801, %v827
    %v829 = vadd.f32 %v758, %v828
    %s830 = sld [smem:[#allocation12 + $0x77]]
    %v831 = vstv %s830
    %v832 = vmul.f32 %v801, %v831
    %v833 = vadd.f32 %v762, %v832
    %s834 = sld [smem:[#allocation12 + $0x78]]
    %v835 = vstv %s834
    %v836 = vmul.f32 %v801, %v835
    %v837 = vadd.f32 %v766, %v836
    %s838 = sld [smem:[#allocation12 + $0x79]]
    %v839 = vstv %s838
    %v840 = vmul.f32 %v801, %v839
    %v841 = vadd.f32 %v770, %v840
    %s842 = sld [smem:[#allocation12 + $0x7a]]
    %v843 = vstv %s842
    %v844 = vmul.f32 %v801, %v843
    %v845 = vadd.f32 %v774, %v844
    %s846 = sld [smem:[#allocation12 + $0x7b]]
    %v847 = vstv %s846
    %v848 = vmul.f32 %v801, %v847
    %v849 = vadd.f32 %v778, %v848
    %s850 = sld [smem:[#allocation12 + $0x7c]]
    %v851 = vstv %s850
    %v852 = vmul.f32 %v801, %v851
    %v853 = vadd.f32 %v782, %v852
    %s854 = sld [smem:[#allocation12 + $0x7d]]
    %v855 = vstv %s854
    %v856 = vmul.f32 %v801, %v855
    %v857 = vadd.f32 %v786, %v856
    %s858 = sld [smem:[#allocation12 + $0x7e]]
    %v859 = vstv %s858
    %v860 = vmul.f32 %v801, %v859
    %v861 = vadd.f32 %v790, %v860
    %s862 = sld [smem:[#allocation12 + $0x7f]]
    %v863 = vstv %s862
    %v864 = vmul.f32 %v801, %v863
    %v865 = vadd.f32 %v794, %v864
    %s866 = sld [smem:[#allocation9 + $0x8]]
    %v867 = vstv %s866
    %v868 = vmul.f32 %v145, %v867
    %s869 = sld [smem:[#allocation10 + $0x8]]
    %v870 = vstv %s869
    %v871 = vadd.f32 %v868, %v870
    %v872 = vmax.f32 %v871, 0.0
    %s873 = sld [smem:[#allocation12 + $0x80]]
    %v874 = vstv %s873
    %v875 = vmul.f32 %v872, %v874
    %v876 = vadd.f32 %v805, %v875
    %s877 = sld [smem:[#allocation12 + $0x81]]
    %v878 = vstv %s877
    %v879 = vmul.f32 %v872, %v878
    %v880 = vadd.f32 %v809, %v879
    %s881 = sld [smem:[#allocation12 + $0x82]]
    %v882 = vstv %s881
    %v883 = vmul.f32 %v872, %v882
    %v884 = vadd.f32 %v813, %v883
    %s885 = sld [smem:[#allocation12 + $0x83]]
    %v886 = vstv %s885
    %v887 = vmul.f32 %v872, %v886
    %v888 = vadd.f32 %v817, %v887
    %s889 = sld [smem:[#allocation12 + $0x84]]
    %v890 = vstv %s889
    %v891 = vmul.f32 %v872, %v890
    %v892 = vadd.f32 %v821, %v891
    %s893 = sld [smem:[#allocation12 + $0x85]]
    %v894 = vstv %s893
    %v895 = vmul.f32 %v872, %v894
    %v896 = vadd.f32 %v825, %v895
    %s897 = sld [smem:[#allocation12 + $0x86]]
    %v898 = vstv %s897
    %v899 = vmul.f32 %v872, %v898
    %v900 = vadd.f32 %v829, %v899
    %s901 = sld [smem:[#allocation12 + $0x87]]
    %v902 = vstv %s901
    %v903 = vmul.f32 %v872, %v902
    %v904 = vadd.f32 %v833, %v903
    %s905 = sld [smem:[#allocation12 + $0x88]]
    %v906 = vstv %s905
    %v907 = vmul.f32 %v872, %v906
    %v908 = vadd.f32 %v837, %v907
    %s909 = sld [smem:[#allocation12 + $0x89]]
    %v910 = vstv %s909
    %v911 = vmul.f32 %v872, %v910
    %v912 = vadd.f32 %v841, %v911
    %s913 = sld [smem:[#allocation12 + $0x8a]]
    %v914 = vstv %s913
    %v915 = vmul.f32 %v872, %v914
    %v916 = vadd.f32 %v845, %v915
    %s917 = sld [smem:[#allocation12 + $0x8b]]
    %v918 = vstv %s917
    %v919 = vmul.f32 %v872, %v918
    %v920 = vadd.f32 %v849, %v919
    %s921 = sld [smem:[#allocation12 + $0x8c]]
    %v922 = vstv %s921
    %v923 = vmul.f32 %v872, %v922
    %v924 = vadd.f32 %v853, %v923
    %s925 = sld [smem:[#allocation12 + $0x8d]]
    %v926 = vstv %s925
    %v927 = vmul.f32 %v872, %v926
    %v928 = vadd.f32 %v857, %v927
    %s929 = sld [smem:[#allocation12 + $0x8e]]
    %v930 = vstv %s929
    %v931 = vmul.f32 %v872, %v930
    %v932 = vadd.f32 %v861, %v931
    %s933 = sld [smem:[#allocation12 + $0x8f]]
    %v934 = vstv %s933
    %v935 = vmul.f32 %v872, %v934
    %v936 = vadd.f32 %v865, %v935
    %s937 = sld [smem:[#allocation9 + $0x9]]
    %v938 = vstv %s937
    %v939 = vmul.f32 %v145, %v938
    %s940 = sld [smem:[#allocation10 + $0x9]]
    %v941 = vstv %s940
    %v942 = vadd.f32 %v939, %v941
    %v943 = vmax.f32 %v942, 0.0
    %s944 = sld [smem:[#allocation12 + $0x90]]
    %v945 = vstv %s944
    %v946 = vmul.f32 %v943, %v945
    %v947 = vadd.f32 %v876, %v946
    %s948 = sld [smem:[#allocation12 + $0x91]]
    %v949 = vstv %s948
    %v950 = vmul.f32 %v943, %v949
    %v951 = vadd.f32 %v880, %v950
    %s952 = sld [smem:[#allocation12 + $0x92]]
    %v953 = vstv %s952
    %v954 = vmul.f32 %v943, %v953
    %v955 = vadd.f32 %v884, %v954
    %s956 = sld [smem:[#allocation12 + $0x93]]
    %v957 = vstv %s956
    %v958 = vmul.f32 %v943, %v957
    %v959 = vadd.f32 %v888, %v958
    %s960 = sld [smem:[#allocation12 + $0x94]]
    %v961 = vstv %s960
    %v962 = vmul.f32 %v943, %v961
    %v963 = vadd.f32 %v892, %v962
    %s964 = sld [smem:[#allocation12 + $0x95]]
    %v965 = vstv %s964
    %v966 = vmul.f32 %v943, %v965
    %v967 = vadd.f32 %v896, %v966
    %s968 = sld [smem:[#allocation12 + $0x96]]
    %v969 = vstv %s968
    %v970 = vmul.f32 %v943, %v969
    %v971 = vadd.f32 %v900, %v970
    %s972 = sld [smem:[#allocation12 + $0x97]]
    %v973 = vstv %s972
    %v974 = vmul.f32 %v943, %v973
    %v975 = vadd.f32 %v904, %v974
    %s976 = sld [smem:[#allocation12 + $0x98]]
    %v977 = vstv %s976
    %v978 = vmul.f32 %v943, %v977
    %v979 = vadd.f32 %v908, %v978
    %s980 = sld [smem:[#allocation12 + $0x99]]
    %v981 = vstv %s980
    %v982 = vmul.f32 %v943, %v981
    %v983 = vadd.f32 %v912, %v982
    %s984 = sld [smem:[#allocation12 + $0x9a]]
    %v985 = vstv %s984
    %v986 = vmul.f32 %v943, %v985
    %v987 = vadd.f32 %v916, %v986
    %s988 = sld [smem:[#allocation12 + $0x9b]]
    %v989 = vstv %s988
    %v990 = vmul.f32 %v943, %v989
    %v991 = vadd.f32 %v920, %v990
    %s992 = sld [smem:[#allocation12 + $0x9c]]
    %v993 = vstv %s992
    %v994 = vmul.f32 %v943, %v993
    %v995 = vadd.f32 %v924, %v994
    %s996 = sld [smem:[#allocation12 + $0x9d]]
    %v997 = vstv %s996
    %v998 = vmul.f32 %v943, %v997
    %v999 = vadd.f32 %v928, %v998
    %s1000 = sld [smem:[#allocation12 + $0x9e]]
    %v1001 = vstv %s1000
    %v1002 = vmul.f32 %v943, %v1001
    %v1003 = vadd.f32 %v932, %v1002
    %s1004 = sld [smem:[#allocation12 + $0x9f]]
    %v1005 = vstv %s1004
    %v1006 = vmul.f32 %v943, %v1005
    %v1007 = vadd.f32 %v936, %v1006
    %s1008 = sld [smem:[#allocation9 + $0xa]]
    %v1009 = vstv %s1008
    %v1010 = vmul.f32 %v145, %v1009
    %s1011 = sld [smem:[#allocation10 + $0xa]]
    %v1012 = vstv %s1011
    %v1013 = vadd.f32 %v1010, %v1012
    %v1014 = vmax.f32 %v1013, 0.0
    %s1015 = sld [smem:[#allocation12 + $0xa0]]
    %v1016 = vstv %s1015
    %v1017 = vmul.f32 %v1014, %v1016
    %v1018 = vadd.f32 %v947, %v1017
    %s1019 = sld [smem:[#allocation12 + $0xa1]]
    %v1020 = vstv %s1019
    %v1021 = vmul.f32 %v1014, %v1020
    %v1022 = vadd.f32 %v951, %v1021
    %s1023 = sld [smem:[#allocation12 + $0xa2]]
    %v1024 = vstv %s1023
    %v1025 = vmul.f32 %v1014, %v1024
    %v1026 = vadd.f32 %v955, %v1025
    %s1027 = sld [smem:[#allocation12 + $0xa3]]
    %v1028 = vstv %s1027
    %v1029 = vmul.f32 %v1014, %v1028
    %v1030 = vadd.f32 %v959, %v1029
    %s1031 = sld [smem:[#allocation12 + $0xa4]]
    %v1032 = vstv %s1031
    %v1033 = vmul.f32 %v1014, %v1032
    %v1034 = vadd.f32 %v963, %v1033
    %s1035 = sld [smem:[#allocation12 + $0xa5]]
    %v1036 = vstv %s1035
    %v1037 = vmul.f32 %v1014, %v1036
    %v1038 = vadd.f32 %v967, %v1037
    %s1039 = sld [smem:[#allocation12 + $0xa6]]
    %v1040 = vstv %s1039
    %v1041 = vmul.f32 %v1014, %v1040
    %v1042 = vadd.f32 %v971, %v1041
    %s1043 = sld [smem:[#allocation12 + $0xa7]]
    %v1044 = vstv %s1043
    %v1045 = vmul.f32 %v1014, %v1044
    %v1046 = vadd.f32 %v975, %v1045
    %s1047 = sld [smem:[#allocation12 + $0xa8]]
    %v1048 = vstv %s1047
    %v1049 = vmul.f32 %v1014, %v1048
    %v1050 = vadd.f32 %v979, %v1049
    %s1051 = sld [smem:[#allocation12 + $0xa9]]
    %v1052 = vstv %s1051
    %v1053 = vmul.f32 %v1014, %v1052
    %v1054 = vadd.f32 %v983, %v1053
    %s1055 = sld [smem:[#allocation12 + $0xaa]]
    %v1056 = vstv %s1055
    %v1057 = vmul.f32 %v1014, %v1056
    %v1058 = vadd.f32 %v987, %v1057
    %s1059 = sld [smem:[#allocation12 + $0xab]]
    %v1060 = vstv %s1059
    %v1061 = vmul.f32 %v1014, %v1060
    %v1062 = vadd.f32 %v991, %v1061
    %s1063 = sld [smem:[#allocation12 + $0xac]]
    %v1064 = vstv %s1063
    %v1065 = vmul.f32 %v1014, %v1064
    %v1066 = vadd.f32 %v995, %v1065
    %s1067 = sld [smem:[#allocation12 + $0xad]]
    %v1068 = vstv %s1067
    %v1069 = vmul.f32 %v1014, %v1068
    %v1070 = vadd.f32 %v999, %v1069
    %s1071 = sld [smem:[#allocation12 + $0xae]]
    %v1072 = vstv %s1071
    %v1073 = vmul.f32 %v1014, %v1072
    %v1074 = vadd.f32 %v1003, %v1073
    %s1075 = sld [smem:[#allocation12 + $0xaf]]
    %v1076 = vstv %s1075
    %v1077 = vmul.f32 %v1014, %v1076
    %v1078 = vadd.f32 %v1007, %v1077
    %s1079 = sld [smem:[#allocation9 + $0xb]]
    %v1080 = vstv %s1079
    %v1081 = vmul.f32 %v145, %v1080
    %s1082 = sld [smem:[#allocation10 + $0xb]]
    %v1083 = vstv %s1082
    %v1084 = vadd.f32 %v1081, %v1083
    %v1085 = vmax.f32 %v1084, 0.0
    %s1086 = sld [smem:[#allocation12 + $0xb0]]
    %v1087 = vstv %s1086
    %v1088 = vmul.f32 %v1085, %v1087
    %v1089 = vadd.f32 %v1018, %v1088
    %s1090 = sld [smem:[#allocation12 + $0xb1]]
    %v1091 = vstv %s1090
    %v1092 = vmul.f32 %v1085, %v1091
    %v1093 = vadd.f32 %v1022, %v1092
    %s1094 = sld [smem:[#allocation12 + $0xb2]]
    %v1095 = vstv %s1094
    %v1096 = vmul.f32 %v1085, %v1095
    %v1097 = vadd.f32 %v1026, %v1096
    %s1098 = sld [smem:[#allocation12 + $0xb3]]
    %v1099 = vstv %s1098
    %v1100 = vmul.f32 %v1085, %v1099
    %v1101 = vadd.f32 %v1030, %v1100
    %s1102 = sld [smem:[#allocation12 + $0xb4]]
    %v1103 = vstv %s1102
    %v1104 = vmul.f32 %v1085, %v1103
    %v1105 = vadd.f32 %v1034, %v1104
    %s1106 = sld [smem:[#allocation12 + $0xb5]]
    %v1107 = vstv %s1106
    %v1108 = vmul.f32 %v1085, %v1107
    %v1109 = vadd.f32 %v1038, %v1108
    %s1110 = sld [smem:[#allocation12 + $0xb6]]
    %v1111 = vstv %s1110
    %v1112 = vmul.f32 %v1085, %v1111
    %v1113 = vadd.f32 %v1042, %v1112
    %s1114 = sld [smem:[#allocation12 + $0xb7]]
    %v1115 = vstv %s1114
    %v1116 = vmul.f32 %v1085, %v1115
    %v1117 = vadd.f32 %v1046, %v1116
    %s1118 = sld [smem:[#allocation12 + $0xb8]]
    %v1119 = vstv %s1118
    %v1120 = vmul.f32 %v1085, %v1119
    %v1121 = vadd.f32 %v1050, %v1120
    %s1122 = sld [smem:[#allocation12 + $0xb9]]
    %v1123 = vstv %s1122
    %v1124 = vmul.f32 %v1085, %v1123
    %v1125 = vadd.f32 %v1054, %v1124
    %s1126 = sld [smem:[#allocation12 + $0xba]]
    %v1127 = vstv %s1126
    %v1128 = vmul.f32 %v1085, %v1127
    %v1129 = vadd.f32 %v1058, %v1128
    %s1130 = sld [smem:[#allocation12 + $0xbb]]
    %v1131 = vstv %s1130
    %v1132 = vmul.f32 %v1085, %v1131
    %v1133 = vadd.f32 %v1062, %v1132
    %s1134 = sld [smem:[#allocation12 + $0xbc]]
    %v1135 = vstv %s1134
    %v1136 = vmul.f32 %v1085, %v1135
    %v1137 = vadd.f32 %v1066, %v1136
    %s1138 = sld [smem:[#allocation12 + $0xbd]]
    %v1139 = vstv %s1138
    %v1140 = vmul.f32 %v1085, %v1139
    %v1141 = vadd.f32 %v1070, %v1140
    %s1142 = sld [smem:[#allocation12 + $0xbe]]
    %v1143 = vstv %s1142
    %v1144 = vmul.f32 %v1085, %v1143
    %v1145 = vadd.f32 %v1074, %v1144
    %s1146 = sld [smem:[#allocation12 + $0xbf]]
    %v1147 = vstv %s1146
    %v1148 = vmul.f32 %v1085, %v1147
    %v1149 = vadd.f32 %v1078, %v1148
    %s1150 = sld [smem:[#allocation9 + $0xc]]
    %v1151 = vstv %s1150
    %v1152 = vmul.f32 %v145, %v1151
    %s1153 = sld [smem:[#allocation10 + $0xc]]
    %v1154 = vstv %s1153
    %v1155 = vadd.f32 %v1152, %v1154
    %v1156 = vmax.f32 %v1155, 0.0
    %s1157 = sld [smem:[#allocation12 + $0xc0]]
    %v1158 = vstv %s1157
    %v1159 = vmul.f32 %v1156, %v1158
    %v1160 = vadd.f32 %v1089, %v1159
    %s1161 = sld [smem:[#allocation12 + $0xc1]]
    %v1162 = vstv %s1161
    %v1163 = vmul.f32 %v1156, %v1162
    %v1164 = vadd.f32 %v1093, %v1163
    %s1165 = sld [smem:[#allocation12 + $0xc2]]
    %v1166 = vstv %s1165
    %v1167 = vmul.f32 %v1156, %v1166
    %v1168 = vadd.f32 %v1097, %v1167
    %s1169 = sld [smem:[#allocation12 + $0xc3]]
    %v1170 = vstv %s1169
    %v1171 = vmul.f32 %v1156, %v1170
    %v1172 = vadd.f32 %v1101, %v1171
    %s1173 = sld [smem:[#allocation12 + $0xc4]]
    %v1174 = vstv %s1173
    %v1175 = vmul.f32 %v1156, %v1174
    %v1176 = vadd.f32 %v1105, %v1175
    %s1177 = sld [smem:[#allocation12 + $0xc5]]
    %v1178 = vstv %s1177
    %v1179 = vmul.f32 %v1156, %v1178
    %v1180 = vadd.f32 %v1109, %v1179
    %s1181 = sld [smem:[#allocation12 + $0xc6]]
    %v1182 = vstv %s1181
    %v1183 = vmul.f32 %v1156, %v1182
    %v1184 = vadd.f32 %v1113, %v1183
    %s1185 = sld [smem:[#allocation12 + $0xc7]]
    %v1186 = vstv %s1185
    %v1187 = vmul.f32 %v1156, %v1186
    %v1188 = vadd.f32 %v1117, %v1187
    %s1189 = sld [smem:[#allocation12 + $0xc8]]
    %v1190 = vstv %s1189
    %v1191 = vmul.f32 %v1156, %v1190
    %v1192 = vadd.f32 %v1121, %v1191
    %s1193 = sld [smem:[#allocation12 + $0xc9]]
    %v1194 = vstv %s1193
    %v1195 = vmul.f32 %v1156, %v1194
    %v1196 = vadd.f32 %v1125, %v1195
    %s1197 = sld [smem:[#allocation12 + $0xca]]
    %v1198 = vstv %s1197
    %v1199 = vmul.f32 %v1156, %v1198
    %v1200 = vadd.f32 %v1129, %v1199
    %s1201 = sld [smem:[#allocation12 + $0xcb]]
    %v1202 = vstv %s1201
    %v1203 = vmul.f32 %v1156, %v1202
    %v1204 = vadd.f32 %v1133, %v1203
    %s1205 = sld [smem:[#allocation12 + $0xcc]]
    %v1206 = vstv %s1205
    %v1207 = vmul.f32 %v1156, %v1206
    %v1208 = vadd.f32 %v1137, %v1207
    %s1209 = sld [smem:[#allocation12 + $0xcd]]
    %v1210 = vstv %s1209
    %v1211 = vmul.f32 %v1156, %v1210
    %v1212 = vadd.f32 %v1141, %v1211
    %s1213 = sld [smem:[#allocation12 + $0xce]]
    %v1214 = vstv %s1213
    %v1215 = vmul.f32 %v1156, %v1214
    %v1216 = vadd.f32 %v1145, %v1215
    %s1217 = sld [smem:[#allocation12 + $0xcf]]
    %v1218 = vstv %s1217
    %v1219 = vmul.f32 %v1156, %v1218
    %v1220 = vadd.f32 %v1149, %v1219
    %s1221 = sld [smem:[#allocation9 + $0xd]]
    %v1222 = vstv %s1221
    %v1223 = vmul.f32 %v145, %v1222
    %s1224 = sld [smem:[#allocation10 + $0xd]]
    %v1225 = vstv %s1224
    %v1226 = vadd.f32 %v1223, %v1225
    %v1227 = vmax.f32 %v1226, 0.0
    %s1228 = sld [smem:[#allocation12 + $0xd0]]
    %v1229 = vstv %s1228
    %v1230 = vmul.f32 %v1227, %v1229
    %v1231 = vadd.f32 %v1160, %v1230
    %s1232 = sld [smem:[#allocation12 + $0xd1]]
    %v1233 = vstv %s1232
    %v1234 = vmul.f32 %v1227, %v1233
    %v1235 = vadd.f32 %v1164, %v1234
    %s1236 = sld [smem:[#allocation12 + $0xd2]]
    %v1237 = vstv %s1236
    %v1238 = vmul.f32 %v1227, %v1237
    %v1239 = vadd.f32 %v1168, %v1238
    %s1240 = sld [smem:[#allocation12 + $0xd3]]
    %v1241 = vstv %s1240
    %v1242 = vmul.f32 %v1227, %v1241
    %v1243 = vadd.f32 %v1172, %v1242
    %s1244 = sld [smem:[#allocation12 + $0xd4]]
    %v1245 = vstv %s1244
    %v1246 = vmul.f32 %v1227, %v1245
    %v1247 = vadd.f32 %v1176, %v1246
    %s1248 = sld [smem:[#allocation12 + $0xd5]]
    %v1249 = vstv %s1248
    %v1250 = vmul.f32 %v1227, %v1249
    %v1251 = vadd.f32 %v1180, %v1250
    %s1252 = sld [smem:[#allocation12 + $0xd6]]
    %v1253 = vstv %s1252
    %v1254 = vmul.f32 %v1227, %v1253
    %v1255 = vadd.f32 %v1184, %v1254
    %s1256 = sld [smem:[#allocation12 + $0xd7]]
    %v1257 = vstv %s1256
    %v1258 = vmul.f32 %v1227, %v1257
    %v1259 = vadd.f32 %v1188, %v1258
    %s1260 = sld [smem:[#allocation12 + $0xd8]]
    %v1261 = vstv %s1260
    %v1262 = vmul.f32 %v1227, %v1261
    %v1263 = vadd.f32 %v1192, %v1262
    %s1264 = sld [smem:[#allocation12 + $0xd9]]
    %v1265 = vstv %s1264
    %v1266 = vmul.f32 %v1227, %v1265
    %v1267 = vadd.f32 %v1196, %v1266
    %s1268 = sld [smem:[#allocation12 + $0xda]]
    %v1269 = vstv %s1268
    %v1270 = vmul.f32 %v1227, %v1269
    %v1271 = vadd.f32 %v1200, %v1270
    %s1272 = sld [smem:[#allocation12 + $0xdb]]
    %v1273 = vstv %s1272
    %v1274 = vmul.f32 %v1227, %v1273
    %v1275 = vadd.f32 %v1204, %v1274
    %s1276 = sld [smem:[#allocation12 + $0xdc]]
    %v1277 = vstv %s1276
    %v1278 = vmul.f32 %v1227, %v1277
    %v1279 = vadd.f32 %v1208, %v1278
    %s1280 = sld [smem:[#allocation12 + $0xdd]]
    %v1281 = vstv %s1280
    %v1282 = vmul.f32 %v1227, %v1281
    %v1283 = vadd.f32 %v1212, %v1282
    %s1284 = sld [smem:[#allocation12 + $0xde]]
    %v1285 = vstv %s1284
    %v1286 = vmul.f32 %v1227, %v1285
    %v1287 = vadd.f32 %v1216, %v1286
    %s1288 = sld [smem:[#allocation12 + $0xdf]]
    %v1289 = vstv %s1288
    %v1290 = vmul.f32 %v1227, %v1289
    %v1291 = vadd.f32 %v1220, %v1290
    %s1292 = sld [smem:[#allocation9 + $0xe]]
    %v1293 = vstv %s1292
    %v1294 = vmul.f32 %v145, %v1293
    %s1295 = sld [smem:[#allocation10 + $0xe]]
    %v1296 = vstv %s1295
    %v1297 = vadd.f32 %v1294, %v1296
    %v1298 = vmax.f32 %v1297, 0.0
    %s1299 = sld [smem:[#allocation12 + $0xe0]]
    %v1300 = vstv %s1299
    %v1301 = vmul.f32 %v1298, %v1300
    %v1302 = vadd.f32 %v1231, %v1301
    %s1303 = sld [smem:[#allocation12 + $0xe1]]
    %v1304 = vstv %s1303
    %v1305 = vmul.f32 %v1298, %v1304
    %v1306 = vadd.f32 %v1235, %v1305
    %s1307 = sld [smem:[#allocation12 + $0xe2]]
    %v1308 = vstv %s1307
    %v1309 = vmul.f32 %v1298, %v1308
    %v1310 = vadd.f32 %v1239, %v1309
    %s1311 = sld [smem:[#allocation12 + $0xe3]]
    %v1312 = vstv %s1311
    %v1313 = vmul.f32 %v1298, %v1312
    %v1314 = vadd.f32 %v1243, %v1313
    %s1315 = sld [smem:[#allocation12 + $0xe4]]
    %v1316 = vstv %s1315
    %v1317 = vmul.f32 %v1298, %v1316
    %v1318 = vadd.f32 %v1247, %v1317
    %s1319 = sld [smem:[#allocation12 + $0xe5]]
    %v1320 = vstv %s1319
    %v1321 = vmul.f32 %v1298, %v1320
    %v1322 = vadd.f32 %v1251, %v1321
    %s1323 = sld [smem:[#allocation12 + $0xe6]]
    %v1324 = vstv %s1323
    %v1325 = vmul.f32 %v1298, %v1324
    %v1326 = vadd.f32 %v1255, %v1325
    %s1327 = sld [smem:[#allocation12 + $0xe7]]
    %v1328 = vstv %s1327
    %v1329 = vmul.f32 %v1298, %v1328
    %v1330 = vadd.f32 %v1259, %v1329
    %s1331 = sld [smem:[#allocation12 + $0xe8]]
    %v1332 = vstv %s1331
    %v1333 = vmul.f32 %v1298, %v1332
    %v1334 = vadd.f32 %v1263, %v1333
    %s1335 = sld [smem:[#allocation12 + $0xe9]]
    %v1336 = vstv %s1335
    %v1337 = vmul.f32 %v1298, %v1336
    %v1338 = vadd.f32 %v1267, %v1337
    %s1339 = sld [smem:[#allocation12 + $0xea]]
    %v1340 = vstv %s1339
    %v1341 = vmul.f32 %v1298, %v1340
    %v1342 = vadd.f32 %v1271, %v1341
    %s1343 = sld [smem:[#allocation12 + $0xeb]]
    %v1344 = vstv %s1343
    %v1345 = vmul.f32 %v1298, %v1344
    %v1346 = vadd.f32 %v1275, %v1345
    %s1347 = sld [smem:[#allocation12 + $0xec]]
    %v1348 = vstv %s1347
    %v1349 = vmul.f32 %v1298, %v1348
    %v1350 = vadd.f32 %v1279, %v1349
    %s1351 = sld [smem:[#allocation12 + $0xed]]
    %v1352 = vstv %s1351
    %v1353 = vmul.f32 %v1298, %v1352
    %v1354 = vadd.f32 %v1283, %v1353
    %s1355 = sld [smem:[#allocation12 + $0xee]]
    %v1356 = vstv %s1355
    %v1357 = vmul.f32 %v1298, %v1356
    %v1358 = vadd.f32 %v1287, %v1357
    %s1359 = sld [smem:[#allocation12 + $0xef]]
    %v1360 = vstv %s1359
    %v1361 = vmul.f32 %v1298, %v1360
    %v1362 = vadd.f32 %v1291, %v1361
    %s1363 = sld [smem:[#allocation9 + $0xf]]
    %v1364 = vstv %s1363
    %v1365 = vmul.f32 %v145, %v1364
    %s1366 = sld [smem:[#allocation10 + $0xf]]
    %v1367 = vstv %s1366
    %v1368 = vadd.f32 %v1365, %v1367
    %v1369 = vmax.f32 %v1368, 0.0
    %s1370 = sld [smem:[#allocation12 + $0xf0]]
    %v1371 = vstv %s1370
    %v1372 = vmul.f32 %v1369, %v1371
    %v1373 = vadd.f32 %v1302, %v1372
    %s1374 = sld [smem:[#allocation12 + $0xf1]]
    %v1375 = vstv %s1374
    %v1376 = vmul.f32 %v1369, %v1375
    %v1377 = vadd.f32 %v1306, %v1376
    %s1378 = sld [smem:[#allocation12 + $0xf2]]
    %v1379 = vstv %s1378
    %v1380 = vmul.f32 %v1369, %v1379
    %v1381 = vadd.f32 %v1310, %v1380
    %s1382 = sld [smem:[#allocation12 + $0xf3]]
    %v1383 = vstv %s1382
    %v1384 = vmul.f32 %v1369, %v1383
    %v1385 = vadd.f32 %v1314, %v1384
    %s1386 = sld [smem:[#allocation12 + $0xf4]]
    %v1387 = vstv %s1386
    %v1388 = vmul.f32 %v1369, %v1387
    %v1389 = vadd.f32 %v1318, %v1388
    %s1390 = sld [smem:[#allocation12 + $0xf5]]
    %v1391 = vstv %s1390
    %v1392 = vmul.f32 %v1369, %v1391
    %v1393 = vadd.f32 %v1322, %v1392
    %s1394 = sld [smem:[#allocation12 + $0xf6]]
    %v1395 = vstv %s1394
    %v1396 = vmul.f32 %v1369, %v1395
    %v1397 = vadd.f32 %v1326, %v1396
    %s1398 = sld [smem:[#allocation12 + $0xf7]]
    %v1399 = vstv %s1398
    %v1400 = vmul.f32 %v1369, %v1399
    %v1401 = vadd.f32 %v1330, %v1400
    %s1402 = sld [smem:[#allocation12 + $0xf8]]
    %v1403 = vstv %s1402
    %v1404 = vmul.f32 %v1369, %v1403
    %v1405 = vadd.f32 %v1334, %v1404
    %s1406 = sld [smem:[#allocation12 + $0xf9]]
    %v1407 = vstv %s1406
    %v1408 = vmul.f32 %v1369, %v1407
    %v1409 = vadd.f32 %v1338, %v1408
    %s1410 = sld [smem:[#allocation12 + $0xfa]]
    %v1411 = vstv %s1410
    %v1412 = vmul.f32 %v1369, %v1411
    %v1413 = vadd.f32 %v1342, %v1412
    %s1414 = sld [smem:[#allocation12 + $0xfb]]
    %v1415 = vstv %s1414
    %v1416 = vmul.f32 %v1369, %v1415
    %v1417 = vadd.f32 %v1346, %v1416
    %s1418 = sld [smem:[#allocation12 + $0xfc]]
    %v1419 = vstv %s1418
    %v1420 = vmul.f32 %v1369, %v1419
    %v1421 = vadd.f32 %v1350, %v1420
    %s1422 = sld [smem:[#allocation12 + $0xfd]]
    %v1423 = vstv %s1422
    %v1424 = vmul.f32 %v1369, %v1423
    %v1425 = vadd.f32 %v1354, %v1424
    %s1426 = sld [smem:[#allocation12 + $0xfe]]
    %v1427 = vstv %s1426
    %v1428 = vmul.f32 %v1369, %v1427
    %v1429 = vadd.f32 %v1358, %v1428
    %s1430 = sld [smem:[#allocation12 + $0xff]]
    %v1431 = vstv %s1430
    %v1432 = vmul.f32 %v1369, %v1431
    %v1433 = vadd.f32 %v1362, %v1432
    %s1434 = sld [smem:[#allocation9 + $0x10]]
    %v1435 = vstv %s1434
    %v1436 = vmul.f32 %v145, %v1435
    %s1437 = sld [smem:[#allocation10 + $0x10]]
    %v1438 = vstv %s1437
    %v1439 = vadd.f32 %v1436, %v1438
    %v1440 = vmax.f32 %v1439, 0.0
    %s1441 = sld [smem:[#allocation12 + $0x100]]
    %v1442 = vstv %s1441
    %v1443 = vmul.f32 %v1440, %v1442
    %v1444 = vadd.f32 %v1373, %v1443
    %s1445 = sld [smem:[#allocation12 + $0x101]]
    %v1446 = vstv %s1445
    %v1447 = vmul.f32 %v1440, %v1446
    %v1448 = vadd.f32 %v1377, %v1447
    %s1449 = sld [smem:[#allocation12 + $0x102]]
    %v1450 = vstv %s1449
    %v1451 = vmul.f32 %v1440, %v1450
    %v1452 = vadd.f32 %v1381, %v1451
    %s1453 = sld [smem:[#allocation12 + $0x103]]
    %v1454 = vstv %s1453
    %v1455 = vmul.f32 %v1440, %v1454
    %v1456 = vadd.f32 %v1385, %v1455
    %s1457 = sld [smem:[#allocation12 + $0x104]]
    %v1458 = vstv %s1457
    %v1459 = vmul.f32 %v1440, %v1458
    %v1460 = vadd.f32 %v1389, %v1459
    %s1461 = sld [smem:[#allocation12 + $0x105]]
    %v1462 = vstv %s1461
    %v1463 = vmul.f32 %v1440, %v1462
    %v1464 = vadd.f32 %v1393, %v1463
    %s1465 = sld [smem:[#allocation12 + $0x106]]
    %v1466 = vstv %s1465
    %v1467 = vmul.f32 %v1440, %v1466
    %v1468 = vadd.f32 %v1397, %v1467
    %s1469 = sld [smem:[#allocation12 + $0x107]]
    %v1470 = vstv %s1469
    %v1471 = vmul.f32 %v1440, %v1470
    %v1472 = vadd.f32 %v1401, %v1471
    %s1473 = sld [smem:[#allocation12 + $0x108]]
    %v1474 = vstv %s1473
    %v1475 = vmul.f32 %v1440, %v1474
    %v1476 = vadd.f32 %v1405, %v1475
    %s1477 = sld [smem:[#allocation12 + $0x109]]
    %v1478 = vstv %s1477
    %v1479 = vmul.f32 %v1440, %v1478
    %v1480 = vadd.f32 %v1409, %v1479
    %s1481 = sld [smem:[#allocation12 + $0x10a]]
    %v1482 = vstv %s1481
    %v1483 = vmul.f32 %v1440, %v1482
    %v1484 = vadd.f32 %v1413, %v1483
    %s1485 = sld [smem:[#allocation12 + $0x10b]]
    %v1486 = vstv %s1485
    %v1487 = vmul.f32 %v1440, %v1486
    %v1488 = vadd.f32 %v1417, %v1487
    %s1489 = sld [smem:[#allocation12 + $0x10c]]
    %v1490 = vstv %s1489
    %v1491 = vmul.f32 %v1440, %v1490
    %v1492 = vadd.f32 %v1421, %v1491
    %s1493 = sld [smem:[#allocation12 + $0x10d]]
    %v1494 = vstv %s1493
    %v1495 = vmul.f32 %v1440, %v1494
    %v1496 = vadd.f32 %v1425, %v1495
    %s1497 = sld [smem:[#allocation12 + $0x10e]]
    %v1498 = vstv %s1497
    %v1499 = vmul.f32 %v1440, %v1498
    %v1500 = vadd.f32 %v1429, %v1499
    %s1501 = sld [smem:[#allocation12 + $0x10f]]
    %v1502 = vstv %s1501
    %v1503 = vmul.f32 %v1440, %v1502
    %v1504 = vadd.f32 %v1433, %v1503
    %s1505 = sld [smem:[#allocation9 + $0x11]]
    %v1506 = vstv %s1505
    %v1507 = vmul.f32 %v145, %v1506
    %s1508 = sld [smem:[#allocation10 + $0x11]]
    %v1509 = vstv %s1508
    %v1510 = vadd.f32 %v1507, %v1509
    %v1511 = vmax.f32 %v1510, 0.0
    %s1512 = sld [smem:[#allocation12 + $0x110]]
    %v1513 = vstv %s1512
    %v1514 = vmul.f32 %v1511, %v1513
    %v1515 = vadd.f32 %v1444, %v1514
    %s1516 = sld [smem:[#allocation12 + $0x111]]
    %v1517 = vstv %s1516
    %v1518 = vmul.f32 %v1511, %v1517
    %v1519 = vadd.f32 %v1448, %v1518
    %s1520 = sld [smem:[#allocation12 + $0x112]]
    %v1521 = vstv %s1520
    %v1522 = vmul.f32 %v1511, %v1521
    %v1523 = vadd.f32 %v1452, %v1522
    %s1524 = sld [smem:[#allocation12 + $0x113]]
    %v1525 = vstv %s1524
    %v1526 = vmul.f32 %v1511, %v1525
    %v1527 = vadd.f32 %v1456, %v1526
    %s1528 = sld [smem:[#allocation12 + $0x114]]
    %v1529 = vstv %s1528
    %v1530 = vmul.f32 %v1511, %v1529
    %v1531 = vadd.f32 %v1460, %v1530
    %s1532 = sld [smem:[#allocation12 + $0x115]]
    %v1533 = vstv %s1532
    %v1534 = vmul.f32 %v1511, %v1533
    %v1535 = vadd.f32 %v1464, %v1534
    %s1536 = sld [smem:[#allocation12 + $0x116]]
    %v1537 = vstv %s1536
    %v1538 = vmul.f32 %v1511, %v1537
    %v1539 = vadd.f32 %v1468, %v1538
    %s1540 = sld [smem:[#allocation12 + $0x117]]
    %v1541 = vstv %s1540
    %v1542 = vmul.f32 %v1511, %v1541
    %v1543 = vadd.f32 %v1472, %v1542
    %s1544 = sld [smem:[#allocation12 + $0x118]]
    %v1545 = vstv %s1544
    %v1546 = vmul.f32 %v1511, %v1545
    %v1547 = vadd.f32 %v1476, %v1546
    %s1548 = sld [smem:[#allocation12 + $0x119]]
    %v1549 = vstv %s1548
    %v1550 = vmul.f32 %v1511, %v1549
    %v1551 = vadd.f32 %v1480, %v1550
    %s1552 = sld [smem:[#allocation12 + $0x11a]]
    %v1553 = vstv %s1552
    %v1554 = vmul.f32 %v1511, %v1553
    %v1555 = vadd.f32 %v1484, %v1554
    %s1556 = sld [smem:[#allocation12 + $0x11b]]
    %v1557 = vstv %s1556
    %v1558 = vmul.f32 %v1511, %v1557
    %v1559 = vadd.f32 %v1488, %v1558
    %s1560 = sld [smem:[#allocation12 + $0x11c]]
    %v1561 = vstv %s1560
    %v1562 = vmul.f32 %v1511, %v1561
    %v1563 = vadd.f32 %v1492, %v1562
    %s1564 = sld [smem:[#allocation12 + $0x11d]]
    %v1565 = vstv %s1564
    %v1566 = vmul.f32 %v1511, %v1565
    %v1567 = vadd.f32 %v1496, %v1566
    %s1568 = sld [smem:[#allocation12 + $0x11e]]
    %v1569 = vstv %s1568
    %v1570 = vmul.f32 %v1511, %v1569
    %v1571 = vadd.f32 %v1500, %v1570
    %s1572 = sld [smem:[#allocation12 + $0x11f]]
    %v1573 = vstv %s1572
    %v1574 = vmul.f32 %v1511, %v1573
    %v1575 = vadd.f32 %v1504, %v1574
    %s1576 = sld [smem:[#allocation9 + $0x12]]
    %v1577 = vstv %s1576
    %v1578 = vmul.f32 %v145, %v1577
    %s1579 = sld [smem:[#allocation10 + $0x12]]
    %v1580 = vstv %s1579
    %v1581 = vadd.f32 %v1578, %v1580
    %v1582 = vmax.f32 %v1581, 0.0
    %s1583 = sld [smem:[#allocation12 + $0x120]]
    %v1584 = vstv %s1583
    %v1585 = vmul.f32 %v1582, %v1584
    %v1586 = vadd.f32 %v1515, %v1585
    %s1587 = sld [smem:[#allocation12 + $0x121]]
    %v1588 = vstv %s1587
    %v1589 = vmul.f32 %v1582, %v1588
    %v1590 = vadd.f32 %v1519, %v1589
    %s1591 = sld [smem:[#allocation12 + $0x122]]
    %v1592 = vstv %s1591
    %v1593 = vmul.f32 %v1582, %v1592
    %v1594 = vadd.f32 %v1523, %v1593
    %s1595 = sld [smem:[#allocation12 + $0x123]]
    %v1596 = vstv %s1595
    %v1597 = vmul.f32 %v1582, %v1596
    %v1598 = vadd.f32 %v1527, %v1597
    %s1599 = sld [smem:[#allocation12 + $0x124]]
    %v1600 = vstv %s1599
    %v1601 = vmul.f32 %v1582, %v1600
    %v1602 = vadd.f32 %v1531, %v1601
    %s1603 = sld [smem:[#allocation12 + $0x125]]
    %v1604 = vstv %s1603
    %v1605 = vmul.f32 %v1582, %v1604
    %v1606 = vadd.f32 %v1535, %v1605
    %s1607 = sld [smem:[#allocation12 + $0x126]]
    %v1608 = vstv %s1607
    %v1609 = vmul.f32 %v1582, %v1608
    %v1610 = vadd.f32 %v1539, %v1609
    %s1611 = sld [smem:[#allocation12 + $0x127]]
    %v1612 = vstv %s1611
    %v1613 = vmul.f32 %v1582, %v1612
    %v1614 = vadd.f32 %v1543, %v1613
    %s1615 = sld [smem:[#allocation12 + $0x128]]
    %v1616 = vstv %s1615
    %v1617 = vmul.f32 %v1582, %v1616
    %v1618 = vadd.f32 %v1547, %v1617
    %s1619 = sld [smem:[#allocation12 + $0x129]]
    %v1620 = vstv %s1619
    %v1621 = vmul.f32 %v1582, %v1620
    %v1622 = vadd.f32 %v1551, %v1621
    %s1623 = sld [smem:[#allocation12 + $0x12a]]
    %v1624 = vstv %s1623
    %v1625 = vmul.f32 %v1582, %v1624
    %v1626 = vadd.f32 %v1555, %v1625
    %s1627 = sld [smem:[#allocation12 + $0x12b]]
    %v1628 = vstv %s1627
    %v1629 = vmul.f32 %v1582, %v1628
    %v1630 = vadd.f32 %v1559, %v1629
    %s1631 = sld [smem:[#allocation12 + $0x12c]]
    %v1632 = vstv %s1631
    %v1633 = vmul.f32 %v1582, %v1632
    %v1634 = vadd.f32 %v1563, %v1633
    %s1635 = sld [smem:[#allocation12 + $0x12d]]
    %v1636 = vstv %s1635
    %v1637 = vmul.f32 %v1582, %v1636
    %v1638 = vadd.f32 %v1567, %v1637
    %s1639 = sld [smem:[#allocation12 + $0x12e]]
    %v1640 = vstv %s1639
    %v1641 = vmul.f32 %v1582, %v1640
    %v1642 = vadd.f32 %v1571, %v1641
    %s1643 = sld [smem:[#allocation12 + $0x12f]]
    %v1644 = vstv %s1643
    %v1645 = vmul.f32 %v1582, %v1644
    %v1646 = vadd.f32 %v1575, %v1645
    %s1647 = sld [smem:[#allocation9 + $0x13]]
    %v1648 = vstv %s1647
    %v1649 = vmul.f32 %v145, %v1648
    %s1650 = sld [smem:[#allocation10 + $0x13]]
    %v1651 = vstv %s1650
    %v1652 = vadd.f32 %v1649, %v1651
    %v1653 = vmax.f32 %v1652, 0.0
    %s1654 = sld [smem:[#allocation12 + $0x130]]
    %v1655 = vstv %s1654
    %v1656 = vmul.f32 %v1653, %v1655
    %v1657 = vadd.f32 %v1586, %v1656
    %s1658 = sld [smem:[#allocation12 + $0x131]]
    %v1659 = vstv %s1658
    %v1660 = vmul.f32 %v1653, %v1659
    %v1661 = vadd.f32 %v1590, %v1660
    %s1662 = sld [smem:[#allocation12 + $0x132]]
    %v1663 = vstv %s1662
    %v1664 = vmul.f32 %v1653, %v1663
    %v1665 = vadd.f32 %v1594, %v1664
    %s1666 = sld [smem:[#allocation12 + $0x133]]
    %v1667 = vstv %s1666
    %v1668 = vmul.f32 %v1653, %v1667
    %v1669 = vadd.f32 %v1598, %v1668
    %s1670 = sld [smem:[#allocation12 + $0x134]]
    %v1671 = vstv %s1670
    %v1672 = vmul.f32 %v1653, %v1671
    %v1673 = vadd.f32 %v1602, %v1672
    %s1674 = sld [smem:[#allocation12 + $0x135]]
    %v1675 = vstv %s1674
    %v1676 = vmul.f32 %v1653, %v1675
    %v1677 = vadd.f32 %v1606, %v1676
    %s1678 = sld [smem:[#allocation12 + $0x136]]
    %v1679 = vstv %s1678
    %v1680 = vmul.f32 %v1653, %v1679
    %v1681 = vadd.f32 %v1610, %v1680
    %s1682 = sld [smem:[#allocation12 + $0x137]]
    %v1683 = vstv %s1682
    %v1684 = vmul.f32 %v1653, %v1683
    %v1685 = vadd.f32 %v1614, %v1684
    %s1686 = sld [smem:[#allocation12 + $0x138]]
    %v1687 = vstv %s1686
    %v1688 = vmul.f32 %v1653, %v1687
    %v1689 = vadd.f32 %v1618, %v1688
    %s1690 = sld [smem:[#allocation12 + $0x139]]
    %v1691 = vstv %s1690
    %v1692 = vmul.f32 %v1653, %v1691
    %v1693 = vadd.f32 %v1622, %v1692
    %s1694 = sld [smem:[#allocation12 + $0x13a]]
    %v1695 = vstv %s1694
    %v1696 = vmul.f32 %v1653, %v1695
    %v1697 = vadd.f32 %v1626, %v1696
    %s1698 = sld [smem:[#allocation12 + $0x13b]]
    %v1699 = vstv %s1698
    %v1700 = vmul.f32 %v1653, %v1699
    %v1701 = vadd.f32 %v1630, %v1700
    %s1702 = sld [smem:[#allocation12 + $0x13c]]
    %v1703 = vstv %s1702
    %v1704 = vmul.f32 %v1653, %v1703
    %v1705 = vadd.f32 %v1634, %v1704
    %s1706 = sld [smem:[#allocation12 + $0x13d]]
    %v1707 = vstv %s1706
    %v1708 = vmul.f32 %v1653, %v1707
    %v1709 = vadd.f32 %v1638, %v1708
    %s1710 = sld [smem:[#allocation12 + $0x13e]]
    %v1711 = vstv %s1710
    %v1712 = vmul.f32 %v1653, %v1711
    %v1713 = vadd.f32 %v1642, %v1712
    %s1714 = sld [smem:[#allocation12 + $0x13f]]
    %v1715 = vstv %s1714
    %v1716 = vmul.f32 %v1653, %v1715
    %v1717 = vadd.f32 %v1646, %v1716
    %s1718 = sld [smem:[#allocation9 + $0x14]]
    %v1719 = vstv %s1718
    %v1720 = vmul.f32 %v145, %v1719
    %s1721 = sld [smem:[#allocation10 + $0x14]]
    %v1722 = vstv %s1721
    %v1723 = vadd.f32 %v1720, %v1722
    %v1724 = vmax.f32 %v1723, 0.0
    %s1725 = sld [smem:[#allocation12 + $0x140]]
    %v1726 = vstv %s1725
    %v1727 = vmul.f32 %v1724, %v1726
    %v1728 = vadd.f32 %v1657, %v1727
    %s1729 = sld [smem:[#allocation12 + $0x141]]
    %v1730 = vstv %s1729
    %v1731 = vmul.f32 %v1724, %v1730
    %v1732 = vadd.f32 %v1661, %v1731
    %s1733 = sld [smem:[#allocation12 + $0x142]]
    %v1734 = vstv %s1733
    %v1735 = vmul.f32 %v1724, %v1734
    %v1736 = vadd.f32 %v1665, %v1735
    %s1737 = sld [smem:[#allocation12 + $0x143]]
    %v1738 = vstv %s1737
    %v1739 = vmul.f32 %v1724, %v1738
    %v1740 = vadd.f32 %v1669, %v1739
    %s1741 = sld [smem:[#allocation12 + $0x144]]
    %v1742 = vstv %s1741
    %v1743 = vmul.f32 %v1724, %v1742
    %v1744 = vadd.f32 %v1673, %v1743
    %s1745 = sld [smem:[#allocation12 + $0x145]]
    %v1746 = vstv %s1745
    %v1747 = vmul.f32 %v1724, %v1746
    %v1748 = vadd.f32 %v1677, %v1747
    %s1749 = sld [smem:[#allocation12 + $0x146]]
    %v1750 = vstv %s1749
    %v1751 = vmul.f32 %v1724, %v1750
    %v1752 = vadd.f32 %v1681, %v1751
    %s1753 = sld [smem:[#allocation12 + $0x147]]
    %v1754 = vstv %s1753
    %v1755 = vmul.f32 %v1724, %v1754
    %v1756 = vadd.f32 %v1685, %v1755
    %s1757 = sld [smem:[#allocation12 + $0x148]]
    %v1758 = vstv %s1757
    %v1759 = vmul.f32 %v1724, %v1758
    %v1760 = vadd.f32 %v1689, %v1759
    %s1761 = sld [smem:[#allocation12 + $0x149]]
    %v1762 = vstv %s1761
    %v1763 = vmul.f32 %v1724, %v1762
    %v1764 = vadd.f32 %v1693, %v1763
    %s1765 = sld [smem:[#allocation12 + $0x14a]]
    %v1766 = vstv %s1765
    %v1767 = vmul.f32 %v1724, %v1766
    %v1768 = vadd.f32 %v1697, %v1767
    %s1769 = sld [smem:[#allocation12 + $0x14b]]
    %v1770 = vstv %s1769
    %v1771 = vmul.f32 %v1724, %v1770
    %v1772 = vadd.f32 %v1701, %v1771
    %s1773 = sld [smem:[#allocation12 + $0x14c]]
    %v1774 = vstv %s1773
    %v1775 = vmul.f32 %v1724, %v1774
    %v1776 = vadd.f32 %v1705, %v1775
    %s1777 = sld [smem:[#allocation12 + $0x14d]]
    %v1778 = vstv %s1777
    %v1779 = vmul.f32 %v1724, %v1778
    %v1780 = vadd.f32 %v1709, %v1779
    %s1781 = sld [smem:[#allocation12 + $0x14e]]
    %v1782 = vstv %s1781
    %v1783 = vmul.f32 %v1724, %v1782
    %v1784 = vadd.f32 %v1713, %v1783
    %s1785 = sld [smem:[#allocation12 + $0x14f]]
    %v1786 = vstv %s1785
    %v1787 = vmul.f32 %v1724, %v1786
    %v1788 = vadd.f32 %v1717, %v1787
    %s1789 = sld [smem:[#allocation9 + $0x15]]
    %v1790 = vstv %s1789
    %v1791 = vmul.f32 %v145, %v1790
    %s1792 = sld [smem:[#allocation10 + $0x15]]
    %v1793 = vstv %s1792
    %v1794 = vadd.f32 %v1791, %v1793
    %v1795 = vmax.f32 %v1794, 0.0
    %s1796 = sld [smem:[#allocation12 + $0x150]]
    %v1797 = vstv %s1796
    %v1798 = vmul.f32 %v1795, %v1797
    %v1799 = vadd.f32 %v1728, %v1798
    %s1800 = sld [smem:[#allocation12 + $0x151]]
    %v1801 = vstv %s1800
    %v1802 = vmul.f32 %v1795, %v1801
    %v1803 = vadd.f32 %v1732, %v1802
    %s1804 = sld [smem:[#allocation12 + $0x152]]
    %v1805 = vstv %s1804
    %v1806 = vmul.f32 %v1795, %v1805
    %v1807 = vadd.f32 %v1736, %v1806
    %s1808 = sld [smem:[#allocation12 + $0x153]]
    %v1809 = vstv %s1808
    %v1810 = vmul.f32 %v1795, %v1809
    %v1811 = vadd.f32 %v1740, %v1810
    %s1812 = sld [smem:[#allocation12 + $0x154]]
    %v1813 = vstv %s1812
    %v1814 = vmul.f32 %v1795, %v1813
    %v1815 = vadd.f32 %v1744, %v1814
    %s1816 = sld [smem:[#allocation12 + $0x155]]
    %v1817 = vstv %s1816
    %v1818 = vmul.f32 %v1795, %v1817
    %v1819 = vadd.f32 %v1748, %v1818
    %s1820 = sld [smem:[#allocation12 + $0x156]]
    %v1821 = vstv %s1820
    %v1822 = vmul.f32 %v1795, %v1821
    %v1823 = vadd.f32 %v1752, %v1822
    %s1824 = sld [smem:[#allocation12 + $0x157]]
    %v1825 = vstv %s1824
    %v1826 = vmul.f32 %v1795, %v1825
    %v1827 = vadd.f32 %v1756, %v1826
    %s1828 = sld [smem:[#allocation12 + $0x158]]
    %v1829 = vstv %s1828
    %v1830 = vmul.f32 %v1795, %v1829
    %v1831 = vadd.f32 %v1760, %v1830
    %s1832 = sld [smem:[#allocation12 + $0x159]]
    %v1833 = vstv %s1832
    %v1834 = vmul.f32 %v1795, %v1833
    %v1835 = vadd.f32 %v1764, %v1834
    %s1836 = sld [smem:[#allocation12 + $0x15a]]
    %v1837 = vstv %s1836
    %v1838 = vmul.f32 %v1795, %v1837
    %v1839 = vadd.f32 %v1768, %v1838
    %s1840 = sld [smem:[#allocation12 + $0x15b]]
    %v1841 = vstv %s1840
    %v1842 = vmul.f32 %v1795, %v1841
    %v1843 = vadd.f32 %v1772, %v1842
    %s1844 = sld [smem:[#allocation12 + $0x15c]]
    %v1845 = vstv %s1844
    %v1846 = vmul.f32 %v1795, %v1845
    %v1847 = vadd.f32 %v1776, %v1846
    %s1848 = sld [smem:[#allocation12 + $0x15d]]
    %v1849 = vstv %s1848
    %v1850 = vmul.f32 %v1795, %v1849
    %v1851 = vadd.f32 %v1780, %v1850
    %s1852 = sld [smem:[#allocation12 + $0x15e]]
    %v1853 = vstv %s1852
    %v1854 = vmul.f32 %v1795, %v1853
    %v1855 = vadd.f32 %v1784, %v1854
    %s1856 = sld [smem:[#allocation12 + $0x15f]]
    %v1857 = vstv %s1856
    %v1858 = vmul.f32 %v1795, %v1857
    %v1859 = vadd.f32 %v1788, %v1858
    %s1860 = sld [smem:[#allocation9 + $0x16]]
    %v1861 = vstv %s1860
    %v1862 = vmul.f32 %v145, %v1861
    %s1863 = sld [smem:[#allocation10 + $0x16]]
    %v1864 = vstv %s1863
    %v1865 = vadd.f32 %v1862, %v1864
    %v1866 = vmax.f32 %v1865, 0.0
    %s1867 = sld [smem:[#allocation12 + $0x160]]
    %v1868 = vstv %s1867
    %v1869 = vmul.f32 %v1866, %v1868
    %v1870 = vadd.f32 %v1799, %v1869
    %s1871 = sld [smem:[#allocation12 + $0x161]]
    %v1872 = vstv %s1871
    %v1873 = vmul.f32 %v1866, %v1872
    %v1874 = vadd.f32 %v1803, %v1873
    %s1875 = sld [smem:[#allocation12 + $0x162]]
    %v1876 = vstv %s1875
    %v1877 = vmul.f32 %v1866, %v1876
    %v1878 = vadd.f32 %v1807, %v1877
    %s1879 = sld [smem:[#allocation12 + $0x163]]
    %v1880 = vstv %s1879
    %v1881 = vmul.f32 %v1866, %v1880
    %v1882 = vadd.f32 %v1811, %v1881
    %s1883 = sld [smem:[#allocation12 + $0x164]]
    %v1884 = vstv %s1883
    %v1885 = vmul.f32 %v1866, %v1884
    %v1886 = vadd.f32 %v1815, %v1885
    %s1887 = sld [smem:[#allocation12 + $0x165]]
    %v1888 = vstv %s1887
    %v1889 = vmul.f32 %v1866, %v1888
    %v1890 = vadd.f32 %v1819, %v1889
    %s1891 = sld [smem:[#allocation12 + $0x166]]
    %v1892 = vstv %s1891
    %v1893 = vmul.f32 %v1866, %v1892
    %v1894 = vadd.f32 %v1823, %v1893
    %s1895 = sld [smem:[#allocation12 + $0x167]]
    %v1896 = vstv %s1895
    %v1897 = vmul.f32 %v1866, %v1896
    %v1898 = vadd.f32 %v1827, %v1897
    %s1899 = sld [smem:[#allocation12 + $0x168]]
    %v1900 = vstv %s1899
    %v1901 = vmul.f32 %v1866, %v1900
    %v1902 = vadd.f32 %v1831, %v1901
    %s1903 = sld [smem:[#allocation12 + $0x169]]
    %v1904 = vstv %s1903
    %v1905 = vmul.f32 %v1866, %v1904
    %v1906 = vadd.f32 %v1835, %v1905
    %s1907 = sld [smem:[#allocation12 + $0x16a]]
    %v1908 = vstv %s1907
    %v1909 = vmul.f32 %v1866, %v1908
    %v1910 = vadd.f32 %v1839, %v1909
    %s1911 = sld [smem:[#allocation12 + $0x16b]]
    %v1912 = vstv %s1911
    %v1913 = vmul.f32 %v1866, %v1912
    %v1914 = vadd.f32 %v1843, %v1913
    %s1915 = sld [smem:[#allocation12 + $0x16c]]
    %v1916 = vstv %s1915
    %v1917 = vmul.f32 %v1866, %v1916
    %v1918 = vadd.f32 %v1847, %v1917
    %s1919 = sld [smem:[#allocation12 + $0x16d]]
    %v1920 = vstv %s1919
    %v1921 = vmul.f32 %v1866, %v1920
    %v1922 = vadd.f32 %v1851, %v1921
    %s1923 = sld [smem:[#allocation12 + $0x16e]]
    %v1924 = vstv %s1923
    %v1925 = vmul.f32 %v1866, %v1924
    %v1926 = vadd.f32 %v1855, %v1925
    %s1927 = sld [smem:[#allocation12 + $0x16f]]
    %v1928 = vstv %s1927
    %v1929 = vmul.f32 %v1866, %v1928
    %v1930 = vadd.f32 %v1859, %v1929
    %s1931 = sld [smem:[#allocation9 + $0x17]]
    %v1932 = vstv %s1931
    %v1933 = vmul.f32 %v145, %v1932
    %s1934 = sld [smem:[#allocation10 + $0x17]]
    %v1935 = vstv %s1934
    %v1936 = vadd.f32 %v1933, %v1935
    %v1937 = vmax.f32 %v1936, 0.0
    %s1938 = sld [smem:[#allocation12 + $0x170]]
    %v1939 = vstv %s1938
    %v1940 = vmul.f32 %v1937, %v1939
    %v1941 = vadd.f32 %v1870, %v1940
    %s1942 = sld [smem:[#allocation12 + $0x171]]
    %v1943 = vstv %s1942
    %v1944 = vmul.f32 %v1937, %v1943
    %v1945 = vadd.f32 %v1874, %v1944
    %s1946 = sld [smem:[#allocation12 + $0x172]]
    %v1947 = vstv %s1946
    %v1948 = vmul.f32 %v1937, %v1947
    %v1949 = vadd.f32 %v1878, %v1948
    %s1950 = sld [smem:[#allocation12 + $0x173]]
    %v1951 = vstv %s1950
    %v1952 = vmul.f32 %v1937, %v1951
    %v1953 = vadd.f32 %v1882, %v1952
    %s1954 = sld [smem:[#allocation12 + $0x174]]
    %v1955 = vstv %s1954
    %v1956 = vmul.f32 %v1937, %v1955
    %v1957 = vadd.f32 %v1886, %v1956
    %s1958 = sld [smem:[#allocation12 + $0x175]]
    %v1959 = vstv %s1958
    %v1960 = vmul.f32 %v1937, %v1959
    %v1961 = vadd.f32 %v1890, %v1960
    %s1962 = sld [smem:[#allocation12 + $0x176]]
    %v1963 = vstv %s1962
    %v1964 = vmul.f32 %v1937, %v1963
    %v1965 = vadd.f32 %v1894, %v1964
    %s1966 = sld [smem:[#allocation12 + $0x177]]
    %v1967 = vstv %s1966
    %v1968 = vmul.f32 %v1937, %v1967
    %v1969 = vadd.f32 %v1898, %v1968
    %s1970 = sld [smem:[#allocation12 + $0x178]]
    %v1971 = vstv %s1970
    %v1972 = vmul.f32 %v1937, %v1971
    %v1973 = vadd.f32 %v1902, %v1972
    %s1974 = sld [smem:[#allocation12 + $0x179]]
    %v1975 = vstv %s1974
    %v1976 = vmul.f32 %v1937, %v1975
    %v1977 = vadd.f32 %v1906, %v1976
    %s1978 = sld [smem:[#allocation12 + $0x17a]]
    %v1979 = vstv %s1978
    %v1980 = vmul.f32 %v1937, %v1979
    %v1981 = vadd.f32 %v1910, %v1980
    %s1982 = sld [smem:[#allocation12 + $0x17b]]
    %v1983 = vstv %s1982
    %v1984 = vmul.f32 %v1937, %v1983
    %v1985 = vadd.f32 %v1914, %v1984
    %s1986 = sld [smem:[#allocation12 + $0x17c]]
    %v1987 = vstv %s1986
    %v1988 = vmul.f32 %v1937, %v1987
    %v1989 = vadd.f32 %v1918, %v1988
    %s1990 = sld [smem:[#allocation12 + $0x17d]]
    %v1991 = vstv %s1990
    %v1992 = vmul.f32 %v1937, %v1991
    %v1993 = vadd.f32 %v1922, %v1992
    %s1994 = sld [smem:[#allocation12 + $0x17e]]
    %v1995 = vstv %s1994
    %v1996 = vmul.f32 %v1937, %v1995
    %v1997 = vadd.f32 %v1926, %v1996
    %s1998 = sld [smem:[#allocation12 + $0x17f]]
    %v1999 = vstv %s1998
    %v2000 = vmul.f32 %v1937, %v1999
    %v2001 = vadd.f32 %v1930, %v2000
    %s2002 = sld [smem:[#allocation9 + $0x18]]
    %v2003 = vstv %s2002
    %v2004 = vmul.f32 %v145, %v2003
    %s2005 = sld [smem:[#allocation10 + $0x18]]
    %v2006 = vstv %s2005
    %v2007 = vadd.f32 %v2004, %v2006
    %v2008 = vmax.f32 %v2007, 0.0
    %s2009 = sld [smem:[#allocation12 + $0x180]]
    %v2010 = vstv %s2009
    %v2011 = vmul.f32 %v2008, %v2010
    %v2012 = vadd.f32 %v1941, %v2011
    %s2013 = sld [smem:[#allocation12 + $0x181]]
    %v2014 = vstv %s2013
    %v2015 = vmul.f32 %v2008, %v2014
    %v2016 = vadd.f32 %v1945, %v2015
    %s2017 = sld [smem:[#allocation12 + $0x182]]
    %v2018 = vstv %s2017
    %v2019 = vmul.f32 %v2008, %v2018
    %v2020 = vadd.f32 %v1949, %v2019
    %s2021 = sld [smem:[#allocation12 + $0x183]]
    %v2022 = vstv %s2021
    %v2023 = vmul.f32 %v2008, %v2022
    %v2024 = vadd.f32 %v1953, %v2023
    %s2025 = sld [smem:[#allocation12 + $0x184]]
    %v2026 = vstv %s2025
    %v2027 = vmul.f32 %v2008, %v2026
    %v2028 = vadd.f32 %v1957, %v2027
    %s2029 = sld [smem:[#allocation12 + $0x185]]
    %v2030 = vstv %s2029
    %v2031 = vmul.f32 %v2008, %v2030
    %v2032 = vadd.f32 %v1961, %v2031
    %s2033 = sld [smem:[#allocation12 + $0x186]]
    %v2034 = vstv %s2033
    %v2035 = vmul.f32 %v2008, %v2034
    %v2036 = vadd.f32 %v1965, %v2035
    %s2037 = sld [smem:[#allocation12 + $0x187]]
    %v2038 = vstv %s2037
    %v2039 = vmul.f32 %v2008, %v2038
    %v2040 = vadd.f32 %v1969, %v2039
    %s2041 = sld [smem:[#allocation12 + $0x188]]
    %v2042 = vstv %s2041
    %v2043 = vmul.f32 %v2008, %v2042
    %v2044 = vadd.f32 %v1973, %v2043
    %s2045 = sld [smem:[#allocation12 + $0x189]]
    %v2046 = vstv %s2045
    %v2047 = vmul.f32 %v2008, %v2046
    %v2048 = vadd.f32 %v1977, %v2047
    %s2049 = sld [smem:[#allocation12 + $0x18a]]
    %v2050 = vstv %s2049
    %v2051 = vmul.f32 %v2008, %v2050
    %v2052 = vadd.f32 %v1981, %v2051
    %s2053 = sld [smem:[#allocation12 + $0x18b]]
    %v2054 = vstv %s2053
    %v2055 = vmul.f32 %v2008, %v2054
    %v2056 = vadd.f32 %v1985, %v2055
    %s2057 = sld [smem:[#allocation12 + $0x18c]]
    %v2058 = vstv %s2057
    %v2059 = vmul.f32 %v2008, %v2058
    %v2060 = vadd.f32 %v1989, %v2059
    %s2061 = sld [smem:[#allocation12 + $0x18d]]
    %v2062 = vstv %s2061
    %v2063 = vmul.f32 %v2008, %v2062
    %v2064 = vadd.f32 %v1993, %v2063
    %s2065 = sld [smem:[#allocation12 + $0x18e]]
    %v2066 = vstv %s2065
    %v2067 = vmul.f32 %v2008, %v2066
    %v2068 = vadd.f32 %v1997, %v2067
    %s2069 = sld [smem:[#allocation12 + $0x18f]]
    %v2070 = vstv %s2069
    %v2071 = vmul.f32 %v2008, %v2070
    %v2072 = vadd.f32 %v2001, %v2071
    %s2073 = sld [smem:[#allocation9 + $0x19]]
    %v2074 = vstv %s2073
    %v2075 = vmul.f32 %v145, %v2074
    %s2076 = sld [smem:[#allocation10 + $0x19]]
    %v2077 = vstv %s2076
    %v2078 = vadd.f32 %v2075, %v2077
    %v2079 = vmax.f32 %v2078, 0.0
    %s2080 = sld [smem:[#allocation12 + $0x190]]
    %v2081 = vstv %s2080
    %v2082 = vmul.f32 %v2079, %v2081
    %v2083 = vadd.f32 %v2012, %v2082
    %s2084 = sld [smem:[#allocation12 + $0x191]]
    %v2085 = vstv %s2084
    %v2086 = vmul.f32 %v2079, %v2085
    %v2087 = vadd.f32 %v2016, %v2086
    %s2088 = sld [smem:[#allocation12 + $0x192]]
    %v2089 = vstv %s2088
    %v2090 = vmul.f32 %v2079, %v2089
    %v2091 = vadd.f32 %v2020, %v2090
    %s2092 = sld [smem:[#allocation12 + $0x193]]
    %v2093 = vstv %s2092
    %v2094 = vmul.f32 %v2079, %v2093
    %v2095 = vadd.f32 %v2024, %v2094
    %s2096 = sld [smem:[#allocation12 + $0x194]]
    %v2097 = vstv %s2096
    %v2098 = vmul.f32 %v2079, %v2097
    %v2099 = vadd.f32 %v2028, %v2098
    %s2100 = sld [smem:[#allocation12 + $0x195]]
    %v2101 = vstv %s2100
    %v2102 = vmul.f32 %v2079, %v2101
    %v2103 = vadd.f32 %v2032, %v2102
    %s2104 = sld [smem:[#allocation12 + $0x196]]
    %v2105 = vstv %s2104
    %v2106 = vmul.f32 %v2079, %v2105
    %v2107 = vadd.f32 %v2036, %v2106
    %s2108 = sld [smem:[#allocation12 + $0x197]]
    %v2109 = vstv %s2108
    %v2110 = vmul.f32 %v2079, %v2109
    %v2111 = vadd.f32 %v2040, %v2110
    %s2112 = sld [smem:[#allocation12 + $0x198]]
    %v2113 = vstv %s2112
    %v2114 = vmul.f32 %v2079, %v2113
    %v2115 = vadd.f32 %v2044, %v2114
    %s2116 = sld [smem:[#allocation12 + $0x199]]
    %v2117 = vstv %s2116
    %v2118 = vmul.f32 %v2079, %v2117
    %v2119 = vadd.f32 %v2048, %v2118
    %s2120 = sld [smem:[#allocation12 + $0x19a]]
    %v2121 = vstv %s2120
    %v2122 = vmul.f32 %v2079, %v2121
    %v2123 = vadd.f32 %v2052, %v2122
    %s2124 = sld [smem:[#allocation12 + $0x19b]]
    %v2125 = vstv %s2124
    %v2126 = vmul.f32 %v2079, %v2125
    %v2127 = vadd.f32 %v2056, %v2126
    %s2128 = sld [smem:[#allocation12 + $0x19c]]
    %v2129 = vstv %s2128
    %v2130 = vmul.f32 %v2079, %v2129
    %v2131 = vadd.f32 %v2060, %v2130
    %s2132 = sld [smem:[#allocation12 + $0x19d]]
    %v2133 = vstv %s2132
    %v2134 = vmul.f32 %v2079, %v2133
    %v2135 = vadd.f32 %v2064, %v2134
    %s2136 = sld [smem:[#allocation12 + $0x19e]]
    %v2137 = vstv %s2136
    %v2138 = vmul.f32 %v2079, %v2137
    %v2139 = vadd.f32 %v2068, %v2138
    %s2140 = sld [smem:[#allocation12 + $0x19f]]
    %v2141 = vstv %s2140
    %v2142 = vmul.f32 %v2079, %v2141
    %v2143 = vadd.f32 %v2072, %v2142
    %s2144 = sld [smem:[#allocation9 + $0x1a]]
    %v2145 = vstv %s2144
    %v2146 = vmul.f32 %v145, %v2145
    %s2147 = sld [smem:[#allocation10 + $0x1a]]
    %v2148 = vstv %s2147
    %v2149 = vadd.f32 %v2146, %v2148
    %v2150 = vmax.f32 %v2149, 0.0
    %s2151 = sld [smem:[#allocation12 + $0x1a0]]
    %v2152 = vstv %s2151
    %v2153 = vmul.f32 %v2150, %v2152
    %v2154 = vadd.f32 %v2083, %v2153
    %s2155 = sld [smem:[#allocation12 + $0x1a1]]
    %v2156 = vstv %s2155
    %v2157 = vmul.f32 %v2150, %v2156
    %v2158 = vadd.f32 %v2087, %v2157
    %s2159 = sld [smem:[#allocation12 + $0x1a2]]
    %v2160 = vstv %s2159
    %v2161 = vmul.f32 %v2150, %v2160
    %v2162 = vadd.f32 %v2091, %v2161
    %s2163 = sld [smem:[#allocation12 + $0x1a3]]
    %v2164 = vstv %s2163
    %v2165 = vmul.f32 %v2150, %v2164
    %v2166 = vadd.f32 %v2095, %v2165
    %s2167 = sld [smem:[#allocation12 + $0x1a4]]
    %v2168 = vstv %s2167
    %v2169 = vmul.f32 %v2150, %v2168
    %v2170 = vadd.f32 %v2099, %v2169
    %s2171 = sld [smem:[#allocation12 + $0x1a5]]
    %v2172 = vstv %s2171
    %v2173 = vmul.f32 %v2150, %v2172
    %v2174 = vadd.f32 %v2103, %v2173
    %s2175 = sld [smem:[#allocation12 + $0x1a6]]
    %v2176 = vstv %s2175
    %v2177 = vmul.f32 %v2150, %v2176
    %v2178 = vadd.f32 %v2107, %v2177
    %s2179 = sld [smem:[#allocation12 + $0x1a7]]
    %v2180 = vstv %s2179
    %v2181 = vmul.f32 %v2150, %v2180
    %v2182 = vadd.f32 %v2111, %v2181
    %s2183 = sld [smem:[#allocation12 + $0x1a8]]
    %v2184 = vstv %s2183
    %v2185 = vmul.f32 %v2150, %v2184
    %v2186 = vadd.f32 %v2115, %v2185
    %s2187 = sld [smem:[#allocation12 + $0x1a9]]
    %v2188 = vstv %s2187
    %v2189 = vmul.f32 %v2150, %v2188
    %v2190 = vadd.f32 %v2119, %v2189
    %s2191 = sld [smem:[#allocation12 + $0x1aa]]
    %v2192 = vstv %s2191
    %v2193 = vmul.f32 %v2150, %v2192
    %v2194 = vadd.f32 %v2123, %v2193
    %s2195 = sld [smem:[#allocation12 + $0x1ab]]
    %v2196 = vstv %s2195
    %v2197 = vmul.f32 %v2150, %v2196
    %v2198 = vadd.f32 %v2127, %v2197
    %s2199 = sld [smem:[#allocation12 + $0x1ac]]
    %v2200 = vstv %s2199
    %v2201 = vmul.f32 %v2150, %v2200
    %v2202 = vadd.f32 %v2131, %v2201
    %s2203 = sld [smem:[#allocation12 + $0x1ad]]
    %v2204 = vstv %s2203
    %v2205 = vmul.f32 %v2150, %v2204
    %v2206 = vadd.f32 %v2135, %v2205
    %s2207 = sld [smem:[#allocation12 + $0x1ae]]
    %v2208 = vstv %s2207
    %v2209 = vmul.f32 %v2150, %v2208
    %v2210 = vadd.f32 %v2139, %v2209
    %s2211 = sld [smem:[#allocation12 + $0x1af]]
    %v2212 = vstv %s2211
    %v2213 = vmul.f32 %v2150, %v2212
    %v2214 = vadd.f32 %v2143, %v2213
    %s2215 = sld [smem:[#allocation9 + $0x1b]]
    %v2216 = vstv %s2215
    %v2217 = vmul.f32 %v145, %v2216
    %s2218 = sld [smem:[#allocation10 + $0x1b]]
    %v2219 = vstv %s2218
    %v2220 = vadd.f32 %v2217, %v2219
    %v2221 = vmax.f32 %v2220, 0.0
    %s2222 = sld [smem:[#allocation12 + $0x1b0]]
    %v2223 = vstv %s2222
    %v2224 = vmul.f32 %v2221, %v2223
    %v2225 = vadd.f32 %v2154, %v2224
    %s2226 = sld [smem:[#allocation12 + $0x1b1]]
    %v2227 = vstv %s2226
    %v2228 = vmul.f32 %v2221, %v2227
    %v2229 = vadd.f32 %v2158, %v2228
    %s2230 = sld [smem:[#allocation12 + $0x1b2]]
    %v2231 = vstv %s2230
    %v2232 = vmul.f32 %v2221, %v2231
    %v2233 = vadd.f32 %v2162, %v2232
    %s2234 = sld [smem:[#allocation12 + $0x1b3]]
    %v2235 = vstv %s2234
    %v2236 = vmul.f32 %v2221, %v2235
    %v2237 = vadd.f32 %v2166, %v2236
    %s2238 = sld [smem:[#allocation12 + $0x1b4]]
    %v2239 = vstv %s2238
    %v2240 = vmul.f32 %v2221, %v2239
    %v2241 = vadd.f32 %v2170, %v2240
    %s2242 = sld [smem:[#allocation12 + $0x1b5]]
    %v2243 = vstv %s2242
    %v2244 = vmul.f32 %v2221, %v2243
    %v2245 = vadd.f32 %v2174, %v2244
    %s2246 = sld [smem:[#allocation12 + $0x1b6]]
    %v2247 = vstv %s2246
    %v2248 = vmul.f32 %v2221, %v2247
    %v2249 = vadd.f32 %v2178, %v2248
    %s2250 = sld [smem:[#allocation12 + $0x1b7]]
    %v2251 = vstv %s2250
    %v2252 = vmul.f32 %v2221, %v2251
    %v2253 = vadd.f32 %v2182, %v2252
    %s2254 = sld [smem:[#allocation12 + $0x1b8]]
    %v2255 = vstv %s2254
    %v2256 = vmul.f32 %v2221, %v2255
    %v2257 = vadd.f32 %v2186, %v2256
    %s2258 = sld [smem:[#allocation12 + $0x1b9]]
    %v2259 = vstv %s2258
    %v2260 = vmul.f32 %v2221, %v2259
    %v2261 = vadd.f32 %v2190, %v2260
    %s2262 = sld [smem:[#allocation12 + $0x1ba]]
    %v2263 = vstv %s2262
    %v2264 = vmul.f32 %v2221, %v2263
    %v2265 = vadd.f32 %v2194, %v2264
    %s2266 = sld [smem:[#allocation12 + $0x1bb]]
    %v2267 = vstv %s2266
    %v2268 = vmul.f32 %v2221, %v2267
    %v2269 = vadd.f32 %v2198, %v2268
    %s2270 = sld [smem:[#allocation12 + $0x1bc]]
    %v2271 = vstv %s2270
    %v2272 = vmul.f32 %v2221, %v2271
    %v2273 = vadd.f32 %v2202, %v2272
    %s2274 = sld [smem:[#allocation12 + $0x1bd]]
    %v2275 = vstv %s2274
    %v2276 = vmul.f32 %v2221, %v2275
    %v2277 = vadd.f32 %v2206, %v2276
    %s2278 = sld [smem:[#allocation12 + $0x1be]]
    %v2279 = vstv %s2278
    %v2280 = vmul.f32 %v2221, %v2279
    %v2281 = vadd.f32 %v2210, %v2280
    %s2282 = sld [smem:[#allocation12 + $0x1bf]]
    %v2283 = vstv %s2282
    %v2284 = vmul.f32 %v2221, %v2283
    %v2285 = vadd.f32 %v2214, %v2284
    %s2286 = sld [smem:[#allocation9 + $0x1c]]
    %v2287 = vstv %s2286
    %v2288 = vmul.f32 %v145, %v2287
    %s2289 = sld [smem:[#allocation10 + $0x1c]]
    %v2290 = vstv %s2289
    %v2291 = vadd.f32 %v2288, %v2290
    %v2292 = vmax.f32 %v2291, 0.0
    %s2293 = sld [smem:[#allocation12 + $0x1c0]]
    %v2294 = vstv %s2293
    %v2295 = vmul.f32 %v2292, %v2294
    %v2296 = vadd.f32 %v2225, %v2295
    %s2297 = sld [smem:[#allocation12 + $0x1c1]]
    %v2298 = vstv %s2297
    %v2299 = vmul.f32 %v2292, %v2298
    %v2300 = vadd.f32 %v2229, %v2299
    %s2301 = sld [smem:[#allocation12 + $0x1c2]]
    %v2302 = vstv %s2301
    %v2303 = vmul.f32 %v2292, %v2302
    %v2304 = vadd.f32 %v2233, %v2303
    %s2305 = sld [smem:[#allocation12 + $0x1c3]]
    %v2306 = vstv %s2305
    %v2307 = vmul.f32 %v2292, %v2306
    %v2308 = vadd.f32 %v2237, %v2307
    %s2309 = sld [smem:[#allocation12 + $0x1c4]]
    %v2310 = vstv %s2309
    %v2311 = vmul.f32 %v2292, %v2310
    %v2312 = vadd.f32 %v2241, %v2311
    %s2313 = sld [smem:[#allocation12 + $0x1c5]]
    %v2314 = vstv %s2313
    %v2315 = vmul.f32 %v2292, %v2314
    %v2316 = vadd.f32 %v2245, %v2315
    %s2317 = sld [smem:[#allocation12 + $0x1c6]]
    %v2318 = vstv %s2317
    %v2319 = vmul.f32 %v2292, %v2318
    %v2320 = vadd.f32 %v2249, %v2319
    %s2321 = sld [smem:[#allocation12 + $0x1c7]]
    %v2322 = vstv %s2321
    %v2323 = vmul.f32 %v2292, %v2322
    %v2324 = vadd.f32 %v2253, %v2323
    %s2325 = sld [smem:[#allocation12 + $0x1c8]]
    %v2326 = vstv %s2325
    %v2327 = vmul.f32 %v2292, %v2326
    %v2328 = vadd.f32 %v2257, %v2327
    %s2329 = sld [smem:[#allocation12 + $0x1c9]]
    %v2330 = vstv %s2329
    %v2331 = vmul.f32 %v2292, %v2330
    %v2332 = vadd.f32 %v2261, %v2331
    %s2333 = sld [smem:[#allocation12 + $0x1ca]]
    %v2334 = vstv %s2333
    %v2335 = vmul.f32 %v2292, %v2334
    %v2336 = vadd.f32 %v2265, %v2335
    %s2337 = sld [smem:[#allocation12 + $0x1cb]]
    %v2338 = vstv %s2337
    %v2339 = vmul.f32 %v2292, %v2338
    %v2340 = vadd.f32 %v2269, %v2339
    %s2341 = sld [smem:[#allocation12 + $0x1cc]]
    %v2342 = vstv %s2341
    %v2343 = vmul.f32 %v2292, %v2342
    %v2344 = vadd.f32 %v2273, %v2343
    %s2345 = sld [smem:[#allocation12 + $0x1cd]]
    %v2346 = vstv %s2345
    %v2347 = vmul.f32 %v2292, %v2346
    %v2348 = vadd.f32 %v2277, %v2347
    %s2349 = sld [smem:[#allocation12 + $0x1ce]]
    %v2350 = vstv %s2349
    %v2351 = vmul.f32 %v2292, %v2350
    %v2352 = vadd.f32 %v2281, %v2351
    %s2353 = sld [smem:[#allocation12 + $0x1cf]]
    %v2354 = vstv %s2353
    %v2355 = vmul.f32 %v2292, %v2354
    %v2356 = vadd.f32 %v2285, %v2355
    %s2357 = sld [smem:[#allocation9 + $0x1d]]
    %v2358 = vstv %s2357
    %v2359 = vmul.f32 %v145, %v2358
    %s2360 = sld [smem:[#allocation10 + $0x1d]]
    %v2361 = vstv %s2360
    %v2362 = vadd.f32 %v2359, %v2361
    %v2363 = vmax.f32 %v2362, 0.0
    %s2364 = sld [smem:[#allocation12 + $0x1d0]]
    %v2365 = vstv %s2364
    %v2366 = vmul.f32 %v2363, %v2365
    %v2367 = vadd.f32 %v2296, %v2366
    %s2368 = sld [smem:[#allocation12 + $0x1d1]]
    %v2369 = vstv %s2368
    %v2370 = vmul.f32 %v2363, %v2369
    %v2371 = vadd.f32 %v2300, %v2370
    %s2372 = sld [smem:[#allocation12 + $0x1d2]]
    %v2373 = vstv %s2372
    %v2374 = vmul.f32 %v2363, %v2373
    %v2375 = vadd.f32 %v2304, %v2374
    %s2376 = sld [smem:[#allocation12 + $0x1d3]]
    %v2377 = vstv %s2376
    %v2378 = vmul.f32 %v2363, %v2377
    %v2379 = vadd.f32 %v2308, %v2378
    %s2380 = sld [smem:[#allocation12 + $0x1d4]]
    %v2381 = vstv %s2380
    %v2382 = vmul.f32 %v2363, %v2381
    %v2383 = vadd.f32 %v2312, %v2382
    %s2384 = sld [smem:[#allocation12 + $0x1d5]]
    %v2385 = vstv %s2384
    %v2386 = vmul.f32 %v2363, %v2385
    %v2387 = vadd.f32 %v2316, %v2386
    %s2388 = sld [smem:[#allocation12 + $0x1d6]]
    %v2389 = vstv %s2388
    %v2390 = vmul.f32 %v2363, %v2389
    %v2391 = vadd.f32 %v2320, %v2390
    %s2392 = sld [smem:[#allocation12 + $0x1d7]]
    %v2393 = vstv %s2392
    %v2394 = vmul.f32 %v2363, %v2393
    %v2395 = vadd.f32 %v2324, %v2394
    %s2396 = sld [smem:[#allocation12 + $0x1d8]]
    %v2397 = vstv %s2396
    %v2398 = vmul.f32 %v2363, %v2397
    %v2399 = vadd.f32 %v2328, %v2398
    %s2400 = sld [smem:[#allocation12 + $0x1d9]]
    %v2401 = vstv %s2400
    %v2402 = vmul.f32 %v2363, %v2401
    %v2403 = vadd.f32 %v2332, %v2402
    %s2404 = sld [smem:[#allocation12 + $0x1da]]
    %v2405 = vstv %s2404
    %v2406 = vmul.f32 %v2363, %v2405
    %v2407 = vadd.f32 %v2336, %v2406
    %s2408 = sld [smem:[#allocation12 + $0x1db]]
    %v2409 = vstv %s2408
    %v2410 = vmul.f32 %v2363, %v2409
    %v2411 = vadd.f32 %v2340, %v2410
    %s2412 = sld [smem:[#allocation12 + $0x1dc]]
    %v2413 = vstv %s2412
    %v2414 = vmul.f32 %v2363, %v2413
    %v2415 = vadd.f32 %v2344, %v2414
    %s2416 = sld [smem:[#allocation12 + $0x1dd]]
    %v2417 = vstv %s2416
    %v2418 = vmul.f32 %v2363, %v2417
    %v2419 = vadd.f32 %v2348, %v2418
    %s2420 = sld [smem:[#allocation12 + $0x1de]]
    %v2421 = vstv %s2420
    %v2422 = vmul.f32 %v2363, %v2421
    %v2423 = vadd.f32 %v2352, %v2422
    %s2424 = sld [smem:[#allocation12 + $0x1df]]
    %v2425 = vstv %s2424
    %v2426 = vmul.f32 %v2363, %v2425
    %v2427 = vadd.f32 %v2356, %v2426
    %s2428 = sld [smem:[#allocation9 + $0x1e]]
    %v2429 = vstv %s2428
    %v2430 = vmul.f32 %v145, %v2429
    %s2431 = sld [smem:[#allocation10 + $0x1e]]
    %v2432 = vstv %s2431
    %v2433 = vadd.f32 %v2430, %v2432
    %v2434 = vmax.f32 %v2433, 0.0
    %s2435 = sld [smem:[#allocation12 + $0x1e0]]
    %v2436 = vstv %s2435
    %v2437 = vmul.f32 %v2434, %v2436
    %v2438 = vadd.f32 %v2367, %v2437
    %s2439 = sld [smem:[#allocation12 + $0x1e1]]
    %v2440 = vstv %s2439
    %v2441 = vmul.f32 %v2434, %v2440
    %v2442 = vadd.f32 %v2371, %v2441
    %s2443 = sld [smem:[#allocation12 + $0x1e2]]
    %v2444 = vstv %s2443
    %v2445 = vmul.f32 %v2434, %v2444
    %v2446 = vadd.f32 %v2375, %v2445
    %s2447 = sld [smem:[#allocation12 + $0x1e3]]
    %v2448 = vstv %s2447
    %v2449 = vmul.f32 %v2434, %v2448
    %v2450 = vadd.f32 %v2379, %v2449
    %s2451 = sld [smem:[#allocation12 + $0x1e4]]
    %v2452 = vstv %s2451
    %v2453 = vmul.f32 %v2434, %v2452
    %v2454 = vadd.f32 %v2383, %v2453
    %s2455 = sld [smem:[#allocation12 + $0x1e5]]
    %v2456 = vstv %s2455
    %v2457 = vmul.f32 %v2434, %v2456
    %v2458 = vadd.f32 %v2387, %v2457
    %s2459 = sld [smem:[#allocation12 + $0x1e6]]
    %v2460 = vstv %s2459
    %v2461 = vmul.f32 %v2434, %v2460
    %v2462 = vadd.f32 %v2391, %v2461
    %s2463 = sld [smem:[#allocation12 + $0x1e7]]
    %v2464 = vstv %s2463
    %v2465 = vmul.f32 %v2434, %v2464
    %v2466 = vadd.f32 %v2395, %v2465
    %s2467 = sld [smem:[#allocation12 + $0x1e8]]
    %v2468 = vstv %s2467
    %v2469 = vmul.f32 %v2434, %v2468
    %v2470 = vadd.f32 %v2399, %v2469
    %s2471 = sld [smem:[#allocation12 + $0x1e9]]
    %v2472 = vstv %s2471
    %v2473 = vmul.f32 %v2434, %v2472
    %v2474 = vadd.f32 %v2403, %v2473
    %s2475 = sld [smem:[#allocation12 + $0x1ea]]
    %v2476 = vstv %s2475
    %v2477 = vmul.f32 %v2434, %v2476
    %v2478 = vadd.f32 %v2407, %v2477
    %s2479 = sld [smem:[#allocation12 + $0x1eb]]
    %v2480 = vstv %s2479
    %v2481 = vmul.f32 %v2434, %v2480
    %v2482 = vadd.f32 %v2411, %v2481
    %s2483 = sld [smem:[#allocation12 + $0x1ec]]
    %v2484 = vstv %s2483
    %v2485 = vmul.f32 %v2434, %v2484
    %v2486 = vadd.f32 %v2415, %v2485
    %s2487 = sld [smem:[#allocation12 + $0x1ed]]
    %v2488 = vstv %s2487
    %v2489 = vmul.f32 %v2434, %v2488
    %v2490 = vadd.f32 %v2419, %v2489
    %s2491 = sld [smem:[#allocation12 + $0x1ee]]
    %v2492 = vstv %s2491
    %v2493 = vmul.f32 %v2434, %v2492
    %v2494 = vadd.f32 %v2423, %v2493
    %s2495 = sld [smem:[#allocation12 + $0x1ef]]
    %v2496 = vstv %s2495
    %v2497 = vmul.f32 %v2434, %v2496
    %v2498 = vadd.f32 %v2427, %v2497
    %s2499 = sld [smem:[#allocation9 + $0x1f]]
    %v2500 = vstv %s2499
    %v2501 = vmul.f32 %v145, %v2500
    %s2502 = sld [smem:[#allocation10 + $0x1f]]
    %v2503 = vstv %s2502
    %v2504 = vadd.f32 %v2501, %v2503
    %v2505 = vmax.f32 %v2504, 0.0
    %s2506 = sld [smem:[#allocation12 + $0x1f0]]
    %v2507 = vstv %s2506
    %v2508 = vmul.f32 %v2505, %v2507
    %v2509 = vadd.f32 %v2438, %v2508
    %s2510 = sld [smem:[#allocation12 + $0x1f1]]
    %v2511 = vstv %s2510
    %v2512 = vmul.f32 %v2505, %v2511
    %v2513 = vadd.f32 %v2442, %v2512
    %s2514 = sld [smem:[#allocation12 + $0x1f2]]
    %v2515 = vstv %s2514
    %v2516 = vmul.f32 %v2505, %v2515
    %v2517 = vadd.f32 %v2446, %v2516
    %s2518 = sld [smem:[#allocation12 + $0x1f3]]
    %v2519 = vstv %s2518
    %v2520 = vmul.f32 %v2505, %v2519
    %v2521 = vadd.f32 %v2450, %v2520
    %s2522 = sld [smem:[#allocation12 + $0x1f4]]
    %v2523 = vstv %s2522
    %v2524 = vmul.f32 %v2505, %v2523
    %v2525 = vadd.f32 %v2454, %v2524
    %s2526 = sld [smem:[#allocation12 + $0x1f5]]
    %v2527 = vstv %s2526
    %v2528 = vmul.f32 %v2505, %v2527
    %v2529 = vadd.f32 %v2458, %v2528
    %s2530 = sld [smem:[#allocation12 + $0x1f6]]
    %v2531 = vstv %s2530
    %v2532 = vmul.f32 %v2505, %v2531
    %v2533 = vadd.f32 %v2462, %v2532
    %s2534 = sld [smem:[#allocation12 + $0x1f7]]
    %v2535 = vstv %s2534
    %v2536 = vmul.f32 %v2505, %v2535
    %v2537 = vadd.f32 %v2466, %v2536
    %s2538 = sld [smem:[#allocation12 + $0x1f8]]
    %v2539 = vstv %s2538
    %v2540 = vmul.f32 %v2505, %v2539
    %v2541 = vadd.f32 %v2470, %v2540
    %s2542 = sld [smem:[#allocation12 + $0x1f9]]
    %v2543 = vstv %s2542
    %v2544 = vmul.f32 %v2505, %v2543
    %v2545 = vadd.f32 %v2474, %v2544
    %s2546 = sld [smem:[#allocation12 + $0x1fa]]
    %v2547 = vstv %s2546
    %v2548 = vmul.f32 %v2505, %v2547
    %v2549 = vadd.f32 %v2478, %v2548
    %s2550 = sld [smem:[#allocation12 + $0x1fb]]
    %v2551 = vstv %s2550
    %v2552 = vmul.f32 %v2505, %v2551
    %v2553 = vadd.f32 %v2482, %v2552
    %s2554 = sld [smem:[#allocation12 + $0x1fc]]
    %v2555 = vstv %s2554
    %v2556 = vmul.f32 %v2505, %v2555
    %v2557 = vadd.f32 %v2486, %v2556
    %s2558 = sld [smem:[#allocation12 + $0x1fd]]
    %v2559 = vstv %s2558
    %v2560 = vmul.f32 %v2505, %v2559
    %v2561 = vadd.f32 %v2490, %v2560
    %s2562 = sld [smem:[#allocation12 + $0x1fe]]
    %v2563 = vstv %s2562
    %v2564 = vmul.f32 %v2505, %v2563
    %v2565 = vadd.f32 %v2494, %v2564
    %s2566 = sld [smem:[#allocation12 + $0x1ff]]
    %v2567 = vstv %s2566
    %v2568 = vmul.f32 %v2505, %v2567
    %v2569 = vadd.f32 %v2498, %v2568
    %v2570 = vstv %s141
    %v2571 = vmax.f32 %v2509, 0.0
    %s2572 = sld [smem:[#allocation15]]
    %v2573 = vstv %s2572
    %v2574 = vmul.f32 %v2571, %v2573
    %v2575 = vadd.f32 %v2570, %v2574
    %v2576 = vmax.f32 %v2513, 0.0
    %s2577 = sld [smem:[#allocation15 + $0x1]]
    %v2578 = vstv %s2577
    %v2579 = vmul.f32 %v2576, %v2578
    %v2580 = vadd.f32 %v2575, %v2579
    %v2581 = vmax.f32 %v2517, 0.0
    %s2582 = sld [smem:[#allocation15 + $0x2]]
    %v2583 = vstv %s2582
    %v2584 = vmul.f32 %v2581, %v2583
    %v2585 = vadd.f32 %v2580, %v2584
    %v2586 = vmax.f32 %v2521, 0.0
    %s2587 = sld [smem:[#allocation15 + $0x3]]
    %v2588 = vstv %s2587
    %v2589 = vmul.f32 %v2586, %v2588
    %v2590 = vadd.f32 %v2585, %v2589
    %v2591 = vmax.f32 %v2525, 0.0
    %s2592 = sld [smem:[#allocation15 + $0x4]]
    %v2593 = vstv %s2592
    %v2594 = vmul.f32 %v2591, %v2593
    %v2595 = vadd.f32 %v2590, %v2594
    %v2596 = vmax.f32 %v2529, 0.0
    %s2597 = sld [smem:[#allocation15 + $0x5]]
    %v2598 = vstv %s2597
    %v2599 = vmul.f32 %v2596, %v2598
    %v2600 = vadd.f32 %v2595, %v2599
    %v2601 = vmax.f32 %v2533, 0.0
    %s2602 = sld [smem:[#allocation15 + $0x6]]
    %v2603 = vstv %s2602
    %v2604 = vmul.f32 %v2601, %v2603
    %v2605 = vadd.f32 %v2600, %v2604
    %v2606 = vmax.f32 %v2537, 0.0
    %s2607 = sld [smem:[#allocation15 + $0x7]]
    %v2608 = vstv %s2607
    %v2609 = vmul.f32 %v2606, %v2608
    %v2610 = vadd.f32 %v2605, %v2609
    %v2611 = vmax.f32 %v2541, 0.0
    %s2612 = sld [smem:[#allocation15 + $0x8]]
    %v2613 = vstv %s2612
    %v2614 = vmul.f32 %v2611, %v2613
    %v2615 = vadd.f32 %v2610, %v2614
    %v2616 = vmax.f32 %v2545, 0.0
    %s2617 = sld [smem:[#allocation15 + $0x9]]
    %v2618 = vstv %s2617
    %v2619 = vmul.f32 %v2616, %v2618
    %v2620 = vadd.f32 %v2615, %v2619
    %v2621 = vmax.f32 %v2549, 0.0
    %s2622 = sld [smem:[#allocation15 + $0xa]]
    %v2623 = vstv %s2622
    %v2624 = vmul.f32 %v2621, %v2623
    %v2625 = vadd.f32 %v2620, %v2624
    %v2626 = vmax.f32 %v2553, 0.0
    %s2627 = sld [smem:[#allocation15 + $0xb]]
    %v2628 = vstv %s2627
    %v2629 = vmul.f32 %v2626, %v2628
    %v2630 = vadd.f32 %v2625, %v2629
    %v2631 = vmax.f32 %v2557, 0.0
    %s2632 = sld [smem:[#allocation15 + $0xc]]
    %v2633 = vstv %s2632
    %v2634 = vmul.f32 %v2631, %v2633
    %v2635 = vadd.f32 %v2630, %v2634
    %v2636 = vmax.f32 %v2561, 0.0
    %s2637 = sld [smem:[#allocation15 + $0xd]]
    %v2638 = vstv %s2637
    %v2639 = vmul.f32 %v2636, %v2638
    %v2640 = vadd.f32 %v2635, %v2639
    %v2641 = vmax.f32 %v2565, 0.0
    %s2642 = sld [smem:[#allocation15 + $0xe]]
    %v2643 = vstv %s2642
    %v2644 = vmul.f32 %v2641, %v2643
    %v2645 = vadd.f32 %v2640, %v2644
    %v2646 = vmax.f32 %v2569, 0.0
    %s2647 = sld [smem:[#allocation15 + $0xf]]
    %v2648 = vstv %s2647
    %v2649 = vmul.f32 %v2646, %v2648
    %v2650 = vadd.f32 %v2645, %v2649
    %v2651 = vtanh.pop %v2650
    %v2652 = vstv %s140
    %v2653 = vmul.f32 %v2652, %v2651
    %v2654 = vadd.f32 %v265, %v2653
    %v2655 = vmax.f32 %v2654, 1e-06
    %v2656 = vmin.f32 %v2655, 1.0
    %2657 = vst [vmem:[#allocation18] sm:$0xff] %v2656
    // Predicated region
    $region74: #{tpu_custom_call.1} parent=1 // pred_check
      _
    $region75: #{tpu_custom_call.1} parent=1 // pred_check_branch
      %2659 = sbr.rel (0) target = $region77
    $region76: #{tpu_custom_call.1} parent=1 // pred_region
      %s2661 = ssub.s32 128, 128
      %2662 = vsyncadd [#allocation4], %s2661
      %s2664 = sshll.u32 [#allocation18], 4
      %s2665 = int_to_ptr.vmem [resolvable:$true] %s2664
      %2667 = dma.vmem_to_hbm [thread:$0]  %s2665, 128, %s9, [#allocation4]
    $region77: #{tpu_custom_call.1} parent=1 // pred_fallthru
      _
    // Predicated region
    $region78: #{tpu_custom_call.1} parent=1 // pred_check
      _
    $region79: #{tpu_custom_call.1} parent=1 // pred_check_branch
      %2669 = sbr.rel (0) target = $region81
    $region80: #{tpu_custom_call.1} parent=1 // pred_region
      %2670 = dma.done [#allocation4], 128
    $region81: #{tpu_custom_call.1} parent=1 // pred_fallthru
      _
    %2671 = vsyncpa [#allocation3], 1
    %2672 = vsyncpa [#allocation4], 1
    %2673 = vsyncpa [#allocation5], 1
    %2674 = vsyncpa [#allocation8], 1
    %2675 = vsyncpa [#allocation11], 1
    %2676 = vsyncpa [#allocation14], 1
    %2677 = vsyncpa [#allocation17], 1

</llo_original>
